<compile_context>
chip_gen: v7x
topology: tpu7x:2x2x1
jax: 0.10.0
libtpu: 0.0.40
codegen_flags: <defaults>
</compile_context>

<pallas_src>
import jax
import jax.numpy as jnp
from jax.experimental import pallas as pl
from jax.experimental.pallas import tpu as pltpu

IN_FEATURES = 5984   # 1 * 44 * 136, matches nn.Linear(5984, 500)
HIDDEN = 500
CLASSES = 8

H_PAD = 512          # HIDDEN padded to a lane-clean 512 (extra cols/rows are zero)
K_PAD = 6016         # 47 * 128: smallest lane-aligned pad of 5984 (single full-K tile)


def _num_tensorcores():
    """2 on v7x (two TensorCores per chip), else 1. Safe fallback = 1 (correct everywhere)."""
    try:
        kind = jax.devices()[0].device_kind.lower()
        if "v7" in kind:
            return 2
    except Exception:
        pass
    return 1


N_SPLIT = _num_tensorcores()   # hidden-half split only pays off with 2 TensorCores
H_HALF = H_PAD // N_SPLIT


def _make_kernel(n_split):
    def kernel(x_ref, w1_ref, b1_ref, w2_ref, b2_ref, o_ref):
        # fc1: (B, K_PAD) bf16 @ (K_PAD, H_HALF) bf16 -> f32 accumulation on the MXU.
        h = jnp.dot(x_ref[...], w1_ref[...], preferred_element_type=jnp.float32)
        h = h + b1_ref[...]                       # (B, H_HALF); no activation in torch code
        # fc2 partial for this hidden half (tiny, f32).
        out = jnp.dot(h, w2_ref[...], preferred_element_type=jnp.float32)

        if n_split == 1:
            o_ref[...] = (out + b2_ref[...]).astype(o_ref.dtype)
        else:
            half = pl.program_id(0)

            @pl.when(half == 0)
            def _():
                o_ref[...] = (out + b2_ref[...]).astype(o_ref.dtype)

            @pl.when(half != 0)
            def _():
                o_ref[...] = out.astype(o_ref.dtype)

    return kernel


def prepare_params(w1_t, b1, w2_t, b2):
    """One-time (parameter-load time) padding / layout / dtype prep.

    W1 -> bf16, padded to (K_PAD, H_PAD), pre-split into contiguous per-half slabs
    (N_SPLIT, K_PAD, H_HALF). b1 / W2 / b2 stay f32 (tiny). All padding is zero,
    hence matmul-neutral. NOT part of the per-call hot path.
    """
    w1_p = jnp.zeros((K_PAD, H_PAD), jnp.float32)
    w1_p = w1_p.at[:IN_FEATURES, :HIDDEN].set(w1_t.astype(jnp.float32))
    w1_p = w1_p.reshape(K_PAD, N_SPLIT, H_HALF).transpose(1, 0, 2)   # (N_SPLIT, K_PAD, H_HALF)
    w1_p = w1_p.astype(jnp.bfloat16)

    b1_p = jnp.zeros((1, H_PAD), jnp.float32).at[0, :HIDDEN].set(b1.astype(jnp.float32))
    w2_p = jnp.zeros((H_PAD, CLASSES), jnp.float32).at[:HIDDEN, :].set(w2_t.astype(jnp.float32))
    b2_p = b2.astype(jnp.float32).reshape(1, CLASSES)
    return w1_p, b1_p, w2_p, b2_p


@jax.jit
def cnn_model_forward(x, w1_p, b1_p, w2_p, b2_p):
    """x: (B, C, H, W) with C*H*W == IN_FEATURES. Params from prepare_params().

    Returns (B, CLASSES) f32 logits matching the PyTorch forward() (bf16 weights/activations
    into fc1, f32 accumulation).
    """
    B = x.shape[0]
    x_flat = x.reshape(B, -1).astype(jnp.bfloat16)          # same flatten as torch .reshape
    x_p = jnp.pad(x_flat, ((0, 0), (0, K_PAD - IN_FEATURES)))   # only ~24 KB padded per call

    grid_spec = pltpu.PrefetchScalarGridSpec(
        num_scalar_prefetch=0,
        grid=(N_SPLIT,),
        in_specs=[
            # x: one resident (B, K_PAD) block, constant index_map -> DMA'd once per call.
            pl.BlockSpec((B, K_PAD), lambda n: (0, 0)),
            # W1 half n: one contiguous (K_PAD, H_HALF) slab, single linear DMA.
            pl.BlockSpec((None, K_PAD, H_HALF), lambda n: (n, 0, 0)),
            # b1 columns for this half.
            pl.BlockSpec((1, H_HALF), lambda n: (0, n)),
            # W2 rows for this half.
            pl.BlockSpec((H_HALF, CLASSES), lambda n: (n, 0)),
            # b2 (added in-kernel; half 0 only when split).
            pl.BlockSpec((1, CLASSES), lambda n: (0, 0)),
        ],
        out_specs=(
            pl.BlockSpec((B, CLASSES), lambda n: (0, 0))
            if N_SPLIT == 1
            else pl.BlockSpec((None, B, CLASSES), lambda n: (n, 0, 0))
        ),
    )
    out_shape = (
        jax.ShapeDtypeStruct((B, CLASSES), jnp.float32)
        if N_SPLIT == 1
        else jax.ShapeDtypeStruct((N_SPLIT, B, CLASSES), jnp.float32)
    )

    result = pl.pallas_call(
        _make_kernel(N_SPLIT),
        out_shape=out_shape,
        grid_spec=grid_spec,
        compiler_params=pltpu.CompilerParams(
            # Hidden-half axis is independent (shardable across v7x's two TensorCores).
            dimension_semantics=("parallel",),
            vmem_limit_bytes=40 * 1024 * 1024,
        ),
    )(x_p, w1_p, b1_p, w2_p, b2_p)

    if N_SPLIT == 1:
        return result                      # b2 already folded in; no epilogue at all
    return result.sum(axis=0)              # tiny recombine of the two per-core halves


def init_params(key):
    """Deterministic init mimicking nn.Linear's U(-1/sqrt(fan_in), 1/sqrt(fan_in)).

    Weights stored transposed as (in_features, out_features).
    """
    k1, k2, k3, k4 = jax.random.split(key, 4)
    bound1 = 1.0 / jnp.sqrt(IN_FEATURES)
    bound2 = 1.0 / jnp.sqrt(HIDDEN)
    w1_t = jax.random.uniform(k1, (IN_FEATURES, HIDDEN), jnp.float32, -bound1, bound1)
    b1 = jax.random.uniform(k2, (HIDDEN,), jnp.float32, -bound1, bound1)
    w2_t = jax.random.uniform(k3, (HIDDEN, CLASSES), jnp.float32, -bound2, bound2)
    b2 = jax.random.uniform(k4, (CLASSES,), jnp.float32, -bound2, bound2)
    return w1_t, b1, w2_t, b2


if __name__ == "__main__":
    key = jax.random.PRNGKey(0)
    k_x, k_p = jax.random.split(key)

    # Small batch; spatial shape chosen so C*H*W == 5984 (required by fc1).
    B, C, H, W = 2, 1, 44, 136
    x = jax.random.normal(k_x, (B, C, H, W), jnp.float32)

    w1_t, b1, w2_t, b2 = init_params(k_p)
    params = prepare_params(w1_t, b1, w2_t, b2)   # one-time layout/dtype prep

    out = jax.block_until_ready(cnn_model_forward(x, *params))
    assert out.shape == (B, CLASSES)

    x_flat = x.reshape(B, -1)
    # Reference matched to the kernel's numerics (bf16 fc1 inputs, f32 accumulation).
    h_ref = jnp.dot(
        x_flat.astype(jnp.bfloat16), w1_t.astype(jnp.bfloat16),
        preferred_element_type=jnp.float32,
    ) + b1
    ref_bf16 = h_ref @ w2_t + b2
    assert jnp.allclose(out, ref_bf16, atol=5e-3, rtol=5e-3), "mismatch vs bf16-matched reference"

    # Loose sanity check against the exact f32 PyTorch-equivalent math.
    ref_f32 = (x_flat @ w1_t + b1) @ w2_t + b2
    assert jnp.allclose(out, ref_f32, atol=5e-2, rtol=5e-2), "mismatch vs f32 reference"

    print("KERNEL_OK")
</pallas_src>

<mosaic_0001>
module attributes {stable_mosaic.version = 11 : i64} {
  func.func @kernel(%arg0: i32, %arg1: memref<2x6016xbf16, #tpu.memory_space<vmem>>, %arg2: memref<1x6016x512xbf16, #tpu.memory_space<vmem>>, %arg3: memref<1x512xf32, #tpu.memory_space<vmem>>, %arg4: memref<512x8xf32, #tpu.memory_space<vmem>>, %arg5: memref<1x8xf32, #tpu.memory_space<vmem>>, %arg6: memref<2x8xf32, #tpu.memory_space<vmem>>) attributes {dimension_semantics = [#tpu.dimension_semantics<parallel>], iteration_bounds = array<i64: 1>, scalar_prefetch = 0 : i64, scratch_operands = 0 : i64, tpu.core_type = #tpu.core_type<tc>, window_params = [{pipeline_mode = #tpu.pipeline_mode<synchronous>, transform_indices = @transform_0, window_bounds = array<i64: 2, 6016>}, {transform_indices = @transform_1, window_bounds = array<i64: 1, 6016, 512>}, {transform_indices = @transform_2, window_bounds = array<i64: 1, 512>}, {transform_indices = @transform_3, window_bounds = array<i64: 512, 8>}, {pipeline_mode = #tpu.pipeline_mode<synchronous>, transform_indices = @transform_4, window_bounds = array<i64: 1, 8>}, {pipeline_mode = #tpu.pipeline_mode<synchronous>, transform_indices = @transform_5, window_bounds = array<i64: 2, 8>}]} {
    %c0 = arith.constant 0 : index
    %c0_0 = arith.constant 0 : index
    %0 = vector.load %arg1[%c0, %c0_0] : memref<2x6016xbf16, #tpu.memory_space<vmem>>, vector<2x6016xbf16>
    %c0_1 = arith.constant 0 : index
    %c0_2 = arith.constant 0 : index
    %c0_3 = arith.constant 0 : index
    %1 = vector.load %arg2[%c0_1, %c0_2, %c0_3] : memref<1x6016x512xbf16, #tpu.memory_space<vmem>>, vector<1x6016x512xbf16>
    %2 = vector.shape_cast %1 : vector<1x6016x512xbf16> to vector<6016x512xbf16>
    %cst = arith.constant dense<0.000000e+00> : vector<2x512xf32>
    %3 = tpu.matmul %0, %2, %cst {dimension_numbers = #tpu.dot_dimension_numbers<[1], [0], [0], [1], [0, 0, 1, 1], [], []>} : vector<2x6016xbf16>, vector<6016x512xbf16>, vector<2x512xf32> -> vector<2x512xf32>
    %c0_4 = arith.constant 0 : index
    %c0_5 = arith.constant 0 : index
    %4 = vector.load %arg3[%c0_4, %c0_5] : memref<1x512xf32, #tpu.memory_space<vmem>>, vector<1x512xf32>
    %5 = vector.broadcast %4 : vector<1x512xf32> to vector<2x512xf32>
    %6 = arith.addf %3, %5 : vector<2x512xf32>
    %c0_6 = arith.constant 0 : index
    %c0_7 = arith.constant 0 : index
    %7 = vector.load %arg4[%c0_6, %c0_7] : memref<512x8xf32, #tpu.memory_space<vmem>>, vector<512x8xf32>
    %cst_8 = arith.constant dense<0.000000e+00> : vector<2x8xf32>
    %8 = tpu.matmul %6, %7, %cst_8 {dimension_numbers = #tpu.dot_dimension_numbers<[1], [0], [0], [1], [0, 0, 1, 1], [], []>} : vector<2x512xf32>, vector<512x8xf32>, vector<2x8xf32> -> vector<2x8xf32>
    %c0_9 = arith.constant 0 : index
    %c0_10 = arith.constant 0 : index
    %9 = vector.load %arg5[%c0_9, %c0_10] : memref<1x8xf32, #tpu.memory_space<vmem>>, vector<1x8xf32>
    %10 = vector.broadcast %9 : vector<1x8xf32> to vector<2x8xf32>
    %11 = arith.addf %8, %10 : vector<2x8xf32>
    %c0_11 = arith.constant 0 : index
    %c0_12 = arith.constant 0 : index
    %12 = vector.load %arg6[%c0_11, %c0_12] : memref<2x8xf32, #tpu.memory_space<vmem>>, vector<2x8xf32>
    tpu.vector_store %arg6[%c0_11, %c0_12], %11 {strides = array<i32>} : memref<2x8xf32, #tpu.memory_space<vmem>>, vector<2x8xf32>,
    return
  }
  func.func @transform_0(%arg0: i32) -> (i32, i32) {
    %c0_i32 = arith.constant 0 : i32
    %c0_i32_0 = arith.constant 0 : i32
    %c0_i32_1 = arith.constant 0 : i32
    return %c0_i32, %c0_i32_0 : i32, i32
  }
  func.func @transform_1(%arg0: i32) -> (i32, i32, i32) {
    %c0_i32 = arith.constant 0 : i32
    %c0_i32_0 = arith.constant 0 : i32
    %c0_i32_1 = arith.constant 0 : i32
    return %arg0, %c0_i32, %c0_i32_0 : i32, i32, i32
  }
  func.func @transform_2(%arg0: i32) -> (i32, i32) {
    %c0_i32 = arith.constant 0 : i32
    %c0_i32_0 = arith.constant 0 : i32
    return %c0_i32, %arg0 : i32, i32
  }
  func.func @transform_3(%arg0: i32) -> (i32, i32) {
    %c0_i32 = arith.constant 0 : i32
    %c0_i32_0 = arith.constant 0 : i32
    return %arg0, %c0_i32 : i32, i32
  }
  func.func @transform_4(%arg0: i32) -> (i32, i32) {
    %c0_i32 = arith.constant 0 : i32
    %c0_i32_0 = arith.constant 0 : i32
    %c0_i32_1 = arith.constant 0 : i32
    return %c0_i32, %c0_i32_0 : i32, i32
  }
  func.func @transform_5(%arg0: i32) -> (i32, i32) {
    %c0_i32 = arith.constant 0 : i32
    %c0_i32_0 = arith.constant 0 : i32
    %c0_i32_1 = arith.constant 0 : i32
    return %c0_i32, %c0_i32_0 : i32, i32
  }
}

</mosaic_0001>

<llo_original>
// kernel: cnn_model_forward.1
$region0: #{cnn_model_forward.1}
  #allocation0 [shape = 'u32[]', space=smem, size = 0x4, offset = 0x4, fixed_abs, tag = 'smem constant byte address 0x4 - core index']
  #allocation1 [shape = 'u32[144,128]{1,0:T(1,128)}', space=vmem, size = 0x12000, scoped, tag = 'internal scratch']
  %s0 = inlined_call_operand.vmem [shape: bf16[2,6016], index: 0, kind: input, shape index: {}]
  %s1 = inlined_call_operand.hbm [shape: bf16[1,6016,512], index: 1, kind: input, shape index: {}]
  %s2 = inlined_call_operand.hbm [shape: f32[1,512], index: 2, kind: input, shape index: {}]
  %s3 = inlined_call_operand.vmem [shape: f32[512,8], index: 3, kind: input, shape index: {}]
  %s4 = inlined_call_operand.hbm [shape: f32[1,8], index: 4, kind: input, shape index: {}]
  %s5 = inlined_call_operand.hbm [shape: f32[2,8], index: 5, kind: output, shape index: {}]
  %s6 = sld [smem:[#allocation0]]
  $region42: #{cnn_model_forward.1} parent=0
    _
  %s8 = ssub.s32 1, %s6
  %s9 = scalar_select 0, %s8, %s6
  $region1: #{cnn_model_forward.1} parent=0
    #allocation2 [shape = 'u8[6160384]{0}', space=vmem, size = 0x5e0000, scoped, tag = 'input window, operand 1, single buffered']
    #allocation3 [shape = 's32[1]{0}', space=sflag, size = 0x4, scoped, tag = 'scoped memory for cnn_model_forward.1']
    #allocation4 [shape = 's32[1]{0}', space=sflag, size = 0x4, scoped, tag = 'scoped memory for cnn_model_forward.1']
    #allocation5 [shape = 'u8[2048]{0}', space=vmem, size = 0x800, scoped, tag = 'input window, operand 2, single buffered']
    #allocation6 [shape = 's32[1]{0}', space=sflag, size = 0x4, scoped, tag = 'scoped memory for cnn_model_forward.1']
    #allocation7 [shape = 'u8[512]{0}', space=vmem, size = 0x400, scoped, tag = 'input window, operand 4, single buffered']
    #allocation8 [shape = 'u8[1024]{0}', space=vmem, size = 0x400, scoped, tag = 'output window, operand 0, single buffered']
    %10 = vsyncpa [#allocation3], 0
    %11 = vsyncpa [#allocation6], 0
    %12 = vsyncpa [#allocation4], 0
    // Predicated region
    $region2: #{cnn_model_forward.1} parent=1 // pred_check
      _
    $region3: #{cnn_model_forward.1} parent=1 // pred_check_branch
      %14 = sbr.rel (0) target = $region5
    $region4: #{cnn_model_forward.1} parent=1 // pred_region
      _
    $region5: #{cnn_model_forward.1} parent=1 // pred_fallthru
      _
    // Predicated region
    $region6: #{cnn_model_forward.1} parent=1 // pred_check
      _
    $region7: #{cnn_model_forward.1} parent=1 // pred_check_branch
      %16 = sbr.rel (0) target = $region9
    $region8: #{cnn_model_forward.1} parent=1 // pred_region
      %s18 = ssub.s32 192512, 192512
      %19 = vsyncadd [#allocation3], %s18
      %s20 = sshll.u32 [#allocation2], 4
      %s21 = int_to_ptr.vmem [resolvable:$true] %s20
      %26 = dma.hbm_to_vmem [thread:$0]  %s1, 192512, %s21, [#allocation3], 256, 256, 16
    $region9: #{cnn_model_forward.1} parent=1 // pred_fallthru
      _
    // Predicated region
    $region10: #{cnn_model_forward.1} parent=1 // pred_check
      _
    $region11: #{cnn_model_forward.1} parent=1 // pred_check_branch
      %28 = sbr.rel (0) target = $region13
    $region12: #{cnn_model_forward.1} parent=1 // pred_region
      %s30 = ssub.s32 64, 64
      %31 = vsyncadd [#allocation6], %s30
      %s33 = sshll.u32 [#allocation5], 4
      %s34 = int_to_ptr.vmem [resolvable:$true] %s33
      %36 = dma.hbm_to_vmem [thread:$0]  %s2, 64, %s34, [#allocation6]
    $region13: #{cnn_model_forward.1} parent=1 // pred_fallthru
      _
    // Predicated region
    $region14: #{cnn_model_forward.1} parent=1 // pred_check
      _
    $region15: #{cnn_model_forward.1} parent=1 // pred_check_branch
      %38 = sbr.rel (0) target = $region17
    $region16: #{cnn_model_forward.1} parent=1 // pred_region
      _
    $region17: #{cnn_model_forward.1} parent=1 // pred_fallthru
      _
    // Predicated region
    $region18: #{cnn_model_forward.1} parent=1 // pred_check
      _
    $region19: #{cnn_model_forward.1} parent=1 // pred_check_branch
      %40 = sbr.rel (0) target = $region21
    $region20: #{cnn_model_forward.1} parent=1 // pred_region
      %s42 = ssub.s32 16, 16
      %43 = vsyncadd [#allocation6], %s42
      %s45 = sshll.u32 [#allocation7], 4
      %s46 = int_to_ptr.vmem [resolvable:$true] %s45
      %48 = dma.hbm_to_vmem [thread:$0]  %s4, 16, %s46, [#allocation6]
    $region21: #{cnn_model_forward.1} parent=1 // pred_fallthru
      _
    // Predicated region
    $region22: #{cnn_model_forward.1} parent=1 // pred_check
      _
    $region23: #{cnn_model_forward.1} parent=1 // pred_check_branch
      %50 = sbr.rel (0) target = $region25
    $region24: #{cnn_model_forward.1} parent=1 // pred_region
      %51 = dma.done [#allocation3], 192512
    $region25: #{cnn_model_forward.1} parent=1 // pred_fallthru
      _
    // Predicated region
    $region26: #{cnn_model_forward.1} parent=1 // pred_check
      _
    $region27: #{cnn_model_forward.1} parent=1 // pred_check_branch
      %53 = sbr.rel (0) target = $region29
    $region28: #{cnn_model_forward.1} parent=1 // pred_region
      %54 = dma.done [#allocation6], 64
    $region29: #{cnn_model_forward.1} parent=1 // pred_fallthru
      _
    // Predicated region
    $region30: #{cnn_model_forward.1} parent=1 // pred_check
      _
    $region31: #{cnn_model_forward.1} parent=1 // pred_check_branch
      %56 = sbr.rel (0) target = $region33
    $region32: #{cnn_model_forward.1} parent=1 // pred_region
      %57 = dma.done [#allocation6], 16
    $region33: #{cnn_model_forward.1} parent=1 // pred_fallthru
      _
    %v59 = vld [vmem:[%s0] sm:$0xff]
    %v60 = vld [vmem:[%s0 + $0x8] sm:$0xff]
    %v61 = vld [vmem:[%s0 + $0x10] sm:$0xff]
    %v62 = vld [vmem:[%s0 + $0x18] sm:$0xff]
    %v63 = vld [vmem:[%s0 + $0x20] sm:$0xff]
    %v64 = vld [vmem:[%s0 + $0x28] sm:$0x7f]
    %v65 = vld [vmem:[#allocation2] sm:$0xff]
    %v66 = vld [vmem:[#allocation2 + $0x8] sm:$0xff]
    %v67 = vld [vmem:[#allocation2 + $0x10] sm:$0xff]
    %v68 = vld [vmem:[#allocation2 + $0x18] sm:$0xff]
    %v69 = vld [vmem:[#allocation2 + $0x20] sm:$0xff]
    %v70 = vld [vmem:[#allocation2 + $0x28] sm:$0xff]
    %v71 = vld [vmem:[#allocation2 + $0x30] sm:$0xff]
    %v72 = vld [vmem:[#allocation2 + $0x38] sm:$0xff]
    %v73 = vld [vmem:[#allocation2 + $0x40] sm:$0xff]
    %v74 = vld [vmem:[#allocation2 + $0x48] sm:$0xff]
    %v75 = vld [vmem:[#allocation2 + $0x50] sm:$0xff]
    %v76 = vld [vmem:[#allocation2 + $0x58] sm:$0xff]
    %v77 = vld [vmem:[#allocation2 + $0x60] sm:$0xff]
    %v78 = vld [vmem:[#allocation2 + $0x68] sm:$0xff]
    %v79 = vld [vmem:[#allocation2 + $0x70] sm:$0xff]
    %v80 = vld [vmem:[#allocation2 + $0x78] sm:$0xff]
    %v81 = vld [vmem:[#allocation2 + $0x80] sm:$0xff]
    %v82 = vld [vmem:[#allocation2 + $0x88] sm:$0xff]
    %v83 = vld [vmem:[#allocation2 + $0x90] sm:$0xff]
    %v84 = vld [vmem:[#allocation2 + $0x98] sm:$0xff]
    %v85 = vld [vmem:[#allocation2 + $0xa0] sm:$0xff]
    %v86 = vld [vmem:[#allocation2 + $0xa8] sm:$0xff]
    %v87 = vld [vmem:[#allocation2 + $0xb0] sm:$0xff]
    %v88 = vld [vmem:[#allocation2 + $0xb8] sm:$0xff]
    %v89 = vld [vmem:[#allocation2 + $0xc0] sm:$0xff]
    %v90 = vld [vmem:[#allocation2 + $0xc8] sm:$0xff]
    %v91 = vld [vmem:[#allocation2 + $0xd0] sm:$0xff]
    %v92 = vld [vmem:[#allocation2 + $0xd8] sm:$0xff]
    %v93 = vld [vmem:[#allocation2 + $0xe0] sm:$0xff]
    %v94 = vld [vmem:[#allocation2 + $0xe8] sm:$0xff]
    %v95 = vld [vmem:[#allocation2 + $0xf0] sm:$0xff]
    %v96 = vld [vmem:[#allocation2 + $0xf8] sm:$0xff]
    %v97 = vld [vmem:[#allocation2 + $0x100] sm:$0xff]
    %v98 = vld [vmem:[#allocation2 + $0x108] sm:$0xff]
    %v99 = vld [vmem:[#allocation2 + $0x110] sm:$0xff]
    %v100 = vld [vmem:[#allocation2 + $0x118] sm:$0xff]
    %v101 = vld [vmem:[#allocation2 + $0x120] sm:$0xff]
    %v102 = vld [vmem:[#allocation2 + $0x128] sm:$0xff]
    %v103 = vld [vmem:[#allocation2 + $0x130] sm:$0xff]
    %v104 = vld [vmem:[#allocation2 + $0x138] sm:$0xff]
    %v105 = vld [vmem:[#allocation2 + $0x140] sm:$0xff]
    %v106 = vld [vmem:[#allocation2 + $0x148] sm:$0xff]
    %v107 = vld [vmem:[#allocation2 + $0x150] sm:$0xff]
    %v108 = vld [vmem:[#allocation2 + $0x158] sm:$0xff]
    %v109 = vld [vmem:[#allocation2 + $0x160] sm:$0xff]
    %v110 = vld [vmem:[#allocation2 + $0x168] sm:$0xff]
    %v111 = vld [vmem:[#allocation2 + $0x170] sm:$0xff]
    %v112 = vld [vmem:[#allocation2 + $0x178] sm:$0xff]
    %v113 = vld [vmem:[#allocation2 + $0x180] sm:$0xff]
    %v114 = vld [vmem:[#allocation2 + $0x188] sm:$0xff]
    %v115 = vld [vmem:[#allocation2 + $0x190] sm:$0xff]
    %v116 = vld [vmem:[#allocation2 + $0x198] sm:$0xff]
    %v117 = vld [vmem:[#allocation2 + $0x1a0] sm:$0xff]
    %v118 = vld [vmem:[#allocation2 + $0x1a8] sm:$0xff]
    %v119 = vld [vmem:[#allocation2 + $0x1b0] sm:$0xff]
    %v120 = vld [vmem:[#allocation2 + $0x1b8] sm:$0xff]
    %v121 = vld [vmem:[#allocation2 + $0x1c0] sm:$0xff]
    %v122 = vld [vmem:[#allocation2 + $0x1c8] sm:$0xff]
    %v123 = vld [vmem:[#allocation2 + $0x1d0] sm:$0xff]
    %v124 = vld [vmem:[#allocation2 + $0x1d8] sm:$0xff]
    %v125 = vld [vmem:[#allocation2 + $0x1e0] sm:$0xff]
    %v126 = vld [vmem:[#allocation2 + $0x1e8] sm:$0xff]
    %v127 = vld [vmem:[#allocation2 + $0x1f0] sm:$0xff]
    %v128 = vld [vmem:[#allocation2 + $0x1f8] sm:$0xff]
    %v129 = vld [vmem:[#allocation2 + $0x200] sm:$0xff]
    %v130 = vld [vmem:[#allocation2 + $0x208] sm:$0xff]
    %v131 = vld [vmem:[#allocation2 + $0x210] sm:$0xff]
    %v132 = vld [vmem:[#allocation2 + $0x218] sm:$0xff]
    %v133 = vld [vmem:[#allocation2 + $0x220] sm:$0xff]
    %v134 = vld [vmem:[#allocation2 + $0x228] sm:$0xff]
    %v135 = vld [vmem:[#allocation2 + $0x230] sm:$0xff]
    %v136 = vld [vmem:[#allocation2 + $0x238] sm:$0xff]
    %v137 = vld [vmem:[#allocation2 + $0x240] sm:$0xff]
    %v138 = vld [vmem:[#allocation2 + $0x248] sm:$0xff]
    %v139 = vld [vmem:[#allocation2 + $0x250] sm:$0xff]
    %v140 = vld [vmem:[#allocation2 + $0x258] sm:$0xff]
    %v141 = vld [vmem:[#allocation2 + $0x260] sm:$0xff]
    %v142 = vld [vmem:[#allocation2 + $0x268] sm:$0xff]
    %v143 = vld [vmem:[#allocation2 + $0x270] sm:$0xff]
    %v144 = vld [vmem:[#allocation2 + $0x278] sm:$0xff]
    %v145 = vld [vmem:[#allocation2 + $0x280] sm:$0xff]
    %v146 = vld [vmem:[#allocation2 + $0x288] sm:$0xff]
    %v147 = vld [vmem:[#allocation2 + $0x290] sm:$0xff]
    %v148 = vld [vmem:[#allocation2 + $0x298] sm:$0xff]
    %v149 = vld [vmem:[#allocation2 + $0x2a0] sm:$0xff]
    %v150 = vld [vmem:[#allocation2 + $0x2a8] sm:$0xff]
    %v151 = vld [vmem:[#allocation2 + $0x2b0] sm:$0xff]
    %v152 = vld [vmem:[#allocation2 + $0x2b8] sm:$0xff]
    %v153 = vld [vmem:[#allocation2 + $0x2c0] sm:$0xff]
    %v154 = vld [vmem:[#allocation2 + $0x2c8] sm:$0xff]
    %v155 = vld [vmem:[#allocation2 + $0x2d0] sm:$0xff]
    %v156 = vld [vmem:[#allocation2 + $0x2d8] sm:$0xff]
    %v157 = vld [vmem:[#allocation2 + $0x2e0] sm:$0xff]
    %v158 = vld [vmem:[#allocation2 + $0x2e8] sm:$0xff]
    %v159 = vld [vmem:[#allocation2 + $0x2f0] sm:$0xff]
    %v160 = vld [vmem:[#allocation2 + $0x2f8] sm:$0xff]
    %v161 = vld [vmem:[#allocation2 + $0x300] sm:$0xff]
    %v162 = vld [vmem:[#allocation2 + $0x308] sm:$0xff]
    %v163 = vld [vmem:[#allocation2 + $0x310] sm:$0xff]
    %v164 = vld [vmem:[#allocation2 + $0x318] sm:$0xff]
    %v165 = vld [vmem:[#allocation2 + $0x320] sm:$0xff]
    %v166 = vld [vmem:[#allocation2 + $0x328] sm:$0xff]
    %v167 = vld [vmem:[#allocation2 + $0x330] sm:$0xff]
    %v168 = vld [vmem:[#allocation2 + $0x338] sm:$0xff]
    %v169 = vld [vmem:[#allocation2 + $0x340] sm:$0xff]
    %v170 = vld [vmem:[#allocation2 + $0x348] sm:$0xff]
    %v171 = vld [vmem:[#allocation2 + $0x350] sm:$0xff]
    %v172 = vld [vmem:[#allocation2 + $0x358] sm:$0xff]
    %v173 = vld [vmem:[#allocation2 + $0x360] sm:$0xff]
    %v174 = vld [vmem:[#allocation2 + $0x368] sm:$0xff]
    %v175 = vld [vmem:[#allocation2 + $0x370] sm:$0xff]
    %v176 = vld [vmem:[#allocation2 + $0x378] sm:$0xff]
    %v177 = vld [vmem:[#allocation2 + $0x380] sm:$0xff]
    %v178 = vld [vmem:[#allocation2 + $0x388] sm:$0xff]
    %v179 = vld [vmem:[#allocation2 + $0x390] sm:$0xff]
    %v180 = vld [vmem:[#allocation2 + $0x398] sm:$0xff]
    %v181 = vld [vmem:[#allocation2 + $0x3a0] sm:$0xff]
    %v182 = vld [vmem:[#allocation2 + $0x3a8] sm:$0xff]
    %v183 = vld [vmem:[#allocation2 + $0x3b0] sm:$0xff]
    %v184 = vld [vmem:[#allocation2 + $0x3b8] sm:$0xff]
    %v185 = vld [vmem:[#allocation2 + $0x3c0] sm:$0xff]
    %v186 = vld [vmem:[#allocation2 + $0x3c8] sm:$0xff]
    %v187 = vld [vmem:[#allocation2 + $0x3d0] sm:$0xff]
    %v188 = vld [vmem:[#allocation2 + $0x3d8] sm:$0xff]
    %v189 = vld [vmem:[#allocation2 + $0x3e0] sm:$0xff]
    %v190 = vld [vmem:[#allocation2 + $0x3e8] sm:$0xff]
    %v191 = vld [vmem:[#allocation2 + $0x3f0] sm:$0xff]
    %v192 = vld [vmem:[#allocation2 + $0x3f8] sm:$0xff]
    %v193 = vld [vmem:[#allocation2 + $0x400] sm:$0xff]
    %v194 = vld [vmem:[#allocation2 + $0x408] sm:$0xff]
    %v195 = vld [vmem:[#allocation2 + $0x410] sm:$0xff]
    %v196 = vld [vmem:[#allocation2 + $0x418] sm:$0xff]
    %v197 = vld [vmem:[#allocation2 + $0x420] sm:$0xff]
    %v198 = vld [vmem:[#allocation2 + $0x428] sm:$0xff]
    %v199 = vld [vmem:[#allocation2 + $0x430] sm:$0xff]
    %v200 = vld [vmem:[#allocation2 + $0x438] sm:$0xff]
    %v201 = vld [vmem:[#allocation2 + $0x440] sm:$0xff]
    %v202 = vld [vmem:[#allocation2 + $0x448] sm:$0xff]
    %v203 = vld [vmem:[#allocation2 + $0x450] sm:$0xff]
    %v204 = vld [vmem:[#allocation2 + $0x458] sm:$0xff]
    %v205 = vld [vmem:[#allocation2 + $0x460] sm:$0xff]
    %v206 = vld [vmem:[#allocation2 + $0x468] sm:$0xff]
    %v207 = vld [vmem:[#allocation2 + $0x470] sm:$0xff]
    %v208 = vld [vmem:[#allocation2 + $0x478] sm:$0xff]
    %v209 = vld [vmem:[#allocation2 + $0x480] sm:$0xff]
    %v210 = vld [vmem:[#allocation2 + $0x488] sm:$0xff]
    %v211 = vld [vmem:[#allocation2 + $0x490] sm:$0xff]
    %v212 = vld [vmem:[#allocation2 + $0x498] sm:$0xff]
    %v213 = vld [vmem:[#allocation2 + $0x4a0] sm:$0xff]
    %v214 = vld [vmem:[#allocation2 + $0x4a8] sm:$0xff]
    %v215 = vld [vmem:[#allocation2 + $0x4b0] sm:$0xff]
    %v216 = vld [vmem:[#allocation2 + $0x4b8] sm:$0xff]
    %v217 = vld [vmem:[#allocation2 + $0x4c0] sm:$0xff]
    %v218 = vld [vmem:[#allocation2 + $0x4c8] sm:$0xff]
    %v219 = vld [vmem:[#allocation2 + $0x4d0] sm:$0xff]
    %v220 = vld [vmem:[#allocation2 + $0x4d8] sm:$0xff]
    %v221 = vld [vmem:[#allocation2 + $0x4e0] sm:$0xff]
    %v222 = vld [vmem:[#allocation2 + $0x4e8] sm:$0xff]
    %v223 = vld [vmem:[#allocation2 + $0x4f0] sm:$0xff]
    %v224 = vld [vmem:[#allocation2 + $0x4f8] sm:$0xff]
    %v225 = vld [vmem:[#allocation2 + $0x500] sm:$0xff]
    %v226 = vld [vmem:[#allocation2 + $0x508] sm:$0xff]
    %v227 = vld [vmem:[#allocation2 + $0x510] sm:$0xff]
    %v228 = vld [vmem:[#allocation2 + $0x518] sm:$0xff]
    %v229 = vld [vmem:[#allocation2 + $0x520] sm:$0xff]
    %v230 = vld [vmem:[#allocation2 + $0x528] sm:$0xff]
    %v231 = vld [vmem:[#allocation2 + $0x530] sm:$0xff]
    %v232 = vld [vmem:[#allocation2 + $0x538] sm:$0xff]
    %v233 = vld [vmem:[#allocation2 + $0x540] sm:$0xff]
    %v234 = vld [vmem:[#allocation2 + $0x548] sm:$0xff]
    %v235 = vld [vmem:[#allocation2 + $0x550] sm:$0xff]
    %v236 = vld [vmem:[#allocation2 + $0x558] sm:$0xff]
    %v237 = vld [vmem:[#allocation2 + $0x560] sm:$0xff]
    %v238 = vld [vmem:[#allocation2 + $0x568] sm:$0xff]
    %v239 = vld [vmem:[#allocation2 + $0x570] sm:$0xff]
    %v240 = vld [vmem:[#allocation2 + $0x578] sm:$0xff]
    %v241 = vld [vmem:[#allocation2 + $0x580] sm:$0xff]
    %v242 = vld [vmem:[#allocation2 + $0x588] sm:$0xff]
    %v243 = vld [vmem:[#allocation2 + $0x590] sm:$0xff]
    %v244 = vld [vmem:[#allocation2 + $0x598] sm:$0xff]
    %v245 = vld [vmem:[#allocation2 + $0x5a0] sm:$0xff]
    %v246 = vld [vmem:[#allocation2 + $0x5a8] sm:$0xff]
    %v247 = vld [vmem:[#allocation2 + $0x5b0] sm:$0xff]
    %v248 = vld [vmem:[#allocation2 + $0x5b8] sm:$0xff]
    %v249 = vld [vmem:[#allocation2 + $0x5c0] sm:$0xff]
    %v250 = vld [vmem:[#allocation2 + $0x5c8] sm:$0xff]
    %v251 = vld [vmem:[#allocation2 + $0x5d0] sm:$0xff]
    %v252 = vld [vmem:[#allocation2 + $0x5d8] sm:$0xff]
    %v253 = vld [vmem:[#allocation2 + $0x5e0] sm:$0xff]
    %v254 = vld [vmem:[#allocation2 + $0x5e8] sm:$0xff]
    %v255 = vld [vmem:[#allocation2 + $0x5f0] sm:$0xff]
    %v256 = vld [vmem:[#allocation2 + $0x5f8] sm:$0xff]
    %v257 = vld [vmem:[#allocation2 + $0x600] sm:$0xff]
    %v258 = vld [vmem:[#allocation2 + $0x608] sm:$0xff]
    %v259 = vld [vmem:[#allocation2 + $0x610] sm:$0xff]
    %v260 = vld [vmem:[#allocation2 + $0x618] sm:$0xff]
    %v261 = vld [vmem:[#allocation2 + $0x620] sm:$0xff]
    %v262 = vld [vmem:[#allocation2 + $0x628] sm:$0xff]
    %v263 = vld [vmem:[#allocation2 + $0x630] sm:$0xff]
    %v264 = vld [vmem:[#allocation2 + $0x638] sm:$0xff]
    %v265 = vld [vmem:[#allocation2 + $0x640] sm:$0xff]
    %v266 = vld [vmem:[#allocation2 + $0x648] sm:$0xff]
    %v267 = vld [vmem:[#allocation2 + $0x650] sm:$0xff]
    %v268 = vld [vmem:[#allocation2 + $0x658] sm:$0xff]
    %v269 = vld [vmem:[#allocation2 + $0x660] sm:$0xff]
    %v270 = vld [vmem:[#allocation2 + $0x668] sm:$0xff]
    %v271 = vld [vmem:[#allocation2 + $0x670] sm:$0xff]
    %v272 = vld [vmem:[#allocation2 + $0x678] sm:$0xff]
    %v273 = vld [vmem:[#allocation2 + $0x680] sm:$0xff]
    %v274 = vld [vmem:[#allocation2 + $0x688] sm:$0xff]
    %v275 = vld [vmem:[#allocation2 + $0x690] sm:$0xff]
    %v276 = vld [vmem:[#allocation2 + $0x698] sm:$0xff]
    %v277 = vld [vmem:[#allocation2 + $0x6a0] sm:$0xff]
    %v278 = vld [vmem:[#allocation2 + $0x6a8] sm:$0xff]
    %v279 = vld [vmem:[#allocation2 + $0x6b0] sm:$0xff]
    %v280 = vld [vmem:[#allocation2 + $0x6b8] sm:$0xff]
    %v281 = vld [vmem:[#allocation2 + $0x6c0] sm:$0xff]
    %v282 = vld [vmem:[#allocation2 + $0x6c8] sm:$0xff]
    %v283 = vld [vmem:[#allocation2 + $0x6d0] sm:$0xff]
    %v284 = vld [vmem:[#allocation2 + $0x6d8] sm:$0xff]
    %v285 = vld [vmem:[#allocation2 + $0x6e0] sm:$0xff]
    %v286 = vld [vmem:[#allocation2 + $0x6e8] sm:$0xff]
    %v287 = vld [vmem:[#allocation2 + $0x6f0] sm:$0xff]
    %v288 = vld [vmem:[#allocation2 + $0x6f8] sm:$0xff]
    %v289 = vld [vmem:[#allocation2 + $0x700] sm:$0xff]
    %v290 = vld [vmem:[#allocation2 + $0x708] sm:$0xff]
    %v291 = vld [vmem:[#allocation2 + $0x710] sm:$0xff]
    %v292 = vld [vmem:[#allocation2 + $0x718] sm:$0xff]
    %v293 = vld [vmem:[#allocation2 + $0x720] sm:$0xff]
    %v294 = vld [vmem:[#allocation2 + $0x728] sm:$0xff]
    %v295 = vld [vmem:[#allocation2 + $0x730] sm:$0xff]
    %v296 = vld [vmem:[#allocation2 + $0x738] sm:$0xff]
    %v297 = vld [vmem:[#allocation2 + $0x740] sm:$0xff]
    %v298 = vld [vmem:[#allocation2 + $0x748] sm:$0xff]
    %v299 = vld [vmem:[#allocation2 + $0x750] sm:$0xff]
    %v300 = vld [vmem:[#allocation2 + $0x758] sm:$0xff]
    %v301 = vld [vmem:[#allocation2 + $0x760] sm:$0xff]
    %v302 = vld [vmem:[#allocation2 + $0x768] sm:$0xff]
    %v303 = vld [vmem:[#allocation2 + $0x770] sm:$0xff]
    %v304 = vld [vmem:[#allocation2 + $0x778] sm:$0xff]
    %v305 = vld [vmem:[#allocation2 + $0x780] sm:$0xff]
    %v306 = vld [vmem:[#allocation2 + $0x788] sm:$0xff]
    %v307 = vld [vmem:[#allocation2 + $0x790] sm:$0xff]
    %v308 = vld [vmem:[#allocation2 + $0x798] sm:$0xff]
    %v309 = vld [vmem:[#allocation2 + $0x7a0] sm:$0xff]
    %v310 = vld [vmem:[#allocation2 + $0x7a8] sm:$0xff]
    %v311 = vld [vmem:[#allocation2 + $0x7b0] sm:$0xff]
    %v312 = vld [vmem:[#allocation2 + $0x7b8] sm:$0xff]
    %v313 = vld [vmem:[#allocation2 + $0x7c0] sm:$0xff]
    %v314 = vld [vmem:[#allocation2 + $0x7c8] sm:$0xff]
    %v315 = vld [vmem:[#allocation2 + $0x7d0] sm:$0xff]
    %v316 = vld [vmem:[#allocation2 + $0x7d8] sm:$0xff]
    %v317 = vld [vmem:[#allocation2 + $0x7e0] sm:$0xff]
    %v318 = vld [vmem:[#allocation2 + $0x7e8] sm:$0xff]
    %v319 = vld [vmem:[#allocation2 + $0x7f0] sm:$0xff]
    %v320 = vld [vmem:[#allocation2 + $0x7f8] sm:$0xff]
    %v321 = vld [vmem:[#allocation2 + $0x800] sm:$0xff]
    %v322 = vld [vmem:[#allocation2 + $0x808] sm:$0xff]
    %v323 = vld [vmem:[#allocation2 + $0x810] sm:$0xff]
    %v324 = vld [vmem:[#allocation2 + $0x818] sm:$0xff]
    %v325 = vld [vmem:[#allocation2 + $0x820] sm:$0xff]
    %v326 = vld [vmem:[#allocation2 + $0x828] sm:$0xff]
    %v327 = vld [vmem:[#allocation2 + $0x830] sm:$0xff]
    %v328 = vld [vmem:[#allocation2 + $0x838] sm:$0xff]
    %v329 = vld [vmem:[#allocation2 + $0x840] sm:$0xff]
    %v330 = vld [vmem:[#allocation2 + $0x848] sm:$0xff]
    %v331 = vld [vmem:[#allocation2 + $0x850] sm:$0xff]
    %v332 = vld [vmem:[#allocation2 + $0x858] sm:$0xff]
    %v333 = vld [vmem:[#allocation2 + $0x860] sm:$0xff]
    %v334 = vld [vmem:[#allocation2 + $0x868] sm:$0xff]
    %v335 = vld [vmem:[#allocation2 + $0x870] sm:$0xff]
    %v336 = vld [vmem:[#allocation2 + $0x878] sm:$0xff]
    %v337 = vld [vmem:[#allocation2 + $0x880] sm:$0xff]
    %v338 = vld [vmem:[#allocation2 + $0x888] sm:$0xff]
    %v339 = vld [vmem:[#allocation2 + $0x890] sm:$0xff]
    %v340 = vld [vmem:[#allocation2 + $0x898] sm:$0xff]
    %v341 = vld [vmem:[#allocation2 + $0x8a0] sm:$0xff]
    %v342 = vld [vmem:[#allocation2 + $0x8a8] sm:$0xff]
    %v343 = vld [vmem:[#allocation2 + $0x8b0] sm:$0xff]
    %v344 = vld [vmem:[#allocation2 + $0x8b8] sm:$0xff]
    %v345 = vld [vmem:[#allocation2 + $0x8c0] sm:$0xff]
    %v346 = vld [vmem:[#allocation2 + $0x8c8] sm:$0xff]
    %v347 = vld [vmem:[#allocation2 + $0x8d0] sm:$0xff]
    %v348 = vld [vmem:[#allocation2 + $0x8d8] sm:$0xff]
    %v349 = vld [vmem:[#allocation2 + $0x8e0] sm:$0xff]
    %v350 = vld [vmem:[#allocation2 + $0x8e8] sm:$0xff]
    %v351 = vld [vmem:[#allocation2 + $0x8f0] sm:$0xff]
    %v352 = vld [vmem:[#allocation2 + $0x8f8] sm:$0xff]
    %v353 = vld [vmem:[#allocation2 + $0x900] sm:$0xff]
    %v354 = vld [vmem:[#allocation2 + $0x908] sm:$0xff]
    %v355 = vld [vmem:[#allocation2 + $0x910] sm:$0xff]
    %v356 = vld [vmem:[#allocation2 + $0x918] sm:$0xff]
    %v357 = vld [vmem:[#allocation2 + $0x920] sm:$0xff]
    %v358 = vld [vmem:[#allocation2 + $0x928] sm:$0xff]
    %v359 = vld [vmem:[#allocation2 + $0x930] sm:$0xff]
    %v360 = vld [vmem:[#allocation2 + $0x938] sm:$0xff]
    %v361 = vld [vmem:[#allocation2 + $0x940] sm:$0xff]
    %v362 = vld [vmem:[#allocation2 + $0x948] sm:$0xff]
    %v363 = vld [vmem:[#allocation2 + $0x950] sm:$0xff]
    %v364 = vld [vmem:[#allocation2 + $0x958] sm:$0xff]
    %v365 = vld [vmem:[#allocation2 + $0x960] sm:$0xff]
    %v366 = vld [vmem:[#allocation2 + $0x968] sm:$0xff]
    %v367 = vld [vmem:[#allocation2 + $0x970] sm:$0xff]
    %v368 = vld [vmem:[#allocation2 + $0x978] sm:$0xff]
    %v369 = vld [vmem:[#allocation2 + $0x980] sm:$0xff]
    %v370 = vld [vmem:[#allocation2 + $0x988] sm:$0xff]
    %v371 = vld [vmem:[#allocation2 + $0x990] sm:$0xff]
    %v372 = vld [vmem:[#allocation2 + $0x998] sm:$0xff]
    %v373 = vld [vmem:[#allocation2 + $0x9a0] sm:$0xff]
    %v374 = vld [vmem:[#allocation2 + $0x9a8] sm:$0xff]
    %v375 = vld [vmem:[#allocation2 + $0x9b0] sm:$0xff]
    %v376 = vld [vmem:[#allocation2 + $0x9b8] sm:$0xff]
    %v377 = vld [vmem:[#allocation2 + $0x9c0] sm:$0xff]
    %v378 = vld [vmem:[#allocation2 + $0x9c8] sm:$0xff]
    %v379 = vld [vmem:[#allocation2 + $0x9d0] sm:$0xff]
    %v380 = vld [vmem:[#allocation2 + $0x9d8] sm:$0xff]
    %v381 = vld [vmem:[#allocation2 + $0x9e0] sm:$0xff]
    %v382 = vld [vmem:[#allocation2 + $0x9e8] sm:$0xff]
    %v383 = vld [vmem:[#allocation2 + $0x9f0] sm:$0xff]
    %v384 = vld [vmem:[#allocation2 + $0x9f8] sm:$0xff]
    %v385 = vld [vmem:[#allocation2 + $0xa00] sm:$0xff]
    %v386 = vld [vmem:[#allocation2 + $0xa08] sm:$0xff]
    %v387 = vld [vmem:[#allocation2 + $0xa10] sm:$0xff]
    %v388 = vld [vmem:[#allocation2 + $0xa18] sm:$0xff]
    %v389 = vld [vmem:[#allocation2 + $0xa20] sm:$0xff]
    %v390 = vld [vmem:[#allocation2 + $0xa28] sm:$0xff]
    %v391 = vld [vmem:[#allocation2 + $0xa30] sm:$0xff]
    %v392 = vld [vmem:[#allocation2 + $0xa38] sm:$0xff]
    %v393 = vld [vmem:[#allocation2 + $0xa40] sm:$0xff]
    %v394 = vld [vmem:[#allocation2 + $0xa48] sm:$0xff]
    %v395 = vld [vmem:[#allocation2 + $0xa50] sm:$0xff]
    %v396 = vld [vmem:[#allocation2 + $0xa58] sm:$0xff]
    %v397 = vld [vmem:[#allocation2 + $0xa60] sm:$0xff]
    %v398 = vld [vmem:[#allocation2 + $0xa68] sm:$0xff]
    %v399 = vld [vmem:[#allocation2 + $0xa70] sm:$0xff]
    %v400 = vld [vmem:[#allocation2 + $0xa78] sm:$0xff]
    %v401 = vld [vmem:[#allocation2 + $0xa80] sm:$0xff]
    %v402 = vld [vmem:[#allocation2 + $0xa88] sm:$0xff]
    %v403 = vld [vmem:[#allocation2 + $0xa90] sm:$0xff]
    %v404 = vld [vmem:[#allocation2 + $0xa98] sm:$0xff]
    %v405 = vld [vmem:[#allocation2 + $0xaa0] sm:$0xff]
    %v406 = vld [vmem:[#allocation2 + $0xaa8] sm:$0xff]
    %v407 = vld [vmem:[#allocation2 + $0xab0] sm:$0xff]
    %v408 = vld [vmem:[#allocation2 + $0xab8] sm:$0xff]
    %v409 = vld [vmem:[#allocation2 + $0xac0] sm:$0xff]
    %v410 = vld [vmem:[#allocation2 + $0xac8] sm:$0xff]
    %v411 = vld [vmem:[#allocation2 + $0xad0] sm:$0xff]
    %v412 = vld [vmem:[#allocation2 + $0xad8] sm:$0xff]
    %v413 = vld [vmem:[#allocation2 + $0xae0] sm:$0xff]
    %v414 = vld [vmem:[#allocation2 + $0xae8] sm:$0xff]
    %v415 = vld [vmem:[#allocation2 + $0xaf0] sm:$0xff]
    %v416 = vld [vmem:[#allocation2 + $0xaf8] sm:$0xff]
    %v417 = vld [vmem:[#allocation2 + $0xb00] sm:$0xff]
    %v418 = vld [vmem:[#allocation2 + $0xb08] sm:$0xff]
    %v419 = vld [vmem:[#allocation2 + $0xb10] sm:$0xff]
    %v420 = vld [vmem:[#allocation2 + $0xb18] sm:$0xff]
    %v421 = vld [vmem:[#allocation2 + $0xb20] sm:$0xff]
    %v422 = vld [vmem:[#allocation2 + $0xb28] sm:$0xff]
    %v423 = vld [vmem:[#allocation2 + $0xb30] sm:$0xff]
    %v424 = vld [vmem:[#allocation2 + $0xb38] sm:$0xff]
    %v425 = vld [vmem:[#allocation2 + $0xb40] sm:$0xff]
    %v426 = vld [vmem:[#allocation2 + $0xb48] sm:$0xff]
    %v427 = vld [vmem:[#allocation2 + $0xb50] sm:$0xff]
    %v428 = vld [vmem:[#allocation2 + $0xb58] sm:$0xff]
    %v429 = vld [vmem:[#allocation2 + $0xb60] sm:$0xff]
    %v430 = vld [vmem:[#allocation2 + $0xb68] sm:$0xff]
    %v431 = vld [vmem:[#allocation2 + $0xb70] sm:$0xff]
    %v432 = vld [vmem:[#allocation2 + $0xb78] sm:$0xff]
    %v433 = vld [vmem:[#allocation2 + $0xb80] sm:$0xff]
    %v434 = vld [vmem:[#allocation2 + $0xb88] sm:$0xff]
    %v435 = vld [vmem:[#allocation2 + $0xb90] sm:$0xff]
    %v436 = vld [vmem:[#allocation2 + $0xb98] sm:$0xff]
    %v437 = vld [vmem:[#allocation2 + $0xba0] sm:$0xff]
    %v438 = vld [vmem:[#allocation2 + $0xba8] sm:$0xff]
    %v439 = vld [vmem:[#allocation2 + $0xbb0] sm:$0xff]
    %v440 = vld [vmem:[#allocation2 + $0xbb8] sm:$0xff]
    %v441 = vld [vmem:[#allocation2 + $0xbc0] sm:$0xff]
    %v442 = vld [vmem:[#allocation2 + $0xbc8] sm:$0xff]
    %v443 = vld [vmem:[#allocation2 + $0xbd0] sm:$0xff]
    %v444 = vld [vmem:[#allocation2 + $0xbd8] sm:$0xff]
    %v445 = vld [vmem:[#allocation2 + $0xbe0] sm:$0xff]
    %v446 = vld [vmem:[#allocation2 + $0xbe8] sm:$0xff]
    %v447 = vld [vmem:[#allocation2 + $0xbf0] sm:$0xff]
    %v448 = vld [vmem:[#allocation2 + $0xbf8] sm:$0xff]
    %v449 = vld [vmem:[#allocation2 + $0xc00] sm:$0xff]
    %v450 = vld [vmem:[#allocation2 + $0xc08] sm:$0xff]
    %v451 = vld [vmem:[#allocation2 + $0xc10] sm:$0xff]
    %v452 = vld [vmem:[#allocation2 + $0xc18] sm:$0xff]
    %v453 = vld [vmem:[#allocation2 + $0xc20] sm:$0xff]
    %v454 = vld [vmem:[#allocation2 + $0xc28] sm:$0xff]
    %v455 = vld [vmem:[#allocation2 + $0xc30] sm:$0xff]
    %v456 = vld [vmem:[#allocation2 + $0xc38] sm:$0xff]
    %v457 = vld [vmem:[#allocation2 + $0xc40] sm:$0xff]
    %v458 = vld [vmem:[#allocation2 + $0xc48] sm:$0xff]
    %v459 = vld [vmem:[#allocation2 + $0xc50] sm:$0xff]
    %v460 = vld [vmem:[#allocation2 + $0xc58] sm:$0xff]
    %v461 = vld [vmem:[#allocation2 + $0xc60] sm:$0xff]
    %v462 = vld [vmem:[#allocation2 + $0xc68] sm:$0xff]
    %v463 = vld [vmem:[#allocation2 + $0xc70] sm:$0xff]
    %v464 = vld [vmem:[#allocation2 + $0xc78] sm:$0xff]
    %v465 = vld [vmem:[#allocation2 + $0xc80] sm:$0xff]
    %v466 = vld [vmem:[#allocation2 + $0xc88] sm:$0xff]
    %v467 = vld [vmem:[#allocation2 + $0xc90] sm:$0xff]
    %v468 = vld [vmem:[#allocation2 + $0xc98] sm:$0xff]
    %v469 = vld [vmem:[#allocation2 + $0xca0] sm:$0xff]
    %v470 = vld [vmem:[#allocation2 + $0xca8] sm:$0xff]
    %v471 = vld [vmem:[#allocation2 + $0xcb0] sm:$0xff]
    %v472 = vld [vmem:[#allocation2 + $0xcb8] sm:$0xff]
    %v473 = vld [vmem:[#allocation2 + $0xcc0] sm:$0xff]
    %v474 = vld [vmem:[#allocation2 + $0xcc8] sm:$0xff]
    %v475 = vld [vmem:[#allocation2 + $0xcd0] sm:$0xff]
    %v476 = vld [vmem:[#allocation2 + $0xcd8] sm:$0xff]
    %v477 = vld [vmem:[#allocation2 + $0xce0] sm:$0xff]
    %v478 = vld [vmem:[#allocation2 + $0xce8] sm:$0xff]
    %v479 = vld [vmem:[#allocation2 + $0xcf0] sm:$0xff]
    %v480 = vld [vmem:[#allocation2 + $0xcf8] sm:$0xff]
    %v481 = vld [vmem:[#allocation2 + $0xd00] sm:$0xff]
    %v482 = vld [vmem:[#allocation2 + $0xd08] sm:$0xff]
    %v483 = vld [vmem:[#allocation2 + $0xd10] sm:$0xff]
    %v484 = vld [vmem:[#allocation2 + $0xd18] sm:$0xff]
    %v485 = vld [vmem:[#allocation2 + $0xd20] sm:$0xff]
    %v486 = vld [vmem:[#allocation2 + $0xd28] sm:$0xff]
    %v487 = vld [vmem:[#allocation2 + $0xd30] sm:$0xff]
    %v488 = vld [vmem:[#allocation2 + $0xd38] sm:$0xff]
    %v489 = vld [vmem:[#allocation2 + $0xd40] sm:$0xff]
    %v490 = vld [vmem:[#allocation2 + $0xd48] sm:$0xff]
    %v491 = vld [vmem:[#allocation2 + $0xd50] sm:$0xff]
    %v492 = vld [vmem:[#allocation2 + $0xd58] sm:$0xff]
    %v493 = vld [vmem:[#allocation2 + $0xd60] sm:$0xff]
    %v494 = vld [vmem:[#allocation2 + $0xd68] sm:$0xff]
    %v495 = vld [vmem:[#allocation2 + $0xd70] sm:$0xff]
    %v496 = vld [vmem:[#allocation2 + $0xd78] sm:$0xff]
    %v497 = vld [vmem:[#allocation2 + $0xd80] sm:$0xff]
    %v498 = vld [vmem:[#allocation2 + $0xd88] sm:$0xff]
    %v499 = vld [vmem:[#allocation2 + $0xd90] sm:$0xff]
    %v500 = vld [vmem:[#allocation2 + $0xd98] sm:$0xff]
    %v501 = vld [vmem:[#allocation2 + $0xda0] sm:$0xff]
    %v502 = vld [vmem:[#allocation2 + $0xda8] sm:$0xff]
    %v503 = vld [vmem:[#allocation2 + $0xdb0] sm:$0xff]
    %v504 = vld [vmem:[#allocation2 + $0xdb8] sm:$0xff]
    %v505 = vld [vmem:[#allocation2 + $0xdc0] sm:$0xff]
    %v506 = vld [vmem:[#allocation2 + $0xdc8] sm:$0xff]
    %v507 = vld [vmem:[#allocation2 + $0xdd0] sm:$0xff]
    %v508 = vld [vmem:[#allocation2 + $0xdd8] sm:$0xff]
    %v509 = vld [vmem:[#allocation2 + $0xde0] sm:$0xff]
    %v510 = vld [vmem:[#allocation2 + $0xde8] sm:$0xff]
    %v511 = vld [vmem:[#allocation2 + $0xdf0] sm:$0xff]
    %v512 = vld [vmem:[#allocation2 + $0xdf8] sm:$0xff]
    %v513 = vld [vmem:[#allocation2 + $0xe00] sm:$0xff]
    %v514 = vld [vmem:[#allocation2 + $0xe08] sm:$0xff]
    %v515 = vld [vmem:[#allocation2 + $0xe10] sm:$0xff]
    %v516 = vld [vmem:[#allocation2 + $0xe18] sm:$0xff]
    %v517 = vld [vmem:[#allocation2 + $0xe20] sm:$0xff]
    %v518 = vld [vmem:[#allocation2 + $0xe28] sm:$0xff]
    %v519 = vld [vmem:[#allocation2 + $0xe30] sm:$0xff]
    %v520 = vld [vmem:[#allocation2 + $0xe38] sm:$0xff]
    %v521 = vld [vmem:[#allocation2 + $0xe40] sm:$0xff]
    %v522 = vld [vmem:[#allocation2 + $0xe48] sm:$0xff]
    %v523 = vld [vmem:[#allocation2 + $0xe50] sm:$0xff]
    %v524 = vld [vmem:[#allocation2 + $0xe58] sm:$0xff]
    %v525 = vld [vmem:[#allocation2 + $0xe60] sm:$0xff]
    %v526 = vld [vmem:[#allocation2 + $0xe68] sm:$0xff]
    %v527 = vld [vmem:[#allocation2 + $0xe70] sm:$0xff]
    %v528 = vld [vmem:[#allocation2 + $0xe78] sm:$0xff]
    %v529 = vld [vmem:[#allocation2 + $0xe80] sm:$0xff]
    %v530 = vld [vmem:[#allocation2 + $0xe88] sm:$0xff]
    %v531 = vld [vmem:[#allocation2 + $0xe90] sm:$0xff]
    %v532 = vld [vmem:[#allocation2 + $0xe98] sm:$0xff]
    %v533 = vld [vmem:[#allocation2 + $0xea0] sm:$0xff]
    %v534 = vld [vmem:[#allocation2 + $0xea8] sm:$0xff]
    %v535 = vld [vmem:[#allocation2 + $0xeb0] sm:$0xff]
    %v536 = vld [vmem:[#allocation2 + $0xeb8] sm:$0xff]
    %v537 = vld [vmem:[#allocation2 + $0xec0] sm:$0xff]
    %v538 = vld [vmem:[#allocation2 + $0xec8] sm:$0xff]
    %v539 = vld [vmem:[#allocation2 + $0xed0] sm:$0xff]
    %v540 = vld [vmem:[#allocation2 + $0xed8] sm:$0xff]
    %v541 = vld [vmem:[#allocation2 + $0xee0] sm:$0xff]
    %v542 = vld [vmem:[#allocation2 + $0xee8] sm:$0xff]
    %v543 = vld [vmem:[#allocation2 + $0xef0] sm:$0xff]
    %v544 = vld [vmem:[#allocation2 + $0xef8] sm:$0xff]
    %v545 = vld [vmem:[#allocation2 + $0xf00] sm:$0xff]
    %v546 = vld [vmem:[#allocation2 + $0xf08] sm:$0xff]
    %v547 = vld [vmem:[#allocation2 + $0xf10] sm:$0xff]
    %v548 = vld [vmem:[#allocation2 + $0xf18] sm:$0xff]
    %v549 = vld [vmem:[#allocation2 + $0xf20] sm:$0xff]
    %v550 = vld [vmem:[#allocation2 + $0xf28] sm:$0xff]
    %v551 = vld [vmem:[#allocation2 + $0xf30] sm:$0xff]
    %v552 = vld [vmem:[#allocation2 + $0xf38] sm:$0xff]
    %v553 = vld [vmem:[#allocation2 + $0xf40] sm:$0xff]
    %v554 = vld [vmem:[#allocation2 + $0xf48] sm:$0xff]
    %v555 = vld [vmem:[#allocation2 + $0xf50] sm:$0xff]
    %v556 = vld [vmem:[#allocation2 + $0xf58] sm:$0xff]
    %v557 = vld [vmem:[#allocation2 + $0xf60] sm:$0xff]
    %v558 = vld [vmem:[#allocation2 + $0xf68] sm:$0xff]
    %v559 = vld [vmem:[#allocation2 + $0xf70] sm:$0xff]
    %v560 = vld [vmem:[#allocation2 + $0xf78] sm:$0xff]
    %v561 = vld [vmem:[#allocation2 + $0xf80] sm:$0xff]
    %v562 = vld [vmem:[#allocation2 + $0xf88] sm:$0xff]
    %v563 = vld [vmem:[#allocation2 + $0xf90] sm:$0xff]
    %v564 = vld [vmem:[#allocation2 + $0xf98] sm:$0xff]
    %v565 = vld [vmem:[#allocation2 + $0xfa0] sm:$0xff]
    %v566 = vld [vmem:[#allocation2 + $0xfa8] sm:$0xff]
    %v567 = vld [vmem:[#allocation2 + $0xfb0] sm:$0xff]
    %v568 = vld [vmem:[#allocation2 + $0xfb8] sm:$0xff]
    %v569 = vld [vmem:[#allocation2 + $0xfc0] sm:$0xff]
    %v570 = vld [vmem:[#allocation2 + $0xfc8] sm:$0xff]
    %v571 = vld [vmem:[#allocation2 + $0xfd0] sm:$0xff]
    %v572 = vld [vmem:[#allocation2 + $0xfd8] sm:$0xff]
    %v573 = vld [vmem:[#allocation2 + $0xfe0] sm:$0xff]
    %v574 = vld [vmem:[#allocation2 + $0xfe8] sm:$0xff]
    %v575 = vld [vmem:[#allocation2 + $0xff0] sm:$0xff]
    %v576 = vld [vmem:[#allocation2 + $0xff8] sm:$0xff]
    %v577 = vld [vmem:[#allocation2 + $0x1000] sm:$0xff]
    %v578 = vld [vmem:[#allocation2 + $0x1008] sm:$0xff]
    %v579 = vld [vmem:[#allocation2 + $0x1010] sm:$0xff]
    %v580 = vld [vmem:[#allocation2 + $0x1018] sm:$0xff]
    %v581 = vld [vmem:[#allocation2 + $0x1020] sm:$0xff]
    %v582 = vld [vmem:[#allocation2 + $0x1028] sm:$0xff]
    %v583 = vld [vmem:[#allocation2 + $0x1030] sm:$0xff]
    %v584 = vld [vmem:[#allocation2 + $0x1038] sm:$0xff]
    %v585 = vld [vmem:[#allocation2 + $0x1040] sm:$0xff]
    %v586 = vld [vmem:[#allocation2 + $0x1048] sm:$0xff]
    %v587 = vld [vmem:[#allocation2 + $0x1050] sm:$0xff]
    %v588 = vld [vmem:[#allocation2 + $0x1058] sm:$0xff]
    %v589 = vld [vmem:[#allocation2 + $0x1060] sm:$0xff]
    %v590 = vld [vmem:[#allocation2 + $0x1068] sm:$0xff]
    %v591 = vld [vmem:[#allocation2 + $0x1070] sm:$0xff]
    %v592 = vld [vmem:[#allocation2 + $0x1078] sm:$0xff]
    %v593 = vld [vmem:[#allocation2 + $0x1080] sm:$0xff]
    %v594 = vld [vmem:[#allocation2 + $0x1088] sm:$0xff]
    %v595 = vld [vmem:[#allocation2 + $0x1090] sm:$0xff]
    %v596 = vld [vmem:[#allocation2 + $0x1098] sm:$0xff]
    %v597 = vld [vmem:[#allocation2 + $0x10a0] sm:$0xff]
    %v598 = vld [vmem:[#allocation2 + $0x10a8] sm:$0xff]
    %v599 = vld [vmem:[#allocation2 + $0x10b0] sm:$0xff]
    %v600 = vld [vmem:[#allocation2 + $0x10b8] sm:$0xff]
    %v601 = vld [vmem:[#allocation2 + $0x10c0] sm:$0xff]
    %v602 = vld [vmem:[#allocation2 + $0x10c8] sm:$0xff]
    %v603 = vld [vmem:[#allocation2 + $0x10d0] sm:$0xff]
    %v604 = vld [vmem:[#allocation2 + $0x10d8] sm:$0xff]
    %v605 = vld [vmem:[#allocation2 + $0x10e0] sm:$0xff]
    %v606 = vld [vmem:[#allocation2 + $0x10e8] sm:$0xff]
    %v607 = vld [vmem:[#allocation2 + $0x10f0] sm:$0xff]
    %v608 = vld [vmem:[#allocation2 + $0x10f8] sm:$0xff]
    %v609 = vld [vmem:[#allocation2 + $0x1100] sm:$0xff]
    %v610 = vld [vmem:[#allocation2 + $0x1108] sm:$0xff]
    %v611 = vld [vmem:[#allocation2 + $0x1110] sm:$0xff]
    %v612 = vld [vmem:[#allocation2 + $0x1118] sm:$0xff]
    %v613 = vld [vmem:[#allocation2 + $0x1120] sm:$0xff]
    %v614 = vld [vmem:[#allocation2 + $0x1128] sm:$0xff]
    %v615 = vld [vmem:[#allocation2 + $0x1130] sm:$0xff]
    %v616 = vld [vmem:[#allocation2 + $0x1138] sm:$0xff]
    %v617 = vld [vmem:[#allocation2 + $0x1140] sm:$0xff]
    %v618 = vld [vmem:[#allocation2 + $0x1148] sm:$0xff]
    %v619 = vld [vmem:[#allocation2 + $0x1150] sm:$0xff]
    %v620 = vld [vmem:[#allocation2 + $0x1158] sm:$0xff]
    %v621 = vld [vmem:[#allocation2 + $0x1160] sm:$0xff]
    %v622 = vld [vmem:[#allocation2 + $0x1168] sm:$0xff]
    %v623 = vld [vmem:[#allocation2 + $0x1170] sm:$0xff]
    %v624 = vld [vmem:[#allocation2 + $0x1178] sm:$0xff]
    %v625 = vld [vmem:[#allocation2 + $0x1180] sm:$0xff]
    %v626 = vld [vmem:[#allocation2 + $0x1188] sm:$0xff]
    %v627 = vld [vmem:[#allocation2 + $0x1190] sm:$0xff]
    %v628 = vld [vmem:[#allocation2 + $0x1198] sm:$0xff]
    %v629 = vld [vmem:[#allocation2 + $0x11a0] sm:$0xff]
    %v630 = vld [vmem:[#allocation2 + $0x11a8] sm:$0xff]
    %v631 = vld [vmem:[#allocation2 + $0x11b0] sm:$0xff]
    %v632 = vld [vmem:[#allocation2 + $0x11b8] sm:$0xff]
    %v633 = vld [vmem:[#allocation2 + $0x11c0] sm:$0xff]
    %v634 = vld [vmem:[#allocation2 + $0x11c8] sm:$0xff]
    %v635 = vld [vmem:[#allocation2 + $0x11d0] sm:$0xff]
    %v636 = vld [vmem:[#allocation2 + $0x11d8] sm:$0xff]
    %v637 = vld [vmem:[#allocation2 + $0x11e0] sm:$0xff]
    %v638 = vld [vmem:[#allocation2 + $0x11e8] sm:$0xff]
    %v639 = vld [vmem:[#allocation2 + $0x11f0] sm:$0xff]
    %v640 = vld [vmem:[#allocation2 + $0x11f8] sm:$0xff]
    %v641 = vld [vmem:[#allocation2 + $0x1200] sm:$0xff]
    %v642 = vld [vmem:[#allocation2 + $0x1208] sm:$0xff]
    %v643 = vld [vmem:[#allocation2 + $0x1210] sm:$0xff]
    %v644 = vld [vmem:[#allocation2 + $0x1218] sm:$0xff]
    %v645 = vld [vmem:[#allocation2 + $0x1220] sm:$0xff]
    %v646 = vld [vmem:[#allocation2 + $0x1228] sm:$0xff]
    %v647 = vld [vmem:[#allocation2 + $0x1230] sm:$0xff]
    %v648 = vld [vmem:[#allocation2 + $0x1238] sm:$0xff]
    %v649 = vld [vmem:[#allocation2 + $0x1240] sm:$0xff]
    %v650 = vld [vmem:[#allocation2 + $0x1248] sm:$0xff]
    %v651 = vld [vmem:[#allocation2 + $0x1250] sm:$0xff]
    %v652 = vld [vmem:[#allocation2 + $0x1258] sm:$0xff]
    %v653 = vld [vmem:[#allocation2 + $0x1260] sm:$0xff]
    %v654 = vld [vmem:[#allocation2 + $0x1268] sm:$0xff]
    %v655 = vld [vmem:[#allocation2 + $0x1270] sm:$0xff]
    %v656 = vld [vmem:[#allocation2 + $0x1278] sm:$0xff]
    %v657 = vld [vmem:[#allocation2 + $0x1280] sm:$0xff]
    %v658 = vld [vmem:[#allocation2 + $0x1288] sm:$0xff]
    %v659 = vld [vmem:[#allocation2 + $0x1290] sm:$0xff]
    %v660 = vld [vmem:[#allocation2 + $0x1298] sm:$0xff]
    %v661 = vld [vmem:[#allocation2 + $0x12a0] sm:$0xff]
    %v662 = vld [vmem:[#allocation2 + $0x12a8] sm:$0xff]
    %v663 = vld [vmem:[#allocation2 + $0x12b0] sm:$0xff]
    %v664 = vld [vmem:[#allocation2 + $0x12b8] sm:$0xff]
    %v665 = vld [vmem:[#allocation2 + $0x12c0] sm:$0xff]
    %v666 = vld [vmem:[#allocation2 + $0x12c8] sm:$0xff]
    %v667 = vld [vmem:[#allocation2 + $0x12d0] sm:$0xff]
    %v668 = vld [vmem:[#allocation2 + $0x12d8] sm:$0xff]
    %v669 = vld [vmem:[#allocation2 + $0x12e0] sm:$0xff]
    %v670 = vld [vmem:[#allocation2 + $0x12e8] sm:$0xff]
    %v671 = vld [vmem:[#allocation2 + $0x12f0] sm:$0xff]
    %v672 = vld [vmem:[#allocation2 + $0x12f8] sm:$0xff]
    %v673 = vld [vmem:[#allocation2 + $0x1300] sm:$0xff]
    %v674 = vld [vmem:[#allocation2 + $0x1308] sm:$0xff]
    %v675 = vld [vmem:[#allocation2 + $0x1310] sm:$0xff]
    %v676 = vld [vmem:[#allocation2 + $0x1318] sm:$0xff]
    %v677 = vld [vmem:[#allocation2 + $0x1320] sm:$0xff]
    %v678 = vld [vmem:[#allocation2 + $0x1328] sm:$0xff]
    %v679 = vld [vmem:[#allocation2 + $0x1330] sm:$0xff]
    %v680 = vld [vmem:[#allocation2 + $0x1338] sm:$0xff]
    %v681 = vld [vmem:[#allocation2 + $0x1340] sm:$0xff]
    %v682 = vld [vmem:[#allocation2 + $0x1348] sm:$0xff]
    %v683 = vld [vmem:[#allocation2 + $0x1350] sm:$0xff]
    %v684 = vld [vmem:[#allocation2 + $0x1358] sm:$0xff]
    %v685 = vld [vmem:[#allocation2 + $0x1360] sm:$0xff]
    %v686 = vld [vmem:[#allocation2 + $0x1368] sm:$0xff]
    %v687 = vld [vmem:[#allocation2 + $0x1370] sm:$0xff]
    %v688 = vld [vmem:[#allocation2 + $0x1378] sm:$0xff]
    %v689 = vld [vmem:[#allocation2 + $0x1380] sm:$0xff]
    %v690 = vld [vmem:[#allocation2 + $0x1388] sm:$0xff]
    %v691 = vld [vmem:[#allocation2 + $0x1390] sm:$0xff]
    %v692 = vld [vmem:[#allocation2 + $0x1398] sm:$0xff]
    %v693 = vld [vmem:[#allocation2 + $0x13a0] sm:$0xff]
    %v694 = vld [vmem:[#allocation2 + $0x13a8] sm:$0xff]
    %v695 = vld [vmem:[#allocation2 + $0x13b0] sm:$0xff]
    %v696 = vld [vmem:[#allocation2 + $0x13b8] sm:$0xff]
    %v697 = vld [vmem:[#allocation2 + $0x13c0] sm:$0xff]
    %v698 = vld [vmem:[#allocation2 + $0x13c8] sm:$0xff]
    %v699 = vld [vmem:[#allocation2 + $0x13d0] sm:$0xff]
    %v700 = vld [vmem:[#allocation2 + $0x13d8] sm:$0xff]
    %v701 = vld [vmem:[#allocation2 + $0x13e0] sm:$0xff]
    %v702 = vld [vmem:[#allocation2 + $0x13e8] sm:$0xff]
    %v703 = vld [vmem:[#allocation2 + $0x13f0] sm:$0xff]
    %v704 = vld [vmem:[#allocation2 + $0x13f8] sm:$0xff]
    %v705 = vld [vmem:[#allocation2 + $0x1400] sm:$0xff]
    %v706 = vld [vmem:[#allocation2 + $0x1408] sm:$0xff]
    %v707 = vld [vmem:[#allocation2 + $0x1410] sm:$0xff]
    %v708 = vld [vmem:[#allocation2 + $0x1418] sm:$0xff]
    %v709 = vld [vmem:[#allocation2 + $0x1420] sm:$0xff]
    %v710 = vld [vmem:[#allocation2 + $0x1428] sm:$0xff]
    %v711 = vld [vmem:[#allocation2 + $0x1430] sm:$0xff]
    %v712 = vld [vmem:[#allocation2 + $0x1438] sm:$0xff]
    %v713 = vld [vmem:[#allocation2 + $0x1440] sm:$0xff]
    %v714 = vld [vmem:[#allocation2 + $0x1448] sm:$0xff]
    %v715 = vld [vmem:[#allocation2 + $0x1450] sm:$0xff]
    %v716 = vld [vmem:[#allocation2 + $0x1458] sm:$0xff]
    %v717 = vld [vmem:[#allocation2 + $0x1460] sm:$0xff]
    %v718 = vld [vmem:[#allocation2 + $0x1468] sm:$0xff]
    %v719 = vld [vmem:[#allocation2 + $0x1470] sm:$0xff]
    %v720 = vld [vmem:[#allocation2 + $0x1478] sm:$0xff]
    %v721 = vld [vmem:[#allocation2 + $0x1480] sm:$0xff]
    %v722 = vld [vmem:[#allocation2 + $0x1488] sm:$0xff]
    %v723 = vld [vmem:[#allocation2 + $0x1490] sm:$0xff]
    %v724 = vld [vmem:[#allocation2 + $0x1498] sm:$0xff]
    %v725 = vld [vmem:[#allocation2 + $0x14a0] sm:$0xff]
    %v726 = vld [vmem:[#allocation2 + $0x14a8] sm:$0xff]
    %v727 = vld [vmem:[#allocation2 + $0x14b0] sm:$0xff]
    %v728 = vld [vmem:[#allocation2 + $0x14b8] sm:$0xff]
    %v729 = vld [vmem:[#allocation2 + $0x14c0] sm:$0xff]
    %v730 = vld [vmem:[#allocation2 + $0x14c8] sm:$0xff]
    %v731 = vld [vmem:[#allocation2 + $0x14d0] sm:$0xff]
    %v732 = vld [vmem:[#allocation2 + $0x14d8] sm:$0xff]
    %v733 = vld [vmem:[#allocation2 + $0x14e0] sm:$0xff]
    %v734 = vld [vmem:[#allocation2 + $0x14e8] sm:$0xff]
    %v735 = vld [vmem:[#allocation2 + $0x14f0] sm:$0xff]
    %v736 = vld [vmem:[#allocation2 + $0x14f8] sm:$0xff]
    %v737 = vld [vmem:[#allocation2 + $0x1500] sm:$0xff]
    %v738 = vld [vmem:[#allocation2 + $0x1508] sm:$0xff]
    %v739 = vld [vmem:[#allocation2 + $0x1510] sm:$0xff]
    %v740 = vld [vmem:[#allocation2 + $0x1518] sm:$0xff]
    %v741 = vld [vmem:[#allocation2 + $0x1520] sm:$0xff]
    %v742 = vld [vmem:[#allocation2 + $0x1528] sm:$0xff]
    %v743 = vld [vmem:[#allocation2 + $0x1530] sm:$0xff]
    %v744 = vld [vmem:[#allocation2 + $0x1538] sm:$0xff]
    %v745 = vld [vmem:[#allocation2 + $0x1540] sm:$0xff]
    %v746 = vld [vmem:[#allocation2 + $0x1548] sm:$0xff]
    %v747 = vld [vmem:[#allocation2 + $0x1550] sm:$0xff]
    %v748 = vld [vmem:[#allocation2 + $0x1558] sm:$0xff]
    %v749 = vld [vmem:[#allocation2 + $0x1560] sm:$0xff]
    %v750 = vld [vmem:[#allocation2 + $0x1568] sm:$0xff]
    %v751 = vld [vmem:[#allocation2 + $0x1570] sm:$0xff]
    %v752 = vld [vmem:[#allocation2 + $0x1578] sm:$0xff]
    %v753 = vld [vmem:[#allocation2 + $0x1580] sm:$0xff]
    %v754 = vld [vmem:[#allocation2 + $0x1588] sm:$0xff]
    %v755 = vld [vmem:[#allocation2 + $0x1590] sm:$0xff]
    %v756 = vld [vmem:[#allocation2 + $0x1598] sm:$0xff]
    %v757 = vld [vmem:[#allocation2 + $0x15a0] sm:$0xff]
    %v758 = vld [vmem:[#allocation2 + $0x15a8] sm:$0xff]
    %v759 = vld [vmem:[#allocation2 + $0x15b0] sm:$0xff]
    %v760 = vld [vmem:[#allocation2 + $0x15b8] sm:$0xff]
    %v761 = vld [vmem:[#allocation2 + $0x15c0] sm:$0xff]
    %v762 = vld [vmem:[#allocation2 + $0x15c8] sm:$0xff]
    %v763 = vld [vmem:[#allocation2 + $0x15d0] sm:$0xff]
    %v764 = vld [vmem:[#allocation2 + $0x15d8] sm:$0xff]
    %v765 = vld [vmem:[#allocation2 + $0x15e0] sm:$0xff]
    %v766 = vld [vmem:[#allocation2 + $0x15e8] sm:$0xff]
    %v767 = vld [vmem:[#allocation2 + $0x15f0] sm:$0xff]
    %v768 = vld [vmem:[#allocation2 + $0x15f8] sm:$0xff]
    %v769 = vld [vmem:[#allocation2 + $0x1600] sm:$0xff]
    %v770 = vld [vmem:[#allocation2 + $0x1608] sm:$0xff]
    %v771 = vld [vmem:[#allocation2 + $0x1610] sm:$0xff]
    %v772 = vld [vmem:[#allocation2 + $0x1618] sm:$0xff]
    %v773 = vld [vmem:[#allocation2 + $0x1620] sm:$0xff]
    %v774 = vld [vmem:[#allocation2 + $0x1628] sm:$0xff]
    %v775 = vld [vmem:[#allocation2 + $0x1630] sm:$0xff]
    %v776 = vld [vmem:[#allocation2 + $0x1638] sm:$0xff]
    %v777 = vld [vmem:[#allocation2 + $0x1640] sm:$0xff]
    %v778 = vld [vmem:[#allocation2 + $0x1648] sm:$0xff]
    %v779 = vld [vmem:[#allocation2 + $0x1650] sm:$0xff]
    %v780 = vld [vmem:[#allocation2 + $0x1658] sm:$0xff]
    %v781 = vld [vmem:[#allocation2 + $0x1660] sm:$0xff]
    %v782 = vld [vmem:[#allocation2 + $0x1668] sm:$0xff]
    %v783 = vld [vmem:[#allocation2 + $0x1670] sm:$0xff]
    %v784 = vld [vmem:[#allocation2 + $0x1678] sm:$0xff]
    %v785 = vld [vmem:[#allocation2 + $0x1680] sm:$0xff]
    %v786 = vld [vmem:[#allocation2 + $0x1688] sm:$0xff]
    %v787 = vld [vmem:[#allocation2 + $0x1690] sm:$0xff]
    %v788 = vld [vmem:[#allocation2 + $0x1698] sm:$0xff]
    %v789 = vld [vmem:[#allocation2 + $0x16a0] sm:$0xff]
    %v790 = vld [vmem:[#allocation2 + $0x16a8] sm:$0xff]
    %v791 = vld [vmem:[#allocation2 + $0x16b0] sm:$0xff]
    %v792 = vld [vmem:[#allocation2 + $0x16b8] sm:$0xff]
    %v793 = vld [vmem:[#allocation2 + $0x16c0] sm:$0xff]
    %v794 = vld [vmem:[#allocation2 + $0x16c8] sm:$0xff]
    %v795 = vld [vmem:[#allocation2 + $0x16d0] sm:$0xff]
    %v796 = vld [vmem:[#allocation2 + $0x16d8] sm:$0xff]
    %v797 = vld [vmem:[#allocation2 + $0x16e0] sm:$0xff]
    %v798 = vld [vmem:[#allocation2 + $0x16e8] sm:$0xff]
    %v799 = vld [vmem:[#allocation2 + $0x16f0] sm:$0xff]
    %v800 = vld [vmem:[#allocation2 + $0x16f8] sm:$0xff]
    %v801 = vld [vmem:[#allocation2 + $0x1700] sm:$0xff]
    %v802 = vld [vmem:[#allocation2 + $0x1708] sm:$0xff]
    %v803 = vld [vmem:[#allocation2 + $0x1710] sm:$0xff]
    %v804 = vld [vmem:[#allocation2 + $0x1718] sm:$0xff]
    %v805 = vld [vmem:[#allocation2 + $0x1720] sm:$0xff]
    %v806 = vld [vmem:[#allocation2 + $0x1728] sm:$0xff]
    %v807 = vld [vmem:[#allocation2 + $0x1730] sm:$0xff]
    %v808 = vld [vmem:[#allocation2 + $0x1738] sm:$0xff]
    %v809 = vld [vmem:[#allocation2 + $0x1740] sm:$0xff]
    %v810 = vld [vmem:[#allocation2 + $0x1748] sm:$0xff]
    %v811 = vld [vmem:[#allocation2 + $0x1750] sm:$0xff]
    %v812 = vld [vmem:[#allocation2 + $0x1758] sm:$0xff]
    %v813 = vld [vmem:[#allocation2 + $0x1760] sm:$0xff]
    %v814 = vld [vmem:[#allocation2 + $0x1768] sm:$0xff]
    %v815 = vld [vmem:[#allocation2 + $0x1770] sm:$0xff]
    %v816 = vld [vmem:[#allocation2 + $0x1778] sm:$0xff]
    %v817 = vld [vmem:[#allocation2 + $0x1780] sm:$0xff]
    %v818 = vld [vmem:[#allocation2 + $0x1788] sm:$0xff]
    %v819 = vld [vmem:[#allocation2 + $0x1790] sm:$0xff]
    %v820 = vld [vmem:[#allocation2 + $0x1798] sm:$0xff]
    %v821 = vld [vmem:[#allocation2 + $0x17a0] sm:$0xff]
    %v822 = vld [vmem:[#allocation2 + $0x17a8] sm:$0xff]
    %v823 = vld [vmem:[#allocation2 + $0x17b0] sm:$0xff]
    %v824 = vld [vmem:[#allocation2 + $0x17b8] sm:$0xff]
    %v825 = vld [vmem:[#allocation2 + $0x17c0] sm:$0xff]
    %v826 = vld [vmem:[#allocation2 + $0x17c8] sm:$0xff]
    %v827 = vld [vmem:[#allocation2 + $0x17d0] sm:$0xff]
    %v828 = vld [vmem:[#allocation2 + $0x17d8] sm:$0xff]
    %v829 = vld [vmem:[#allocation2 + $0x17e0] sm:$0xff]
    %v830 = vld [vmem:[#allocation2 + $0x17e8] sm:$0xff]
    %v831 = vld [vmem:[#allocation2 + $0x17f0] sm:$0xff]
    %v832 = vld [vmem:[#allocation2 + $0x17f8] sm:$0xff]
    %v833 = vld [vmem:[#allocation2 + $0x1800] sm:$0xff]
    %v834 = vld [vmem:[#allocation2 + $0x1808] sm:$0xff]
    %v835 = vld [vmem:[#allocation2 + $0x1810] sm:$0xff]
    %v836 = vld [vmem:[#allocation2 + $0x1818] sm:$0xff]
    %v837 = vld [vmem:[#allocation2 + $0x1820] sm:$0xff]
    %v838 = vld [vmem:[#allocation2 + $0x1828] sm:$0xff]
    %v839 = vld [vmem:[#allocation2 + $0x1830] sm:$0xff]
    %v840 = vld [vmem:[#allocation2 + $0x1838] sm:$0xff]
    %v841 = vld [vmem:[#allocation2 + $0x1840] sm:$0xff]
    %v842 = vld [vmem:[#allocation2 + $0x1848] sm:$0xff]
    %v843 = vld [vmem:[#allocation2 + $0x1850] sm:$0xff]
    %v844 = vld [vmem:[#allocation2 + $0x1858] sm:$0xff]
    %v845 = vld [vmem:[#allocation2 + $0x1860] sm:$0xff]
    %v846 = vld [vmem:[#allocation2 + $0x1868] sm:$0xff]
    %v847 = vld [vmem:[#allocation2 + $0x1870] sm:$0xff]
    %v848 = vld [vmem:[#allocation2 + $0x1878] sm:$0xff]
    %v849 = vld [vmem:[#allocation2 + $0x1880] sm:$0xff]
    %v850 = vld [vmem:[#allocation2 + $0x1888] sm:$0xff]
    %v851 = vld [vmem:[#allocation2 + $0x1890] sm:$0xff]
    %v852 = vld [vmem:[#allocation2 + $0x1898] sm:$0xff]
    %v853 = vld [vmem:[#allocation2 + $0x18a0] sm:$0xff]
    %v854 = vld [vmem:[#allocation2 + $0x18a8] sm:$0xff]
    %v855 = vld [vmem:[#allocation2 + $0x18b0] sm:$0xff]
    %v856 = vld [vmem:[#allocation2 + $0x18b8] sm:$0xff]
    %v857 = vld [vmem:[#allocation2 + $0x18c0] sm:$0xff]
    %v858 = vld [vmem:[#allocation2 + $0x18c8] sm:$0xff]
    %v859 = vld [vmem:[#allocation2 + $0x18d0] sm:$0xff]
    %v860 = vld [vmem:[#allocation2 + $0x18d8] sm:$0xff]
    %v861 = vld [vmem:[#allocation2 + $0x18e0] sm:$0xff]
    %v862 = vld [vmem:[#allocation2 + $0x18e8] sm:$0xff]
    %v863 = vld [vmem:[#allocation2 + $0x18f0] sm:$0xff]
    %v864 = vld [vmem:[#allocation2 + $0x18f8] sm:$0xff]
    %v865 = vld [vmem:[#allocation2 + $0x1900] sm:$0xff]
    %v866 = vld [vmem:[#allocation2 + $0x1908] sm:$0xff]
    %v867 = vld [vmem:[#allocation2 + $0x1910] sm:$0xff]
    %v868 = vld [vmem:[#allocation2 + $0x1918] sm:$0xff]
    %v869 = vld [vmem:[#allocation2 + $0x1920] sm:$0xff]
    %v870 = vld [vmem:[#allocation2 + $0x1928] sm:$0xff]
    %v871 = vld [vmem:[#allocation2 + $0x1930] sm:$0xff]
    %v872 = vld [vmem:[#allocation2 + $0x1938] sm:$0xff]
    %v873 = vld [vmem:[#allocation2 + $0x1940] sm:$0xff]
    %v874 = vld [vmem:[#allocation2 + $0x1948] sm:$0xff]
    %v875 = vld [vmem:[#allocation2 + $0x1950] sm:$0xff]
    %v876 = vld [vmem:[#allocation2 + $0x1958] sm:$0xff]
    %v877 = vld [vmem:[#allocation2 + $0x1960] sm:$0xff]
    %v878 = vld [vmem:[#allocation2 + $0x1968] sm:$0xff]
    %v879 = vld [vmem:[#allocation2 + $0x1970] sm:$0xff]
    %v880 = vld [vmem:[#allocation2 + $0x1978] sm:$0xff]
    %v881 = vld [vmem:[#allocation2 + $0x1980] sm:$0xff]
    %v882 = vld [vmem:[#allocation2 + $0x1988] sm:$0xff]
    %v883 = vld [vmem:[#allocation2 + $0x1990] sm:$0xff]
    %v884 = vld [vmem:[#allocation2 + $0x1998] sm:$0xff]
    %v885 = vld [vmem:[#allocation2 + $0x19a0] sm:$0xff]
    %v886 = vld [vmem:[#allocation2 + $0x19a8] sm:$0xff]
    %v887 = vld [vmem:[#allocation2 + $0x19b0] sm:$0xff]
    %v888 = vld [vmem:[#allocation2 + $0x19b8] sm:$0xff]
    %v889 = vld [vmem:[#allocation2 + $0x19c0] sm:$0xff]
    %v890 = vld [vmem:[#allocation2 + $0x19c8] sm:$0xff]
    %v891 = vld [vmem:[#allocation2 + $0x19d0] sm:$0xff]
    %v892 = vld [vmem:[#allocation2 + $0x19d8] sm:$0xff]
    %v893 = vld [vmem:[#allocation2 + $0x19e0] sm:$0xff]
    %v894 = vld [vmem:[#allocation2 + $0x19e8] sm:$0xff]
    %v895 = vld [vmem:[#allocation2 + $0x19f0] sm:$0xff]
    %v896 = vld [vmem:[#allocation2 + $0x19f8] sm:$0xff]
    %v897 = vld [vmem:[#allocation2 + $0x1a00] sm:$0xff]
    %v898 = vld [vmem:[#allocation2 + $0x1a08] sm:$0xff]
    %v899 = vld [vmem:[#allocation2 + $0x1a10] sm:$0xff]
    %v900 = vld [vmem:[#allocation2 + $0x1a18] sm:$0xff]
    %v901 = vld [vmem:[#allocation2 + $0x1a20] sm:$0xff]
    %v902 = vld [vmem:[#allocation2 + $0x1a28] sm:$0xff]
    %v903 = vld [vmem:[#allocation2 + $0x1a30] sm:$0xff]
    %v904 = vld [vmem:[#allocation2 + $0x1a38] sm:$0xff]
    %v905 = vld [vmem:[#allocation2 + $0x1a40] sm:$0xff]
    %v906 = vld [vmem:[#allocation2 + $0x1a48] sm:$0xff]
    %v907 = vld [vmem:[#allocation2 + $0x1a50] sm:$0xff]
    %v908 = vld [vmem:[#allocation2 + $0x1a58] sm:$0xff]
    %v909 = vld [vmem:[#allocation2 + $0x1a60] sm:$0xff]
    %v910 = vld [vmem:[#allocation2 + $0x1a68] sm:$0xff]
    %v911 = vld [vmem:[#allocation2 + $0x1a70] sm:$0xff]
    %v912 = vld [vmem:[#allocation2 + $0x1a78] sm:$0xff]
    %v913 = vld [vmem:[#allocation2 + $0x1a80] sm:$0xff]
    %v914 = vld [vmem:[#allocation2 + $0x1a88] sm:$0xff]
    %v915 = vld [vmem:[#allocation2 + $0x1a90] sm:$0xff]
    %v916 = vld [vmem:[#allocation2 + $0x1a98] sm:$0xff]
    %v917 = vld [vmem:[#allocation2 + $0x1aa0] sm:$0xff]
    %v918 = vld [vmem:[#allocation2 + $0x1aa8] sm:$0xff]
    %v919 = vld [vmem:[#allocation2 + $0x1ab0] sm:$0xff]
    %v920 = vld [vmem:[#allocation2 + $0x1ab8] sm:$0xff]
    %v921 = vld [vmem:[#allocation2 + $0x1ac0] sm:$0xff]
    %v922 = vld [vmem:[#allocation2 + $0x1ac8] sm:$0xff]
    %v923 = vld [vmem:[#allocation2 + $0x1ad0] sm:$0xff]
    %v924 = vld [vmem:[#allocation2 + $0x1ad8] sm:$0xff]
    %v925 = vld [vmem:[#allocation2 + $0x1ae0] sm:$0xff]
    %v926 = vld [vmem:[#allocation2 + $0x1ae8] sm:$0xff]
    %v927 = vld [vmem:[#allocation2 + $0x1af0] sm:$0xff]
    %v928 = vld [vmem:[#allocation2 + $0x1af8] sm:$0xff]
    %v929 = vld [vmem:[#allocation2 + $0x1b00] sm:$0xff]
    %v930 = vld [vmem:[#allocation2 + $0x1b08] sm:$0xff]
    %v931 = vld [vmem:[#allocation2 + $0x1b10] sm:$0xff]
    %v932 = vld [vmem:[#allocation2 + $0x1b18] sm:$0xff]
    %v933 = vld [vmem:[#allocation2 + $0x1b20] sm:$0xff]
    %v934 = vld [vmem:[#allocation2 + $0x1b28] sm:$0xff]
    %v935 = vld [vmem:[#allocation2 + $0x1b30] sm:$0xff]
    %v936 = vld [vmem:[#allocation2 + $0x1b38] sm:$0xff]
    %v937 = vld [vmem:[#allocation2 + $0x1b40] sm:$0xff]
    %v938 = vld [vmem:[#allocation2 + $0x1b48] sm:$0xff]
    %v939 = vld [vmem:[#allocation2 + $0x1b50] sm:$0xff]
    %v940 = vld [vmem:[#allocation2 + $0x1b58] sm:$0xff]
    %v941 = vld [vmem:[#allocation2 + $0x1b60] sm:$0xff]
    %v942 = vld [vmem:[#allocation2 + $0x1b68] sm:$0xff]
    %v943 = vld [vmem:[#allocation2 + $0x1b70] sm:$0xff]
    %v944 = vld [vmem:[#allocation2 + $0x1b78] sm:$0xff]
    %v945 = vld [vmem:[#allocation2 + $0x1b80] sm:$0xff]
    %v946 = vld [vmem:[#allocation2 + $0x1b88] sm:$0xff]
    %v947 = vld [vmem:[#allocation2 + $0x1b90] sm:$0xff]
    %v948 = vld [vmem:[#allocation2 + $0x1b98] sm:$0xff]
    %v949 = vld [vmem:[#allocation2 + $0x1ba0] sm:$0xff]
    %v950 = vld [vmem:[#allocation2 + $0x1ba8] sm:$0xff]
    %v951 = vld [vmem:[#allocation2 + $0x1bb0] sm:$0xff]
    %v952 = vld [vmem:[#allocation2 + $0x1bb8] sm:$0xff]
    %v953 = vld [vmem:[#allocation2 + $0x1bc0] sm:$0xff]
    %v954 = vld [vmem:[#allocation2 + $0x1bc8] sm:$0xff]
    %v955 = vld [vmem:[#allocation2 + $0x1bd0] sm:$0xff]
    %v956 = vld [vmem:[#allocation2 + $0x1bd8] sm:$0xff]
    %v957 = vld [vmem:[#allocation2 + $0x1be0] sm:$0xff]
    %v958 = vld [vmem:[#allocation2 + $0x1be8] sm:$0xff]
    %v959 = vld [vmem:[#allocation2 + $0x1bf0] sm:$0xff]
    %v960 = vld [vmem:[#allocation2 + $0x1bf8] sm:$0xff]
    %v961 = vld [vmem:[#allocation2 + $0x1c00] sm:$0xff]
    %v962 = vld [vmem:[#allocation2 + $0x1c08] sm:$0xff]
    %v963 = vld [vmem:[#allocation2 + $0x1c10] sm:$0xff]
    %v964 = vld [vmem:[#allocation2 + $0x1c18] sm:$0xff]
    %v965 = vld [vmem:[#allocation2 + $0x1c20] sm:$0xff]
    %v966 = vld [vmem:[#allocation2 + $0x1c28] sm:$0xff]
    %v967 = vld [vmem:[#allocation2 + $0x1c30] sm:$0xff]
    %v968 = vld [vmem:[#allocation2 + $0x1c38] sm:$0xff]
    %v969 = vld [vmem:[#allocation2 + $0x1c40] sm:$0xff]
    %v970 = vld [vmem:[#allocation2 + $0x1c48] sm:$0xff]
    %v971 = vld [vmem:[#allocation2 + $0x1c50] sm:$0xff]
    %v972 = vld [vmem:[#allocation2 + $0x1c58] sm:$0xff]
    %v973 = vld [vmem:[#allocation2 + $0x1c60] sm:$0xff]
    %v974 = vld [vmem:[#allocation2 + $0x1c68] sm:$0xff]
    %v975 = vld [vmem:[#allocation2 + $0x1c70] sm:$0xff]
    %v976 = vld [vmem:[#allocation2 + $0x1c78] sm:$0xff]
    %v977 = vld [vmem:[#allocation2 + $0x1c80] sm:$0xff]
    %v978 = vld [vmem:[#allocation2 + $0x1c88] sm:$0xff]
    %v979 = vld [vmem:[#allocation2 + $0x1c90] sm:$0xff]
    %v980 = vld [vmem:[#allocation2 + $0x1c98] sm:$0xff]
    %v981 = vld [vmem:[#allocation2 + $0x1ca0] sm:$0xff]
    %v982 = vld [vmem:[#allocation2 + $0x1ca8] sm:$0xff]
    %v983 = vld [vmem:[#allocation2 + $0x1cb0] sm:$0xff]
    %v984 = vld [vmem:[#allocation2 + $0x1cb8] sm:$0xff]
    %v985 = vld [vmem:[#allocation2 + $0x1cc0] sm:$0xff]
    %v986 = vld [vmem:[#allocation2 + $0x1cc8] sm:$0xff]
    %v987 = vld [vmem:[#allocation2 + $0x1cd0] sm:$0xff]
    %v988 = vld [vmem:[#allocation2 + $0x1cd8] sm:$0xff]
    %v989 = vld [vmem:[#allocation2 + $0x1ce0] sm:$0xff]
    %v990 = vld [vmem:[#allocation2 + $0x1ce8] sm:$0xff]
    %v991 = vld [vmem:[#allocation2 + $0x1cf0] sm:$0xff]
    %v992 = vld [vmem:[#allocation2 + $0x1cf8] sm:$0xff]
    %v993 = vld [vmem:[#allocation2 + $0x1d00] sm:$0xff]
    %v994 = vld [vmem:[#allocation2 + $0x1d08] sm:$0xff]
    %v995 = vld [vmem:[#allocation2 + $0x1d10] sm:$0xff]
    %v996 = vld [vmem:[#allocation2 + $0x1d18] sm:$0xff]
    %v997 = vld [vmem:[#allocation2 + $0x1d20] sm:$0xff]
    %v998 = vld [vmem:[#allocation2 + $0x1d28] sm:$0xff]
    %v999 = vld [vmem:[#allocation2 + $0x1d30] sm:$0xff]
    %v1000 = vld [vmem:[#allocation2 + $0x1d38] sm:$0xff]
    %v1001 = vld [vmem:[#allocation2 + $0x1d40] sm:$0xff]
    %v1002 = vld [vmem:[#allocation2 + $0x1d48] sm:$0xff]
    %v1003 = vld [vmem:[#allocation2 + $0x1d50] sm:$0xff]
    %v1004 = vld [vmem:[#allocation2 + $0x1d58] sm:$0xff]
    %v1005 = vld [vmem:[#allocation2 + $0x1d60] sm:$0xff]
    %v1006 = vld [vmem:[#allocation2 + $0x1d68] sm:$0xff]
    %v1007 = vld [vmem:[#allocation2 + $0x1d70] sm:$0xff]
    %v1008 = vld [vmem:[#allocation2 + $0x1d78] sm:$0xff]
    %v1009 = vld [vmem:[#allocation2 + $0x1d80] sm:$0xff]
    %v1010 = vld [vmem:[#allocation2 + $0x1d88] sm:$0xff]
    %v1011 = vld [vmem:[#allocation2 + $0x1d90] sm:$0xff]
    %v1012 = vld [vmem:[#allocation2 + $0x1d98] sm:$0xff]
    %v1013 = vld [vmem:[#allocation2 + $0x1da0] sm:$0xff]
    %v1014 = vld [vmem:[#allocation2 + $0x1da8] sm:$0xff]
    %v1015 = vld [vmem:[#allocation2 + $0x1db0] sm:$0xff]
    %v1016 = vld [vmem:[#allocation2 + $0x1db8] sm:$0xff]
    %v1017 = vld [vmem:[#allocation2 + $0x1dc0] sm:$0xff]
    %v1018 = vld [vmem:[#allocation2 + $0x1dc8] sm:$0xff]
    %v1019 = vld [vmem:[#allocation2 + $0x1dd0] sm:$0xff]
    %v1020 = vld [vmem:[#allocation2 + $0x1dd8] sm:$0xff]
    %v1021 = vld [vmem:[#allocation2 + $0x1de0] sm:$0xff]
    %v1022 = vld [vmem:[#allocation2 + $0x1de8] sm:$0xff]
    %v1023 = vld [vmem:[#allocation2 + $0x1df0] sm:$0xff]
    %v1024 = vld [vmem:[#allocation2 + $0x1df8] sm:$0xff]
    %v1025 = vld [vmem:[#allocation2 + $0x1e00] sm:$0xff]
    %v1026 = vld [vmem:[#allocation2 + $0x1e08] sm:$0xff]
    %v1027 = vld [vmem:[#allocation2 + $0x1e10] sm:$0xff]
    %v1028 = vld [vmem:[#allocation2 + $0x1e18] sm:$0xff]
    %v1029 = vld [vmem:[#allocation2 + $0x1e20] sm:$0xff]
    %v1030 = vld [vmem:[#allocation2 + $0x1e28] sm:$0xff]
    %v1031 = vld [vmem:[#allocation2 + $0x1e30] sm:$0xff]
    %v1032 = vld [vmem:[#allocation2 + $0x1e38] sm:$0xff]
    %v1033 = vld [vmem:[#allocation2 + $0x1e40] sm:$0xff]
    %v1034 = vld [vmem:[#allocation2 + $0x1e48] sm:$0xff]
    %v1035 = vld [vmem:[#allocation2 + $0x1e50] sm:$0xff]
    %v1036 = vld [vmem:[#allocation2 + $0x1e58] sm:$0xff]
    %v1037 = vld [vmem:[#allocation2 + $0x1e60] sm:$0xff]
    %v1038 = vld [vmem:[#allocation2 + $0x1e68] sm:$0xff]
    %v1039 = vld [vmem:[#allocation2 + $0x1e70] sm:$0xff]
    %v1040 = vld [vmem:[#allocation2 + $0x1e78] sm:$0xff]
    %v1041 = vld [vmem:[#allocation2 + $0x1e80] sm:$0xff]
    %v1042 = vld [vmem:[#allocation2 + $0x1e88] sm:$0xff]
    %v1043 = vld [vmem:[#allocation2 + $0x1e90] sm:$0xff]
    %v1044 = vld [vmem:[#allocation2 + $0x1e98] sm:$0xff]
    %v1045 = vld [vmem:[#allocation2 + $0x1ea0] sm:$0xff]
    %v1046 = vld [vmem:[#allocation2 + $0x1ea8] sm:$0xff]
    %v1047 = vld [vmem:[#allocation2 + $0x1eb0] sm:$0xff]
    %v1048 = vld [vmem:[#allocation2 + $0x1eb8] sm:$0xff]
    %v1049 = vld [vmem:[#allocation2 + $0x1ec0] sm:$0xff]
    %v1050 = vld [vmem:[#allocation2 + $0x1ec8] sm:$0xff]
    %v1051 = vld [vmem:[#allocation2 + $0x1ed0] sm:$0xff]
    %v1052 = vld [vmem:[#allocation2 + $0x1ed8] sm:$0xff]
    %v1053 = vld [vmem:[#allocation2 + $0x1ee0] sm:$0xff]
    %v1054 = vld [vmem:[#allocation2 + $0x1ee8] sm:$0xff]
    %v1055 = vld [vmem:[#allocation2 + $0x1ef0] sm:$0xff]
    %v1056 = vld [vmem:[#allocation2 + $0x1ef8] sm:$0xff]
    %v1057 = vld [vmem:[#allocation2 + $0x1f00] sm:$0xff]
    %v1058 = vld [vmem:[#allocation2 + $0x1f08] sm:$0xff]
    %v1059 = vld [vmem:[#allocation2 + $0x1f10] sm:$0xff]
    %v1060 = vld [vmem:[#allocation2 + $0x1f18] sm:$0xff]
    %v1061 = vld [vmem:[#allocation2 + $0x1f20] sm:$0xff]
    %v1062 = vld [vmem:[#allocation2 + $0x1f28] sm:$0xff]
    %v1063 = vld [vmem:[#allocation2 + $0x1f30] sm:$0xff]
    %v1064 = vld [vmem:[#allocation2 + $0x1f38] sm:$0xff]
    %v1065 = vld [vmem:[#allocation2 + $0x1f40] sm:$0xff]
    %v1066 = vld [vmem:[#allocation2 + $0x1f48] sm:$0xff]
    %v1067 = vld [vmem:[#allocation2 + $0x1f50] sm:$0xff]
    %v1068 = vld [vmem:[#allocation2 + $0x1f58] sm:$0xff]
    %v1069 = vld [vmem:[#allocation2 + $0x1f60] sm:$0xff]
    %v1070 = vld [vmem:[#allocation2 + $0x1f68] sm:$0xff]
    %v1071 = vld [vmem:[#allocation2 + $0x1f70] sm:$0xff]
    %v1072 = vld [vmem:[#allocation2 + $0x1f78] sm:$0xff]
    %v1073 = vld [vmem:[#allocation2 + $0x1f80] sm:$0xff]
    %v1074 = vld [vmem:[#allocation2 + $0x1f88] sm:$0xff]
    %v1075 = vld [vmem:[#allocation2 + $0x1f90] sm:$0xff]
    %v1076 = vld [vmem:[#allocation2 + $0x1f98] sm:$0xff]
    %v1077 = vld [vmem:[#allocation2 + $0x1fa0] sm:$0xff]
    %v1078 = vld [vmem:[#allocation2 + $0x1fa8] sm:$0xff]
    %v1079 = vld [vmem:[#allocation2 + $0x1fb0] sm:$0xff]
    %v1080 = vld [vmem:[#allocation2 + $0x1fb8] sm:$0xff]
    %v1081 = vld [vmem:[#allocation2 + $0x1fc0] sm:$0xff]
    %v1082 = vld [vmem:[#allocation2 + $0x1fc8] sm:$0xff]
    %v1083 = vld [vmem:[#allocation2 + $0x1fd0] sm:$0xff]
    %v1084 = vld [vmem:[#allocation2 + $0x1fd8] sm:$0xff]
    %v1085 = vld [vmem:[#allocation2 + $0x1fe0] sm:$0xff]
    %v1086 = vld [vmem:[#allocation2 + $0x1fe8] sm:$0xff]
    %v1087 = vld [vmem:[#allocation2 + $0x1ff0] sm:$0xff]
    %v1088 = vld [vmem:[#allocation2 + $0x1ff8] sm:$0xff]
    %v1089 = vld [vmem:[#allocation2 + $0x2000] sm:$0xff]
    %v1090 = vld [vmem:[#allocation2 + $0x2008] sm:$0xff]
    %v1091 = vld [vmem:[#allocation2 + $0x2010] sm:$0xff]
    %v1092 = vld [vmem:[#allocation2 + $0x2018] sm:$0xff]
    %v1093 = vld [vmem:[#allocation2 + $0x2020] sm:$0xff]
    %v1094 = vld [vmem:[#allocation2 + $0x2028] sm:$0xff]
    %v1095 = vld [vmem:[#allocation2 + $0x2030] sm:$0xff]
    %v1096 = vld [vmem:[#allocation2 + $0x2038] sm:$0xff]
    %v1097 = vld [vmem:[#allocation2 + $0x2040] sm:$0xff]
    %v1098 = vld [vmem:[#allocation2 + $0x2048] sm:$0xff]
    %v1099 = vld [vmem:[#allocation2 + $0x2050] sm:$0xff]
    %v1100 = vld [vmem:[#allocation2 + $0x2058] sm:$0xff]
    %v1101 = vld [vmem:[#allocation2 + $0x2060] sm:$0xff]
    %v1102 = vld [vmem:[#allocation2 + $0x2068] sm:$0xff]
    %v1103 = vld [vmem:[#allocation2 + $0x2070] sm:$0xff]
    %v1104 = vld [vmem:[#allocation2 + $0x2078] sm:$0xff]
    %v1105 = vld [vmem:[#allocation2 + $0x2080] sm:$0xff]
    %v1106 = vld [vmem:[#allocation2 + $0x2088] sm:$0xff]
    %v1107 = vld [vmem:[#allocation2 + $0x2090] sm:$0xff]
    %v1108 = vld [vmem:[#allocation2 + $0x2098] sm:$0xff]
    %v1109 = vld [vmem:[#allocation2 + $0x20a0] sm:$0xff]
    %v1110 = vld [vmem:[#allocation2 + $0x20a8] sm:$0xff]
    %v1111 = vld [vmem:[#allocation2 + $0x20b0] sm:$0xff]
    %v1112 = vld [vmem:[#allocation2 + $0x20b8] sm:$0xff]
    %v1113 = vld [vmem:[#allocation2 + $0x20c0] sm:$0xff]
    %v1114 = vld [vmem:[#allocation2 + $0x20c8] sm:$0xff]
    %v1115 = vld [vmem:[#allocation2 + $0x20d0] sm:$0xff]
    %v1116 = vld [vmem:[#allocation2 + $0x20d8] sm:$0xff]
    %v1117 = vld [vmem:[#allocation2 + $0x20e0] sm:$0xff]
    %v1118 = vld [vmem:[#allocation2 + $0x20e8] sm:$0xff]
    %v1119 = vld [vmem:[#allocation2 + $0x20f0] sm:$0xff]
    %v1120 = vld [vmem:[#allocation2 + $0x20f8] sm:$0xff]
    %v1121 = vld [vmem:[#allocation2 + $0x2100] sm:$0xff]
    %v1122 = vld [vmem:[#allocation2 + $0x2108] sm:$0xff]
    %v1123 = vld [vmem:[#allocation2 + $0x2110] sm:$0xff]
    %v1124 = vld [vmem:[#allocation2 + $0x2118] sm:$0xff]
    %v1125 = vld [vmem:[#allocation2 + $0x2120] sm:$0xff]
    %v1126 = vld [vmem:[#allocation2 + $0x2128] sm:$0xff]
    %v1127 = vld [vmem:[#allocation2 + $0x2130] sm:$0xff]
    %v1128 = vld [vmem:[#allocation2 + $0x2138] sm:$0xff]
    %v1129 = vld [vmem:[#allocation2 + $0x2140] sm:$0xff]
    %v1130 = vld [vmem:[#allocation2 + $0x2148] sm:$0xff]
    %v1131 = vld [vmem:[#allocation2 + $0x2150] sm:$0xff]
    %v1132 = vld [vmem:[#allocation2 + $0x2158] sm:$0xff]
    %v1133 = vld [vmem:[#allocation2 + $0x2160] sm:$0xff]
    %v1134 = vld [vmem:[#allocation2 + $0x2168] sm:$0xff]
    %v1135 = vld [vmem:[#allocation2 + $0x2170] sm:$0xff]
    %v1136 = vld [vmem:[#allocation2 + $0x2178] sm:$0xff]
    %v1137 = vld [vmem:[#allocation2 + $0x2180] sm:$0xff]
    %v1138 = vld [vmem:[#allocation2 + $0x2188] sm:$0xff]
    %v1139 = vld [vmem:[#allocation2 + $0x2190] sm:$0xff]
    %v1140 = vld [vmem:[#allocation2 + $0x2198] sm:$0xff]
    %v1141 = vld [vmem:[#allocation2 + $0x21a0] sm:$0xff]
    %v1142 = vld [vmem:[#allocation2 + $0x21a8] sm:$0xff]
    %v1143 = vld [vmem:[#allocation2 + $0x21b0] sm:$0xff]
    %v1144 = vld [vmem:[#allocation2 + $0x21b8] sm:$0xff]
    %v1145 = vld [vmem:[#allocation2 + $0x21c0] sm:$0xff]
    %v1146 = vld [vmem:[#allocation2 + $0x21c8] sm:$0xff]
    %v1147 = vld [vmem:[#allocation2 + $0x21d0] sm:$0xff]
    %v1148 = vld [vmem:[#allocation2 + $0x21d8] sm:$0xff]
    %v1149 = vld [vmem:[#allocation2 + $0x21e0] sm:$0xff]
    %v1150 = vld [vmem:[#allocation2 + $0x21e8] sm:$0xff]
    %v1151 = vld [vmem:[#allocation2 + $0x21f0] sm:$0xff]
    %v1152 = vld [vmem:[#allocation2 + $0x21f8] sm:$0xff]
    %v1153 = vld [vmem:[#allocation2 + $0x2200] sm:$0xff]
    %v1154 = vld [vmem:[#allocation2 + $0x2208] sm:$0xff]
    %v1155 = vld [vmem:[#allocation2 + $0x2210] sm:$0xff]
    %v1156 = vld [vmem:[#allocation2 + $0x2218] sm:$0xff]
    %v1157 = vld [vmem:[#allocation2 + $0x2220] sm:$0xff]
    %v1158 = vld [vmem:[#allocation2 + $0x2228] sm:$0xff]
    %v1159 = vld [vmem:[#allocation2 + $0x2230] sm:$0xff]
    %v1160 = vld [vmem:[#allocation2 + $0x2238] sm:$0xff]
    %v1161 = vld [vmem:[#allocation2 + $0x2240] sm:$0xff]
    %v1162 = vld [vmem:[#allocation2 + $0x2248] sm:$0xff]
    %v1163 = vld [vmem:[#allocation2 + $0x2250] sm:$0xff]
    %v1164 = vld [vmem:[#allocation2 + $0x2258] sm:$0xff]
    %v1165 = vld [vmem:[#allocation2 + $0x2260] sm:$0xff]
    %v1166 = vld [vmem:[#allocation2 + $0x2268] sm:$0xff]
    %v1167 = vld [vmem:[#allocation2 + $0x2270] sm:$0xff]
    %v1168 = vld [vmem:[#allocation2 + $0x2278] sm:$0xff]
    %v1169 = vld [vmem:[#allocation2 + $0x2280] sm:$0xff]
    %v1170 = vld [vmem:[#allocation2 + $0x2288] sm:$0xff]
    %v1171 = vld [vmem:[#allocation2 + $0x2290] sm:$0xff]
    %v1172 = vld [vmem:[#allocation2 + $0x2298] sm:$0xff]
    %v1173 = vld [vmem:[#allocation2 + $0x22a0] sm:$0xff]
    %v1174 = vld [vmem:[#allocation2 + $0x22a8] sm:$0xff]
    %v1175 = vld [vmem:[#allocation2 + $0x22b0] sm:$0xff]
    %v1176 = vld [vmem:[#allocation2 + $0x22b8] sm:$0xff]
    %v1177 = vld [vmem:[#allocation2 + $0x22c0] sm:$0xff]
    %v1178 = vld [vmem:[#allocation2 + $0x22c8] sm:$0xff]
    %v1179 = vld [vmem:[#allocation2 + $0x22d0] sm:$0xff]
    %v1180 = vld [vmem:[#allocation2 + $0x22d8] sm:$0xff]
    %v1181 = vld [vmem:[#allocation2 + $0x22e0] sm:$0xff]
    %v1182 = vld [vmem:[#allocation2 + $0x22e8] sm:$0xff]
    %v1183 = vld [vmem:[#allocation2 + $0x22f0] sm:$0xff]
    %v1184 = vld [vmem:[#allocation2 + $0x22f8] sm:$0xff]
    %v1185 = vld [vmem:[#allocation2 + $0x2300] sm:$0xff]
    %v1186 = vld [vmem:[#allocation2 + $0x2308] sm:$0xff]
    %v1187 = vld [vmem:[#allocation2 + $0x2310] sm:$0xff]
    %v1188 = vld [vmem:[#allocation2 + $0x2318] sm:$0xff]
    %v1189 = vld [vmem:[#allocation2 + $0x2320] sm:$0xff]
    %v1190 = vld [vmem:[#allocation2 + $0x2328] sm:$0xff]
    %v1191 = vld [vmem:[#allocation2 + $0x2330] sm:$0xff]
    %v1192 = vld [vmem:[#allocation2 + $0x2338] sm:$0xff]
    %v1193 = vld [vmem:[#allocation2 + $0x2340] sm:$0xff]
    %v1194 = vld [vmem:[#allocation2 + $0x2348] sm:$0xff]
    %v1195 = vld [vmem:[#allocation2 + $0x2350] sm:$0xff]
    %v1196 = vld [vmem:[#allocation2 + $0x2358] sm:$0xff]
    %v1197 = vld [vmem:[#allocation2 + $0x2360] sm:$0xff]
    %v1198 = vld [vmem:[#allocation2 + $0x2368] sm:$0xff]
    %v1199 = vld [vmem:[#allocation2 + $0x2370] sm:$0xff]
    %v1200 = vld [vmem:[#allocation2 + $0x2378] sm:$0xff]
    %v1201 = vld [vmem:[#allocation2 + $0x2380] sm:$0xff]
    %v1202 = vld [vmem:[#allocation2 + $0x2388] sm:$0xff]
    %v1203 = vld [vmem:[#allocation2 + $0x2390] sm:$0xff]
    %v1204 = vld [vmem:[#allocation2 + $0x2398] sm:$0xff]
    %v1205 = vld [vmem:[#allocation2 + $0x23a0] sm:$0xff]
    %v1206 = vld [vmem:[#allocation2 + $0x23a8] sm:$0xff]
    %v1207 = vld [vmem:[#allocation2 + $0x23b0] sm:$0xff]
    %v1208 = vld [vmem:[#allocation2 + $0x23b8] sm:$0xff]
    %v1209 = vld [vmem:[#allocation2 + $0x23c0] sm:$0xff]
    %v1210 = vld [vmem:[#allocation2 + $0x23c8] sm:$0xff]
    %v1211 = vld [vmem:[#allocation2 + $0x23d0] sm:$0xff]
    %v1212 = vld [vmem:[#allocation2 + $0x23d8] sm:$0xff]
    %v1213 = vld [vmem:[#allocation2 + $0x23e0] sm:$0xff]
    %v1214 = vld [vmem:[#allocation2 + $0x23e8] sm:$0xff]
    %v1215 = vld [vmem:[#allocation2 + $0x23f0] sm:$0xff]
    %v1216 = vld [vmem:[#allocation2 + $0x23f8] sm:$0xff]
    %v1217 = vld [vmem:[#allocation2 + $0x2400] sm:$0xff]
    %v1218 = vld [vmem:[#allocation2 + $0x2408] sm:$0xff]
    %v1219 = vld [vmem:[#allocation2 + $0x2410] sm:$0xff]
    %v1220 = vld [vmem:[#allocation2 + $0x2418] sm:$0xff]
    %v1221 = vld [vmem:[#allocation2 + $0x2420] sm:$0xff]
    %v1222 = vld [vmem:[#allocation2 + $0x2428] sm:$0xff]
    %v1223 = vld [vmem:[#allocation2 + $0x2430] sm:$0xff]
    %v1224 = vld [vmem:[#allocation2 + $0x2438] sm:$0xff]
    %v1225 = vld [vmem:[#allocation2 + $0x2440] sm:$0xff]
    %v1226 = vld [vmem:[#allocation2 + $0x2448] sm:$0xff]
    %v1227 = vld [vmem:[#allocation2 + $0x2450] sm:$0xff]
    %v1228 = vld [vmem:[#allocation2 + $0x2458] sm:$0xff]
    %v1229 = vld [vmem:[#allocation2 + $0x2460] sm:$0xff]
    %v1230 = vld [vmem:[#allocation2 + $0x2468] sm:$0xff]
    %v1231 = vld [vmem:[#allocation2 + $0x2470] sm:$0xff]
    %v1232 = vld [vmem:[#allocation2 + $0x2478] sm:$0xff]
    %v1233 = vld [vmem:[#allocation2 + $0x2480] sm:$0xff]
    %v1234 = vld [vmem:[#allocation2 + $0x2488] sm:$0xff]
    %v1235 = vld [vmem:[#allocation2 + $0x2490] sm:$0xff]
    %v1236 = vld [vmem:[#allocation2 + $0x2498] sm:$0xff]
    %v1237 = vld [vmem:[#allocation2 + $0x24a0] sm:$0xff]
    %v1238 = vld [vmem:[#allocation2 + $0x24a8] sm:$0xff]
    %v1239 = vld [vmem:[#allocation2 + $0x24b0] sm:$0xff]
    %v1240 = vld [vmem:[#allocation2 + $0x24b8] sm:$0xff]
    %v1241 = vld [vmem:[#allocation2 + $0x24c0] sm:$0xff]
    %v1242 = vld [vmem:[#allocation2 + $0x24c8] sm:$0xff]
    %v1243 = vld [vmem:[#allocation2 + $0x24d0] sm:$0xff]
    %v1244 = vld [vmem:[#allocation2 + $0x24d8] sm:$0xff]
    %v1245 = vld [vmem:[#allocation2 + $0x24e0] sm:$0xff]
    %v1246 = vld [vmem:[#allocation2 + $0x24e8] sm:$0xff]
    %v1247 = vld [vmem:[#allocation2 + $0x24f0] sm:$0xff]
    %v1248 = vld [vmem:[#allocation2 + $0x24f8] sm:$0xff]
    %v1249 = vld [vmem:[#allocation2 + $0x2500] sm:$0xff]
    %v1250 = vld [vmem:[#allocation2 + $0x2508] sm:$0xff]
    %v1251 = vld [vmem:[#allocation2 + $0x2510] sm:$0xff]
    %v1252 = vld [vmem:[#allocation2 + $0x2518] sm:$0xff]
    %v1253 = vld [vmem:[#allocation2 + $0x2520] sm:$0xff]
    %v1254 = vld [vmem:[#allocation2 + $0x2528] sm:$0xff]
    %v1255 = vld [vmem:[#allocation2 + $0x2530] sm:$0xff]
    %v1256 = vld [vmem:[#allocation2 + $0x2538] sm:$0xff]
    %v1257 = vld [vmem:[#allocation2 + $0x2540] sm:$0xff]
    %v1258 = vld [vmem:[#allocation2 + $0x2548] sm:$0xff]
    %v1259 = vld [vmem:[#allocation2 + $0x2550] sm:$0xff]
    %v1260 = vld [vmem:[#allocation2 + $0x2558] sm:$0xff]
    %v1261 = vld [vmem:[#allocation2 + $0x2560] sm:$0xff]
    %v1262 = vld [vmem:[#allocation2 + $0x2568] sm:$0xff]
    %v1263 = vld [vmem:[#allocation2 + $0x2570] sm:$0xff]
    %v1264 = vld [vmem:[#allocation2 + $0x2578] sm:$0xff]
    %v1265 = vld [vmem:[#allocation2 + $0x2580] sm:$0xff]
    %v1266 = vld [vmem:[#allocation2 + $0x2588] sm:$0xff]
    %v1267 = vld [vmem:[#allocation2 + $0x2590] sm:$0xff]
    %v1268 = vld [vmem:[#allocation2 + $0x2598] sm:$0xff]
    %v1269 = vld [vmem:[#allocation2 + $0x25a0] sm:$0xff]
    %v1270 = vld [vmem:[#allocation2 + $0x25a8] sm:$0xff]
    %v1271 = vld [vmem:[#allocation2 + $0x25b0] sm:$0xff]
    %v1272 = vld [vmem:[#allocation2 + $0x25b8] sm:$0xff]
    %v1273 = vld [vmem:[#allocation2 + $0x25c0] sm:$0xff]
    %v1274 = vld [vmem:[#allocation2 + $0x25c8] sm:$0xff]
    %v1275 = vld [vmem:[#allocation2 + $0x25d0] sm:$0xff]
    %v1276 = vld [vmem:[#allocation2 + $0x25d8] sm:$0xff]
    %v1277 = vld [vmem:[#allocation2 + $0x25e0] sm:$0xff]
    %v1278 = vld [vmem:[#allocation2 + $0x25e8] sm:$0xff]
    %v1279 = vld [vmem:[#allocation2 + $0x25f0] sm:$0xff]
    %v1280 = vld [vmem:[#allocation2 + $0x25f8] sm:$0xff]
    %v1281 = vld [vmem:[#allocation2 + $0x2600] sm:$0xff]
    %v1282 = vld [vmem:[#allocation2 + $0x2608] sm:$0xff]
    %v1283 = vld [vmem:[#allocation2 + $0x2610] sm:$0xff]
    %v1284 = vld [vmem:[#allocation2 + $0x2618] sm:$0xff]
    %v1285 = vld [vmem:[#allocation2 + $0x2620] sm:$0xff]
    %v1286 = vld [vmem:[#allocation2 + $0x2628] sm:$0xff]
    %v1287 = vld [vmem:[#allocation2 + $0x2630] sm:$0xff]
    %v1288 = vld [vmem:[#allocation2 + $0x2638] sm:$0xff]
    %v1289 = vld [vmem:[#allocation2 + $0x2640] sm:$0xff]
    %v1290 = vld [vmem:[#allocation2 + $0x2648] sm:$0xff]
    %v1291 = vld [vmem:[#allocation2 + $0x2650] sm:$0xff]
    %v1292 = vld [vmem:[#allocation2 + $0x2658] sm:$0xff]
    %v1293 = vld [vmem:[#allocation2 + $0x2660] sm:$0xff]
    %v1294 = vld [vmem:[#allocation2 + $0x2668] sm:$0xff]
    %v1295 = vld [vmem:[#allocation2 + $0x2670] sm:$0xff]
    %v1296 = vld [vmem:[#allocation2 + $0x2678] sm:$0xff]
    %v1297 = vld [vmem:[#allocation2 + $0x2680] sm:$0xff]
    %v1298 = vld [vmem:[#allocation2 + $0x2688] sm:$0xff]
    %v1299 = vld [vmem:[#allocation2 + $0x2690] sm:$0xff]
    %v1300 = vld [vmem:[#allocation2 + $0x2698] sm:$0xff]
    %v1301 = vld [vmem:[#allocation2 + $0x26a0] sm:$0xff]
    %v1302 = vld [vmem:[#allocation2 + $0x26a8] sm:$0xff]
    %v1303 = vld [vmem:[#allocation2 + $0x26b0] sm:$0xff]
    %v1304 = vld [vmem:[#allocation2 + $0x26b8] sm:$0xff]
    %v1305 = vld [vmem:[#allocation2 + $0x26c0] sm:$0xff]
    %v1306 = vld [vmem:[#allocation2 + $0x26c8] sm:$0xff]
    %v1307 = vld [vmem:[#allocation2 + $0x26d0] sm:$0xff]
    %v1308 = vld [vmem:[#allocation2 + $0x26d8] sm:$0xff]
    %v1309 = vld [vmem:[#allocation2 + $0x26e0] sm:$0xff]
    %v1310 = vld [vmem:[#allocation2 + $0x26e8] sm:$0xff]
    %v1311 = vld [vmem:[#allocation2 + $0x26f0] sm:$0xff]
    %v1312 = vld [vmem:[#allocation2 + $0x26f8] sm:$0xff]
    %v1313 = vld [vmem:[#allocation2 + $0x2700] sm:$0xff]
    %v1314 = vld [vmem:[#allocation2 + $0x2708] sm:$0xff]
    %v1315 = vld [vmem:[#allocation2 + $0x2710] sm:$0xff]
    %v1316 = vld [vmem:[#allocation2 + $0x2718] sm:$0xff]
    %v1317 = vld [vmem:[#allocation2 + $0x2720] sm:$0xff]
    %v1318 = vld [vmem:[#allocation2 + $0x2728] sm:$0xff]
    %v1319 = vld [vmem:[#allocation2 + $0x2730] sm:$0xff]
    %v1320 = vld [vmem:[#allocation2 + $0x2738] sm:$0xff]
    %v1321 = vld [vmem:[#allocation2 + $0x2740] sm:$0xff]
    %v1322 = vld [vmem:[#allocation2 + $0x2748] sm:$0xff]
    %v1323 = vld [vmem:[#allocation2 + $0x2750] sm:$0xff]
    %v1324 = vld [vmem:[#allocation2 + $0x2758] sm:$0xff]
    %v1325 = vld [vmem:[#allocation2 + $0x2760] sm:$0xff]
    %v1326 = vld [vmem:[#allocation2 + $0x2768] sm:$0xff]
    %v1327 = vld [vmem:[#allocation2 + $0x2770] sm:$0xff]
    %v1328 = vld [vmem:[#allocation2 + $0x2778] sm:$0xff]
    %v1329 = vld [vmem:[#allocation2 + $0x2780] sm:$0xff]
    %v1330 = vld [vmem:[#allocation2 + $0x2788] sm:$0xff]
    %v1331 = vld [vmem:[#allocation2 + $0x2790] sm:$0xff]
    %v1332 = vld [vmem:[#allocation2 + $0x2798] sm:$0xff]
    %v1333 = vld [vmem:[#allocation2 + $0x27a0] sm:$0xff]
    %v1334 = vld [vmem:[#allocation2 + $0x27a8] sm:$0xff]
    %v1335 = vld [vmem:[#allocation2 + $0x27b0] sm:$0xff]
    %v1336 = vld [vmem:[#allocation2 + $0x27b8] sm:$0xff]
    %v1337 = vld [vmem:[#allocation2 + $0x27c0] sm:$0xff]
    %v1338 = vld [vmem:[#allocation2 + $0x27c8] sm:$0xff]
    %v1339 = vld [vmem:[#allocation2 + $0x27d0] sm:$0xff]
    %v1340 = vld [vmem:[#allocation2 + $0x27d8] sm:$0xff]
    %v1341 = vld [vmem:[#allocation2 + $0x27e0] sm:$0xff]
    %v1342 = vld [vmem:[#allocation2 + $0x27e8] sm:$0xff]
    %v1343 = vld [vmem:[#allocation2 + $0x27f0] sm:$0xff]
    %v1344 = vld [vmem:[#allocation2 + $0x27f8] sm:$0xff]
    %v1345 = vld [vmem:[#allocation2 + $0x2800] sm:$0xff]
    %v1346 = vld [vmem:[#allocation2 + $0x2808] sm:$0xff]
    %v1347 = vld [vmem:[#allocation2 + $0x2810] sm:$0xff]
    %v1348 = vld [vmem:[#allocation2 + $0x2818] sm:$0xff]
    %v1349 = vld [vmem:[#allocation2 + $0x2820] sm:$0xff]
    %v1350 = vld [vmem:[#allocation2 + $0x2828] sm:$0xff]
    %v1351 = vld [vmem:[#allocation2 + $0x2830] sm:$0xff]
    %v1352 = vld [vmem:[#allocation2 + $0x2838] sm:$0xff]
    %v1353 = vld [vmem:[#allocation2 + $0x2840] sm:$0xff]
    %v1354 = vld [vmem:[#allocation2 + $0x2848] sm:$0xff]
    %v1355 = vld [vmem:[#allocation2 + $0x2850] sm:$0xff]
    %v1356 = vld [vmem:[#allocation2 + $0x2858] sm:$0xff]
    %v1357 = vld [vmem:[#allocation2 + $0x2860] sm:$0xff]
    %v1358 = vld [vmem:[#allocation2 + $0x2868] sm:$0xff]
    %v1359 = vld [vmem:[#allocation2 + $0x2870] sm:$0xff]
    %v1360 = vld [vmem:[#allocation2 + $0x2878] sm:$0xff]
    %v1361 = vld [vmem:[#allocation2 + $0x2880] sm:$0xff]
    %v1362 = vld [vmem:[#allocation2 + $0x2888] sm:$0xff]
    %v1363 = vld [vmem:[#allocation2 + $0x2890] sm:$0xff]
    %v1364 = vld [vmem:[#allocation2 + $0x2898] sm:$0xff]
    %v1365 = vld [vmem:[#allocation2 + $0x28a0] sm:$0xff]
    %v1366 = vld [vmem:[#allocation2 + $0x28a8] sm:$0xff]
    %v1367 = vld [vmem:[#allocation2 + $0x28b0] sm:$0xff]
    %v1368 = vld [vmem:[#allocation2 + $0x28b8] sm:$0xff]
    %v1369 = vld [vmem:[#allocation2 + $0x28c0] sm:$0xff]
    %v1370 = vld [vmem:[#allocation2 + $0x28c8] sm:$0xff]
    %v1371 = vld [vmem:[#allocation2 + $0x28d0] sm:$0xff]
    %v1372 = vld [vmem:[#allocation2 + $0x28d8] sm:$0xff]
    %v1373 = vld [vmem:[#allocation2 + $0x28e0] sm:$0xff]
    %v1374 = vld [vmem:[#allocation2 + $0x28e8] sm:$0xff]
    %v1375 = vld [vmem:[#allocation2 + $0x28f0] sm:$0xff]
    %v1376 = vld [vmem:[#allocation2 + $0x28f8] sm:$0xff]
    %v1377 = vld [vmem:[#allocation2 + $0x2900] sm:$0xff]
    %v1378 = vld [vmem:[#allocation2 + $0x2908] sm:$0xff]
    %v1379 = vld [vmem:[#allocation2 + $0x2910] sm:$0xff]
    %v1380 = vld [vmem:[#allocation2 + $0x2918] sm:$0xff]
    %v1381 = vld [vmem:[#allocation2 + $0x2920] sm:$0xff]
    %v1382 = vld [vmem:[#allocation2 + $0x2928] sm:$0xff]
    %v1383 = vld [vmem:[#allocation2 + $0x2930] sm:$0xff]
    %v1384 = vld [vmem:[#allocation2 + $0x2938] sm:$0xff]
    %v1385 = vld [vmem:[#allocation2 + $0x2940] sm:$0xff]
    %v1386 = vld [vmem:[#allocation2 + $0x2948] sm:$0xff]
    %v1387 = vld [vmem:[#allocation2 + $0x2950] sm:$0xff]
    %v1388 = vld [vmem:[#allocation2 + $0x2958] sm:$0xff]
    %v1389 = vld [vmem:[#allocation2 + $0x2960] sm:$0xff]
    %v1390 = vld [vmem:[#allocation2 + $0x2968] sm:$0xff]
    %v1391 = vld [vmem:[#allocation2 + $0x2970] sm:$0xff]
    %v1392 = vld [vmem:[#allocation2 + $0x2978] sm:$0xff]
    %v1393 = vld [vmem:[#allocation2 + $0x2980] sm:$0xff]
    %v1394 = vld [vmem:[#allocation2 + $0x2988] sm:$0xff]
    %v1395 = vld [vmem:[#allocation2 + $0x2990] sm:$0xff]
    %v1396 = vld [vmem:[#allocation2 + $0x2998] sm:$0xff]
    %v1397 = vld [vmem:[#allocation2 + $0x29a0] sm:$0xff]
    %v1398 = vld [vmem:[#allocation2 + $0x29a8] sm:$0xff]
    %v1399 = vld [vmem:[#allocation2 + $0x29b0] sm:$0xff]
    %v1400 = vld [vmem:[#allocation2 + $0x29b8] sm:$0xff]
    %v1401 = vld [vmem:[#allocation2 + $0x29c0] sm:$0xff]
    %v1402 = vld [vmem:[#allocation2 + $0x29c8] sm:$0xff]
    %v1403 = vld [vmem:[#allocation2 + $0x29d0] sm:$0xff]
    %v1404 = vld [vmem:[#allocation2 + $0x29d8] sm:$0xff]
    %v1405 = vld [vmem:[#allocation2 + $0x29e0] sm:$0xff]
    %v1406 = vld [vmem:[#allocation2 + $0x29e8] sm:$0xff]
    %v1407 = vld [vmem:[#allocation2 + $0x29f0] sm:$0xff]
    %v1408 = vld [vmem:[#allocation2 + $0x29f8] sm:$0xff]
    %v1409 = vld [vmem:[#allocation2 + $0x2a00] sm:$0xff]
    %v1410 = vld [vmem:[#allocation2 + $0x2a08] sm:$0xff]
    %v1411 = vld [vmem:[#allocation2 + $0x2a10] sm:$0xff]
    %v1412 = vld [vmem:[#allocation2 + $0x2a18] sm:$0xff]
    %v1413 = vld [vmem:[#allocation2 + $0x2a20] sm:$0xff]
    %v1414 = vld [vmem:[#allocation2 + $0x2a28] sm:$0xff]
    %v1415 = vld [vmem:[#allocation2 + $0x2a30] sm:$0xff]
    %v1416 = vld [vmem:[#allocation2 + $0x2a38] sm:$0xff]
    %v1417 = vld [vmem:[#allocation2 + $0x2a40] sm:$0xff]
    %v1418 = vld [vmem:[#allocation2 + $0x2a48] sm:$0xff]
    %v1419 = vld [vmem:[#allocation2 + $0x2a50] sm:$0xff]
    %v1420 = vld [vmem:[#allocation2 + $0x2a58] sm:$0xff]
    %v1421 = vld [vmem:[#allocation2 + $0x2a60] sm:$0xff]
    %v1422 = vld [vmem:[#allocation2 + $0x2a68] sm:$0xff]
    %v1423 = vld [vmem:[#allocation2 + $0x2a70] sm:$0xff]
    %v1424 = vld [vmem:[#allocation2 + $0x2a78] sm:$0xff]
    %v1425 = vld [vmem:[#allocation2 + $0x2a80] sm:$0xff]
    %v1426 = vld [vmem:[#allocation2 + $0x2a88] sm:$0xff]
    %v1427 = vld [vmem:[#allocation2 + $0x2a90] sm:$0xff]
    %v1428 = vld [vmem:[#allocation2 + $0x2a98] sm:$0xff]
    %v1429 = vld [vmem:[#allocation2 + $0x2aa0] sm:$0xff]
    %v1430 = vld [vmem:[#allocation2 + $0x2aa8] sm:$0xff]
    %v1431 = vld [vmem:[#allocation2 + $0x2ab0] sm:$0xff]
    %v1432 = vld [vmem:[#allocation2 + $0x2ab8] sm:$0xff]
    %v1433 = vld [vmem:[#allocation2 + $0x2ac0] sm:$0xff]
    %v1434 = vld [vmem:[#allocation2 + $0x2ac8] sm:$0xff]
    %v1435 = vld [vmem:[#allocation2 + $0x2ad0] sm:$0xff]
    %v1436 = vld [vmem:[#allocation2 + $0x2ad8] sm:$0xff]
    %v1437 = vld [vmem:[#allocation2 + $0x2ae0] sm:$0xff]
    %v1438 = vld [vmem:[#allocation2 + $0x2ae8] sm:$0xff]
    %v1439 = vld [vmem:[#allocation2 + $0x2af0] sm:$0xff]
    %v1440 = vld [vmem:[#allocation2 + $0x2af8] sm:$0xff]
    %v1441 = vld [vmem:[#allocation2 + $0x2b00] sm:$0xff]
    %v1442 = vld [vmem:[#allocation2 + $0x2b08] sm:$0xff]
    %v1443 = vld [vmem:[#allocation2 + $0x2b10] sm:$0xff]
    %v1444 = vld [vmem:[#allocation2 + $0x2b18] sm:$0xff]
    %v1445 = vld [vmem:[#allocation2 + $0x2b20] sm:$0xff]
    %v1446 = vld [vmem:[#allocation2 + $0x2b28] sm:$0xff]
    %v1447 = vld [vmem:[#allocation2 + $0x2b30] sm:$0xff]
    %v1448 = vld [vmem:[#allocation2 + $0x2b38] sm:$0xff]
    %v1449 = vld [vmem:[#allocation2 + $0x2b40] sm:$0xff]
    %v1450 = vld [vmem:[#allocation2 + $0x2b48] sm:$0xff]
    %v1451 = vld [vmem:[#allocation2 + $0x2b50] sm:$0xff]
    %v1452 = vld [vmem:[#allocation2 + $0x2b58] sm:$0xff]
    %v1453 = vld [vmem:[#allocation2 + $0x2b60] sm:$0xff]
    %v1454 = vld [vmem:[#allocation2 + $0x2b68] sm:$0xff]
    %v1455 = vld [vmem:[#allocation2 + $0x2b70] sm:$0xff]
    %v1456 = vld [vmem:[#allocation2 + $0x2b78] sm:$0xff]
    %v1457 = vld [vmem:[#allocation2 + $0x2b80] sm:$0xff]
    %v1458 = vld [vmem:[#allocation2 + $0x2b88] sm:$0xff]
    %v1459 = vld [vmem:[#allocation2 + $0x2b90] sm:$0xff]
    %v1460 = vld [vmem:[#allocation2 + $0x2b98] sm:$0xff]
    %v1461 = vld [vmem:[#allocation2 + $0x2ba0] sm:$0xff]
    %v1462 = vld [vmem:[#allocation2 + $0x2ba8] sm:$0xff]
    %v1463 = vld [vmem:[#allocation2 + $0x2bb0] sm:$0xff]
    %v1464 = vld [vmem:[#allocation2 + $0x2bb8] sm:$0xff]
    %v1465 = vld [vmem:[#allocation2 + $0x2bc0] sm:$0xff]
    %v1466 = vld [vmem:[#allocation2 + $0x2bc8] sm:$0xff]
    %v1467 = vld [vmem:[#allocation2 + $0x2bd0] sm:$0xff]
    %v1468 = vld [vmem:[#allocation2 + $0x2bd8] sm:$0xff]
    %v1469 = vld [vmem:[#allocation2 + $0x2be0] sm:$0xff]
    %v1470 = vld [vmem:[#allocation2 + $0x2be8] sm:$0xff]
    %v1471 = vld [vmem:[#allocation2 + $0x2bf0] sm:$0xff]
    %v1472 = vld [vmem:[#allocation2 + $0x2bf8] sm:$0xff]
    %v1473 = vld [vmem:[#allocation2 + $0x2c00] sm:$0xff]
    %v1474 = vld [vmem:[#allocation2 + $0x2c08] sm:$0xff]
    %v1475 = vld [vmem:[#allocation2 + $0x2c10] sm:$0xff]
    %v1476 = vld [vmem:[#allocation2 + $0x2c18] sm:$0xff]
    %v1477 = vld [vmem:[#allocation2 + $0x2c20] sm:$0xff]
    %v1478 = vld [vmem:[#allocation2 + $0x2c28] sm:$0xff]
    %v1479 = vld [vmem:[#allocation2 + $0x2c30] sm:$0xff]
    %v1480 = vld [vmem:[#allocation2 + $0x2c38] sm:$0xff]
    %v1481 = vld [vmem:[#allocation2 + $0x2c40] sm:$0xff]
    %v1482 = vld [vmem:[#allocation2 + $0x2c48] sm:$0xff]
    %v1483 = vld [vmem:[#allocation2 + $0x2c50] sm:$0xff]
    %v1484 = vld [vmem:[#allocation2 + $0x2c58] sm:$0xff]
    %v1485 = vld [vmem:[#allocation2 + $0x2c60] sm:$0xff]
    %v1486 = vld [vmem:[#allocation2 + $0x2c68] sm:$0xff]
    %v1487 = vld [vmem:[#allocation2 + $0x2c70] sm:$0xff]
    %v1488 = vld [vmem:[#allocation2 + $0x2c78] sm:$0xff]
    %v1489 = vld [vmem:[#allocation2 + $0x2c80] sm:$0xff]
    %v1490 = vld [vmem:[#allocation2 + $0x2c88] sm:$0xff]
    %v1491 = vld [vmem:[#allocation2 + $0x2c90] sm:$0xff]
    %v1492 = vld [vmem:[#allocation2 + $0x2c98] sm:$0xff]
    %v1493 = vld [vmem:[#allocation2 + $0x2ca0] sm:$0xff]
    %v1494 = vld [vmem:[#allocation2 + $0x2ca8] sm:$0xff]
    %v1495 = vld [vmem:[#allocation2 + $0x2cb0] sm:$0xff]
    %v1496 = vld [vmem:[#allocation2 + $0x2cb8] sm:$0xff]
    %v1497 = vld [vmem:[#allocation2 + $0x2cc0] sm:$0xff]
    %v1498 = vld [vmem:[#allocation2 + $0x2cc8] sm:$0xff]
    %v1499 = vld [vmem:[#allocation2 + $0x2cd0] sm:$0xff]
    %v1500 = vld [vmem:[#allocation2 + $0x2cd8] sm:$0xff]
    %v1501 = vld [vmem:[#allocation2 + $0x2ce0] sm:$0xff]
    %v1502 = vld [vmem:[#allocation2 + $0x2ce8] sm:$0xff]
    %v1503 = vld [vmem:[#allocation2 + $0x2cf0] sm:$0xff]
    %v1504 = vld [vmem:[#allocation2 + $0x2cf8] sm:$0xff]
    %v1505 = vld [vmem:[#allocation2 + $0x2d00] sm:$0xff]
    %v1506 = vld [vmem:[#allocation2 + $0x2d08] sm:$0xff]
    %v1507 = vld [vmem:[#allocation2 + $0x2d10] sm:$0xff]
    %v1508 = vld [vmem:[#allocation2 + $0x2d18] sm:$0xff]
    %v1509 = vld [vmem:[#allocation2 + $0x2d20] sm:$0xff]
    %v1510 = vld [vmem:[#allocation2 + $0x2d28] sm:$0xff]
    %v1511 = vld [vmem:[#allocation2 + $0x2d30] sm:$0xff]
    %v1512 = vld [vmem:[#allocation2 + $0x2d38] sm:$0xff]
    %v1513 = vld [vmem:[#allocation2 + $0x2d40] sm:$0xff]
    %v1514 = vld [vmem:[#allocation2 + $0x2d48] sm:$0xff]
    %v1515 = vld [vmem:[#allocation2 + $0x2d50] sm:$0xff]
    %v1516 = vld [vmem:[#allocation2 + $0x2d58] sm:$0xff]
    %v1517 = vld [vmem:[#allocation2 + $0x2d60] sm:$0xff]
    %v1518 = vld [vmem:[#allocation2 + $0x2d68] sm:$0xff]
    %v1519 = vld [vmem:[#allocation2 + $0x2d70] sm:$0xff]
    %v1520 = vld [vmem:[#allocation2 + $0x2d78] sm:$0xff]
    %v1521 = vld [vmem:[#allocation2 + $0x2d80] sm:$0xff]
    %v1522 = vld [vmem:[#allocation2 + $0x2d88] sm:$0xff]
    %v1523 = vld [vmem:[#allocation2 + $0x2d90] sm:$0xff]
    %v1524 = vld [vmem:[#allocation2 + $0x2d98] sm:$0xff]
    %v1525 = vld [vmem:[#allocation2 + $0x2da0] sm:$0xff]
    %v1526 = vld [vmem:[#allocation2 + $0x2da8] sm:$0xff]
    %v1527 = vld [vmem:[#allocation2 + $0x2db0] sm:$0xff]
    %v1528 = vld [vmem:[#allocation2 + $0x2db8] sm:$0xff]
    %v1529 = vld [vmem:[#allocation2 + $0x2dc0] sm:$0xff]
    %v1530 = vld [vmem:[#allocation2 + $0x2dc8] sm:$0xff]
    %v1531 = vld [vmem:[#allocation2 + $0x2dd0] sm:$0xff]
    %v1532 = vld [vmem:[#allocation2 + $0x2dd8] sm:$0xff]
    %v1533 = vld [vmem:[#allocation2 + $0x2de0] sm:$0xff]
    %v1534 = vld [vmem:[#allocation2 + $0x2de8] sm:$0xff]
    %v1535 = vld [vmem:[#allocation2 + $0x2df0] sm:$0xff]
    %v1536 = vld [vmem:[#allocation2 + $0x2df8] sm:$0xff]
    %v1537 = vld [vmem:[#allocation2 + $0x2e00] sm:$0xff]
    %v1538 = vld [vmem:[#allocation2 + $0x2e08] sm:$0xff]
    %v1539 = vld [vmem:[#allocation2 + $0x2e10] sm:$0xff]
    %v1540 = vld [vmem:[#allocation2 + $0x2e18] sm:$0xff]
    %v1541 = vld [vmem:[#allocation2 + $0x2e20] sm:$0xff]
    %v1542 = vld [vmem:[#allocation2 + $0x2e28] sm:$0xff]
    %v1543 = vld [vmem:[#allocation2 + $0x2e30] sm:$0xff]
    %v1544 = vld [vmem:[#allocation2 + $0x2e38] sm:$0xff]
    %v1545 = vld [vmem:[#allocation2 + $0x2e40] sm:$0xff]
    %v1546 = vld [vmem:[#allocation2 + $0x2e48] sm:$0xff]
    %v1547 = vld [vmem:[#allocation2 + $0x2e50] sm:$0xff]
    %v1548 = vld [vmem:[#allocation2 + $0x2e58] sm:$0xff]
    %v1549 = vld [vmem:[#allocation2 + $0x2e60] sm:$0xff]
    %v1550 = vld [vmem:[#allocation2 + $0x2e68] sm:$0xff]
    %v1551 = vld [vmem:[#allocation2 + $0x2e70] sm:$0xff]
    %v1552 = vld [vmem:[#allocation2 + $0x2e78] sm:$0xff]
    %v1553 = vld [vmem:[#allocation2 + $0x2e80] sm:$0xff]
    %v1554 = vld [vmem:[#allocation2 + $0x2e88] sm:$0xff]
    %v1555 = vld [vmem:[#allocation2 + $0x2e90] sm:$0xff]
    %v1556 = vld [vmem:[#allocation2 + $0x2e98] sm:$0xff]
    %v1557 = vld [vmem:[#allocation2 + $0x2ea0] sm:$0xff]
    %v1558 = vld [vmem:[#allocation2 + $0x2ea8] sm:$0xff]
    %v1559 = vld [vmem:[#allocation2 + $0x2eb0] sm:$0xff]
    %v1560 = vld [vmem:[#allocation2 + $0x2eb8] sm:$0xff]
    %v1561 = vld [vmem:[#allocation2 + $0x2ec0] sm:$0xff]
    %v1562 = vld [vmem:[#allocation2 + $0x2ec8] sm:$0xff]
    %v1563 = vld [vmem:[#allocation2 + $0x2ed0] sm:$0xff]
    %v1564 = vld [vmem:[#allocation2 + $0x2ed8] sm:$0xff]
    %v1565 = vld [vmem:[#allocation2 + $0x2ee0] sm:$0xff]
    %v1566 = vld [vmem:[#allocation2 + $0x2ee8] sm:$0xff]
    %v1567 = vld [vmem:[#allocation2 + $0x2ef0] sm:$0xff]
    %v1568 = vld [vmem:[#allocation2 + $0x2ef8] sm:$0xff]
    %v1569 = vld [vmem:[#allocation5] sm:$0xf]
    %v1571 = vlaneseq
    %v1572 = vshrl.u32 %v1571, 7
    %v1573 = vsub.s32 0, %v1572
    %v1574 = vrot.slane %v1569, %v1573
    %v1575 = vlaneseq
    %v1576 = vshrl.u32 %v1575, 7
    %v1577 = vsub.s32 1, %v1576
    %v1578 = vrot.slane %v1569, %v1577
    %v1579 = vlaneseq
    %v1580 = vshrl.u32 %v1579, 7
    %v1581 = vsub.s32 2, %v1580
    %v1582 = vrot.slane %v1569, %v1581
    %v1583 = vlaneseq
    %v1584 = vshrl.u32 %v1583, 7
    %v1585 = vsub.s32 3, %v1584
    %v1586 = vrot.slane %v1569, %v1585
    %v1597 = vcombine.high %v59, %v59
    %v1599 = vunpack.c.l.s4 1966171168
    %v1600 = vunpack.c.0.s8 %v1599
    %v1601 = vlaneseq
    %v1602 = vshrl.u32 %v1601, 7
    %v1603 = vsub.s32 %v1600, %v1602
    %v1604 = vrot.slane %v59, %v1603
    %v1606 = vunpack.c.l.s4 1966171168
    %v1607 = vunpack.c.0.s8 %v1606
    %v1608 = vlaneseq
    %v1609 = vshrl.u32 %v1608, 7
    %v1610 = vsub.s32 %v1607, %v1609
    %v1611 = vrot.slane %v1597, %v1610
    %v1612 = vcombine.high %v1604, %v1604
    %v1613 = vcombine.high %v1611, %v1611
    %v1615 = vunpack.c.l.s4 1966171168
    %v1616 = vunpack.c.0.s8 %v1615
    %v1617 = vlaneseq
    %v1618 = vshrl.u32 %v1617, 7
    %v1619 = vsub.s32 %v1616, %v1618
    %v1620 = vrot.slane %v1604, %v1619
    %v1622 = vunpack.c.l.s4 1966171168
    %v1623 = vunpack.c.0.s8 %v1622
    %v1624 = vlaneseq
    %v1625 = vshrl.u32 %v1624, 7
    %v1626 = vsub.s32 %v1623, %v1625
    %v1627 = vrot.slane %v1611, %v1626
    %v1629 = vunpack.c.l.s4 1966171168
    %v1630 = vunpack.c.0.s8 %v1629
    %v1631 = vlaneseq
    %v1632 = vshrl.u32 %v1631, 7
    %v1633 = vsub.s32 %v1630, %v1632
    %v1634 = vrot.slane %v1612, %v1633
    %v1636 = vunpack.c.l.s4 1966171168
    %v1637 = vunpack.c.0.s8 %v1636
    %v1638 = vlaneseq
    %v1639 = vshrl.u32 %v1638, 7
    %v1640 = vsub.s32 %v1637, %v1639
    %v1641 = vrot.slane %v1613, %v1640
    %v1642 = vcombine.high %v1620, %v1620
    %v1643 = vcombine.high %v1627, %v1627
    %v1644 = vcombine.high %v1634, %v1634
    %v1645 = vcombine.high %v1641, %v1641
    %v1646 = vcombine.high %v60, %v60
    %v1648 = vunpack.c.l.s4 1966171168
    %v1649 = vunpack.c.0.s8 %v1648
    %v1650 = vlaneseq
    %v1651 = vshrl.u32 %v1650, 7
    %v1652 = vsub.s32 %v1649, %v1651
    %v1653 = vrot.slane %v60, %v1652
    %v1655 = vunpack.c.l.s4 1966171168
    %v1656 = vunpack.c.0.s8 %v1655
    %v1657 = vlaneseq
    %v1658 = vshrl.u32 %v1657, 7
    %v1659 = vsub.s32 %v1656, %v1658
    %v1660 = vrot.slane %v1646, %v1659
    %v1661 = vcombine.high %v1653, %v1653
    %v1662 = vcombine.high %v1660, %v1660
    %v1664 = vunpack.c.l.s4 1966171168
    %v1665 = vunpack.c.0.s8 %v1664
    %v1666 = vlaneseq
    %v1667 = vshrl.u32 %v1666, 7
    %v1668 = vsub.s32 %v1665, %v1667
    %v1669 = vrot.slane %v1653, %v1668
    %v1671 = vunpack.c.l.s4 1966171168
    %v1672 = vunpack.c.0.s8 %v1671
    %v1673 = vlaneseq
    %v1674 = vshrl.u32 %v1673, 7
    %v1675 = vsub.s32 %v1672, %v1674
    %v1676 = vrot.slane %v1660, %v1675
    %v1678 = vunpack.c.l.s4 1966171168
    %v1679 = vunpack.c.0.s8 %v1678
    %v1680 = vlaneseq
    %v1681 = vshrl.u32 %v1680, 7
    %v1682 = vsub.s32 %v1679, %v1681
    %v1683 = vrot.slane %v1661, %v1682
    %v1685 = vunpack.c.l.s4 1966171168
    %v1686 = vunpack.c.0.s8 %v1685
    %v1687 = vlaneseq
    %v1688 = vshrl.u32 %v1687, 7
    %v1689 = vsub.s32 %v1686, %v1688
    %v1690 = vrot.slane %v1662, %v1689
    %v1691 = vcombine.high %v1669, %v1669
    %v1692 = vcombine.high %v1676, %v1676
    %v1693 = vcombine.high %v1683, %v1683
    %v1694 = vcombine.high %v1690, %v1690
    %v1695 = vcombine.high %v61, %v61
    %v1697 = vunpack.c.l.s4 1966171168
    %v1698 = vunpack.c.0.s8 %v1697
    %v1699 = vlaneseq
    %v1700 = vshrl.u32 %v1699, 7
    %v1701 = vsub.s32 %v1698, %v1700
    %v1702 = vrot.slane %v61, %v1701
    %v1704 = vunpack.c.l.s4 1966171168
    %v1705 = vunpack.c.0.s8 %v1704
    %v1706 = vlaneseq
    %v1707 = vshrl.u32 %v1706, 7
    %v1708 = vsub.s32 %v1705, %v1707
    %v1709 = vrot.slane %v1695, %v1708
    %v1710 = vcombine.high %v1702, %v1702
    %v1711 = vcombine.high %v1709, %v1709
    %v1713 = vunpack.c.l.s4 1966171168
    %v1714 = vunpack.c.0.s8 %v1713
    %v1715 = vlaneseq
    %v1716 = vshrl.u32 %v1715, 7
    %v1717 = vsub.s32 %v1714, %v1716
    %v1718 = vrot.slane %v1702, %v1717
    %v1720 = vunpack.c.l.s4 1966171168
    %v1721 = vunpack.c.0.s8 %v1720
    %v1722 = vlaneseq
    %v1723 = vshrl.u32 %v1722, 7
    %v1724 = vsub.s32 %v1721, %v1723
    %v1725 = vrot.slane %v1709, %v1724
    %v1727 = vunpack.c.l.s4 1966171168
    %v1728 = vunpack.c.0.s8 %v1727
    %v1729 = vlaneseq
    %v1730 = vshrl.u32 %v1729, 7
    %v1731 = vsub.s32 %v1728, %v1730
    %v1732 = vrot.slane %v1710, %v1731
    %v1734 = vunpack.c.l.s4 1966171168
    %v1735 = vunpack.c.0.s8 %v1734
    %v1736 = vlaneseq
    %v1737 = vshrl.u32 %v1736, 7
    %v1738 = vsub.s32 %v1735, %v1737
    %v1739 = vrot.slane %v1711, %v1738
    %v1740 = vcombine.high %v1718, %v1718
    %v1741 = vcombine.high %v1725, %v1725
    %v1742 = vcombine.high %v1732, %v1732
    %v1743 = vcombine.high %v1739, %v1739
    %v1744 = vcombine.high %v62, %v62
    %v1746 = vunpack.c.l.s4 1966171168
    %v1747 = vunpack.c.0.s8 %v1746
    %v1748 = vlaneseq
    %v1749 = vshrl.u32 %v1748, 7
    %v1750 = vsub.s32 %v1747, %v1749
    %v1751 = vrot.slane %v62, %v1750
    %v1753 = vunpack.c.l.s4 1966171168
    %v1754 = vunpack.c.0.s8 %v1753
    %v1755 = vlaneseq
    %v1756 = vshrl.u32 %v1755, 7
    %v1757 = vsub.s32 %v1754, %v1756
    %v1758 = vrot.slane %v1744, %v1757
    %v1759 = vcombine.high %v1751, %v1751
    %v1760 = vcombine.high %v1758, %v1758
    %v1762 = vunpack.c.l.s4 1966171168
    %v1763 = vunpack.c.0.s8 %v1762
    %v1764 = vlaneseq
    %v1765 = vshrl.u32 %v1764, 7
    %v1766 = vsub.s32 %v1763, %v1765
    %v1767 = vrot.slane %v1751, %v1766
    %v1769 = vunpack.c.l.s4 1966171168
    %v1770 = vunpack.c.0.s8 %v1769
    %v1771 = vlaneseq
    %v1772 = vshrl.u32 %v1771, 7
    %v1773 = vsub.s32 %v1770, %v1772
    %v1774 = vrot.slane %v1758, %v1773
    %v1776 = vunpack.c.l.s4 1966171168
    %v1777 = vunpack.c.0.s8 %v1776
    %v1778 = vlaneseq
    %v1779 = vshrl.u32 %v1778, 7
    %v1780 = vsub.s32 %v1777, %v1779
    %v1781 = vrot.slane %v1759, %v1780
    %v1783 = vunpack.c.l.s4 1966171168
    %v1784 = vunpack.c.0.s8 %v1783
    %v1785 = vlaneseq
    %v1786 = vshrl.u32 %v1785, 7
    %v1787 = vsub.s32 %v1784, %v1786
    %v1788 = vrot.slane %v1760, %v1787
    %v1789 = vcombine.high %v1767, %v1767
    %v1790 = vcombine.high %v1774, %v1774
    %v1791 = vcombine.high %v1781, %v1781
    %v1792 = vcombine.high %v1788, %v1788
    %v1793 = vcombine.high %v63, %v63
    %v1795 = vunpack.c.l.s4 1966171168
    %v1796 = vunpack.c.0.s8 %v1795
    %v1797 = vlaneseq
    %v1798 = vshrl.u32 %v1797, 7
    %v1799 = vsub.s32 %v1796, %v1798
    %v1800 = vrot.slane %v63, %v1799
    %v1802 = vunpack.c.l.s4 1966171168
    %v1803 = vunpack.c.0.s8 %v1802
    %v1804 = vlaneseq
    %v1805 = vshrl.u32 %v1804, 7
    %v1806 = vsub.s32 %v1803, %v1805
    %v1807 = vrot.slane %v1793, %v1806
    %v1808 = vcombine.high %v1800, %v1800
    %v1809 = vcombine.high %v1807, %v1807
    %v1811 = vunpack.c.l.s4 1966171168
    %v1812 = vunpack.c.0.s8 %v1811
    %v1813 = vlaneseq
    %v1814 = vshrl.u32 %v1813, 7
    %v1815 = vsub.s32 %v1812, %v1814
    %v1816 = vrot.slane %v1800, %v1815
    %v1818 = vunpack.c.l.s4 1966171168
    %v1819 = vunpack.c.0.s8 %v1818
    %v1820 = vlaneseq
    %v1821 = vshrl.u32 %v1820, 7
    %v1822 = vsub.s32 %v1819, %v1821
    %v1823 = vrot.slane %v1807, %v1822
    %v1825 = vunpack.c.l.s4 1966171168
    %v1826 = vunpack.c.0.s8 %v1825
    %v1827 = vlaneseq
    %v1828 = vshrl.u32 %v1827, 7
    %v1829 = vsub.s32 %v1826, %v1828
    %v1830 = vrot.slane %v1808, %v1829
    %v1832 = vunpack.c.l.s4 1966171168
    %v1833 = vunpack.c.0.s8 %v1832
    %v1834 = vlaneseq
    %v1835 = vshrl.u32 %v1834, 7
    %v1836 = vsub.s32 %v1833, %v1835
    %v1837 = vrot.slane %v1809, %v1836
    %v1838 = vcombine.high %v1816, %v1816
    %v1839 = vcombine.high %v1823, %v1823
    %v1840 = vcombine.high %v1830, %v1830
    %v1841 = vcombine.high %v1837, %v1837
    %v1842 = vcombine.high %v64, %v64
    %v1844 = vunpack.c.l.s4 1966171168
    %v1845 = vunpack.c.0.s8 %v1844
    %v1846 = vlaneseq
    %v1847 = vshrl.u32 %v1846, 7
    %v1848 = vsub.s32 %v1845, %v1847
    %v1849 = vrot.slane %v64, %v1848
    %v1851 = vunpack.c.l.s4 1966171168
    %v1852 = vunpack.c.0.s8 %v1851
    %v1853 = vlaneseq
    %v1854 = vshrl.u32 %v1853, 7
    %v1855 = vsub.s32 %v1852, %v1854
    %v1856 = vrot.slane %v1842, %v1855
    %v1857 = vcombine.high %v1849, %v1849
    %v1858 = vcombine.high %v1856, %v1856
    %v1860 = vunpack.c.l.s4 1966171168
    %v1861 = vunpack.c.0.s8 %v1860
    %v1862 = vlaneseq
    %v1863 = vshrl.u32 %v1862, 7
    %v1864 = vsub.s32 %v1861, %v1863
    %v1865 = vrot.slane %v1849, %v1864
    %v1867 = vunpack.c.l.s4 1966171168
    %v1868 = vunpack.c.0.s8 %v1867
    %v1869 = vlaneseq
    %v1870 = vshrl.u32 %v1869, 7
    %v1871 = vsub.s32 %v1868, %v1870
    %v1872 = vrot.slane %v1856, %v1871
    %v1874 = vunpack.c.l.s4 1966171168
    %v1875 = vunpack.c.0.s8 %v1874
    %v1876 = vlaneseq
    %v1877 = vshrl.u32 %v1876, 7
    %v1878 = vsub.s32 %v1875, %v1877
    %v1879 = vrot.slane %v1857, %v1878
    %v1881 = vunpack.c.l.s4 1966171168
    %v1882 = vunpack.c.0.s8 %v1881
    %v1883 = vlaneseq
    %v1884 = vshrl.u32 %v1883, 7
    %v1885 = vsub.s32 %v1882, %v1884
    %v1886 = vrot.slane %v1858, %v1885
    %v1887 = vcombine.high %v1865, %v1865
    %v1888 = vcombine.high %v1872, %v1872
    %v1889 = vcombine.high %v1879, %v1879
    %v3441 = vunpack.c.l.b16 %v65
    %v3442 = vunpack.c.h.b16 %v65
    %v3443 = vunpack.c.l.b16 %v66
    %v3444 = vunpack.c.h.b16 %v66
    %v3445 = vunpack.c.l.b16 %v67
    %v3446 = vunpack.c.h.b16 %v67
    %v3447 = vunpack.c.l.b16 %v68
    %v3448 = vunpack.c.h.b16 %v68
    %v3449 = vunpack.c.l.b16 %v69
    %v3450 = vunpack.c.h.b16 %v69
    %v3451 = vunpack.c.l.b16 %v70
    %v3452 = vunpack.c.h.b16 %v70
    %v3453 = vunpack.c.l.b16 %v71
    %v3454 = vunpack.c.h.b16 %v71
    %v3455 = vunpack.c.l.b16 %v72
    %v3456 = vunpack.c.h.b16 %v72
    %v3457 = vunpack.c.l.b16 %v73
    %v3458 = vunpack.c.h.b16 %v73
    %v3459 = vunpack.c.l.b16 %v74
    %v3460 = vunpack.c.h.b16 %v74
    %v3461 = vunpack.c.l.b16 %v75
    %v3462 = vunpack.c.h.b16 %v75
    %v3463 = vunpack.c.l.b16 %v76
    %v3464 = vunpack.c.h.b16 %v76
    %v3465 = vunpack.c.l.b16 %v77
    %v3466 = vunpack.c.h.b16 %v77
    %v3467 = vunpack.c.l.b16 %v78
    %v3468 = vunpack.c.h.b16 %v78
    %v3469 = vunpack.c.l.b16 %v79
    %v3470 = vunpack.c.h.b16 %v79
    %v3471 = vunpack.c.l.b16 %v80
    %v3472 = vunpack.c.h.b16 %v80
    %v3473 = vunpack.c.l.b16 %v81
    %v3474 = vunpack.c.h.b16 %v81
    %v3475 = vunpack.c.l.b16 %v82
    %v3476 = vunpack.c.h.b16 %v82
    %v3477 = vunpack.c.l.b16 %v83
    %v3478 = vunpack.c.h.b16 %v83
    %v3479 = vunpack.c.l.b16 %v84
    %v3480 = vunpack.c.h.b16 %v84
    %v3481 = vunpack.c.l.b16 %v85
    %v3482 = vunpack.c.h.b16 %v85
    %v3483 = vunpack.c.l.b16 %v86
    %v3484 = vunpack.c.h.b16 %v86
    %v3485 = vunpack.c.l.b16 %v87
    %v3486 = vunpack.c.h.b16 %v87
    %v3487 = vunpack.c.l.b16 %v88
    %v3488 = vunpack.c.h.b16 %v88
    %v3489 = vunpack.c.l.b16 %v89
    %v3490 = vunpack.c.h.b16 %v89
    %v3491 = vunpack.c.l.b16 %v90
    %v3492 = vunpack.c.h.b16 %v90
    %v3493 = vunpack.c.l.b16 %v91
    %v3494 = vunpack.c.h.b16 %v91
    %v3495 = vunpack.c.l.b16 %v92
    %v3496 = vunpack.c.h.b16 %v92
    %v3497 = vunpack.c.l.b16 %v93
    %v3498 = vunpack.c.h.b16 %v93
    %v3499 = vunpack.c.l.b16 %v94
    %v3500 = vunpack.c.h.b16 %v94
    %v3501 = vunpack.c.l.b16 %v95
    %v3502 = vunpack.c.h.b16 %v95
    %v3503 = vunpack.c.l.b16 %v96
    %v3504 = vunpack.c.h.b16 %v96
    %v3505 = vunpack.c.l.b16 %v97
    %v3506 = vunpack.c.h.b16 %v97
    %v3507 = vunpack.c.l.b16 %v98
    %v3508 = vunpack.c.h.b16 %v98
    %v3509 = vunpack.c.l.b16 %v99
    %v3510 = vunpack.c.h.b16 %v99
    %v3511 = vunpack.c.l.b16 %v100
    %v3512 = vunpack.c.h.b16 %v100
    %v3513 = vunpack.c.l.b16 %v101
    %v3514 = vunpack.c.h.b16 %v101
    %v3515 = vunpack.c.l.b16 %v102
    %v3516 = vunpack.c.h.b16 %v102
    %v3517 = vunpack.c.l.b16 %v103
    %v3518 = vunpack.c.h.b16 %v103
    %v3519 = vunpack.c.l.b16 %v104
    %v3520 = vunpack.c.h.b16 %v104
    %v3521 = vunpack.c.l.b16 %v105
    %v3522 = vunpack.c.h.b16 %v105
    %v3523 = vunpack.c.l.b16 %v106
    %v3524 = vunpack.c.h.b16 %v106
    %v3525 = vunpack.c.l.b16 %v107
    %v3526 = vunpack.c.h.b16 %v107
    %v3527 = vunpack.c.l.b16 %v108
    %v3528 = vunpack.c.h.b16 %v108
    %v3529 = vunpack.c.l.b16 %v109
    %v3530 = vunpack.c.h.b16 %v109
    %v3531 = vunpack.c.l.b16 %v110
    %v3532 = vunpack.c.h.b16 %v110
    %v3533 = vunpack.c.l.b16 %v111
    %v3534 = vunpack.c.h.b16 %v111
    %v3535 = vunpack.c.l.b16 %v112
    %v3536 = vunpack.c.h.b16 %v112
    %v3537 = vunpack.c.l.b16 %v113
    %v3538 = vunpack.c.h.b16 %v113
    %v3539 = vunpack.c.l.b16 %v114
    %v3540 = vunpack.c.h.b16 %v114
    %v3541 = vunpack.c.l.b16 %v115
    %v3542 = vunpack.c.h.b16 %v115
    %v3543 = vunpack.c.l.b16 %v116
    %v3544 = vunpack.c.h.b16 %v116
    %v3545 = vunpack.c.l.b16 %v117
    %v3546 = vunpack.c.h.b16 %v117
    %v3547 = vunpack.c.l.b16 %v118
    %v3548 = vunpack.c.h.b16 %v118
    %v3549 = vunpack.c.l.b16 %v119
    %v3550 = vunpack.c.h.b16 %v119
    %v3551 = vunpack.c.l.b16 %v120
    %v3552 = vunpack.c.h.b16 %v120
    %v3553 = vunpack.c.l.b16 %v121
    %v3554 = vunpack.c.h.b16 %v121
    %v3555 = vunpack.c.l.b16 %v122
    %v3556 = vunpack.c.h.b16 %v122
    %v3557 = vunpack.c.l.b16 %v123
    %v3558 = vunpack.c.h.b16 %v123
    %v3559 = vunpack.c.l.b16 %v124
    %v3560 = vunpack.c.h.b16 %v124
    %v3561 = vunpack.c.l.b16 %v125
    %v3562 = vunpack.c.h.b16 %v125
    %v3563 = vunpack.c.l.b16 %v126
    %v3564 = vunpack.c.h.b16 %v126
    %v3565 = vunpack.c.l.b16 %v127
    %v3566 = vunpack.c.h.b16 %v127
    %v3567 = vunpack.c.l.b16 %v128
    %v3568 = vunpack.c.h.b16 %v128
    %v3569 = vunpack.c.l.b16 %v129
    %v3570 = vunpack.c.h.b16 %v129
    %v3571 = vunpack.c.l.b16 %v130
    %v3572 = vunpack.c.h.b16 %v130
    %v3573 = vunpack.c.l.b16 %v131
    %v3574 = vunpack.c.h.b16 %v131
    %v3575 = vunpack.c.l.b16 %v132
    %v3576 = vunpack.c.h.b16 %v132
    %v3577 = vunpack.c.l.b16 %v133
    %v3578 = vunpack.c.h.b16 %v133
    %v3579 = vunpack.c.l.b16 %v134
    %v3580 = vunpack.c.h.b16 %v134
    %v3581 = vunpack.c.l.b16 %v135
    %v3582 = vunpack.c.h.b16 %v135
    %v3583 = vunpack.c.l.b16 %v136
    %v3584 = vunpack.c.h.b16 %v136
    %v3585 = vunpack.c.l.b16 %v137
    %v3586 = vunpack.c.h.b16 %v137
    %v3587 = vunpack.c.l.b16 %v138
    %v3588 = vunpack.c.h.b16 %v138
    %v3589 = vunpack.c.l.b16 %v139
    %v3590 = vunpack.c.h.b16 %v139
    %v3591 = vunpack.c.l.b16 %v140
    %v3592 = vunpack.c.h.b16 %v140
    %v3593 = vunpack.c.l.b16 %v141
    %v3594 = vunpack.c.h.b16 %v141
    %v3595 = vunpack.c.l.b16 %v142
    %v3596 = vunpack.c.h.b16 %v142
    %v3597 = vunpack.c.l.b16 %v143
    %v3598 = vunpack.c.h.b16 %v143
    %v3599 = vunpack.c.l.b16 %v144
    %v3600 = vunpack.c.h.b16 %v144
    %v3601 = vunpack.c.l.b16 %v145
    %v3602 = vunpack.c.h.b16 %v145
    %v3603 = vunpack.c.l.b16 %v146
    %v3604 = vunpack.c.h.b16 %v146
    %v3605 = vunpack.c.l.b16 %v147
    %v3606 = vunpack.c.h.b16 %v147
    %v3607 = vunpack.c.l.b16 %v148
    %v3608 = vunpack.c.h.b16 %v148
    %v3609 = vunpack.c.l.b16 %v149
    %v3610 = vunpack.c.h.b16 %v149
    %v3611 = vunpack.c.l.b16 %v150
    %v3612 = vunpack.c.h.b16 %v150
    %v3613 = vunpack.c.l.b16 %v151
    %v3614 = vunpack.c.h.b16 %v151
    %v3615 = vunpack.c.l.b16 %v152
    %v3616 = vunpack.c.h.b16 %v152
    %v3617 = vunpack.c.l.b16 %v153
    %v3618 = vunpack.c.h.b16 %v153
    %v3619 = vunpack.c.l.b16 %v154
    %v3620 = vunpack.c.h.b16 %v154
    %v3621 = vunpack.c.l.b16 %v155
    %v3622 = vunpack.c.h.b16 %v155
    %v3623 = vunpack.c.l.b16 %v156
    %v3624 = vunpack.c.h.b16 %v156
    %v3625 = vunpack.c.l.b16 %v157
    %v3626 = vunpack.c.h.b16 %v157
    %v3627 = vunpack.c.l.b16 %v158
    %v3628 = vunpack.c.h.b16 %v158
    %v3629 = vunpack.c.l.b16 %v159
    %v3630 = vunpack.c.h.b16 %v159
    %v3631 = vunpack.c.l.b16 %v160
    %v3632 = vunpack.c.h.b16 %v160
    %v3633 = vunpack.c.l.b16 %v161
    %v3634 = vunpack.c.h.b16 %v161
    %v3635 = vunpack.c.l.b16 %v162
    %v3636 = vunpack.c.h.b16 %v162
    %v3637 = vunpack.c.l.b16 %v163
    %v3638 = vunpack.c.h.b16 %v163
    %v3639 = vunpack.c.l.b16 %v164
    %v3640 = vunpack.c.h.b16 %v164
    %v3641 = vunpack.c.l.b16 %v165
    %v3642 = vunpack.c.h.b16 %v165
    %v3643 = vunpack.c.l.b16 %v166
    %v3644 = vunpack.c.h.b16 %v166
    %v3645 = vunpack.c.l.b16 %v167
    %v3646 = vunpack.c.h.b16 %v167
    %v3647 = vunpack.c.l.b16 %v168
    %v3648 = vunpack.c.h.b16 %v168
    %v3649 = vunpack.c.l.b16 %v169
    %v3650 = vunpack.c.h.b16 %v169
    %v3651 = vunpack.c.l.b16 %v170
    %v3652 = vunpack.c.h.b16 %v170
    %v3653 = vunpack.c.l.b16 %v171
    %v3654 = vunpack.c.h.b16 %v171
    %v3655 = vunpack.c.l.b16 %v172
    %v3656 = vunpack.c.h.b16 %v172
    %v3657 = vunpack.c.l.b16 %v173
    %v3658 = vunpack.c.h.b16 %v173
    %v3659 = vunpack.c.l.b16 %v174
    %v3660 = vunpack.c.h.b16 %v174
    %v3661 = vunpack.c.l.b16 %v175
    %v3662 = vunpack.c.h.b16 %v175
    %v3663 = vunpack.c.l.b16 %v176
    %v3664 = vunpack.c.h.b16 %v176
    %v3665 = vunpack.c.l.b16 %v177
    %v3666 = vunpack.c.h.b16 %v177
    %v3667 = vunpack.c.l.b16 %v178
    %v3668 = vunpack.c.h.b16 %v178
    %v3669 = vunpack.c.l.b16 %v179
    %v3670 = vunpack.c.h.b16 %v179
    %v3671 = vunpack.c.l.b16 %v180
    %v3672 = vunpack.c.h.b16 %v180
    %v3673 = vunpack.c.l.b16 %v181
    %v3674 = vunpack.c.h.b16 %v181
    %v3675 = vunpack.c.l.b16 %v182
    %v3676 = vunpack.c.h.b16 %v182
    %v3677 = vunpack.c.l.b16 %v183
    %v3678 = vunpack.c.h.b16 %v183
    %v3679 = vunpack.c.l.b16 %v184
    %v3680 = vunpack.c.h.b16 %v184
    %v3681 = vunpack.c.l.b16 %v185
    %v3682 = vunpack.c.h.b16 %v185
    %v3683 = vunpack.c.l.b16 %v186
    %v3684 = vunpack.c.h.b16 %v186
    %v3685 = vunpack.c.l.b16 %v187
    %v3686 = vunpack.c.h.b16 %v187
    %v3687 = vunpack.c.l.b16 %v188
    %v3688 = vunpack.c.h.b16 %v188
    %v3689 = vunpack.c.l.b16 %v189
    %v3690 = vunpack.c.h.b16 %v189
    %v3691 = vunpack.c.l.b16 %v190
    %v3692 = vunpack.c.h.b16 %v190
    %v3693 = vunpack.c.l.b16 %v191
    %v3694 = vunpack.c.h.b16 %v191
    %v3695 = vunpack.c.l.b16 %v192
    %v3696 = vunpack.c.h.b16 %v192
    %v3697 = vunpack.c.l.b16 %v193
    %v3698 = vunpack.c.h.b16 %v193
    %v3699 = vunpack.c.l.b16 %v194
    %v3700 = vunpack.c.h.b16 %v194
    %v3701 = vunpack.c.l.b16 %v195
    %v3702 = vunpack.c.h.b16 %v195
    %v3703 = vunpack.c.l.b16 %v196
    %v3704 = vunpack.c.h.b16 %v196
    %v3705 = vunpack.c.l.b16 %v197
    %v3706 = vunpack.c.h.b16 %v197
    %v3707 = vunpack.c.l.b16 %v198
    %v3708 = vunpack.c.h.b16 %v198
    %v3709 = vunpack.c.l.b16 %v199
    %v3710 = vunpack.c.h.b16 %v199
    %v3711 = vunpack.c.l.b16 %v200
    %v3712 = vunpack.c.h.b16 %v200
    %v3713 = vunpack.c.l.b16 %v201
    %v3714 = vunpack.c.h.b16 %v201
    %v3715 = vunpack.c.l.b16 %v202
    %v3716 = vunpack.c.h.b16 %v202
    %v3717 = vunpack.c.l.b16 %v203
    %v3718 = vunpack.c.h.b16 %v203
    %v3719 = vunpack.c.l.b16 %v204
    %v3720 = vunpack.c.h.b16 %v204
    %v3721 = vunpack.c.l.b16 %v205
    %v3722 = vunpack.c.h.b16 %v205
    %v3723 = vunpack.c.l.b16 %v206
    %v3724 = vunpack.c.h.b16 %v206
    %v3725 = vunpack.c.l.b16 %v207
    %v3726 = vunpack.c.h.b16 %v207
    %v3727 = vunpack.c.l.b16 %v208
    %v3728 = vunpack.c.h.b16 %v208
    %v3729 = vunpack.c.l.b16 %v209
    %v3730 = vunpack.c.h.b16 %v209
    %v3731 = vunpack.c.l.b16 %v210
    %v3732 = vunpack.c.h.b16 %v210
    %v3733 = vunpack.c.l.b16 %v211
    %v3734 = vunpack.c.h.b16 %v211
    %v3735 = vunpack.c.l.b16 %v212
    %v3736 = vunpack.c.h.b16 %v212
    %v3737 = vunpack.c.l.b16 %v213
    %v3738 = vunpack.c.h.b16 %v213
    %v3739 = vunpack.c.l.b16 %v214
    %v3740 = vunpack.c.h.b16 %v214
    %v3741 = vunpack.c.l.b16 %v215
    %v3742 = vunpack.c.h.b16 %v215
    %v3743 = vunpack.c.l.b16 %v216
    %v3744 = vunpack.c.h.b16 %v216
    %v3745 = vunpack.c.l.b16 %v217
    %v3746 = vunpack.c.h.b16 %v217
    %v3747 = vunpack.c.l.b16 %v218
    %v3748 = vunpack.c.h.b16 %v218
    %v3749 = vunpack.c.l.b16 %v219
    %v3750 = vunpack.c.h.b16 %v219
    %v3751 = vunpack.c.l.b16 %v220
    %v3752 = vunpack.c.h.b16 %v220
    %v3753 = vunpack.c.l.b16 %v221
    %v3754 = vunpack.c.h.b16 %v221
    %v3755 = vunpack.c.l.b16 %v222
    %v3756 = vunpack.c.h.b16 %v222
    %v3757 = vunpack.c.l.b16 %v223
    %v3758 = vunpack.c.h.b16 %v223
    %v3759 = vunpack.c.l.b16 %v224
    %v3760 = vunpack.c.h.b16 %v224
    %v3761 = vunpack.c.l.b16 %v225
    %v3762 = vunpack.c.h.b16 %v225
    %v3763 = vunpack.c.l.b16 %v226
    %v3764 = vunpack.c.h.b16 %v226
    %v3765 = vunpack.c.l.b16 %v227
    %v3766 = vunpack.c.h.b16 %v227
    %v3767 = vunpack.c.l.b16 %v228
    %v3768 = vunpack.c.h.b16 %v228
    %v3769 = vunpack.c.l.b16 %v229
    %v3770 = vunpack.c.h.b16 %v229
    %v3771 = vunpack.c.l.b16 %v230
    %v3772 = vunpack.c.h.b16 %v230
    %v3773 = vunpack.c.l.b16 %v231
    %v3774 = vunpack.c.h.b16 %v231
    %v3775 = vunpack.c.l.b16 %v232
    %v3776 = vunpack.c.h.b16 %v232
    %v3777 = vunpack.c.l.b16 %v233
    %v3778 = vunpack.c.h.b16 %v233
    %v3779 = vunpack.c.l.b16 %v234
    %v3780 = vunpack.c.h.b16 %v234
    %v3781 = vunpack.c.l.b16 %v235
    %v3782 = vunpack.c.h.b16 %v235
    %v3783 = vunpack.c.l.b16 %v236
    %v3784 = vunpack.c.h.b16 %v236
    %v3785 = vunpack.c.l.b16 %v237
    %v3786 = vunpack.c.h.b16 %v237
    %v3787 = vunpack.c.l.b16 %v238
    %v3788 = vunpack.c.h.b16 %v238
    %v3789 = vunpack.c.l.b16 %v239
    %v3790 = vunpack.c.h.b16 %v239
    %v3791 = vunpack.c.l.b16 %v240
    %v3792 = vunpack.c.h.b16 %v240
    %v3793 = vunpack.c.l.b16 %v241
    %v3794 = vunpack.c.h.b16 %v241
    %v3795 = vunpack.c.l.b16 %v242
    %v3796 = vunpack.c.h.b16 %v242
    %v3797 = vunpack.c.l.b16 %v243
    %v3798 = vunpack.c.h.b16 %v243
    %v3799 = vunpack.c.l.b16 %v244
    %v3800 = vunpack.c.h.b16 %v244
    %v3801 = vunpack.c.l.b16 %v245
    %v3802 = vunpack.c.h.b16 %v245
    %v3803 = vunpack.c.l.b16 %v246
    %v3804 = vunpack.c.h.b16 %v246
    %v3805 = vunpack.c.l.b16 %v247
    %v3806 = vunpack.c.h.b16 %v247
    %v3807 = vunpack.c.l.b16 %v248
    %v3808 = vunpack.c.h.b16 %v248
    %v3809 = vunpack.c.l.b16 %v249
    %v3810 = vunpack.c.h.b16 %v249
    %v3811 = vunpack.c.l.b16 %v250
    %v3812 = vunpack.c.h.b16 %v250
    %v3813 = vunpack.c.l.b16 %v251
    %v3814 = vunpack.c.h.b16 %v251
    %v3815 = vunpack.c.l.b16 %v252
    %v3816 = vunpack.c.h.b16 %v252
    %v3817 = vunpack.c.l.b16 %v253
    %v3818 = vunpack.c.h.b16 %v253
    %v3819 = vunpack.c.l.b16 %v254
    %v3820 = vunpack.c.h.b16 %v254
    %v3821 = vunpack.c.l.b16 %v255
    %v3822 = vunpack.c.h.b16 %v255
    %v3823 = vunpack.c.l.b16 %v256
    %v3824 = vunpack.c.h.b16 %v256
    %v3825 = vunpack.c.l.b16 %v257
    %v3826 = vunpack.c.h.b16 %v257
    %v3827 = vunpack.c.l.b16 %v258
    %v3828 = vunpack.c.h.b16 %v258
    %v3829 = vunpack.c.l.b16 %v259
    %v3830 = vunpack.c.h.b16 %v259
    %v3831 = vunpack.c.l.b16 %v260
    %v3832 = vunpack.c.h.b16 %v260
    %v3833 = vunpack.c.l.b16 %v261
    %v3834 = vunpack.c.h.b16 %v261
    %v3835 = vunpack.c.l.b16 %v262
    %v3836 = vunpack.c.h.b16 %v262
    %v3837 = vunpack.c.l.b16 %v263
    %v3838 = vunpack.c.h.b16 %v263
    %v3839 = vunpack.c.l.b16 %v264
    %v3840 = vunpack.c.h.b16 %v264
    %v3841 = vunpack.c.l.b16 %v265
    %v3842 = vunpack.c.h.b16 %v265
    %v3843 = vunpack.c.l.b16 %v266
    %v3844 = vunpack.c.h.b16 %v266
    %v3845 = vunpack.c.l.b16 %v267
    %v3846 = vunpack.c.h.b16 %v267
    %v3847 = vunpack.c.l.b16 %v268
    %v3848 = vunpack.c.h.b16 %v268
    %v3849 = vunpack.c.l.b16 %v269
    %v3850 = vunpack.c.h.b16 %v269
    %v3851 = vunpack.c.l.b16 %v270
    %v3852 = vunpack.c.h.b16 %v270
    %v3853 = vunpack.c.l.b16 %v271
    %v3854 = vunpack.c.h.b16 %v271
    %v3855 = vunpack.c.l.b16 %v272
    %v3856 = vunpack.c.h.b16 %v272
    %v3857 = vunpack.c.l.b16 %v273
    %v3858 = vunpack.c.h.b16 %v273
    %v3859 = vunpack.c.l.b16 %v274
    %v3860 = vunpack.c.h.b16 %v274
    %v3861 = vunpack.c.l.b16 %v275
    %v3862 = vunpack.c.h.b16 %v275
    %v3863 = vunpack.c.l.b16 %v276
    %v3864 = vunpack.c.h.b16 %v276
    %v3865 = vunpack.c.l.b16 %v277
    %v3866 = vunpack.c.h.b16 %v277
    %v3867 = vunpack.c.l.b16 %v278
    %v3868 = vunpack.c.h.b16 %v278
    %v3869 = vunpack.c.l.b16 %v279
    %v3870 = vunpack.c.h.b16 %v279
    %v3871 = vunpack.c.l.b16 %v280
    %v3872 = vunpack.c.h.b16 %v280
    %v3873 = vunpack.c.l.b16 %v281
    %v3874 = vunpack.c.h.b16 %v281
    %v3875 = vunpack.c.l.b16 %v282
    %v3876 = vunpack.c.h.b16 %v282
    %v3877 = vunpack.c.l.b16 %v283
    %v3878 = vunpack.c.h.b16 %v283
    %v3879 = vunpack.c.l.b16 %v284
    %v3880 = vunpack.c.h.b16 %v284
    %v3881 = vunpack.c.l.b16 %v285
    %v3882 = vunpack.c.h.b16 %v285
    %v3883 = vunpack.c.l.b16 %v286
    %v3884 = vunpack.c.h.b16 %v286
    %v3885 = vunpack.c.l.b16 %v287
    %v3886 = vunpack.c.h.b16 %v287
    %v3887 = vunpack.c.l.b16 %v288
    %v3888 = vunpack.c.h.b16 %v288
    %v3889 = vunpack.c.l.b16 %v289
    %v3890 = vunpack.c.h.b16 %v289
    %v3891 = vunpack.c.l.b16 %v290
    %v3892 = vunpack.c.h.b16 %v290
    %v3893 = vunpack.c.l.b16 %v291
    %v3894 = vunpack.c.h.b16 %v291
    %v3895 = vunpack.c.l.b16 %v292
    %v3896 = vunpack.c.h.b16 %v292
    %v3897 = vunpack.c.l.b16 %v293
    %v3898 = vunpack.c.h.b16 %v293
    %v3899 = vunpack.c.l.b16 %v294
    %v3900 = vunpack.c.h.b16 %v294
    %v3901 = vunpack.c.l.b16 %v295
    %v3902 = vunpack.c.h.b16 %v295
    %v3903 = vunpack.c.l.b16 %v296
    %v3904 = vunpack.c.h.b16 %v296
    %v3905 = vunpack.c.l.b16 %v297
    %v3906 = vunpack.c.h.b16 %v297
    %v3907 = vunpack.c.l.b16 %v298
    %v3908 = vunpack.c.h.b16 %v298
    %v3909 = vunpack.c.l.b16 %v299
    %v3910 = vunpack.c.h.b16 %v299
    %v3911 = vunpack.c.l.b16 %v300
    %v3912 = vunpack.c.h.b16 %v300
    %v3913 = vunpack.c.l.b16 %v301
    %v3914 = vunpack.c.h.b16 %v301
    %v3915 = vunpack.c.l.b16 %v302
    %v3916 = vunpack.c.h.b16 %v302
    %v3917 = vunpack.c.l.b16 %v303
    %v3918 = vunpack.c.h.b16 %v303
    %v3919 = vunpack.c.l.b16 %v304
    %v3920 = vunpack.c.h.b16 %v304
    %v3921 = vunpack.c.l.b16 %v305
    %v3922 = vunpack.c.h.b16 %v305
    %v3923 = vunpack.c.l.b16 %v306
    %v3924 = vunpack.c.h.b16 %v306
    %v3925 = vunpack.c.l.b16 %v307
    %v3926 = vunpack.c.h.b16 %v307
    %v3927 = vunpack.c.l.b16 %v308
    %v3928 = vunpack.c.h.b16 %v308
    %v3929 = vunpack.c.l.b16 %v309
    %v3930 = vunpack.c.h.b16 %v309
    %v3931 = vunpack.c.l.b16 %v310
    %v3932 = vunpack.c.h.b16 %v310
    %v3933 = vunpack.c.l.b16 %v311
    %v3934 = vunpack.c.h.b16 %v311
    %v3935 = vunpack.c.l.b16 %v312
    %v3936 = vunpack.c.h.b16 %v312
    %v3937 = vunpack.c.l.b16 %v313
    %v3938 = vunpack.c.h.b16 %v313
    %v3939 = vunpack.c.l.b16 %v314
    %v3940 = vunpack.c.h.b16 %v314
    %v3941 = vunpack.c.l.b16 %v315
    %v3942 = vunpack.c.h.b16 %v315
    %v3943 = vunpack.c.l.b16 %v316
    %v3944 = vunpack.c.h.b16 %v316
    %v3945 = vunpack.c.l.b16 %v317
    %v3946 = vunpack.c.h.b16 %v317
    %v3947 = vunpack.c.l.b16 %v318
    %v3948 = vunpack.c.h.b16 %v318
    %v3949 = vunpack.c.l.b16 %v319
    %v3950 = vunpack.c.h.b16 %v319
    %v3951 = vunpack.c.l.b16 %v320
    %v3952 = vunpack.c.h.b16 %v320
    %v3953 = vunpack.c.l.b16 %v321
    %v3954 = vunpack.c.h.b16 %v321
    %v3955 = vunpack.c.l.b16 %v322
    %v3956 = vunpack.c.h.b16 %v322
    %v3957 = vunpack.c.l.b16 %v323
    %v3958 = vunpack.c.h.b16 %v323
    %v3959 = vunpack.c.l.b16 %v324
    %v3960 = vunpack.c.h.b16 %v324
    %v3961 = vunpack.c.l.b16 %v325
    %v3962 = vunpack.c.h.b16 %v325
    %v3963 = vunpack.c.l.b16 %v326
    %v3964 = vunpack.c.h.b16 %v326
    %v3965 = vunpack.c.l.b16 %v327
    %v3966 = vunpack.c.h.b16 %v327
    %v3967 = vunpack.c.l.b16 %v328
    %v3968 = vunpack.c.h.b16 %v328
    %v3969 = vunpack.c.l.b16 %v329
    %v3970 = vunpack.c.h.b16 %v329
    %v3971 = vunpack.c.l.b16 %v330
    %v3972 = vunpack.c.h.b16 %v330
    %v3973 = vunpack.c.l.b16 %v331
    %v3974 = vunpack.c.h.b16 %v331
    %v3975 = vunpack.c.l.b16 %v332
    %v3976 = vunpack.c.h.b16 %v332
    %v3977 = vunpack.c.l.b16 %v333
    %v3978 = vunpack.c.h.b16 %v333
    %v3979 = vunpack.c.l.b16 %v334
    %v3980 = vunpack.c.h.b16 %v334
    %v3981 = vunpack.c.l.b16 %v335
    %v3982 = vunpack.c.h.b16 %v335
    %v3983 = vunpack.c.l.b16 %v336
    %v3984 = vunpack.c.h.b16 %v336
    %v3985 = vunpack.c.l.b16 %v337
    %v3986 = vunpack.c.h.b16 %v337
    %v3987 = vunpack.c.l.b16 %v338
    %v3988 = vunpack.c.h.b16 %v338
    %v3989 = vunpack.c.l.b16 %v339
    %v3990 = vunpack.c.h.b16 %v339
    %v3991 = vunpack.c.l.b16 %v340
    %v3992 = vunpack.c.h.b16 %v340
    %v3993 = vunpack.c.l.b16 %v341
    %v3994 = vunpack.c.h.b16 %v341
    %v3995 = vunpack.c.l.b16 %v342
    %v3996 = vunpack.c.h.b16 %v342
    %v3997 = vunpack.c.l.b16 %v343
    %v3998 = vunpack.c.h.b16 %v343
    %v3999 = vunpack.c.l.b16 %v344
    %v4000 = vunpack.c.h.b16 %v344
    %v4001 = vunpack.c.l.b16 %v345
    %v4002 = vunpack.c.h.b16 %v345
    %v4003 = vunpack.c.l.b16 %v346
    %v4004 = vunpack.c.h.b16 %v346
    %v4005 = vunpack.c.l.b16 %v347
    %v4006 = vunpack.c.h.b16 %v347
    %v4007 = vunpack.c.l.b16 %v348
    %v4008 = vunpack.c.h.b16 %v348
    %v4009 = vunpack.c.l.b16 %v349
    %v4010 = vunpack.c.h.b16 %v349
    %v4011 = vunpack.c.l.b16 %v350
    %v4012 = vunpack.c.h.b16 %v350
    %v4013 = vunpack.c.l.b16 %v351
    %v4014 = vunpack.c.h.b16 %v351
    %v4015 = vunpack.c.l.b16 %v352
    %v4016 = vunpack.c.h.b16 %v352
    %v4017 = vunpack.c.l.b16 %v353
    %v4018 = vunpack.c.h.b16 %v353
    %v4019 = vunpack.c.l.b16 %v354
    %v4020 = vunpack.c.h.b16 %v354
    %v4021 = vunpack.c.l.b16 %v355
    %v4022 = vunpack.c.h.b16 %v355
    %v4023 = vunpack.c.l.b16 %v356
    %v4024 = vunpack.c.h.b16 %v356
    %v4025 = vunpack.c.l.b16 %v357
    %v4026 = vunpack.c.h.b16 %v357
    %v4027 = vunpack.c.l.b16 %v358
    %v4028 = vunpack.c.h.b16 %v358
    %v4029 = vunpack.c.l.b16 %v359
    %v4030 = vunpack.c.h.b16 %v359
    %v4031 = vunpack.c.l.b16 %v360
    %v4032 = vunpack.c.h.b16 %v360
    %v4033 = vunpack.c.l.b16 %v361
    %v4034 = vunpack.c.h.b16 %v361
    %v4035 = vunpack.c.l.b16 %v362
    %v4036 = vunpack.c.h.b16 %v362
    %v4037 = vunpack.c.l.b16 %v363
    %v4038 = vunpack.c.h.b16 %v363
    %v4039 = vunpack.c.l.b16 %v364
    %v4040 = vunpack.c.h.b16 %v364
    %v4041 = vunpack.c.l.b16 %v365
    %v4042 = vunpack.c.h.b16 %v365
    %v4043 = vunpack.c.l.b16 %v366
    %v4044 = vunpack.c.h.b16 %v366
    %v4045 = vunpack.c.l.b16 %v367
    %v4046 = vunpack.c.h.b16 %v367
    %v4047 = vunpack.c.l.b16 %v368
    %v4048 = vunpack.c.h.b16 %v368
    %v4049 = vunpack.c.l.b16 %v369
    %v4050 = vunpack.c.h.b16 %v369
    %v4051 = vunpack.c.l.b16 %v370
    %v4052 = vunpack.c.h.b16 %v370
    %v4053 = vunpack.c.l.b16 %v371
    %v4054 = vunpack.c.h.b16 %v371
    %v4055 = vunpack.c.l.b16 %v372
    %v4056 = vunpack.c.h.b16 %v372
    %v4057 = vunpack.c.l.b16 %v373
    %v4058 = vunpack.c.h.b16 %v373
    %v4059 = vunpack.c.l.b16 %v374
    %v4060 = vunpack.c.h.b16 %v374
    %v4061 = vunpack.c.l.b16 %v375
    %v4062 = vunpack.c.h.b16 %v375
    %v4063 = vunpack.c.l.b16 %v376
    %v4064 = vunpack.c.h.b16 %v376
    %v4065 = vunpack.c.l.b16 %v377
    %v4066 = vunpack.c.h.b16 %v377
    %v4067 = vunpack.c.l.b16 %v378
    %v4068 = vunpack.c.h.b16 %v378
    %v4069 = vunpack.c.l.b16 %v379
    %v4070 = vunpack.c.h.b16 %v379
    %v4071 = vunpack.c.l.b16 %v380
    %v4072 = vunpack.c.h.b16 %v380
    %v4073 = vunpack.c.l.b16 %v381
    %v4074 = vunpack.c.h.b16 %v381
    %v4075 = vunpack.c.l.b16 %v382
    %v4076 = vunpack.c.h.b16 %v382
    %v4077 = vunpack.c.l.b16 %v383
    %v4078 = vunpack.c.h.b16 %v383
    %v4079 = vunpack.c.l.b16 %v384
    %v4080 = vunpack.c.h.b16 %v384
    %v4081 = vunpack.c.l.b16 %v385
    %v4082 = vunpack.c.h.b16 %v385
    %v4083 = vunpack.c.l.b16 %v386
    %v4084 = vunpack.c.h.b16 %v386
    %v4085 = vunpack.c.l.b16 %v387
    %v4086 = vunpack.c.h.b16 %v387
    %v4087 = vunpack.c.l.b16 %v388
    %v4088 = vunpack.c.h.b16 %v388
    %v4089 = vunpack.c.l.b16 %v389
    %v4090 = vunpack.c.h.b16 %v389
    %v4091 = vunpack.c.l.b16 %v390
    %v4092 = vunpack.c.h.b16 %v390
    %v4093 = vunpack.c.l.b16 %v391
    %v4094 = vunpack.c.h.b16 %v391
    %v4095 = vunpack.c.l.b16 %v392
    %v4096 = vunpack.c.h.b16 %v392
    %v4097 = vunpack.c.l.b16 %v393
    %v4098 = vunpack.c.h.b16 %v393
    %v4099 = vunpack.c.l.b16 %v394
    %v4100 = vunpack.c.h.b16 %v394
    %v4101 = vunpack.c.l.b16 %v395
    %v4102 = vunpack.c.h.b16 %v395
    %v4103 = vunpack.c.l.b16 %v396
    %v4104 = vunpack.c.h.b16 %v396
    %v4105 = vunpack.c.l.b16 %v397
    %v4106 = vunpack.c.h.b16 %v397
    %v4107 = vunpack.c.l.b16 %v398
    %v4108 = vunpack.c.h.b16 %v398
    %v4109 = vunpack.c.l.b16 %v399
    %v4110 = vunpack.c.h.b16 %v399
    %v4111 = vunpack.c.l.b16 %v400
    %v4112 = vunpack.c.h.b16 %v400
    %v4113 = vunpack.c.l.b16 %v401
    %v4114 = vunpack.c.h.b16 %v401
    %v4115 = vunpack.c.l.b16 %v402
    %v4116 = vunpack.c.h.b16 %v402
    %v4117 = vunpack.c.l.b16 %v403
    %v4118 = vunpack.c.h.b16 %v403
    %v4119 = vunpack.c.l.b16 %v404
    %v4120 = vunpack.c.h.b16 %v404
    %v4121 = vunpack.c.l.b16 %v405
    %v4122 = vunpack.c.h.b16 %v405
    %v4123 = vunpack.c.l.b16 %v406
    %v4124 = vunpack.c.h.b16 %v406
    %v4125 = vunpack.c.l.b16 %v407
    %v4126 = vunpack.c.h.b16 %v407
    %v4127 = vunpack.c.l.b16 %v408
    %v4128 = vunpack.c.h.b16 %v408
    %v4129 = vunpack.c.l.b16 %v409
    %v4130 = vunpack.c.h.b16 %v409
    %v4131 = vunpack.c.l.b16 %v410
    %v4132 = vunpack.c.h.b16 %v410
    %v4133 = vunpack.c.l.b16 %v411
    %v4134 = vunpack.c.h.b16 %v411
    %v4135 = vunpack.c.l.b16 %v412
    %v4136 = vunpack.c.h.b16 %v412
    %v4137 = vunpack.c.l.b16 %v413
    %v4138 = vunpack.c.h.b16 %v413
    %v4139 = vunpack.c.l.b16 %v414
    %v4140 = vunpack.c.h.b16 %v414
    %v4141 = vunpack.c.l.b16 %v415
    %v4142 = vunpack.c.h.b16 %v415
    %v4143 = vunpack.c.l.b16 %v416
    %v4144 = vunpack.c.h.b16 %v416
    %v4145 = vunpack.c.l.b16 %v417
    %v4146 = vunpack.c.h.b16 %v417
    %v4147 = vunpack.c.l.b16 %v418
    %v4148 = vunpack.c.h.b16 %v418
    %v4149 = vunpack.c.l.b16 %v419
    %v4150 = vunpack.c.h.b16 %v419
    %v4151 = vunpack.c.l.b16 %v420
    %v4152 = vunpack.c.h.b16 %v420
    %v4153 = vunpack.c.l.b16 %v421
    %v4154 = vunpack.c.h.b16 %v421
    %v4155 = vunpack.c.l.b16 %v422
    %v4156 = vunpack.c.h.b16 %v422
    %v4157 = vunpack.c.l.b16 %v423
    %v4158 = vunpack.c.h.b16 %v423
    %v4159 = vunpack.c.l.b16 %v424
    %v4160 = vunpack.c.h.b16 %v424
    %v4161 = vunpack.c.l.b16 %v425
    %v4162 = vunpack.c.h.b16 %v425
    %v4163 = vunpack.c.l.b16 %v426
    %v4164 = vunpack.c.h.b16 %v426
    %v4165 = vunpack.c.l.b16 %v427
    %v4166 = vunpack.c.h.b16 %v427
    %v4167 = vunpack.c.l.b16 %v428
    %v4168 = vunpack.c.h.b16 %v428
    %v4169 = vunpack.c.l.b16 %v429
    %v4170 = vunpack.c.h.b16 %v429
    %v4171 = vunpack.c.l.b16 %v430
    %v4172 = vunpack.c.h.b16 %v430
    %v4173 = vunpack.c.l.b16 %v431
    %v4174 = vunpack.c.h.b16 %v431
    %v4175 = vunpack.c.l.b16 %v432
    %v4176 = vunpack.c.h.b16 %v432
    %v4177 = vunpack.c.l.b16 %v433
    %v4178 = vunpack.c.h.b16 %v433
    %v4179 = vunpack.c.l.b16 %v434
    %v4180 = vunpack.c.h.b16 %v434
    %v4181 = vunpack.c.l.b16 %v435
    %v4182 = vunpack.c.h.b16 %v435
    %v4183 = vunpack.c.l.b16 %v436
    %v4184 = vunpack.c.h.b16 %v436
    %v4185 = vunpack.c.l.b16 %v437
    %v4186 = vunpack.c.h.b16 %v437
    %v4187 = vunpack.c.l.b16 %v438
    %v4188 = vunpack.c.h.b16 %v438
    %v4189 = vunpack.c.l.b16 %v439
    %v4190 = vunpack.c.h.b16 %v439
    %v4191 = vunpack.c.l.b16 %v440
    %v4192 = vunpack.c.h.b16 %v440
    %v4193 = vunpack.c.l.b16 %v441
    %v4194 = vunpack.c.h.b16 %v441
    %v4195 = vunpack.c.l.b16 %v442
    %v4196 = vunpack.c.h.b16 %v442
    %v4197 = vunpack.c.l.b16 %v443
    %v4198 = vunpack.c.h.b16 %v443
    %v4199 = vunpack.c.l.b16 %v444
    %v4200 = vunpack.c.h.b16 %v444
    %v4201 = vunpack.c.l.b16 %v445
    %v4202 = vunpack.c.h.b16 %v445
    %v4203 = vunpack.c.l.b16 %v446
    %v4204 = vunpack.c.h.b16 %v446
    %v4205 = vunpack.c.l.b16 %v447
    %v4206 = vunpack.c.h.b16 %v447
    %v4207 = vunpack.c.l.b16 %v448
    %v4208 = vunpack.c.h.b16 %v448
    %v4209 = vunpack.c.l.b16 %v449
    %v4210 = vunpack.c.h.b16 %v449
    %v4211 = vunpack.c.l.b16 %v450
    %v4212 = vunpack.c.h.b16 %v450
    %v4213 = vunpack.c.l.b16 %v451
    %v4214 = vunpack.c.h.b16 %v451
    %v4215 = vunpack.c.l.b16 %v452
    %v4216 = vunpack.c.h.b16 %v452
    %v4217 = vunpack.c.l.b16 %v453
    %v4218 = vunpack.c.h.b16 %v453
    %v4219 = vunpack.c.l.b16 %v454
    %v4220 = vunpack.c.h.b16 %v454
    %v4221 = vunpack.c.l.b16 %v455
    %v4222 = vunpack.c.h.b16 %v455
    %v4223 = vunpack.c.l.b16 %v456
    %v4224 = vunpack.c.h.b16 %v456
    %v4225 = vunpack.c.l.b16 %v457
    %v4226 = vunpack.c.h.b16 %v457
    %v4227 = vunpack.c.l.b16 %v458
    %v4228 = vunpack.c.h.b16 %v458
    %v4229 = vunpack.c.l.b16 %v459
    %v4230 = vunpack.c.h.b16 %v459
    %v4231 = vunpack.c.l.b16 %v460
    %v4232 = vunpack.c.h.b16 %v460
    %v4233 = vunpack.c.l.b16 %v461
    %v4234 = vunpack.c.h.b16 %v461
    %v4235 = vunpack.c.l.b16 %v462
    %v4236 = vunpack.c.h.b16 %v462
    %v4237 = vunpack.c.l.b16 %v463
    %v4238 = vunpack.c.h.b16 %v463
    %v4239 = vunpack.c.l.b16 %v464
    %v4240 = vunpack.c.h.b16 %v464
    %v4241 = vunpack.c.l.b16 %v465
    %v4242 = vunpack.c.h.b16 %v465
    %v4243 = vunpack.c.l.b16 %v466
    %v4244 = vunpack.c.h.b16 %v466
    %v4245 = vunpack.c.l.b16 %v467
    %v4246 = vunpack.c.h.b16 %v467
    %v4247 = vunpack.c.l.b16 %v468
    %v4248 = vunpack.c.h.b16 %v468
    %v4249 = vunpack.c.l.b16 %v469
    %v4250 = vunpack.c.h.b16 %v469
    %v4251 = vunpack.c.l.b16 %v470
    %v4252 = vunpack.c.h.b16 %v470
    %v4253 = vunpack.c.l.b16 %v471
    %v4254 = vunpack.c.h.b16 %v471
    %v4255 = vunpack.c.l.b16 %v472
    %v4256 = vunpack.c.h.b16 %v472
    %v4257 = vunpack.c.l.b16 %v473
    %v4258 = vunpack.c.h.b16 %v473
    %v4259 = vunpack.c.l.b16 %v474
    %v4260 = vunpack.c.h.b16 %v474
    %v4261 = vunpack.c.l.b16 %v475
    %v4262 = vunpack.c.h.b16 %v475
    %v4263 = vunpack.c.l.b16 %v476
    %v4264 = vunpack.c.h.b16 %v476
    %v4265 = vunpack.c.l.b16 %v477
    %v4266 = vunpack.c.h.b16 %v477
    %v4267 = vunpack.c.l.b16 %v478
    %v4268 = vunpack.c.h.b16 %v478
    %v4269 = vunpack.c.l.b16 %v479
    %v4270 = vunpack.c.h.b16 %v479
    %v4271 = vunpack.c.l.b16 %v480
    %v4272 = vunpack.c.h.b16 %v480
    %v4273 = vunpack.c.l.b16 %v481
    %v4274 = vunpack.c.h.b16 %v481
    %v4275 = vunpack.c.l.b16 %v482
    %v4276 = vunpack.c.h.b16 %v482
    %v4277 = vunpack.c.l.b16 %v483
    %v4278 = vunpack.c.h.b16 %v483
    %v4279 = vunpack.c.l.b16 %v484
    %v4280 = vunpack.c.h.b16 %v484
    %v4281 = vunpack.c.l.b16 %v485
    %v4282 = vunpack.c.h.b16 %v485
    %v4283 = vunpack.c.l.b16 %v486
    %v4284 = vunpack.c.h.b16 %v486
    %v4285 = vunpack.c.l.b16 %v487
    %v4286 = vunpack.c.h.b16 %v487
    %v4287 = vunpack.c.l.b16 %v488
    %v4288 = vunpack.c.h.b16 %v488
    %v4289 = vunpack.c.l.b16 %v489
    %v4290 = vunpack.c.h.b16 %v489
    %v4291 = vunpack.c.l.b16 %v490
    %v4292 = vunpack.c.h.b16 %v490
    %v4293 = vunpack.c.l.b16 %v491
    %v4294 = vunpack.c.h.b16 %v491
    %v4295 = vunpack.c.l.b16 %v492
    %v4296 = vunpack.c.h.b16 %v492
    %v4297 = vunpack.c.l.b16 %v493
    %v4298 = vunpack.c.h.b16 %v493
    %v4299 = vunpack.c.l.b16 %v494
    %v4300 = vunpack.c.h.b16 %v494
    %v4301 = vunpack.c.l.b16 %v495
    %v4302 = vunpack.c.h.b16 %v495
    %v4303 = vunpack.c.l.b16 %v496
    %v4304 = vunpack.c.h.b16 %v496
    %v4305 = vunpack.c.l.b16 %v497
    %v4306 = vunpack.c.h.b16 %v497
    %v4307 = vunpack.c.l.b16 %v498
    %v4308 = vunpack.c.h.b16 %v498
    %v4309 = vunpack.c.l.b16 %v499
    %v4310 = vunpack.c.h.b16 %v499
    %v4311 = vunpack.c.l.b16 %v500
    %v4312 = vunpack.c.h.b16 %v500
    %v4313 = vunpack.c.l.b16 %v501
    %v4314 = vunpack.c.h.b16 %v501
    %v4315 = vunpack.c.l.b16 %v502
    %v4316 = vunpack.c.h.b16 %v502
    %v4317 = vunpack.c.l.b16 %v503
    %v4318 = vunpack.c.h.b16 %v503
    %v4319 = vunpack.c.l.b16 %v504
    %v4320 = vunpack.c.h.b16 %v504
    %v4321 = vunpack.c.l.b16 %v505
    %v4322 = vunpack.c.h.b16 %v505
    %v4323 = vunpack.c.l.b16 %v506
    %v4324 = vunpack.c.h.b16 %v506
    %v4325 = vunpack.c.l.b16 %v507
    %v4326 = vunpack.c.h.b16 %v507
    %v4327 = vunpack.c.l.b16 %v508
    %v4328 = vunpack.c.h.b16 %v508
    %v4329 = vunpack.c.l.b16 %v509
    %v4330 = vunpack.c.h.b16 %v509
    %v4331 = vunpack.c.l.b16 %v510
    %v4332 = vunpack.c.h.b16 %v510
    %v4333 = vunpack.c.l.b16 %v511
    %v4334 = vunpack.c.h.b16 %v511
    %v4335 = vunpack.c.l.b16 %v512
    %v4336 = vunpack.c.h.b16 %v512
    %v4337 = vunpack.c.l.b16 %v513
    %v4338 = vunpack.c.h.b16 %v513
    %v4339 = vunpack.c.l.b16 %v514
    %v4340 = vunpack.c.h.b16 %v514
    %v4341 = vunpack.c.l.b16 %v515
    %v4342 = vunpack.c.h.b16 %v515
    %v4343 = vunpack.c.l.b16 %v516
    %v4344 = vunpack.c.h.b16 %v516
    %v4345 = vunpack.c.l.b16 %v517
    %v4346 = vunpack.c.h.b16 %v517
    %v4347 = vunpack.c.l.b16 %v518
    %v4348 = vunpack.c.h.b16 %v518
    %v4349 = vunpack.c.l.b16 %v519
    %v4350 = vunpack.c.h.b16 %v519
    %v4351 = vunpack.c.l.b16 %v520
    %v4352 = vunpack.c.h.b16 %v520
    %v4353 = vunpack.c.l.b16 %v521
    %v4354 = vunpack.c.h.b16 %v521
    %v4355 = vunpack.c.l.b16 %v522
    %v4356 = vunpack.c.h.b16 %v522
    %v4357 = vunpack.c.l.b16 %v523
    %v4358 = vunpack.c.h.b16 %v523
    %v4359 = vunpack.c.l.b16 %v524
    %v4360 = vunpack.c.h.b16 %v524
    %v4361 = vunpack.c.l.b16 %v525
    %v4362 = vunpack.c.h.b16 %v525
    %v4363 = vunpack.c.l.b16 %v526
    %v4364 = vunpack.c.h.b16 %v526
    %v4365 = vunpack.c.l.b16 %v527
    %v4366 = vunpack.c.h.b16 %v527
    %v4367 = vunpack.c.l.b16 %v528
    %v4368 = vunpack.c.h.b16 %v528
    %v4369 = vunpack.c.l.b16 %v529
    %v4370 = vunpack.c.h.b16 %v529
    %v4371 = vunpack.c.l.b16 %v530
    %v4372 = vunpack.c.h.b16 %v530
    %v4373 = vunpack.c.l.b16 %v531
    %v4374 = vunpack.c.h.b16 %v531
    %v4375 = vunpack.c.l.b16 %v532
    %v4376 = vunpack.c.h.b16 %v532
    %v4377 = vunpack.c.l.b16 %v533
    %v4378 = vunpack.c.h.b16 %v533
    %v4379 = vunpack.c.l.b16 %v534
    %v4380 = vunpack.c.h.b16 %v534
    %v4381 = vunpack.c.l.b16 %v535
    %v4382 = vunpack.c.h.b16 %v535
    %v4383 = vunpack.c.l.b16 %v536
    %v4384 = vunpack.c.h.b16 %v536
    %v4385 = vunpack.c.l.b16 %v537
    %v4386 = vunpack.c.h.b16 %v537
    %v4387 = vunpack.c.l.b16 %v538
    %v4388 = vunpack.c.h.b16 %v538
    %v4389 = vunpack.c.l.b16 %v539
    %v4390 = vunpack.c.h.b16 %v539
    %v4391 = vunpack.c.l.b16 %v540
    %v4392 = vunpack.c.h.b16 %v540
    %v4393 = vunpack.c.l.b16 %v541
    %v4394 = vunpack.c.h.b16 %v541
    %v4395 = vunpack.c.l.b16 %v542
    %v4396 = vunpack.c.h.b16 %v542
    %v4397 = vunpack.c.l.b16 %v543
    %v4398 = vunpack.c.h.b16 %v543
    %v4399 = vunpack.c.l.b16 %v544
    %v4400 = vunpack.c.h.b16 %v544
    %v4401 = vunpack.c.l.b16 %v545
    %v4402 = vunpack.c.h.b16 %v545
    %v4403 = vunpack.c.l.b16 %v546
    %v4404 = vunpack.c.h.b16 %v546
    %v4405 = vunpack.c.l.b16 %v547
    %v4406 = vunpack.c.h.b16 %v547
    %v4407 = vunpack.c.l.b16 %v548
    %v4408 = vunpack.c.h.b16 %v548
    %v4409 = vunpack.c.l.b16 %v549
    %v4410 = vunpack.c.h.b16 %v549
    %v4411 = vunpack.c.l.b16 %v550
    %v4412 = vunpack.c.h.b16 %v550
    %v4413 = vunpack.c.l.b16 %v551
    %v4414 = vunpack.c.h.b16 %v551
    %v4415 = vunpack.c.l.b16 %v552
    %v4416 = vunpack.c.h.b16 %v552
    %v4417 = vunpack.c.l.b16 %v553
    %v4418 = vunpack.c.h.b16 %v553
    %v4419 = vunpack.c.l.b16 %v554
    %v4420 = vunpack.c.h.b16 %v554
    %v4421 = vunpack.c.l.b16 %v555
    %v4422 = vunpack.c.h.b16 %v555
    %v4423 = vunpack.c.l.b16 %v556
    %v4424 = vunpack.c.h.b16 %v556
    %v4425 = vunpack.c.l.b16 %v557
    %v4426 = vunpack.c.h.b16 %v557
    %v4427 = vunpack.c.l.b16 %v558
    %v4428 = vunpack.c.h.b16 %v558
    %v4429 = vunpack.c.l.b16 %v559
    %v4430 = vunpack.c.h.b16 %v559
    %v4431 = vunpack.c.l.b16 %v560
    %v4432 = vunpack.c.h.b16 %v560
    %v4433 = vunpack.c.l.b16 %v561
    %v4434 = vunpack.c.h.b16 %v561
    %v4435 = vunpack.c.l.b16 %v562
    %v4436 = vunpack.c.h.b16 %v562
    %v4437 = vunpack.c.l.b16 %v563
    %v4438 = vunpack.c.h.b16 %v563
    %v4439 = vunpack.c.l.b16 %v564
    %v4440 = vunpack.c.h.b16 %v564
    %v4441 = vunpack.c.l.b16 %v565
    %v4442 = vunpack.c.h.b16 %v565
    %v4443 = vunpack.c.l.b16 %v566
    %v4444 = vunpack.c.h.b16 %v566
    %v4445 = vunpack.c.l.b16 %v567
    %v4446 = vunpack.c.h.b16 %v567
    %v4447 = vunpack.c.l.b16 %v568
    %v4448 = vunpack.c.h.b16 %v568
    %v4449 = vunpack.c.l.b16 %v569
    %v4450 = vunpack.c.h.b16 %v569
    %v4451 = vunpack.c.l.b16 %v570
    %v4452 = vunpack.c.h.b16 %v570
    %v4453 = vunpack.c.l.b16 %v571
    %v4454 = vunpack.c.h.b16 %v571
    %v4455 = vunpack.c.l.b16 %v572
    %v4456 = vunpack.c.h.b16 %v572
    %v4457 = vunpack.c.l.b16 %v573
    %v4458 = vunpack.c.h.b16 %v573
    %v4459 = vunpack.c.l.b16 %v574
    %v4460 = vunpack.c.h.b16 %v574
    %v4461 = vunpack.c.l.b16 %v575
    %v4462 = vunpack.c.h.b16 %v575
    %v4463 = vunpack.c.l.b16 %v576
    %v4464 = vunpack.c.h.b16 %v576
    %v4465 = vunpack.c.l.b16 %v577
    %v4466 = vunpack.c.h.b16 %v577
    %v4467 = vunpack.c.l.b16 %v578
    %v4468 = vunpack.c.h.b16 %v578
    %v4469 = vunpack.c.l.b16 %v579
    %v4470 = vunpack.c.h.b16 %v579
    %v4471 = vunpack.c.l.b16 %v580
    %v4472 = vunpack.c.h.b16 %v580
    %v4473 = vunpack.c.l.b16 %v581
    %v4474 = vunpack.c.h.b16 %v581
    %v4475 = vunpack.c.l.b16 %v582
    %v4476 = vunpack.c.h.b16 %v582
    %v4477 = vunpack.c.l.b16 %v583
    %v4478 = vunpack.c.h.b16 %v583
    %v4479 = vunpack.c.l.b16 %v584
    %v4480 = vunpack.c.h.b16 %v584
    %v4481 = vunpack.c.l.b16 %v585
    %v4482 = vunpack.c.h.b16 %v585
    %v4483 = vunpack.c.l.b16 %v586
    %v4484 = vunpack.c.h.b16 %v586
    %v4485 = vunpack.c.l.b16 %v587
    %v4486 = vunpack.c.h.b16 %v587
    %v4487 = vunpack.c.l.b16 %v588
    %v4488 = vunpack.c.h.b16 %v588
    %v4489 = vunpack.c.l.b16 %v589
    %v4490 = vunpack.c.h.b16 %v589
    %v4491 = vunpack.c.l.b16 %v590
    %v4492 = vunpack.c.h.b16 %v590
    %v4493 = vunpack.c.l.b16 %v591
    %v4494 = vunpack.c.h.b16 %v591
    %v4495 = vunpack.c.l.b16 %v592
    %v4496 = vunpack.c.h.b16 %v592
    %v4497 = vunpack.c.l.b16 %v593
    %v4498 = vunpack.c.h.b16 %v593
    %v4499 = vunpack.c.l.b16 %v594
    %v4500 = vunpack.c.h.b16 %v594
    %v4501 = vunpack.c.l.b16 %v595
    %v4502 = vunpack.c.h.b16 %v595
    %v4503 = vunpack.c.l.b16 %v596
    %v4504 = vunpack.c.h.b16 %v596
    %v4505 = vunpack.c.l.b16 %v597
    %v4506 = vunpack.c.h.b16 %v597
    %v4507 = vunpack.c.l.b16 %v598
    %v4508 = vunpack.c.h.b16 %v598
    %v4509 = vunpack.c.l.b16 %v599
    %v4510 = vunpack.c.h.b16 %v599
    %v4511 = vunpack.c.l.b16 %v600
    %v4512 = vunpack.c.h.b16 %v600
    %v4513 = vunpack.c.l.b16 %v601
    %v4514 = vunpack.c.h.b16 %v601
    %v4515 = vunpack.c.l.b16 %v602
    %v4516 = vunpack.c.h.b16 %v602
    %v4517 = vunpack.c.l.b16 %v603
    %v4518 = vunpack.c.h.b16 %v603
    %v4519 = vunpack.c.l.b16 %v604
    %v4520 = vunpack.c.h.b16 %v604
    %v4521 = vunpack.c.l.b16 %v605
    %v4522 = vunpack.c.h.b16 %v605
    %v4523 = vunpack.c.l.b16 %v606
    %v4524 = vunpack.c.h.b16 %v606
    %v4525 = vunpack.c.l.b16 %v607
    %v4526 = vunpack.c.h.b16 %v607
    %v4527 = vunpack.c.l.b16 %v608
    %v4528 = vunpack.c.h.b16 %v608
    %v4529 = vunpack.c.l.b16 %v609
    %v4530 = vunpack.c.h.b16 %v609
    %v4531 = vunpack.c.l.b16 %v610
    %v4532 = vunpack.c.h.b16 %v610
    %v4533 = vunpack.c.l.b16 %v611
    %v4534 = vunpack.c.h.b16 %v611
    %v4535 = vunpack.c.l.b16 %v612
    %v4536 = vunpack.c.h.b16 %v612
    %v4537 = vunpack.c.l.b16 %v613
    %v4538 = vunpack.c.h.b16 %v613
    %v4539 = vunpack.c.l.b16 %v614
    %v4540 = vunpack.c.h.b16 %v614
    %v4541 = vunpack.c.l.b16 %v615
    %v4542 = vunpack.c.h.b16 %v615
    %v4543 = vunpack.c.l.b16 %v616
    %v4544 = vunpack.c.h.b16 %v616
    %v4545 = vunpack.c.l.b16 %v617
    %v4546 = vunpack.c.h.b16 %v617
    %v4547 = vunpack.c.l.b16 %v618
    %v4548 = vunpack.c.h.b16 %v618
    %v4549 = vunpack.c.l.b16 %v619
    %v4550 = vunpack.c.h.b16 %v619
    %v4551 = vunpack.c.l.b16 %v620
    %v4552 = vunpack.c.h.b16 %v620
    %v4553 = vunpack.c.l.b16 %v621
    %v4554 = vunpack.c.h.b16 %v621
    %v4555 = vunpack.c.l.b16 %v622
    %v4556 = vunpack.c.h.b16 %v622
    %v4557 = vunpack.c.l.b16 %v623
    %v4558 = vunpack.c.h.b16 %v623
    %v4559 = vunpack.c.l.b16 %v624
    %v4560 = vunpack.c.h.b16 %v624
    %v4561 = vunpack.c.l.b16 %v625
    %v4562 = vunpack.c.h.b16 %v625
    %v4563 = vunpack.c.l.b16 %v626
    %v4564 = vunpack.c.h.b16 %v626
    %v4565 = vunpack.c.l.b16 %v627
    %v4566 = vunpack.c.h.b16 %v627
    %v4567 = vunpack.c.l.b16 %v628
    %v4568 = vunpack.c.h.b16 %v628
    %v4569 = vunpack.c.l.b16 %v629
    %v4570 = vunpack.c.h.b16 %v629
    %v4571 = vunpack.c.l.b16 %v630
    %v4572 = vunpack.c.h.b16 %v630
    %v4573 = vunpack.c.l.b16 %v631
    %v4574 = vunpack.c.h.b16 %v631
    %v4575 = vunpack.c.l.b16 %v632
    %v4576 = vunpack.c.h.b16 %v632
    %v4577 = vunpack.c.l.b16 %v633
    %v4578 = vunpack.c.h.b16 %v633
    %v4579 = vunpack.c.l.b16 %v634
    %v4580 = vunpack.c.h.b16 %v634
    %v4581 = vunpack.c.l.b16 %v635
    %v4582 = vunpack.c.h.b16 %v635
    %v4583 = vunpack.c.l.b16 %v636
    %v4584 = vunpack.c.h.b16 %v636
    %v4585 = vunpack.c.l.b16 %v637
    %v4586 = vunpack.c.h.b16 %v637
    %v4587 = vunpack.c.l.b16 %v638
    %v4588 = vunpack.c.h.b16 %v638
    %v4589 = vunpack.c.l.b16 %v639
    %v4590 = vunpack.c.h.b16 %v639
    %v4591 = vunpack.c.l.b16 %v640
    %v4592 = vunpack.c.h.b16 %v640
    %v4593 = vunpack.c.l.b16 %v641
    %v4594 = vunpack.c.h.b16 %v641
    %v4595 = vunpack.c.l.b16 %v642
    %v4596 = vunpack.c.h.b16 %v642
    %v4597 = vunpack.c.l.b16 %v643
    %v4598 = vunpack.c.h.b16 %v643
    %v4599 = vunpack.c.l.b16 %v644
    %v4600 = vunpack.c.h.b16 %v644
    %v4601 = vunpack.c.l.b16 %v645
    %v4602 = vunpack.c.h.b16 %v645
    %v4603 = vunpack.c.l.b16 %v646
    %v4604 = vunpack.c.h.b16 %v646
    %v4605 = vunpack.c.l.b16 %v647
    %v4606 = vunpack.c.h.b16 %v647
    %v4607 = vunpack.c.l.b16 %v648
    %v4608 = vunpack.c.h.b16 %v648
    %v4609 = vunpack.c.l.b16 %v649
    %v4610 = vunpack.c.h.b16 %v649
    %v4611 = vunpack.c.l.b16 %v650
    %v4612 = vunpack.c.h.b16 %v650
    %v4613 = vunpack.c.l.b16 %v651
    %v4614 = vunpack.c.h.b16 %v651
    %v4615 = vunpack.c.l.b16 %v652
    %v4616 = vunpack.c.h.b16 %v652
    %v4617 = vunpack.c.l.b16 %v653
    %v4618 = vunpack.c.h.b16 %v653
    %v4619 = vunpack.c.l.b16 %v654
    %v4620 = vunpack.c.h.b16 %v654
    %v4621 = vunpack.c.l.b16 %v655
    %v4622 = vunpack.c.h.b16 %v655
    %v4623 = vunpack.c.l.b16 %v656
    %v4624 = vunpack.c.h.b16 %v656
    %v4625 = vunpack.c.l.b16 %v657
    %v4626 = vunpack.c.h.b16 %v657
    %v4627 = vunpack.c.l.b16 %v658
    %v4628 = vunpack.c.h.b16 %v658
    %v4629 = vunpack.c.l.b16 %v659
    %v4630 = vunpack.c.h.b16 %v659
    %v4631 = vunpack.c.l.b16 %v660
    %v4632 = vunpack.c.h.b16 %v660
    %v4633 = vunpack.c.l.b16 %v661
    %v4634 = vunpack.c.h.b16 %v661
    %v4635 = vunpack.c.l.b16 %v662
    %v4636 = vunpack.c.h.b16 %v662
    %v4637 = vunpack.c.l.b16 %v663
    %v4638 = vunpack.c.h.b16 %v663
    %v4639 = vunpack.c.l.b16 %v664
    %v4640 = vunpack.c.h.b16 %v664
    %v4641 = vunpack.c.l.b16 %v665
    %v4642 = vunpack.c.h.b16 %v665
    %v4643 = vunpack.c.l.b16 %v666
    %v4644 = vunpack.c.h.b16 %v666
    %v4645 = vunpack.c.l.b16 %v667
    %v4646 = vunpack.c.h.b16 %v667
    %v4647 = vunpack.c.l.b16 %v668
    %v4648 = vunpack.c.h.b16 %v668
    %v4649 = vunpack.c.l.b16 %v669
    %v4650 = vunpack.c.h.b16 %v669
    %v4651 = vunpack.c.l.b16 %v670
    %v4652 = vunpack.c.h.b16 %v670
    %v4653 = vunpack.c.l.b16 %v671
    %v4654 = vunpack.c.h.b16 %v671
    %v4655 = vunpack.c.l.b16 %v672
    %v4656 = vunpack.c.h.b16 %v672
    %v4657 = vunpack.c.l.b16 %v673
    %v4658 = vunpack.c.h.b16 %v673
    %v4659 = vunpack.c.l.b16 %v674
    %v4660 = vunpack.c.h.b16 %v674
    %v4661 = vunpack.c.l.b16 %v675
    %v4662 = vunpack.c.h.b16 %v675
    %v4663 = vunpack.c.l.b16 %v676
    %v4664 = vunpack.c.h.b16 %v676
    %v4665 = vunpack.c.l.b16 %v677
    %v4666 = vunpack.c.h.b16 %v677
    %v4667 = vunpack.c.l.b16 %v678
    %v4668 = vunpack.c.h.b16 %v678
    %v4669 = vunpack.c.l.b16 %v679
    %v4670 = vunpack.c.h.b16 %v679
    %v4671 = vunpack.c.l.b16 %v680
    %v4672 = vunpack.c.h.b16 %v680
    %v4673 = vunpack.c.l.b16 %v681
    %v4674 = vunpack.c.h.b16 %v681
    %v4675 = vunpack.c.l.b16 %v682
    %v4676 = vunpack.c.h.b16 %v682
    %v4677 = vunpack.c.l.b16 %v683
    %v4678 = vunpack.c.h.b16 %v683
    %v4679 = vunpack.c.l.b16 %v684
    %v4680 = vunpack.c.h.b16 %v684
    %v4681 = vunpack.c.l.b16 %v685
    %v4682 = vunpack.c.h.b16 %v685
    %v4683 = vunpack.c.l.b16 %v686
    %v4684 = vunpack.c.h.b16 %v686
    %v4685 = vunpack.c.l.b16 %v687
    %v4686 = vunpack.c.h.b16 %v687
    %v4687 = vunpack.c.l.b16 %v688
    %v4688 = vunpack.c.h.b16 %v688
    %v4689 = vunpack.c.l.b16 %v689
    %v4690 = vunpack.c.h.b16 %v689
    %v4691 = vunpack.c.l.b16 %v690
    %v4692 = vunpack.c.h.b16 %v690
    %v4693 = vunpack.c.l.b16 %v691
    %v4694 = vunpack.c.h.b16 %v691
    %v4695 = vunpack.c.l.b16 %v692
    %v4696 = vunpack.c.h.b16 %v692
    %v4697 = vunpack.c.l.b16 %v693
    %v4698 = vunpack.c.h.b16 %v693
    %v4699 = vunpack.c.l.b16 %v694
    %v4700 = vunpack.c.h.b16 %v694
    %v4701 = vunpack.c.l.b16 %v695
    %v4702 = vunpack.c.h.b16 %v695
    %v4703 = vunpack.c.l.b16 %v696
    %v4704 = vunpack.c.h.b16 %v696
    %v4705 = vunpack.c.l.b16 %v697
    %v4706 = vunpack.c.h.b16 %v697
    %v4707 = vunpack.c.l.b16 %v698
    %v4708 = vunpack.c.h.b16 %v698
    %v4709 = vunpack.c.l.b16 %v699
    %v4710 = vunpack.c.h.b16 %v699
    %v4711 = vunpack.c.l.b16 %v700
    %v4712 = vunpack.c.h.b16 %v700
    %v4713 = vunpack.c.l.b16 %v701
    %v4714 = vunpack.c.h.b16 %v701
    %v4715 = vunpack.c.l.b16 %v702
    %v4716 = vunpack.c.h.b16 %v702
    %v4717 = vunpack.c.l.b16 %v703
    %v4718 = vunpack.c.h.b16 %v703
    %v4719 = vunpack.c.l.b16 %v704
    %v4720 = vunpack.c.h.b16 %v704
    %v4721 = vunpack.c.l.b16 %v705
    %v4722 = vunpack.c.h.b16 %v705
    %v4723 = vunpack.c.l.b16 %v706
    %v4724 = vunpack.c.h.b16 %v706
    %v4725 = vunpack.c.l.b16 %v707
    %v4726 = vunpack.c.h.b16 %v707
    %v4727 = vunpack.c.l.b16 %v708
    %v4728 = vunpack.c.h.b16 %v708
    %v4729 = vunpack.c.l.b16 %v709
    %v4730 = vunpack.c.h.b16 %v709
    %v4731 = vunpack.c.l.b16 %v710
    %v4732 = vunpack.c.h.b16 %v710
    %v4733 = vunpack.c.l.b16 %v711
    %v4734 = vunpack.c.h.b16 %v711
    %v4735 = vunpack.c.l.b16 %v712
    %v4736 = vunpack.c.h.b16 %v712
    %v4737 = vunpack.c.l.b16 %v713
    %v4738 = vunpack.c.h.b16 %v713
    %v4739 = vunpack.c.l.b16 %v714
    %v4740 = vunpack.c.h.b16 %v714
    %v4741 = vunpack.c.l.b16 %v715
    %v4742 = vunpack.c.h.b16 %v715
    %v4743 = vunpack.c.l.b16 %v716
    %v4744 = vunpack.c.h.b16 %v716
    %v4745 = vunpack.c.l.b16 %v717
    %v4746 = vunpack.c.h.b16 %v717
    %v4747 = vunpack.c.l.b16 %v718
    %v4748 = vunpack.c.h.b16 %v718
    %v4749 = vunpack.c.l.b16 %v719
    %v4750 = vunpack.c.h.b16 %v719
    %v4751 = vunpack.c.l.b16 %v720
    %v4752 = vunpack.c.h.b16 %v720
    %v4753 = vunpack.c.l.b16 %v721
    %v4754 = vunpack.c.h.b16 %v721
    %v4755 = vunpack.c.l.b16 %v722
    %v4756 = vunpack.c.h.b16 %v722
    %v4757 = vunpack.c.l.b16 %v723
    %v4758 = vunpack.c.h.b16 %v723
    %v4759 = vunpack.c.l.b16 %v724
    %v4760 = vunpack.c.h.b16 %v724
    %v4761 = vunpack.c.l.b16 %v725
    %v4762 = vunpack.c.h.b16 %v725
    %v4763 = vunpack.c.l.b16 %v726
    %v4764 = vunpack.c.h.b16 %v726
    %v4765 = vunpack.c.l.b16 %v727
    %v4766 = vunpack.c.h.b16 %v727
    %v4767 = vunpack.c.l.b16 %v728
    %v4768 = vunpack.c.h.b16 %v728
    %v4769 = vunpack.c.l.b16 %v729
    %v4770 = vunpack.c.h.b16 %v729
    %v4771 = vunpack.c.l.b16 %v730
    %v4772 = vunpack.c.h.b16 %v730
    %v4773 = vunpack.c.l.b16 %v731
    %v4774 = vunpack.c.h.b16 %v731
    %v4775 = vunpack.c.l.b16 %v732
    %v4776 = vunpack.c.h.b16 %v732
    %v4777 = vunpack.c.l.b16 %v733
    %v4778 = vunpack.c.h.b16 %v733
    %v4779 = vunpack.c.l.b16 %v734
    %v4780 = vunpack.c.h.b16 %v734
    %v4781 = vunpack.c.l.b16 %v735
    %v4782 = vunpack.c.h.b16 %v735
    %v4783 = vunpack.c.l.b16 %v736
    %v4784 = vunpack.c.h.b16 %v736
    %v4785 = vunpack.c.l.b16 %v737
    %v4786 = vunpack.c.h.b16 %v737
    %v4787 = vunpack.c.l.b16 %v738
    %v4788 = vunpack.c.h.b16 %v738
    %v4789 = vunpack.c.l.b16 %v739
    %v4790 = vunpack.c.h.b16 %v739
    %v4791 = vunpack.c.l.b16 %v740
    %v4792 = vunpack.c.h.b16 %v740
    %v4793 = vunpack.c.l.b16 %v741
    %v4794 = vunpack.c.h.b16 %v741
    %v4795 = vunpack.c.l.b16 %v742
    %v4796 = vunpack.c.h.b16 %v742
    %v4797 = vunpack.c.l.b16 %v743
    %v4798 = vunpack.c.h.b16 %v743
    %v4799 = vunpack.c.l.b16 %v744
    %v4800 = vunpack.c.h.b16 %v744
    %v4801 = vunpack.c.l.b16 %v745
    %v4802 = vunpack.c.h.b16 %v745
    %v4803 = vunpack.c.l.b16 %v746
    %v4804 = vunpack.c.h.b16 %v746
    %v4805 = vunpack.c.l.b16 %v747
    %v4806 = vunpack.c.h.b16 %v747
    %v4807 = vunpack.c.l.b16 %v748
    %v4808 = vunpack.c.h.b16 %v748
    %v4809 = vunpack.c.l.b16 %v749
    %v4810 = vunpack.c.h.b16 %v749
    %v4811 = vunpack.c.l.b16 %v750
    %v4812 = vunpack.c.h.b16 %v750
    %v4813 = vunpack.c.l.b16 %v751
    %v4814 = vunpack.c.h.b16 %v751
    %v4815 = vunpack.c.l.b16 %v752
    %v4816 = vunpack.c.h.b16 %v752
    %v4817 = vunpack.c.l.b16 %v753
    %v4818 = vunpack.c.h.b16 %v753
    %v4819 = vunpack.c.l.b16 %v754
    %v4820 = vunpack.c.h.b16 %v754
    %v4821 = vunpack.c.l.b16 %v755
    %v4822 = vunpack.c.h.b16 %v755
    %v4823 = vunpack.c.l.b16 %v756
    %v4824 = vunpack.c.h.b16 %v756
    %v4825 = vunpack.c.l.b16 %v757
    %v4826 = vunpack.c.h.b16 %v757
    %v4827 = vunpack.c.l.b16 %v758
    %v4828 = vunpack.c.h.b16 %v758
    %v4829 = vunpack.c.l.b16 %v759
    %v4830 = vunpack.c.h.b16 %v759
    %v4831 = vunpack.c.l.b16 %v760
    %v4832 = vunpack.c.h.b16 %v760
    %v4833 = vunpack.c.l.b16 %v761
    %v4834 = vunpack.c.h.b16 %v761
    %v4835 = vunpack.c.l.b16 %v762
    %v4836 = vunpack.c.h.b16 %v762
    %v4837 = vunpack.c.l.b16 %v763
    %v4838 = vunpack.c.h.b16 %v763
    %v4839 = vunpack.c.l.b16 %v764
    %v4840 = vunpack.c.h.b16 %v764
    %v4841 = vunpack.c.l.b16 %v765
    %v4842 = vunpack.c.h.b16 %v765
    %v4843 = vunpack.c.l.b16 %v766
    %v4844 = vunpack.c.h.b16 %v766
    %v4845 = vunpack.c.l.b16 %v767
    %v4846 = vunpack.c.h.b16 %v767
    %v4847 = vunpack.c.l.b16 %v768
    %v4848 = vunpack.c.h.b16 %v768
    %v4849 = vunpack.c.l.b16 %v769
    %v4850 = vunpack.c.h.b16 %v769
    %v4851 = vunpack.c.l.b16 %v770
    %v4852 = vunpack.c.h.b16 %v770
    %v4853 = vunpack.c.l.b16 %v771
    %v4854 = vunpack.c.h.b16 %v771
    %v4855 = vunpack.c.l.b16 %v772
    %v4856 = vunpack.c.h.b16 %v772
    %v4857 = vunpack.c.l.b16 %v773
    %v4858 = vunpack.c.h.b16 %v773
    %v4859 = vunpack.c.l.b16 %v774
    %v4860 = vunpack.c.h.b16 %v774
    %v4861 = vunpack.c.l.b16 %v775
    %v4862 = vunpack.c.h.b16 %v775
    %v4863 = vunpack.c.l.b16 %v776
    %v4864 = vunpack.c.h.b16 %v776
    %v4865 = vunpack.c.l.b16 %v777
    %v4866 = vunpack.c.h.b16 %v777
    %v4867 = vunpack.c.l.b16 %v778
    %v4868 = vunpack.c.h.b16 %v778
    %v4869 = vunpack.c.l.b16 %v779
    %v4870 = vunpack.c.h.b16 %v779
    %v4871 = vunpack.c.l.b16 %v780
    %v4872 = vunpack.c.h.b16 %v780
    %v4873 = vunpack.c.l.b16 %v781
    %v4874 = vunpack.c.h.b16 %v781
    %v4875 = vunpack.c.l.b16 %v782
    %v4876 = vunpack.c.h.b16 %v782
    %v4877 = vunpack.c.l.b16 %v783
    %v4878 = vunpack.c.h.b16 %v783
    %v4879 = vunpack.c.l.b16 %v784
    %v4880 = vunpack.c.h.b16 %v784
    %v4881 = vunpack.c.l.b16 %v785
    %v4882 = vunpack.c.h.b16 %v785
    %v4883 = vunpack.c.l.b16 %v786
    %v4884 = vunpack.c.h.b16 %v786
    %v4885 = vunpack.c.l.b16 %v787
    %v4886 = vunpack.c.h.b16 %v787
    %v4887 = vunpack.c.l.b16 %v788
    %v4888 = vunpack.c.h.b16 %v788
    %v4889 = vunpack.c.l.b16 %v789
    %v4890 = vunpack.c.h.b16 %v789
    %v4891 = vunpack.c.l.b16 %v790
    %v4892 = vunpack.c.h.b16 %v790
    %v4893 = vunpack.c.l.b16 %v791
    %v4894 = vunpack.c.h.b16 %v791
    %v4895 = vunpack.c.l.b16 %v792
    %v4896 = vunpack.c.h.b16 %v792
    %v4897 = vunpack.c.l.b16 %v793
    %v4898 = vunpack.c.h.b16 %v793
    %v4899 = vunpack.c.l.b16 %v794
    %v4900 = vunpack.c.h.b16 %v794
    %v4901 = vunpack.c.l.b16 %v795
    %v4902 = vunpack.c.h.b16 %v795
    %v4903 = vunpack.c.l.b16 %v796
    %v4904 = vunpack.c.h.b16 %v796
    %v4905 = vunpack.c.l.b16 %v797
    %v4906 = vunpack.c.h.b16 %v797
    %v4907 = vunpack.c.l.b16 %v798
    %v4908 = vunpack.c.h.b16 %v798
    %v4909 = vunpack.c.l.b16 %v799
    %v4910 = vunpack.c.h.b16 %v799
    %v4911 = vunpack.c.l.b16 %v800
    %v4912 = vunpack.c.h.b16 %v800
    %v4913 = vunpack.c.l.b16 %v801
    %v4914 = vunpack.c.h.b16 %v801
    %v4915 = vunpack.c.l.b16 %v802
    %v4916 = vunpack.c.h.b16 %v802
    %v4917 = vunpack.c.l.b16 %v803
    %v4918 = vunpack.c.h.b16 %v803
    %v4919 = vunpack.c.l.b16 %v804
    %v4920 = vunpack.c.h.b16 %v804
    %v4921 = vunpack.c.l.b16 %v805
    %v4922 = vunpack.c.h.b16 %v805
    %v4923 = vunpack.c.l.b16 %v806
    %v4924 = vunpack.c.h.b16 %v806
    %v4925 = vunpack.c.l.b16 %v807
    %v4926 = vunpack.c.h.b16 %v807
    %v4927 = vunpack.c.l.b16 %v808
    %v4928 = vunpack.c.h.b16 %v808
    %v4929 = vunpack.c.l.b16 %v809
    %v4930 = vunpack.c.h.b16 %v809
    %v4931 = vunpack.c.l.b16 %v810
    %v4932 = vunpack.c.h.b16 %v810
    %v4933 = vunpack.c.l.b16 %v811
    %v4934 = vunpack.c.h.b16 %v811
    %v4935 = vunpack.c.l.b16 %v812
    %v4936 = vunpack.c.h.b16 %v812
    %v4937 = vunpack.c.l.b16 %v813
    %v4938 = vunpack.c.h.b16 %v813
    %v4939 = vunpack.c.l.b16 %v814
    %v4940 = vunpack.c.h.b16 %v814
    %v4941 = vunpack.c.l.b16 %v815
    %v4942 = vunpack.c.h.b16 %v815
    %v4943 = vunpack.c.l.b16 %v816
    %v4944 = vunpack.c.h.b16 %v816
    %v4945 = vunpack.c.l.b16 %v817
    %v4946 = vunpack.c.h.b16 %v817
    %v4947 = vunpack.c.l.b16 %v818
    %v4948 = vunpack.c.h.b16 %v818
    %v4949 = vunpack.c.l.b16 %v819
    %v4950 = vunpack.c.h.b16 %v819
    %v4951 = vunpack.c.l.b16 %v820
    %v4952 = vunpack.c.h.b16 %v820
    %v4953 = vunpack.c.l.b16 %v821
    %v4954 = vunpack.c.h.b16 %v821
    %v4955 = vunpack.c.l.b16 %v822
    %v4956 = vunpack.c.h.b16 %v822
    %v4957 = vunpack.c.l.b16 %v823
    %v4958 = vunpack.c.h.b16 %v823
    %v4959 = vunpack.c.l.b16 %v824
    %v4960 = vunpack.c.h.b16 %v824
    %v4961 = vunpack.c.l.b16 %v825
    %v4962 = vunpack.c.h.b16 %v825
    %v4963 = vunpack.c.l.b16 %v826
    %v4964 = vunpack.c.h.b16 %v826
    %v4965 = vunpack.c.l.b16 %v827
    %v4966 = vunpack.c.h.b16 %v827
    %v4967 = vunpack.c.l.b16 %v828
    %v4968 = vunpack.c.h.b16 %v828
    %v4969 = vunpack.c.l.b16 %v829
    %v4970 = vunpack.c.h.b16 %v829
    %v4971 = vunpack.c.l.b16 %v830
    %v4972 = vunpack.c.h.b16 %v830
    %v4973 = vunpack.c.l.b16 %v831
    %v4974 = vunpack.c.h.b16 %v831
    %v4975 = vunpack.c.l.b16 %v832
    %v4976 = vunpack.c.h.b16 %v832
    %v4977 = vunpack.c.l.b16 %v833
    %v4978 = vunpack.c.h.b16 %v833
    %v4979 = vunpack.c.l.b16 %v834
    %v4980 = vunpack.c.h.b16 %v834
    %v4981 = vunpack.c.l.b16 %v835
    %v4982 = vunpack.c.h.b16 %v835
    %v4983 = vunpack.c.l.b16 %v836
    %v4984 = vunpack.c.h.b16 %v836
    %v4985 = vunpack.c.l.b16 %v837
    %v4986 = vunpack.c.h.b16 %v837
    %v4987 = vunpack.c.l.b16 %v838
    %v4988 = vunpack.c.h.b16 %v838
    %v4989 = vunpack.c.l.b16 %v839
    %v4990 = vunpack.c.h.b16 %v839
    %v4991 = vunpack.c.l.b16 %v840
    %v4992 = vunpack.c.h.b16 %v840
    %v4993 = vunpack.c.l.b16 %v841
    %v4994 = vunpack.c.h.b16 %v841
    %v4995 = vunpack.c.l.b16 %v842
    %v4996 = vunpack.c.h.b16 %v842
    %v4997 = vunpack.c.l.b16 %v843
    %v4998 = vunpack.c.h.b16 %v843
    %v4999 = vunpack.c.l.b16 %v844
    %v5000 = vunpack.c.h.b16 %v844
    %v5001 = vunpack.c.l.b16 %v845
    %v5002 = vunpack.c.h.b16 %v845
    %v5003 = vunpack.c.l.b16 %v846
    %v5004 = vunpack.c.h.b16 %v846
    %v5005 = vunpack.c.l.b16 %v847
    %v5006 = vunpack.c.h.b16 %v847
    %v5007 = vunpack.c.l.b16 %v848
    %v5008 = vunpack.c.h.b16 %v848
    %v5009 = vunpack.c.l.b16 %v849
    %v5010 = vunpack.c.h.b16 %v849
    %v5011 = vunpack.c.l.b16 %v850
    %v5012 = vunpack.c.h.b16 %v850
    %v5013 = vunpack.c.l.b16 %v851
    %v5014 = vunpack.c.h.b16 %v851
    %v5015 = vunpack.c.l.b16 %v852
    %v5016 = vunpack.c.h.b16 %v852
    %v5017 = vunpack.c.l.b16 %v853
    %v5018 = vunpack.c.h.b16 %v853
    %v5019 = vunpack.c.l.b16 %v854
    %v5020 = vunpack.c.h.b16 %v854
    %v5021 = vunpack.c.l.b16 %v855
    %v5022 = vunpack.c.h.b16 %v855
    %v5023 = vunpack.c.l.b16 %v856
    %v5024 = vunpack.c.h.b16 %v856
    %v5025 = vunpack.c.l.b16 %v857
    %v5026 = vunpack.c.h.b16 %v857
    %v5027 = vunpack.c.l.b16 %v858
    %v5028 = vunpack.c.h.b16 %v858
    %v5029 = vunpack.c.l.b16 %v859
    %v5030 = vunpack.c.h.b16 %v859
    %v5031 = vunpack.c.l.b16 %v860
    %v5032 = vunpack.c.h.b16 %v860
    %v5033 = vunpack.c.l.b16 %v861
    %v5034 = vunpack.c.h.b16 %v861
    %v5035 = vunpack.c.l.b16 %v862
    %v5036 = vunpack.c.h.b16 %v862
    %v5037 = vunpack.c.l.b16 %v863
    %v5038 = vunpack.c.h.b16 %v863
    %v5039 = vunpack.c.l.b16 %v864
    %v5040 = vunpack.c.h.b16 %v864
    %v5041 = vunpack.c.l.b16 %v865
    %v5042 = vunpack.c.h.b16 %v865
    %v5043 = vunpack.c.l.b16 %v866
    %v5044 = vunpack.c.h.b16 %v866
    %v5045 = vunpack.c.l.b16 %v867
    %v5046 = vunpack.c.h.b16 %v867
    %v5047 = vunpack.c.l.b16 %v868
    %v5048 = vunpack.c.h.b16 %v868
    %v5049 = vunpack.c.l.b16 %v869
    %v5050 = vunpack.c.h.b16 %v869
    %v5051 = vunpack.c.l.b16 %v870
    %v5052 = vunpack.c.h.b16 %v870
    %v5053 = vunpack.c.l.b16 %v871
    %v5054 = vunpack.c.h.b16 %v871
    %v5055 = vunpack.c.l.b16 %v872
    %v5056 = vunpack.c.h.b16 %v872
    %v5057 = vunpack.c.l.b16 %v873
    %v5058 = vunpack.c.h.b16 %v873
    %v5059 = vunpack.c.l.b16 %v874
    %v5060 = vunpack.c.h.b16 %v874
    %v5061 = vunpack.c.l.b16 %v875
    %v5062 = vunpack.c.h.b16 %v875
    %v5063 = vunpack.c.l.b16 %v876
    %v5064 = vunpack.c.h.b16 %v876
    %v5065 = vunpack.c.l.b16 %v877
    %v5066 = vunpack.c.h.b16 %v877
    %v5067 = vunpack.c.l.b16 %v878
    %v5068 = vunpack.c.h.b16 %v878
    %v5069 = vunpack.c.l.b16 %v879
    %v5070 = vunpack.c.h.b16 %v879
    %v5071 = vunpack.c.l.b16 %v880
    %v5072 = vunpack.c.h.b16 %v880
    %v5073 = vunpack.c.l.b16 %v881
    %v5074 = vunpack.c.h.b16 %v881
    %v5075 = vunpack.c.l.b16 %v882
    %v5076 = vunpack.c.h.b16 %v882
    %v5077 = vunpack.c.l.b16 %v883
    %v5078 = vunpack.c.h.b16 %v883
    %v5079 = vunpack.c.l.b16 %v884
    %v5080 = vunpack.c.h.b16 %v884
    %v5081 = vunpack.c.l.b16 %v885
    %v5082 = vunpack.c.h.b16 %v885
    %v5083 = vunpack.c.l.b16 %v886
    %v5084 = vunpack.c.h.b16 %v886
    %v5085 = vunpack.c.l.b16 %v887
    %v5086 = vunpack.c.h.b16 %v887
    %v5087 = vunpack.c.l.b16 %v888
    %v5088 = vunpack.c.h.b16 %v888
    %v5089 = vunpack.c.l.b16 %v889
    %v5090 = vunpack.c.h.b16 %v889
    %v5091 = vunpack.c.l.b16 %v890
    %v5092 = vunpack.c.h.b16 %v890
    %v5093 = vunpack.c.l.b16 %v891
    %v5094 = vunpack.c.h.b16 %v891
    %v5095 = vunpack.c.l.b16 %v892
    %v5096 = vunpack.c.h.b16 %v892
    %v5097 = vunpack.c.l.b16 %v893
    %v5098 = vunpack.c.h.b16 %v893
    %v5099 = vunpack.c.l.b16 %v894
    %v5100 = vunpack.c.h.b16 %v894
    %v5101 = vunpack.c.l.b16 %v895
    %v5102 = vunpack.c.h.b16 %v895
    %v5103 = vunpack.c.l.b16 %v896
    %v5104 = vunpack.c.h.b16 %v896
    %v5105 = vunpack.c.l.b16 %v897
    %v5106 = vunpack.c.h.b16 %v897
    %v5107 = vunpack.c.l.b16 %v898
    %v5108 = vunpack.c.h.b16 %v898
    %v5109 = vunpack.c.l.b16 %v899
    %v5110 = vunpack.c.h.b16 %v899
    %v5111 = vunpack.c.l.b16 %v900
    %v5112 = vunpack.c.h.b16 %v900
    %v5113 = vunpack.c.l.b16 %v901
    %v5114 = vunpack.c.h.b16 %v901
    %v5115 = vunpack.c.l.b16 %v902
    %v5116 = vunpack.c.h.b16 %v902
    %v5117 = vunpack.c.l.b16 %v903
    %v5118 = vunpack.c.h.b16 %v903
    %v5119 = vunpack.c.l.b16 %v904
    %v5120 = vunpack.c.h.b16 %v904
    %v5121 = vunpack.c.l.b16 %v905
    %v5122 = vunpack.c.h.b16 %v905
    %v5123 = vunpack.c.l.b16 %v906
    %v5124 = vunpack.c.h.b16 %v906
    %v5125 = vunpack.c.l.b16 %v907
    %v5126 = vunpack.c.h.b16 %v907
    %v5127 = vunpack.c.l.b16 %v908
    %v5128 = vunpack.c.h.b16 %v908
    %v5129 = vunpack.c.l.b16 %v909
    %v5130 = vunpack.c.h.b16 %v909
    %v5131 = vunpack.c.l.b16 %v910
    %v5132 = vunpack.c.h.b16 %v910
    %v5133 = vunpack.c.l.b16 %v911
    %v5134 = vunpack.c.h.b16 %v911
    %v5135 = vunpack.c.l.b16 %v912
    %v5136 = vunpack.c.h.b16 %v912
    %v5137 = vunpack.c.l.b16 %v913
    %v5138 = vunpack.c.h.b16 %v913
    %v5139 = vunpack.c.l.b16 %v914
    %v5140 = vunpack.c.h.b16 %v914
    %v5141 = vunpack.c.l.b16 %v915
    %v5142 = vunpack.c.h.b16 %v915
    %v5143 = vunpack.c.l.b16 %v916
    %v5144 = vunpack.c.h.b16 %v916
    %v5145 = vunpack.c.l.b16 %v917
    %v5146 = vunpack.c.h.b16 %v917
    %v5147 = vunpack.c.l.b16 %v918
    %v5148 = vunpack.c.h.b16 %v918
    %v5149 = vunpack.c.l.b16 %v919
    %v5150 = vunpack.c.h.b16 %v919
    %v5151 = vunpack.c.l.b16 %v920
    %v5152 = vunpack.c.h.b16 %v920
    %v5153 = vunpack.c.l.b16 %v921
    %v5154 = vunpack.c.h.b16 %v921
    %v5155 = vunpack.c.l.b16 %v922
    %v5156 = vunpack.c.h.b16 %v922
    %v5157 = vunpack.c.l.b16 %v923
    %v5158 = vunpack.c.h.b16 %v923
    %v5159 = vunpack.c.l.b16 %v924
    %v5160 = vunpack.c.h.b16 %v924
    %v5161 = vunpack.c.l.b16 %v925
    %v5162 = vunpack.c.h.b16 %v925
    %v5163 = vunpack.c.l.b16 %v926
    %v5164 = vunpack.c.h.b16 %v926
    %v5165 = vunpack.c.l.b16 %v927
    %v5166 = vunpack.c.h.b16 %v927
    %v5167 = vunpack.c.l.b16 %v928
    %v5168 = vunpack.c.h.b16 %v928
    %v5169 = vunpack.c.l.b16 %v929
    %v5170 = vunpack.c.h.b16 %v929
    %v5171 = vunpack.c.l.b16 %v930
    %v5172 = vunpack.c.h.b16 %v930
    %v5173 = vunpack.c.l.b16 %v931
    %v5174 = vunpack.c.h.b16 %v931
    %v5175 = vunpack.c.l.b16 %v932
    %v5176 = vunpack.c.h.b16 %v932
    %v5177 = vunpack.c.l.b16 %v933
    %v5178 = vunpack.c.h.b16 %v933
    %v5179 = vunpack.c.l.b16 %v934
    %v5180 = vunpack.c.h.b16 %v934
    %v5181 = vunpack.c.l.b16 %v935
    %v5182 = vunpack.c.h.b16 %v935
    %v5183 = vunpack.c.l.b16 %v936
    %v5184 = vunpack.c.h.b16 %v936
    %v5185 = vunpack.c.l.b16 %v937
    %v5186 = vunpack.c.h.b16 %v937
    %v5187 = vunpack.c.l.b16 %v938
    %v5188 = vunpack.c.h.b16 %v938
    %v5189 = vunpack.c.l.b16 %v939
    %v5190 = vunpack.c.h.b16 %v939
    %v5191 = vunpack.c.l.b16 %v940
    %v5192 = vunpack.c.h.b16 %v940
    %v5193 = vunpack.c.l.b16 %v941
    %v5194 = vunpack.c.h.b16 %v941
    %v5195 = vunpack.c.l.b16 %v942
    %v5196 = vunpack.c.h.b16 %v942
    %v5197 = vunpack.c.l.b16 %v943
    %v5198 = vunpack.c.h.b16 %v943
    %v5199 = vunpack.c.l.b16 %v944
    %v5200 = vunpack.c.h.b16 %v944
    %v5201 = vunpack.c.l.b16 %v945
    %v5202 = vunpack.c.h.b16 %v945
    %v5203 = vunpack.c.l.b16 %v946
    %v5204 = vunpack.c.h.b16 %v946
    %v5205 = vunpack.c.l.b16 %v947
    %v5206 = vunpack.c.h.b16 %v947
    %v5207 = vunpack.c.l.b16 %v948
    %v5208 = vunpack.c.h.b16 %v948
    %v5209 = vunpack.c.l.b16 %v949
    %v5210 = vunpack.c.h.b16 %v949
    %v5211 = vunpack.c.l.b16 %v950
    %v5212 = vunpack.c.h.b16 %v950
    %v5213 = vunpack.c.l.b16 %v951
    %v5214 = vunpack.c.h.b16 %v951
    %v5215 = vunpack.c.l.b16 %v952
    %v5216 = vunpack.c.h.b16 %v952
    %v5217 = vunpack.c.l.b16 %v953
    %v5218 = vunpack.c.h.b16 %v953
    %v5219 = vunpack.c.l.b16 %v954
    %v5220 = vunpack.c.h.b16 %v954
    %v5221 = vunpack.c.l.b16 %v955
    %v5222 = vunpack.c.h.b16 %v955
    %v5223 = vunpack.c.l.b16 %v956
    %v5224 = vunpack.c.h.b16 %v956
    %v5225 = vunpack.c.l.b16 %v957
    %v5226 = vunpack.c.h.b16 %v957
    %v5227 = vunpack.c.l.b16 %v958
    %v5228 = vunpack.c.h.b16 %v958
    %v5229 = vunpack.c.l.b16 %v959
    %v5230 = vunpack.c.h.b16 %v959
    %v5231 = vunpack.c.l.b16 %v960
    %v5232 = vunpack.c.h.b16 %v960
    %v5233 = vunpack.c.l.b16 %v961
    %v5234 = vunpack.c.h.b16 %v961
    %v5235 = vunpack.c.l.b16 %v962
    %v5236 = vunpack.c.h.b16 %v962
    %v5237 = vunpack.c.l.b16 %v963
    %v5238 = vunpack.c.h.b16 %v963
    %v5239 = vunpack.c.l.b16 %v964
    %v5240 = vunpack.c.h.b16 %v964
    %v5241 = vunpack.c.l.b16 %v965
    %v5242 = vunpack.c.h.b16 %v965
    %v5243 = vunpack.c.l.b16 %v966
    %v5244 = vunpack.c.h.b16 %v966
    %v5245 = vunpack.c.l.b16 %v967
    %v5246 = vunpack.c.h.b16 %v967
    %v5247 = vunpack.c.l.b16 %v968
    %v5248 = vunpack.c.h.b16 %v968
    %v5249 = vunpack.c.l.b16 %v969
    %v5250 = vunpack.c.h.b16 %v969
    %v5251 = vunpack.c.l.b16 %v970
    %v5252 = vunpack.c.h.b16 %v970
    %v5253 = vunpack.c.l.b16 %v971
    %v5254 = vunpack.c.h.b16 %v971
    %v5255 = vunpack.c.l.b16 %v972
    %v5256 = vunpack.c.h.b16 %v972
    %v5257 = vunpack.c.l.b16 %v973
    %v5258 = vunpack.c.h.b16 %v973
    %v5259 = vunpack.c.l.b16 %v974
    %v5260 = vunpack.c.h.b16 %v974
    %v5261 = vunpack.c.l.b16 %v975
    %v5262 = vunpack.c.h.b16 %v975
    %v5263 = vunpack.c.l.b16 %v976
    %v5264 = vunpack.c.h.b16 %v976
    %v5265 = vunpack.c.l.b16 %v977
    %v5266 = vunpack.c.h.b16 %v977
    %v5267 = vunpack.c.l.b16 %v978
    %v5268 = vunpack.c.h.b16 %v978
    %v5269 = vunpack.c.l.b16 %v979
    %v5270 = vunpack.c.h.b16 %v979
    %v5271 = vunpack.c.l.b16 %v980
    %v5272 = vunpack.c.h.b16 %v980
    %v5273 = vunpack.c.l.b16 %v981
    %v5274 = vunpack.c.h.b16 %v981
    %v5275 = vunpack.c.l.b16 %v982
    %v5276 = vunpack.c.h.b16 %v982
    %v5277 = vunpack.c.l.b16 %v983
    %v5278 = vunpack.c.h.b16 %v983
    %v5279 = vunpack.c.l.b16 %v984
    %v5280 = vunpack.c.h.b16 %v984
    %v5281 = vunpack.c.l.b16 %v985
    %v5282 = vunpack.c.h.b16 %v985
    %v5283 = vunpack.c.l.b16 %v986
    %v5284 = vunpack.c.h.b16 %v986
    %v5285 = vunpack.c.l.b16 %v987
    %v5286 = vunpack.c.h.b16 %v987
    %v5287 = vunpack.c.l.b16 %v988
    %v5288 = vunpack.c.h.b16 %v988
    %v5289 = vunpack.c.l.b16 %v989
    %v5290 = vunpack.c.h.b16 %v989
    %v5291 = vunpack.c.l.b16 %v990
    %v5292 = vunpack.c.h.b16 %v990
    %v5293 = vunpack.c.l.b16 %v991
    %v5294 = vunpack.c.h.b16 %v991
    %v5295 = vunpack.c.l.b16 %v992
    %v5296 = vunpack.c.h.b16 %v992
    %v5297 = vunpack.c.l.b16 %v993
    %v5298 = vunpack.c.h.b16 %v993
    %v5299 = vunpack.c.l.b16 %v994
    %v5300 = vunpack.c.h.b16 %v994
    %v5301 = vunpack.c.l.b16 %v995
    %v5302 = vunpack.c.h.b16 %v995
    %v5303 = vunpack.c.l.b16 %v996
    %v5304 = vunpack.c.h.b16 %v996
    %v5305 = vunpack.c.l.b16 %v997
    %v5306 = vunpack.c.h.b16 %v997
    %v5307 = vunpack.c.l.b16 %v998
    %v5308 = vunpack.c.h.b16 %v998
    %v5309 = vunpack.c.l.b16 %v999
    %v5310 = vunpack.c.h.b16 %v999
    %v5311 = vunpack.c.l.b16 %v1000
    %v5312 = vunpack.c.h.b16 %v1000
    %v5313 = vunpack.c.l.b16 %v1001
    %v5314 = vunpack.c.h.b16 %v1001
    %v5315 = vunpack.c.l.b16 %v1002
    %v5316 = vunpack.c.h.b16 %v1002
    %v5317 = vunpack.c.l.b16 %v1003
    %v5318 = vunpack.c.h.b16 %v1003
    %v5319 = vunpack.c.l.b16 %v1004
    %v5320 = vunpack.c.h.b16 %v1004
    %v5321 = vunpack.c.l.b16 %v1005
    %v5322 = vunpack.c.h.b16 %v1005
    %v5323 = vunpack.c.l.b16 %v1006
    %v5324 = vunpack.c.h.b16 %v1006
    %v5325 = vunpack.c.l.b16 %v1007
    %v5326 = vunpack.c.h.b16 %v1007
    %v5327 = vunpack.c.l.b16 %v1008
    %v5328 = vunpack.c.h.b16 %v1008
    %v5329 = vunpack.c.l.b16 %v1009
    %v5330 = vunpack.c.h.b16 %v1009
    %v5331 = vunpack.c.l.b16 %v1010
    %v5332 = vunpack.c.h.b16 %v1010
    %v5333 = vunpack.c.l.b16 %v1011
    %v5334 = vunpack.c.h.b16 %v1011
    %v5335 = vunpack.c.l.b16 %v1012
    %v5336 = vunpack.c.h.b16 %v1012
    %v5337 = vunpack.c.l.b16 %v1013
    %v5338 = vunpack.c.h.b16 %v1013
    %v5339 = vunpack.c.l.b16 %v1014
    %v5340 = vunpack.c.h.b16 %v1014
    %v5341 = vunpack.c.l.b16 %v1015
    %v5342 = vunpack.c.h.b16 %v1015
    %v5343 = vunpack.c.l.b16 %v1016
    %v5344 = vunpack.c.h.b16 %v1016
    %v5345 = vunpack.c.l.b16 %v1017
    %v5346 = vunpack.c.h.b16 %v1017
    %v5347 = vunpack.c.l.b16 %v1018
    %v5348 = vunpack.c.h.b16 %v1018
    %v5349 = vunpack.c.l.b16 %v1019
    %v5350 = vunpack.c.h.b16 %v1019
    %v5351 = vunpack.c.l.b16 %v1020
    %v5352 = vunpack.c.h.b16 %v1020
    %v5353 = vunpack.c.l.b16 %v1021
    %v5354 = vunpack.c.h.b16 %v1021
    %v5355 = vunpack.c.l.b16 %v1022
    %v5356 = vunpack.c.h.b16 %v1022
    %v5357 = vunpack.c.l.b16 %v1023
    %v5358 = vunpack.c.h.b16 %v1023
    %v5359 = vunpack.c.l.b16 %v1024
    %v5360 = vunpack.c.h.b16 %v1024
    %v5361 = vunpack.c.l.b16 %v1025
    %v5362 = vunpack.c.h.b16 %v1025
    %v5363 = vunpack.c.l.b16 %v1026
    %v5364 = vunpack.c.h.b16 %v1026
    %v5365 = vunpack.c.l.b16 %v1027
    %v5366 = vunpack.c.h.b16 %v1027
    %v5367 = vunpack.c.l.b16 %v1028
    %v5368 = vunpack.c.h.b16 %v1028
    %v5369 = vunpack.c.l.b16 %v1029
    %v5370 = vunpack.c.h.b16 %v1029
    %v5371 = vunpack.c.l.b16 %v1030
    %v5372 = vunpack.c.h.b16 %v1030
    %v5373 = vunpack.c.l.b16 %v1031
    %v5374 = vunpack.c.h.b16 %v1031
    %v5375 = vunpack.c.l.b16 %v1032
    %v5376 = vunpack.c.h.b16 %v1032
    %v5377 = vunpack.c.l.b16 %v1033
    %v5378 = vunpack.c.h.b16 %v1033
    %v5379 = vunpack.c.l.b16 %v1034
    %v5380 = vunpack.c.h.b16 %v1034
    %v5381 = vunpack.c.l.b16 %v1035
    %v5382 = vunpack.c.h.b16 %v1035
    %v5383 = vunpack.c.l.b16 %v1036
    %v5384 = vunpack.c.h.b16 %v1036
    %v5385 = vunpack.c.l.b16 %v1037
    %v5386 = vunpack.c.h.b16 %v1037
    %v5387 = vunpack.c.l.b16 %v1038
    %v5388 = vunpack.c.h.b16 %v1038
    %v5389 = vunpack.c.l.b16 %v1039
    %v5390 = vunpack.c.h.b16 %v1039
    %v5391 = vunpack.c.l.b16 %v1040
    %v5392 = vunpack.c.h.b16 %v1040
    %v5393 = vunpack.c.l.b16 %v1041
    %v5394 = vunpack.c.h.b16 %v1041
    %v5395 = vunpack.c.l.b16 %v1042
    %v5396 = vunpack.c.h.b16 %v1042
    %v5397 = vunpack.c.l.b16 %v1043
    %v5398 = vunpack.c.h.b16 %v1043
    %v5399 = vunpack.c.l.b16 %v1044
    %v5400 = vunpack.c.h.b16 %v1044
    %v5401 = vunpack.c.l.b16 %v1045
    %v5402 = vunpack.c.h.b16 %v1045
    %v5403 = vunpack.c.l.b16 %v1046
    %v5404 = vunpack.c.h.b16 %v1046
    %v5405 = vunpack.c.l.b16 %v1047
    %v5406 = vunpack.c.h.b16 %v1047
    %v5407 = vunpack.c.l.b16 %v1048
    %v5408 = vunpack.c.h.b16 %v1048
    %v5409 = vunpack.c.l.b16 %v1049
    %v5410 = vunpack.c.h.b16 %v1049
    %v5411 = vunpack.c.l.b16 %v1050
    %v5412 = vunpack.c.h.b16 %v1050
    %v5413 = vunpack.c.l.b16 %v1051
    %v5414 = vunpack.c.h.b16 %v1051
    %v5415 = vunpack.c.l.b16 %v1052
    %v5416 = vunpack.c.h.b16 %v1052
    %v5417 = vunpack.c.l.b16 %v1053
    %v5418 = vunpack.c.h.b16 %v1053
    %v5419 = vunpack.c.l.b16 %v1054
    %v5420 = vunpack.c.h.b16 %v1054
    %v5421 = vunpack.c.l.b16 %v1055
    %v5422 = vunpack.c.h.b16 %v1055
    %v5423 = vunpack.c.l.b16 %v1056
    %v5424 = vunpack.c.h.b16 %v1056
    %v5425 = vunpack.c.l.b16 %v1057
    %v5426 = vunpack.c.h.b16 %v1057
    %v5427 = vunpack.c.l.b16 %v1058
    %v5428 = vunpack.c.h.b16 %v1058
    %v5429 = vunpack.c.l.b16 %v1059
    %v5430 = vunpack.c.h.b16 %v1059
    %v5431 = vunpack.c.l.b16 %v1060
    %v5432 = vunpack.c.h.b16 %v1060
    %v5433 = vunpack.c.l.b16 %v1061
    %v5434 = vunpack.c.h.b16 %v1061
    %v5435 = vunpack.c.l.b16 %v1062
    %v5436 = vunpack.c.h.b16 %v1062
    %v5437 = vunpack.c.l.b16 %v1063
    %v5438 = vunpack.c.h.b16 %v1063
    %v5439 = vunpack.c.l.b16 %v1064
    %v5440 = vunpack.c.h.b16 %v1064
    %v5441 = vunpack.c.l.b16 %v1065
    %v5442 = vunpack.c.h.b16 %v1065
    %v5443 = vunpack.c.l.b16 %v1066
    %v5444 = vunpack.c.h.b16 %v1066
    %v5445 = vunpack.c.l.b16 %v1067
    %v5446 = vunpack.c.h.b16 %v1067
    %v5447 = vunpack.c.l.b16 %v1068
    %v5448 = vunpack.c.h.b16 %v1068
    %v5449 = vunpack.c.l.b16 %v1069
    %v5450 = vunpack.c.h.b16 %v1069
    %v5451 = vunpack.c.l.b16 %v1070
    %v5452 = vunpack.c.h.b16 %v1070
    %v5453 = vunpack.c.l.b16 %v1071
    %v5454 = vunpack.c.h.b16 %v1071
    %v5455 = vunpack.c.l.b16 %v1072
    %v5456 = vunpack.c.h.b16 %v1072
    %v5457 = vunpack.c.l.b16 %v1073
    %v5458 = vunpack.c.h.b16 %v1073
    %v5459 = vunpack.c.l.b16 %v1074
    %v5460 = vunpack.c.h.b16 %v1074
    %v5461 = vunpack.c.l.b16 %v1075
    %v5462 = vunpack.c.h.b16 %v1075
    %v5463 = vunpack.c.l.b16 %v1076
    %v5464 = vunpack.c.h.b16 %v1076
    %v5465 = vunpack.c.l.b16 %v1077
    %v5466 = vunpack.c.h.b16 %v1077
    %v5467 = vunpack.c.l.b16 %v1078
    %v5468 = vunpack.c.h.b16 %v1078
    %v5469 = vunpack.c.l.b16 %v1079
    %v5470 = vunpack.c.h.b16 %v1079
    %v5471 = vunpack.c.l.b16 %v1080
    %v5472 = vunpack.c.h.b16 %v1080
    %v5473 = vunpack.c.l.b16 %v1081
    %v5474 = vunpack.c.h.b16 %v1081
    %v5475 = vunpack.c.l.b16 %v1082
    %v5476 = vunpack.c.h.b16 %v1082
    %v5477 = vunpack.c.l.b16 %v1083
    %v5478 = vunpack.c.h.b16 %v1083
    %v5479 = vunpack.c.l.b16 %v1084
    %v5480 = vunpack.c.h.b16 %v1084
    %v5481 = vunpack.c.l.b16 %v1085
    %v5482 = vunpack.c.h.b16 %v1085
    %v5483 = vunpack.c.l.b16 %v1086
    %v5484 = vunpack.c.h.b16 %v1086
    %v5485 = vunpack.c.l.b16 %v1087
    %v5486 = vunpack.c.h.b16 %v1087
    %v5487 = vunpack.c.l.b16 %v1088
    %v5488 = vunpack.c.h.b16 %v1088
    %v5489 = vunpack.c.l.b16 %v1089
    %v5490 = vunpack.c.h.b16 %v1089
    %v5491 = vunpack.c.l.b16 %v1090
    %v5492 = vunpack.c.h.b16 %v1090
    %v5493 = vunpack.c.l.b16 %v1091
    %v5494 = vunpack.c.h.b16 %v1091
    %v5495 = vunpack.c.l.b16 %v1092
    %v5496 = vunpack.c.h.b16 %v1092
    %v5497 = vunpack.c.l.b16 %v1093
    %v5498 = vunpack.c.h.b16 %v1093
    %v5499 = vunpack.c.l.b16 %v1094
    %v5500 = vunpack.c.h.b16 %v1094
    %v5501 = vunpack.c.l.b16 %v1095
    %v5502 = vunpack.c.h.b16 %v1095
    %v5503 = vunpack.c.l.b16 %v1096
    %v5504 = vunpack.c.h.b16 %v1096
    %v5505 = vunpack.c.l.b16 %v1097
    %v5506 = vunpack.c.h.b16 %v1097
    %v5507 = vunpack.c.l.b16 %v1098
    %v5508 = vunpack.c.h.b16 %v1098
    %v5509 = vunpack.c.l.b16 %v1099
    %v5510 = vunpack.c.h.b16 %v1099
    %v5511 = vunpack.c.l.b16 %v1100
    %v5512 = vunpack.c.h.b16 %v1100
    %v5513 = vunpack.c.l.b16 %v1101
    %v5514 = vunpack.c.h.b16 %v1101
    %v5515 = vunpack.c.l.b16 %v1102
    %v5516 = vunpack.c.h.b16 %v1102
    %v5517 = vunpack.c.l.b16 %v1103
    %v5518 = vunpack.c.h.b16 %v1103
    %v5519 = vunpack.c.l.b16 %v1104
    %v5520 = vunpack.c.h.b16 %v1104
    %v5521 = vunpack.c.l.b16 %v1105
    %v5522 = vunpack.c.h.b16 %v1105
    %v5523 = vunpack.c.l.b16 %v1106
    %v5524 = vunpack.c.h.b16 %v1106
    %v5525 = vunpack.c.l.b16 %v1107
    %v5526 = vunpack.c.h.b16 %v1107
    %v5527 = vunpack.c.l.b16 %v1108
    %v5528 = vunpack.c.h.b16 %v1108
    %v5529 = vunpack.c.l.b16 %v1109
    %v5530 = vunpack.c.h.b16 %v1109
    %v5531 = vunpack.c.l.b16 %v1110
    %v5532 = vunpack.c.h.b16 %v1110
    %v5533 = vunpack.c.l.b16 %v1111
    %v5534 = vunpack.c.h.b16 %v1111
    %v5535 = vunpack.c.l.b16 %v1112
    %v5536 = vunpack.c.h.b16 %v1112
    %v5537 = vunpack.c.l.b16 %v1113
    %v5538 = vunpack.c.h.b16 %v1113
    %v5539 = vunpack.c.l.b16 %v1114
    %v5540 = vunpack.c.h.b16 %v1114
    %v5541 = vunpack.c.l.b16 %v1115
    %v5542 = vunpack.c.h.b16 %v1115
    %v5543 = vunpack.c.l.b16 %v1116
    %v5544 = vunpack.c.h.b16 %v1116
    %v5545 = vunpack.c.l.b16 %v1117
    %v5546 = vunpack.c.h.b16 %v1117
    %v5547 = vunpack.c.l.b16 %v1118
    %v5548 = vunpack.c.h.b16 %v1118
    %v5549 = vunpack.c.l.b16 %v1119
    %v5550 = vunpack.c.h.b16 %v1119
    %v5551 = vunpack.c.l.b16 %v1120
    %v5552 = vunpack.c.h.b16 %v1120
    %v5553 = vunpack.c.l.b16 %v1121
    %v5554 = vunpack.c.h.b16 %v1121
    %v5555 = vunpack.c.l.b16 %v1122
    %v5556 = vunpack.c.h.b16 %v1122
    %v5557 = vunpack.c.l.b16 %v1123
    %v5558 = vunpack.c.h.b16 %v1123
    %v5559 = vunpack.c.l.b16 %v1124
    %v5560 = vunpack.c.h.b16 %v1124
    %v5561 = vunpack.c.l.b16 %v1125
    %v5562 = vunpack.c.h.b16 %v1125
    %v5563 = vunpack.c.l.b16 %v1126
    %v5564 = vunpack.c.h.b16 %v1126
    %v5565 = vunpack.c.l.b16 %v1127
    %v5566 = vunpack.c.h.b16 %v1127
    %v5567 = vunpack.c.l.b16 %v1128
    %v5568 = vunpack.c.h.b16 %v1128
    %v5569 = vunpack.c.l.b16 %v1129
    %v5570 = vunpack.c.h.b16 %v1129
    %v5571 = vunpack.c.l.b16 %v1130
    %v5572 = vunpack.c.h.b16 %v1130
    %v5573 = vunpack.c.l.b16 %v1131
    %v5574 = vunpack.c.h.b16 %v1131
    %v5575 = vunpack.c.l.b16 %v1132
    %v5576 = vunpack.c.h.b16 %v1132
    %v5577 = vunpack.c.l.b16 %v1133
    %v5578 = vunpack.c.h.b16 %v1133
    %v5579 = vunpack.c.l.b16 %v1134
    %v5580 = vunpack.c.h.b16 %v1134
    %v5581 = vunpack.c.l.b16 %v1135
    %v5582 = vunpack.c.h.b16 %v1135
    %v5583 = vunpack.c.l.b16 %v1136
    %v5584 = vunpack.c.h.b16 %v1136
    %v5585 = vunpack.c.l.b16 %v1137
    %v5586 = vunpack.c.h.b16 %v1137
    %v5587 = vunpack.c.l.b16 %v1138
    %v5588 = vunpack.c.h.b16 %v1138
    %v5589 = vunpack.c.l.b16 %v1139
    %v5590 = vunpack.c.h.b16 %v1139
    %v5591 = vunpack.c.l.b16 %v1140
    %v5592 = vunpack.c.h.b16 %v1140
    %v5593 = vunpack.c.l.b16 %v1141
    %v5594 = vunpack.c.h.b16 %v1141
    %v5595 = vunpack.c.l.b16 %v1142
    %v5596 = vunpack.c.h.b16 %v1142
    %v5597 = vunpack.c.l.b16 %v1143
    %v5598 = vunpack.c.h.b16 %v1143
    %v5599 = vunpack.c.l.b16 %v1144
    %v5600 = vunpack.c.h.b16 %v1144
    %v5601 = vunpack.c.l.b16 %v1145
    %v5602 = vunpack.c.h.b16 %v1145
    %v5603 = vunpack.c.l.b16 %v1146
    %v5604 = vunpack.c.h.b16 %v1146
    %v5605 = vunpack.c.l.b16 %v1147
    %v5606 = vunpack.c.h.b16 %v1147
    %v5607 = vunpack.c.l.b16 %v1148
    %v5608 = vunpack.c.h.b16 %v1148
    %v5609 = vunpack.c.l.b16 %v1149
    %v5610 = vunpack.c.h.b16 %v1149
    %v5611 = vunpack.c.l.b16 %v1150
    %v5612 = vunpack.c.h.b16 %v1150
    %v5613 = vunpack.c.l.b16 %v1151
    %v5614 = vunpack.c.h.b16 %v1151
    %v5615 = vunpack.c.l.b16 %v1152
    %v5616 = vunpack.c.h.b16 %v1152
    %v5617 = vunpack.c.l.b16 %v1153
    %v5618 = vunpack.c.h.b16 %v1153
    %v5619 = vunpack.c.l.b16 %v1154
    %v5620 = vunpack.c.h.b16 %v1154
    %v5621 = vunpack.c.l.b16 %v1155
    %v5622 = vunpack.c.h.b16 %v1155
    %v5623 = vunpack.c.l.b16 %v1156
    %v5624 = vunpack.c.h.b16 %v1156
    %v5625 = vunpack.c.l.b16 %v1157
    %v5626 = vunpack.c.h.b16 %v1157
    %v5627 = vunpack.c.l.b16 %v1158
    %v5628 = vunpack.c.h.b16 %v1158
    %v5629 = vunpack.c.l.b16 %v1159
    %v5630 = vunpack.c.h.b16 %v1159
    %v5631 = vunpack.c.l.b16 %v1160
    %v5632 = vunpack.c.h.b16 %v1160
    %v5633 = vunpack.c.l.b16 %v1161
    %v5634 = vunpack.c.h.b16 %v1161
    %v5635 = vunpack.c.l.b16 %v1162
    %v5636 = vunpack.c.h.b16 %v1162
    %v5637 = vunpack.c.l.b16 %v1163
    %v5638 = vunpack.c.h.b16 %v1163
    %v5639 = vunpack.c.l.b16 %v1164
    %v5640 = vunpack.c.h.b16 %v1164
    %v5641 = vunpack.c.l.b16 %v1165
    %v5642 = vunpack.c.h.b16 %v1165
    %v5643 = vunpack.c.l.b16 %v1166
    %v5644 = vunpack.c.h.b16 %v1166
    %v5645 = vunpack.c.l.b16 %v1167
    %v5646 = vunpack.c.h.b16 %v1167
    %v5647 = vunpack.c.l.b16 %v1168
    %v5648 = vunpack.c.h.b16 %v1168
    %v5649 = vunpack.c.l.b16 %v1169
    %v5650 = vunpack.c.h.b16 %v1169
    %v5651 = vunpack.c.l.b16 %v1170
    %v5652 = vunpack.c.h.b16 %v1170
    %v5653 = vunpack.c.l.b16 %v1171
    %v5654 = vunpack.c.h.b16 %v1171
    %v5655 = vunpack.c.l.b16 %v1172
    %v5656 = vunpack.c.h.b16 %v1172
    %v5657 = vunpack.c.l.b16 %v1173
    %v5658 = vunpack.c.h.b16 %v1173
    %v5659 = vunpack.c.l.b16 %v1174
    %v5660 = vunpack.c.h.b16 %v1174
    %v5661 = vunpack.c.l.b16 %v1175
    %v5662 = vunpack.c.h.b16 %v1175
    %v5663 = vunpack.c.l.b16 %v1176
    %v5664 = vunpack.c.h.b16 %v1176
    %v5665 = vunpack.c.l.b16 %v1177
    %v5666 = vunpack.c.h.b16 %v1177
    %v5667 = vunpack.c.l.b16 %v1178
    %v5668 = vunpack.c.h.b16 %v1178
    %v5669 = vunpack.c.l.b16 %v1179
    %v5670 = vunpack.c.h.b16 %v1179
    %v5671 = vunpack.c.l.b16 %v1180
    %v5672 = vunpack.c.h.b16 %v1180
    %v5673 = vunpack.c.l.b16 %v1181
    %v5674 = vunpack.c.h.b16 %v1181
    %v5675 = vunpack.c.l.b16 %v1182
    %v5676 = vunpack.c.h.b16 %v1182
    %v5677 = vunpack.c.l.b16 %v1183
    %v5678 = vunpack.c.h.b16 %v1183
    %v5679 = vunpack.c.l.b16 %v1184
    %v5680 = vunpack.c.h.b16 %v1184
    %v5681 = vunpack.c.l.b16 %v1185
    %v5682 = vunpack.c.h.b16 %v1185
    %v5683 = vunpack.c.l.b16 %v1186
    %v5684 = vunpack.c.h.b16 %v1186
    %v5685 = vunpack.c.l.b16 %v1187
    %v5686 = vunpack.c.h.b16 %v1187
    %v5687 = vunpack.c.l.b16 %v1188
    %v5688 = vunpack.c.h.b16 %v1188
    %v5689 = vunpack.c.l.b16 %v1189
    %v5690 = vunpack.c.h.b16 %v1189
    %v5691 = vunpack.c.l.b16 %v1190
    %v5692 = vunpack.c.h.b16 %v1190
    %v5693 = vunpack.c.l.b16 %v1191
    %v5694 = vunpack.c.h.b16 %v1191
    %v5695 = vunpack.c.l.b16 %v1192
    %v5696 = vunpack.c.h.b16 %v1192
    %v5697 = vunpack.c.l.b16 %v1193
    %v5698 = vunpack.c.h.b16 %v1193
    %v5699 = vunpack.c.l.b16 %v1194
    %v5700 = vunpack.c.h.b16 %v1194
    %v5701 = vunpack.c.l.b16 %v1195
    %v5702 = vunpack.c.h.b16 %v1195
    %v5703 = vunpack.c.l.b16 %v1196
    %v5704 = vunpack.c.h.b16 %v1196
    %v5705 = vunpack.c.l.b16 %v1197
    %v5706 = vunpack.c.h.b16 %v1197
    %v5707 = vunpack.c.l.b16 %v1198
    %v5708 = vunpack.c.h.b16 %v1198
    %v5709 = vunpack.c.l.b16 %v1199
    %v5710 = vunpack.c.h.b16 %v1199
    %v5711 = vunpack.c.l.b16 %v1200
    %v5712 = vunpack.c.h.b16 %v1200
    %v5713 = vunpack.c.l.b16 %v1201
    %v5714 = vunpack.c.h.b16 %v1201
    %v5715 = vunpack.c.l.b16 %v1202
    %v5716 = vunpack.c.h.b16 %v1202
    %v5717 = vunpack.c.l.b16 %v1203
    %v5718 = vunpack.c.h.b16 %v1203
    %v5719 = vunpack.c.l.b16 %v1204
    %v5720 = vunpack.c.h.b16 %v1204
    %v5721 = vunpack.c.l.b16 %v1205
    %v5722 = vunpack.c.h.b16 %v1205
    %v5723 = vunpack.c.l.b16 %v1206
    %v5724 = vunpack.c.h.b16 %v1206
    %v5725 = vunpack.c.l.b16 %v1207
    %v5726 = vunpack.c.h.b16 %v1207
    %v5727 = vunpack.c.l.b16 %v1208
    %v5728 = vunpack.c.h.b16 %v1208
    %v5729 = vunpack.c.l.b16 %v1209
    %v5730 = vunpack.c.h.b16 %v1209
    %v5731 = vunpack.c.l.b16 %v1210
    %v5732 = vunpack.c.h.b16 %v1210
    %v5733 = vunpack.c.l.b16 %v1211
    %v5734 = vunpack.c.h.b16 %v1211
    %v5735 = vunpack.c.l.b16 %v1212
    %v5736 = vunpack.c.h.b16 %v1212
    %v5737 = vunpack.c.l.b16 %v1213
    %v5738 = vunpack.c.h.b16 %v1213
    %v5739 = vunpack.c.l.b16 %v1214
    %v5740 = vunpack.c.h.b16 %v1214
    %v5741 = vunpack.c.l.b16 %v1215
    %v5742 = vunpack.c.h.b16 %v1215
    %v5743 = vunpack.c.l.b16 %v1216
    %v5744 = vunpack.c.h.b16 %v1216
    %v5745 = vunpack.c.l.b16 %v1217
    %v5746 = vunpack.c.h.b16 %v1217
    %v5747 = vunpack.c.l.b16 %v1218
    %v5748 = vunpack.c.h.b16 %v1218
    %v5749 = vunpack.c.l.b16 %v1219
    %v5750 = vunpack.c.h.b16 %v1219
    %v5751 = vunpack.c.l.b16 %v1220
    %v5752 = vunpack.c.h.b16 %v1220
    %v5753 = vunpack.c.l.b16 %v1221
    %v5754 = vunpack.c.h.b16 %v1221
    %v5755 = vunpack.c.l.b16 %v1222
    %v5756 = vunpack.c.h.b16 %v1222
    %v5757 = vunpack.c.l.b16 %v1223
    %v5758 = vunpack.c.h.b16 %v1223
    %v5759 = vunpack.c.l.b16 %v1224
    %v5760 = vunpack.c.h.b16 %v1224
    %v5761 = vunpack.c.l.b16 %v1225
    %v5762 = vunpack.c.h.b16 %v1225
    %v5763 = vunpack.c.l.b16 %v1226
    %v5764 = vunpack.c.h.b16 %v1226
    %v5765 = vunpack.c.l.b16 %v1227
    %v5766 = vunpack.c.h.b16 %v1227
    %v5767 = vunpack.c.l.b16 %v1228
    %v5768 = vunpack.c.h.b16 %v1228
    %v5769 = vunpack.c.l.b16 %v1229
    %v5770 = vunpack.c.h.b16 %v1229
    %v5771 = vunpack.c.l.b16 %v1230
    %v5772 = vunpack.c.h.b16 %v1230
    %v5773 = vunpack.c.l.b16 %v1231
    %v5774 = vunpack.c.h.b16 %v1231
    %v5775 = vunpack.c.l.b16 %v1232
    %v5776 = vunpack.c.h.b16 %v1232
    %v5777 = vunpack.c.l.b16 %v1233
    %v5778 = vunpack.c.h.b16 %v1233
    %v5779 = vunpack.c.l.b16 %v1234
    %v5780 = vunpack.c.h.b16 %v1234
    %v5781 = vunpack.c.l.b16 %v1235
    %v5782 = vunpack.c.h.b16 %v1235
    %v5783 = vunpack.c.l.b16 %v1236
    %v5784 = vunpack.c.h.b16 %v1236
    %v5785 = vunpack.c.l.b16 %v1237
    %v5786 = vunpack.c.h.b16 %v1237
    %v5787 = vunpack.c.l.b16 %v1238
    %v5788 = vunpack.c.h.b16 %v1238
    %v5789 = vunpack.c.l.b16 %v1239
    %v5790 = vunpack.c.h.b16 %v1239
    %v5791 = vunpack.c.l.b16 %v1240
    %v5792 = vunpack.c.h.b16 %v1240
    %v5793 = vunpack.c.l.b16 %v1241
    %v5794 = vunpack.c.h.b16 %v1241
    %v5795 = vunpack.c.l.b16 %v1242
    %v5796 = vunpack.c.h.b16 %v1242
    %v5797 = vunpack.c.l.b16 %v1243
    %v5798 = vunpack.c.h.b16 %v1243
    %v5799 = vunpack.c.l.b16 %v1244
    %v5800 = vunpack.c.h.b16 %v1244
    %v5801 = vunpack.c.l.b16 %v1245
    %v5802 = vunpack.c.h.b16 %v1245
    %v5803 = vunpack.c.l.b16 %v1246
    %v5804 = vunpack.c.h.b16 %v1246
    %v5805 = vunpack.c.l.b16 %v1247
    %v5806 = vunpack.c.h.b16 %v1247
    %v5807 = vunpack.c.l.b16 %v1248
    %v5808 = vunpack.c.h.b16 %v1248
    %v5809 = vunpack.c.l.b16 %v1249
    %v5810 = vunpack.c.h.b16 %v1249
    %v5811 = vunpack.c.l.b16 %v1250
    %v5812 = vunpack.c.h.b16 %v1250
    %v5813 = vunpack.c.l.b16 %v1251
    %v5814 = vunpack.c.h.b16 %v1251
    %v5815 = vunpack.c.l.b16 %v1252
    %v5816 = vunpack.c.h.b16 %v1252
    %v5817 = vunpack.c.l.b16 %v1253
    %v5818 = vunpack.c.h.b16 %v1253
    %v5819 = vunpack.c.l.b16 %v1254
    %v5820 = vunpack.c.h.b16 %v1254
    %v5821 = vunpack.c.l.b16 %v1255
    %v5822 = vunpack.c.h.b16 %v1255
    %v5823 = vunpack.c.l.b16 %v1256
    %v5824 = vunpack.c.h.b16 %v1256
    %v5825 = vunpack.c.l.b16 %v1257
    %v5826 = vunpack.c.h.b16 %v1257
    %v5827 = vunpack.c.l.b16 %v1258
    %v5828 = vunpack.c.h.b16 %v1258
    %v5829 = vunpack.c.l.b16 %v1259
    %v5830 = vunpack.c.h.b16 %v1259
    %v5831 = vunpack.c.l.b16 %v1260
    %v5832 = vunpack.c.h.b16 %v1260
    %v5833 = vunpack.c.l.b16 %v1261
    %v5834 = vunpack.c.h.b16 %v1261
    %v5835 = vunpack.c.l.b16 %v1262
    %v5836 = vunpack.c.h.b16 %v1262
    %v5837 = vunpack.c.l.b16 %v1263
    %v5838 = vunpack.c.h.b16 %v1263
    %v5839 = vunpack.c.l.b16 %v1264
    %v5840 = vunpack.c.h.b16 %v1264
    %v5841 = vunpack.c.l.b16 %v1265
    %v5842 = vunpack.c.h.b16 %v1265
    %v5843 = vunpack.c.l.b16 %v1266
    %v5844 = vunpack.c.h.b16 %v1266
    %v5845 = vunpack.c.l.b16 %v1267
    %v5846 = vunpack.c.h.b16 %v1267
    %v5847 = vunpack.c.l.b16 %v1268
    %v5848 = vunpack.c.h.b16 %v1268
    %v5849 = vunpack.c.l.b16 %v1269
    %v5850 = vunpack.c.h.b16 %v1269
    %v5851 = vunpack.c.l.b16 %v1270
    %v5852 = vunpack.c.h.b16 %v1270
    %v5853 = vunpack.c.l.b16 %v1271
    %v5854 = vunpack.c.h.b16 %v1271
    %v5855 = vunpack.c.l.b16 %v1272
    %v5856 = vunpack.c.h.b16 %v1272
    %v5857 = vunpack.c.l.b16 %v1273
    %v5858 = vunpack.c.h.b16 %v1273
    %v5859 = vunpack.c.l.b16 %v1274
    %v5860 = vunpack.c.h.b16 %v1274
    %v5861 = vunpack.c.l.b16 %v1275
    %v5862 = vunpack.c.h.b16 %v1275
    %v5863 = vunpack.c.l.b16 %v1276
    %v5864 = vunpack.c.h.b16 %v1276
    %v5865 = vunpack.c.l.b16 %v1277
    %v5866 = vunpack.c.h.b16 %v1277
    %v5867 = vunpack.c.l.b16 %v1278
    %v5868 = vunpack.c.h.b16 %v1278
    %v5869 = vunpack.c.l.b16 %v1279
    %v5870 = vunpack.c.h.b16 %v1279
    %v5871 = vunpack.c.l.b16 %v1280
    %v5872 = vunpack.c.h.b16 %v1280
    %v5873 = vunpack.c.l.b16 %v1281
    %v5874 = vunpack.c.h.b16 %v1281
    %v5875 = vunpack.c.l.b16 %v1282
    %v5876 = vunpack.c.h.b16 %v1282
    %v5877 = vunpack.c.l.b16 %v1283
    %v5878 = vunpack.c.h.b16 %v1283
    %v5879 = vunpack.c.l.b16 %v1284
    %v5880 = vunpack.c.h.b16 %v1284
    %v5881 = vunpack.c.l.b16 %v1285
    %v5882 = vunpack.c.h.b16 %v1285
    %v5883 = vunpack.c.l.b16 %v1286
    %v5884 = vunpack.c.h.b16 %v1286
    %v5885 = vunpack.c.l.b16 %v1287
    %v5886 = vunpack.c.h.b16 %v1287
    %v5887 = vunpack.c.l.b16 %v1288
    %v5888 = vunpack.c.h.b16 %v1288
    %v5889 = vunpack.c.l.b16 %v1289
    %v5890 = vunpack.c.h.b16 %v1289
    %v5891 = vunpack.c.l.b16 %v1290
    %v5892 = vunpack.c.h.b16 %v1290
    %v5893 = vunpack.c.l.b16 %v1291
    %v5894 = vunpack.c.h.b16 %v1291
    %v5895 = vunpack.c.l.b16 %v1292
    %v5896 = vunpack.c.h.b16 %v1292
    %v5897 = vunpack.c.l.b16 %v1293
    %v5898 = vunpack.c.h.b16 %v1293
    %v5899 = vunpack.c.l.b16 %v1294
    %v5900 = vunpack.c.h.b16 %v1294
    %v5901 = vunpack.c.l.b16 %v1295
    %v5902 = vunpack.c.h.b16 %v1295
    %v5903 = vunpack.c.l.b16 %v1296
    %v5904 = vunpack.c.h.b16 %v1296
    %v5905 = vunpack.c.l.b16 %v1297
    %v5906 = vunpack.c.h.b16 %v1297
    %v5907 = vunpack.c.l.b16 %v1298
    %v5908 = vunpack.c.h.b16 %v1298
    %v5909 = vunpack.c.l.b16 %v1299
    %v5910 = vunpack.c.h.b16 %v1299
    %v5911 = vunpack.c.l.b16 %v1300
    %v5912 = vunpack.c.h.b16 %v1300
    %v5913 = vunpack.c.l.b16 %v1301
    %v5914 = vunpack.c.h.b16 %v1301
    %v5915 = vunpack.c.l.b16 %v1302
    %v5916 = vunpack.c.h.b16 %v1302
    %v5917 = vunpack.c.l.b16 %v1303
    %v5918 = vunpack.c.h.b16 %v1303
    %v5919 = vunpack.c.l.b16 %v1304
    %v5920 = vunpack.c.h.b16 %v1304
    %v5921 = vunpack.c.l.b16 %v1305
    %v5922 = vunpack.c.h.b16 %v1305
    %v5923 = vunpack.c.l.b16 %v1306
    %v5924 = vunpack.c.h.b16 %v1306
    %v5925 = vunpack.c.l.b16 %v1307
    %v5926 = vunpack.c.h.b16 %v1307
    %v5927 = vunpack.c.l.b16 %v1308
    %v5928 = vunpack.c.h.b16 %v1308
    %v5929 = vunpack.c.l.b16 %v1309
    %v5930 = vunpack.c.h.b16 %v1309
    %v5931 = vunpack.c.l.b16 %v1310
    %v5932 = vunpack.c.h.b16 %v1310
    %v5933 = vunpack.c.l.b16 %v1311
    %v5934 = vunpack.c.h.b16 %v1311
    %v5935 = vunpack.c.l.b16 %v1312
    %v5936 = vunpack.c.h.b16 %v1312
    %v5937 = vunpack.c.l.b16 %v1313
    %v5938 = vunpack.c.h.b16 %v1313
    %v5939 = vunpack.c.l.b16 %v1314
    %v5940 = vunpack.c.h.b16 %v1314
    %v5941 = vunpack.c.l.b16 %v1315
    %v5942 = vunpack.c.h.b16 %v1315
    %v5943 = vunpack.c.l.b16 %v1316
    %v5944 = vunpack.c.h.b16 %v1316
    %v5945 = vunpack.c.l.b16 %v1317
    %v5946 = vunpack.c.h.b16 %v1317
    %v5947 = vunpack.c.l.b16 %v1318
    %v5948 = vunpack.c.h.b16 %v1318
    %v5949 = vunpack.c.l.b16 %v1319
    %v5950 = vunpack.c.h.b16 %v1319
    %v5951 = vunpack.c.l.b16 %v1320
    %v5952 = vunpack.c.h.b16 %v1320
    %v5953 = vunpack.c.l.b16 %v1321
    %v5954 = vunpack.c.h.b16 %v1321
    %v5955 = vunpack.c.l.b16 %v1322
    %v5956 = vunpack.c.h.b16 %v1322
    %v5957 = vunpack.c.l.b16 %v1323
    %v5958 = vunpack.c.h.b16 %v1323
    %v5959 = vunpack.c.l.b16 %v1324
    %v5960 = vunpack.c.h.b16 %v1324
    %v5961 = vunpack.c.l.b16 %v1325
    %v5962 = vunpack.c.h.b16 %v1325
    %v5963 = vunpack.c.l.b16 %v1326
    %v5964 = vunpack.c.h.b16 %v1326
    %v5965 = vunpack.c.l.b16 %v1327
    %v5966 = vunpack.c.h.b16 %v1327
    %v5967 = vunpack.c.l.b16 %v1328
    %v5968 = vunpack.c.h.b16 %v1328
    %v5969 = vunpack.c.l.b16 %v1329
    %v5970 = vunpack.c.h.b16 %v1329
    %v5971 = vunpack.c.l.b16 %v1330
    %v5972 = vunpack.c.h.b16 %v1330
    %v5973 = vunpack.c.l.b16 %v1331
    %v5974 = vunpack.c.h.b16 %v1331
    %v5975 = vunpack.c.l.b16 %v1332
    %v5976 = vunpack.c.h.b16 %v1332
    %v5977 = vunpack.c.l.b16 %v1333
    %v5978 = vunpack.c.h.b16 %v1333
    %v5979 = vunpack.c.l.b16 %v1334
    %v5980 = vunpack.c.h.b16 %v1334
    %v5981 = vunpack.c.l.b16 %v1335
    %v5982 = vunpack.c.h.b16 %v1335
    %v5983 = vunpack.c.l.b16 %v1336
    %v5984 = vunpack.c.h.b16 %v1336
    %v5985 = vunpack.c.l.b16 %v1337
    %v5986 = vunpack.c.h.b16 %v1337
    %v5987 = vunpack.c.l.b16 %v1338
    %v5988 = vunpack.c.h.b16 %v1338
    %v5989 = vunpack.c.l.b16 %v1339
    %v5990 = vunpack.c.h.b16 %v1339
    %v5991 = vunpack.c.l.b16 %v1340
    %v5992 = vunpack.c.h.b16 %v1340
    %v5993 = vunpack.c.l.b16 %v1341
    %v5994 = vunpack.c.h.b16 %v1341
    %v5995 = vunpack.c.l.b16 %v1342
    %v5996 = vunpack.c.h.b16 %v1342
    %v5997 = vunpack.c.l.b16 %v1343
    %v5998 = vunpack.c.h.b16 %v1343
    %v5999 = vunpack.c.l.b16 %v1344
    %v6000 = vunpack.c.h.b16 %v1344
    %v6001 = vunpack.c.l.b16 %v1345
    %v6002 = vunpack.c.h.b16 %v1345
    %v6003 = vunpack.c.l.b16 %v1346
    %v6004 = vunpack.c.h.b16 %v1346
    %v6005 = vunpack.c.l.b16 %v1347
    %v6006 = vunpack.c.h.b16 %v1347
    %v6007 = vunpack.c.l.b16 %v1348
    %v6008 = vunpack.c.h.b16 %v1348
    %v6009 = vunpack.c.l.b16 %v1349
    %v6010 = vunpack.c.h.b16 %v1349
    %v6011 = vunpack.c.l.b16 %v1350
    %v6012 = vunpack.c.h.b16 %v1350
    %v6013 = vunpack.c.l.b16 %v1351
    %v6014 = vunpack.c.h.b16 %v1351
    %v6015 = vunpack.c.l.b16 %v1352
    %v6016 = vunpack.c.h.b16 %v1352
    %v6017 = vunpack.c.l.b16 %v1353
    %v6018 = vunpack.c.h.b16 %v1353
    %v6019 = vunpack.c.l.b16 %v1354
    %v6020 = vunpack.c.h.b16 %v1354
    %v6021 = vunpack.c.l.b16 %v1355
    %v6022 = vunpack.c.h.b16 %v1355
    %v6023 = vunpack.c.l.b16 %v1356
    %v6024 = vunpack.c.h.b16 %v1356
    %v6025 = vunpack.c.l.b16 %v1357
    %v6026 = vunpack.c.h.b16 %v1357
    %v6027 = vunpack.c.l.b16 %v1358
    %v6028 = vunpack.c.h.b16 %v1358
    %v6029 = vunpack.c.l.b16 %v1359
    %v6030 = vunpack.c.h.b16 %v1359
    %v6031 = vunpack.c.l.b16 %v1360
    %v6032 = vunpack.c.h.b16 %v1360
    %v6033 = vunpack.c.l.b16 %v1361
    %v6034 = vunpack.c.h.b16 %v1361
    %v6035 = vunpack.c.l.b16 %v1362
    %v6036 = vunpack.c.h.b16 %v1362
    %v6037 = vunpack.c.l.b16 %v1363
    %v6038 = vunpack.c.h.b16 %v1363
    %v6039 = vunpack.c.l.b16 %v1364
    %v6040 = vunpack.c.h.b16 %v1364
    %v6041 = vunpack.c.l.b16 %v1365
    %v6042 = vunpack.c.h.b16 %v1365
    %v6043 = vunpack.c.l.b16 %v1366
    %v6044 = vunpack.c.h.b16 %v1366
    %v6045 = vunpack.c.l.b16 %v1367
    %v6046 = vunpack.c.h.b16 %v1367
    %v6047 = vunpack.c.l.b16 %v1368
    %v6048 = vunpack.c.h.b16 %v1368
    %v6049 = vunpack.c.l.b16 %v1369
    %v6050 = vunpack.c.h.b16 %v1369
    %v6051 = vunpack.c.l.b16 %v1370
    %v6052 = vunpack.c.h.b16 %v1370
    %v6053 = vunpack.c.l.b16 %v1371
    %v6054 = vunpack.c.h.b16 %v1371
    %v6055 = vunpack.c.l.b16 %v1372
    %v6056 = vunpack.c.h.b16 %v1372
    %v6057 = vunpack.c.l.b16 %v1373
    %v6058 = vunpack.c.h.b16 %v1373
    %v6059 = vunpack.c.l.b16 %v1374
    %v6060 = vunpack.c.h.b16 %v1374
    %v6061 = vunpack.c.l.b16 %v1375
    %v6062 = vunpack.c.h.b16 %v1375
    %v6063 = vunpack.c.l.b16 %v1376
    %v6064 = vunpack.c.h.b16 %v1376
    %v6065 = vunpack.c.l.b16 %v1377
    %v6066 = vunpack.c.h.b16 %v1377
    %v6067 = vunpack.c.l.b16 %v1378
    %v6068 = vunpack.c.h.b16 %v1378
    %v6069 = vunpack.c.l.b16 %v1379
    %v6070 = vunpack.c.h.b16 %v1379
    %v6071 = vunpack.c.l.b16 %v1380
    %v6072 = vunpack.c.h.b16 %v1380
    %v6073 = vunpack.c.l.b16 %v1381
    %v6074 = vunpack.c.h.b16 %v1381
    %v6075 = vunpack.c.l.b16 %v1382
    %v6076 = vunpack.c.h.b16 %v1382
    %v6077 = vunpack.c.l.b16 %v1383
    %v6078 = vunpack.c.h.b16 %v1383
    %v6079 = vunpack.c.l.b16 %v1384
    %v6080 = vunpack.c.h.b16 %v1384
    %v6081 = vunpack.c.l.b16 %v1385
    %v6082 = vunpack.c.h.b16 %v1385
    %v6083 = vunpack.c.l.b16 %v1386
    %v6084 = vunpack.c.h.b16 %v1386
    %v6085 = vunpack.c.l.b16 %v1387
    %v6086 = vunpack.c.h.b16 %v1387
    %v6087 = vunpack.c.l.b16 %v1388
    %v6088 = vunpack.c.h.b16 %v1388
    %v6089 = vunpack.c.l.b16 %v1389
    %v6090 = vunpack.c.h.b16 %v1389
    %v6091 = vunpack.c.l.b16 %v1390
    %v6092 = vunpack.c.h.b16 %v1390
    %v6093 = vunpack.c.l.b16 %v1391
    %v6094 = vunpack.c.h.b16 %v1391
    %v6095 = vunpack.c.l.b16 %v1392
    %v6096 = vunpack.c.h.b16 %v1392
    %v6097 = vunpack.c.l.b16 %v1393
    %v6098 = vunpack.c.h.b16 %v1393
    %v6099 = vunpack.c.l.b16 %v1394
    %v6100 = vunpack.c.h.b16 %v1394
    %v6101 = vunpack.c.l.b16 %v1395
    %v6102 = vunpack.c.h.b16 %v1395
    %v6103 = vunpack.c.l.b16 %v1396
    %v6104 = vunpack.c.h.b16 %v1396
    %v6105 = vunpack.c.l.b16 %v1397
    %v6106 = vunpack.c.h.b16 %v1397
    %v6107 = vunpack.c.l.b16 %v1398
    %v6108 = vunpack.c.h.b16 %v1398
    %v6109 = vunpack.c.l.b16 %v1399
    %v6110 = vunpack.c.h.b16 %v1399
    %v6111 = vunpack.c.l.b16 %v1400
    %v6112 = vunpack.c.h.b16 %v1400
    %v6113 = vunpack.c.l.b16 %v1401
    %v6114 = vunpack.c.h.b16 %v1401
    %v6115 = vunpack.c.l.b16 %v1402
    %v6116 = vunpack.c.h.b16 %v1402
    %v6117 = vunpack.c.l.b16 %v1403
    %v6118 = vunpack.c.h.b16 %v1403
    %v6119 = vunpack.c.l.b16 %v1404
    %v6120 = vunpack.c.h.b16 %v1404
    %v6121 = vunpack.c.l.b16 %v1405
    %v6122 = vunpack.c.h.b16 %v1405
    %v6123 = vunpack.c.l.b16 %v1406
    %v6124 = vunpack.c.h.b16 %v1406
    %v6125 = vunpack.c.l.b16 %v1407
    %v6126 = vunpack.c.h.b16 %v1407
    %v6127 = vunpack.c.l.b16 %v1408
    %v6128 = vunpack.c.h.b16 %v1408
    %v6129 = vunpack.c.l.b16 %v1409
    %v6130 = vunpack.c.h.b16 %v1409
    %v6131 = vunpack.c.l.b16 %v1410
    %v6132 = vunpack.c.h.b16 %v1410
    %v6133 = vunpack.c.l.b16 %v1411
    %v6134 = vunpack.c.h.b16 %v1411
    %v6135 = vunpack.c.l.b16 %v1412
    %v6136 = vunpack.c.h.b16 %v1412
    %v6137 = vunpack.c.l.b16 %v1413
    %v6138 = vunpack.c.h.b16 %v1413
    %v6139 = vunpack.c.l.b16 %v1414
    %v6140 = vunpack.c.h.b16 %v1414
    %v6141 = vunpack.c.l.b16 %v1415
    %v6142 = vunpack.c.h.b16 %v1415
    %v6143 = vunpack.c.l.b16 %v1416
    %v6144 = vunpack.c.h.b16 %v1416
    %v6145 = vunpack.c.l.b16 %v1417
    %v6146 = vunpack.c.h.b16 %v1417
    %v6147 = vunpack.c.l.b16 %v1418
    %v6148 = vunpack.c.h.b16 %v1418
    %v6149 = vunpack.c.l.b16 %v1419
    %v6150 = vunpack.c.h.b16 %v1419
    %v6151 = vunpack.c.l.b16 %v1420
    %v6152 = vunpack.c.h.b16 %v1420
    %v6153 = vunpack.c.l.b16 %v1421
    %v6154 = vunpack.c.h.b16 %v1421
    %v6155 = vunpack.c.l.b16 %v1422
    %v6156 = vunpack.c.h.b16 %v1422
    %v6157 = vunpack.c.l.b16 %v1423
    %v6158 = vunpack.c.h.b16 %v1423
    %v6159 = vunpack.c.l.b16 %v1424
    %v6160 = vunpack.c.h.b16 %v1424
    %v6161 = vunpack.c.l.b16 %v1425
    %v6162 = vunpack.c.h.b16 %v1425
    %v6163 = vunpack.c.l.b16 %v1426
    %v6164 = vunpack.c.h.b16 %v1426
    %v6165 = vunpack.c.l.b16 %v1427
    %v6166 = vunpack.c.h.b16 %v1427
    %v6167 = vunpack.c.l.b16 %v1428
    %v6168 = vunpack.c.h.b16 %v1428
    %v6169 = vunpack.c.l.b16 %v1429
    %v6170 = vunpack.c.h.b16 %v1429
    %v6171 = vunpack.c.l.b16 %v1430
    %v6172 = vunpack.c.h.b16 %v1430
    %v6173 = vunpack.c.l.b16 %v1431
    %v6174 = vunpack.c.h.b16 %v1431
    %v6175 = vunpack.c.l.b16 %v1432
    %v6176 = vunpack.c.h.b16 %v1432
    %v6177 = vunpack.c.l.b16 %v1433
    %v6178 = vunpack.c.h.b16 %v1433
    %v6179 = vunpack.c.l.b16 %v1434
    %v6180 = vunpack.c.h.b16 %v1434
    %v6181 = vunpack.c.l.b16 %v1435
    %v6182 = vunpack.c.h.b16 %v1435
    %v6183 = vunpack.c.l.b16 %v1436
    %v6184 = vunpack.c.h.b16 %v1436
    %v6185 = vunpack.c.l.b16 %v1437
    %v6186 = vunpack.c.h.b16 %v1437
    %v6187 = vunpack.c.l.b16 %v1438
    %v6188 = vunpack.c.h.b16 %v1438
    %v6189 = vunpack.c.l.b16 %v1439
    %v6190 = vunpack.c.h.b16 %v1439
    %v6191 = vunpack.c.l.b16 %v1440
    %v6192 = vunpack.c.h.b16 %v1440
    %v6193 = vunpack.c.l.b16 %v1441
    %v6194 = vunpack.c.h.b16 %v1441
    %v6195 = vunpack.c.l.b16 %v1442
    %v6196 = vunpack.c.h.b16 %v1442
    %v6197 = vunpack.c.l.b16 %v1443
    %v6198 = vunpack.c.h.b16 %v1443
    %v6199 = vunpack.c.l.b16 %v1444
    %v6200 = vunpack.c.h.b16 %v1444
    %v6201 = vunpack.c.l.b16 %v1445
    %v6202 = vunpack.c.h.b16 %v1445
    %v6203 = vunpack.c.l.b16 %v1446
    %v6204 = vunpack.c.h.b16 %v1446
    %v6205 = vunpack.c.l.b16 %v1447
    %v6206 = vunpack.c.h.b16 %v1447
    %v6207 = vunpack.c.l.b16 %v1448
    %v6208 = vunpack.c.h.b16 %v1448
    %v6209 = vunpack.c.l.b16 %v1449
    %v6210 = vunpack.c.h.b16 %v1449
    %v6211 = vunpack.c.l.b16 %v1450
    %v6212 = vunpack.c.h.b16 %v1450
    %v6213 = vunpack.c.l.b16 %v1451
    %v6214 = vunpack.c.h.b16 %v1451
    %v6215 = vunpack.c.l.b16 %v1452
    %v6216 = vunpack.c.h.b16 %v1452
    %v6217 = vunpack.c.l.b16 %v1453
    %v6218 = vunpack.c.h.b16 %v1453
    %v6219 = vunpack.c.l.b16 %v1454
    %v6220 = vunpack.c.h.b16 %v1454
    %v6221 = vunpack.c.l.b16 %v1455
    %v6222 = vunpack.c.h.b16 %v1455
    %v6223 = vunpack.c.l.b16 %v1456
    %v6224 = vunpack.c.h.b16 %v1456
    %v6225 = vunpack.c.l.b16 %v1457
    %v6226 = vunpack.c.h.b16 %v1457
    %v6227 = vunpack.c.l.b16 %v1458
    %v6228 = vunpack.c.h.b16 %v1458
    %v6229 = vunpack.c.l.b16 %v1459
    %v6230 = vunpack.c.h.b16 %v1459
    %v6231 = vunpack.c.l.b16 %v1460
    %v6232 = vunpack.c.h.b16 %v1460
    %v6233 = vunpack.c.l.b16 %v1461
    %v6234 = vunpack.c.h.b16 %v1461
    %v6235 = vunpack.c.l.b16 %v1462
    %v6236 = vunpack.c.h.b16 %v1462
    %v6237 = vunpack.c.l.b16 %v1463
    %v6238 = vunpack.c.h.b16 %v1463
    %v6239 = vunpack.c.l.b16 %v1464
    %v6240 = vunpack.c.h.b16 %v1464
    %v6241 = vunpack.c.l.b16 %v1465
    %v6242 = vunpack.c.h.b16 %v1465
    %v6243 = vunpack.c.l.b16 %v1466
    %v6244 = vunpack.c.h.b16 %v1466
    %v6245 = vunpack.c.l.b16 %v1467
    %v6246 = vunpack.c.h.b16 %v1467
    %v6247 = vunpack.c.l.b16 %v1468
    %v6248 = vunpack.c.h.b16 %v1468
    %v6249 = vunpack.c.l.b16 %v1469
    %v6250 = vunpack.c.h.b16 %v1469
    %v6251 = vunpack.c.l.b16 %v1470
    %v6252 = vunpack.c.h.b16 %v1470
    %v6253 = vunpack.c.l.b16 %v1471
    %v6254 = vunpack.c.h.b16 %v1471
    %v6255 = vunpack.c.l.b16 %v1472
    %v6256 = vunpack.c.h.b16 %v1472
    %v6257 = vunpack.c.l.b16 %v1473
    %v6258 = vunpack.c.h.b16 %v1473
    %v6259 = vunpack.c.l.b16 %v1474
    %v6260 = vunpack.c.h.b16 %v1474
    %v6261 = vunpack.c.l.b16 %v1475
    %v6262 = vunpack.c.h.b16 %v1475
    %v6263 = vunpack.c.l.b16 %v1476
    %v6264 = vunpack.c.h.b16 %v1476
    %v6265 = vunpack.c.l.b16 %v1477
    %v6266 = vunpack.c.h.b16 %v1477
    %v6267 = vunpack.c.l.b16 %v1478
    %v6268 = vunpack.c.h.b16 %v1478
    %v6269 = vunpack.c.l.b16 %v1479
    %v6270 = vunpack.c.h.b16 %v1479
    %v6271 = vunpack.c.l.b16 %v1480
    %v6272 = vunpack.c.h.b16 %v1480
    %v6273 = vunpack.c.l.b16 %v1481
    %v6274 = vunpack.c.h.b16 %v1481
    %v6275 = vunpack.c.l.b16 %v1482
    %v6276 = vunpack.c.h.b16 %v1482
    %v6277 = vunpack.c.l.b16 %v1483
    %v6278 = vunpack.c.h.b16 %v1483
    %v6279 = vunpack.c.l.b16 %v1484
    %v6280 = vunpack.c.h.b16 %v1484
    %v6281 = vunpack.c.l.b16 %v1485
    %v6282 = vunpack.c.h.b16 %v1485
    %v6283 = vunpack.c.l.b16 %v1486
    %v6284 = vunpack.c.h.b16 %v1486
    %v6285 = vunpack.c.l.b16 %v1487
    %v6286 = vunpack.c.h.b16 %v1487
    %v6287 = vunpack.c.l.b16 %v1488
    %v6288 = vunpack.c.h.b16 %v1488
    %v6289 = vunpack.c.l.b16 %v1489
    %v6290 = vunpack.c.h.b16 %v1489
    %v6291 = vunpack.c.l.b16 %v1490
    %v6292 = vunpack.c.h.b16 %v1490
    %v6293 = vunpack.c.l.b16 %v1491
    %v6294 = vunpack.c.h.b16 %v1491
    %v6295 = vunpack.c.l.b16 %v1492
    %v6296 = vunpack.c.h.b16 %v1492
    %v6297 = vunpack.c.l.b16 %v1493
    %v6298 = vunpack.c.h.b16 %v1493
    %v6299 = vunpack.c.l.b16 %v1494
    %v6300 = vunpack.c.h.b16 %v1494
    %v6301 = vunpack.c.l.b16 %v1495
    %v6302 = vunpack.c.h.b16 %v1495
    %v6303 = vunpack.c.l.b16 %v1496
    %v6304 = vunpack.c.h.b16 %v1496
    %v6305 = vunpack.c.l.b16 %v1497
    %v6306 = vunpack.c.h.b16 %v1497
    %v6307 = vunpack.c.l.b16 %v1498
    %v6308 = vunpack.c.h.b16 %v1498
    %v6309 = vunpack.c.l.b16 %v1499
    %v6310 = vunpack.c.h.b16 %v1499
    %v6311 = vunpack.c.l.b16 %v1500
    %v6312 = vunpack.c.h.b16 %v1500
    %v6313 = vunpack.c.l.b16 %v1501
    %v6314 = vunpack.c.h.b16 %v1501
    %v6315 = vunpack.c.l.b16 %v1502
    %v6316 = vunpack.c.h.b16 %v1502
    %v6317 = vunpack.c.l.b16 %v1503
    %v6318 = vunpack.c.h.b16 %v1503
    %v6319 = vunpack.c.l.b16 %v1504
    %v6320 = vunpack.c.h.b16 %v1504
    %v6321 = vunpack.c.l.b16 %v1505
    %v6322 = vunpack.c.h.b16 %v1505
    %v6323 = vunpack.c.l.b16 %v1506
    %v6324 = vunpack.c.h.b16 %v1506
    %v6325 = vunpack.c.l.b16 %v1507
    %v6326 = vunpack.c.h.b16 %v1507
    %v6327 = vunpack.c.l.b16 %v1508
    %v6328 = vunpack.c.h.b16 %v1508
    %v6329 = vunpack.c.l.b16 %v1509
    %v6330 = vunpack.c.h.b16 %v1509
    %v6331 = vunpack.c.l.b16 %v1510
    %v6332 = vunpack.c.h.b16 %v1510
    %v6333 = vunpack.c.l.b16 %v1511
    %v6334 = vunpack.c.h.b16 %v1511
    %v6335 = vunpack.c.l.b16 %v1512
    %v6336 = vunpack.c.h.b16 %v1512
    %v6337 = vunpack.c.l.b16 %v1513
    %v6338 = vunpack.c.h.b16 %v1513
    %v6339 = vunpack.c.l.b16 %v1514
    %v6340 = vunpack.c.h.b16 %v1514
    %v6341 = vunpack.c.l.b16 %v1515
    %v6342 = vunpack.c.h.b16 %v1515
    %v6343 = vunpack.c.l.b16 %v1516
    %v6344 = vunpack.c.h.b16 %v1516
    %v6345 = vunpack.c.l.b16 %v1517
    %v6346 = vunpack.c.h.b16 %v1517
    %v6347 = vunpack.c.l.b16 %v1518
    %v6348 = vunpack.c.h.b16 %v1518
    %v6349 = vunpack.c.l.b16 %v1519
    %v6350 = vunpack.c.h.b16 %v1519
    %v6351 = vunpack.c.l.b16 %v1520
    %v6352 = vunpack.c.h.b16 %v1520
    %v6353 = vunpack.c.l.b16 %v1521
    %v6354 = vunpack.c.h.b16 %v1521
    %v6355 = vunpack.c.l.b16 %v1522
    %v6356 = vunpack.c.h.b16 %v1522
    %v6357 = vunpack.c.l.b16 %v1523
    %v6358 = vunpack.c.h.b16 %v1523
    %v6359 = vunpack.c.l.b16 %v1524
    %v6360 = vunpack.c.h.b16 %v1524
    %v6361 = vunpack.c.l.b16 %v1525
    %v6362 = vunpack.c.h.b16 %v1525
    %v6363 = vunpack.c.l.b16 %v1526
    %v6364 = vunpack.c.h.b16 %v1526
    %v6365 = vunpack.c.l.b16 %v1527
    %v6366 = vunpack.c.h.b16 %v1527
    %v6367 = vunpack.c.l.b16 %v1528
    %v6368 = vunpack.c.h.b16 %v1528
    %v6369 = vunpack.c.l.b16 %v1529
    %v6370 = vunpack.c.h.b16 %v1529
    %v6371 = vunpack.c.l.b16 %v1530
    %v6372 = vunpack.c.h.b16 %v1530
    %v6373 = vunpack.c.l.b16 %v1531
    %v6374 = vunpack.c.h.b16 %v1531
    %v6375 = vunpack.c.l.b16 %v1532
    %v6376 = vunpack.c.h.b16 %v1532
    %v6377 = vunpack.c.l.b16 %v1533
    %v6378 = vunpack.c.h.b16 %v1533
    %v6379 = vunpack.c.l.b16 %v1534
    %v6380 = vunpack.c.h.b16 %v1534
    %v6381 = vunpack.c.l.b16 %v1535
    %v6382 = vunpack.c.h.b16 %v1535
    %v6383 = vunpack.c.l.b16 %v1536
    %v6384 = vunpack.c.h.b16 %v1536
    %v6385 = vunpack.c.l.b16 %v1537
    %v6386 = vunpack.c.h.b16 %v1537
    %v6387 = vunpack.c.l.b16 %v1538
    %v6388 = vunpack.c.h.b16 %v1538
    %v6389 = vunpack.c.l.b16 %v1539
    %v6390 = vunpack.c.h.b16 %v1539
    %v6391 = vunpack.c.l.b16 %v1540
    %v6392 = vunpack.c.h.b16 %v1540
    %v6393 = vunpack.c.l.b16 %v1541
    %v6394 = vunpack.c.h.b16 %v1541
    %v6395 = vunpack.c.l.b16 %v1542
    %v6396 = vunpack.c.h.b16 %v1542
    %v6397 = vunpack.c.l.b16 %v1543
    %v6398 = vunpack.c.h.b16 %v1543
    %v6399 = vunpack.c.l.b16 %v1544
    %v6400 = vunpack.c.h.b16 %v1544
    %v6401 = vunpack.c.l.b16 %v1545
    %v6402 = vunpack.c.h.b16 %v1545
    %v6403 = vunpack.c.l.b16 %v1546
    %v6404 = vunpack.c.h.b16 %v1546
    %v6405 = vunpack.c.l.b16 %v1547
    %v6406 = vunpack.c.h.b16 %v1547
    %v6407 = vunpack.c.l.b16 %v1548
    %v6408 = vunpack.c.h.b16 %v1548
    %v6409 = vunpack.c.l.b16 %v1549
    %v6410 = vunpack.c.h.b16 %v1549
    %v6411 = vunpack.c.l.b16 %v1550
    %v6412 = vunpack.c.h.b16 %v1550
    %v6413 = vunpack.c.l.b16 %v1551
    %v6414 = vunpack.c.h.b16 %v1551
    %v6415 = vunpack.c.l.b16 %v1552
    %v6416 = vunpack.c.h.b16 %v1552
    %v6417 = vunpack.c.l.b16 %v1553
    %v6418 = vunpack.c.h.b16 %v1553
    %v6419 = vunpack.c.l.b16 %v1554
    %v6420 = vunpack.c.h.b16 %v1554
    %v6421 = vunpack.c.l.b16 %v1555
    %v6422 = vunpack.c.h.b16 %v1555
    %v6423 = vunpack.c.l.b16 %v1556
    %v6424 = vunpack.c.h.b16 %v1556
    %v6425 = vunpack.c.l.b16 %v1557
    %v6426 = vunpack.c.h.b16 %v1557
    %v6427 = vunpack.c.l.b16 %v1558
    %v6428 = vunpack.c.h.b16 %v1558
    %v6429 = vunpack.c.l.b16 %v1559
    %v6430 = vunpack.c.h.b16 %v1559
    %v6431 = vunpack.c.l.b16 %v1560
    %v6432 = vunpack.c.h.b16 %v1560
    %v6433 = vunpack.c.l.b16 %v1561
    %v6434 = vunpack.c.h.b16 %v1561
    %v6435 = vunpack.c.l.b16 %v1562
    %v6436 = vunpack.c.h.b16 %v1562
    %v6437 = vunpack.c.l.b16 %v1563
    %v6438 = vunpack.c.h.b16 %v1563
    %v6439 = vunpack.c.l.b16 %v1564
    %v6440 = vunpack.c.h.b16 %v1564
    %v6441 = vunpack.c.l.b16 %v1565
    %v6442 = vunpack.c.h.b16 %v1565
    %v6443 = vunpack.c.l.b16 %v1566
    %v6444 = vunpack.c.h.b16 %v1566
    %v6445 = vunpack.c.l.b16 %v1567
    %v6446 = vunpack.c.h.b16 %v1567
    %v6447 = vunpack.c.l.b16 %v1568
    %v6448 = vunpack.c.h.b16 %v1568
    %v6449 = vpack.c.b16 %v3445, %v3441
    %v6450 = vpack.c.b16 %v3446, %v3442
    %v6451 = vpack.c.b16 %v3447, %v3443
    %v6452 = vpack.c.b16 %v3448, %v3444
    %v6453 = vpack.c.b16 %v3453, %v3449
    %v6454 = vpack.c.b16 %v3454, %v3450
    %v6455 = vpack.c.b16 %v3455, %v3451
    %v6456 = vpack.c.b16 %v3456, %v3452
    %v6457 = vpack.c.b16 %v3461, %v3457
    %v6458 = vpack.c.b16 %v3462, %v3458
    %v6459 = vpack.c.b16 %v3463, %v3459
    %v6460 = vpack.c.b16 %v3464, %v3460
    %v6461 = vpack.c.b16 %v3469, %v3465
    %v6462 = vpack.c.b16 %v3470, %v3466
    %v6463 = vpack.c.b16 %v3471, %v3467
    %v6464 = vpack.c.b16 %v3472, %v3468
    %v6465 = vpack.c.b16 %v3477, %v3473
    %v6466 = vpack.c.b16 %v3478, %v3474
    %v6467 = vpack.c.b16 %v3479, %v3475
    %v6468 = vpack.c.b16 %v3480, %v3476
    %v6469 = vpack.c.b16 %v3485, %v3481
    %v6470 = vpack.c.b16 %v3486, %v3482
    %v6471 = vpack.c.b16 %v3487, %v3483
    %v6472 = vpack.c.b16 %v3488, %v3484
    %v6473 = vpack.c.b16 %v3493, %v3489
    %v6474 = vpack.c.b16 %v3494, %v3490
    %v6475 = vpack.c.b16 %v3495, %v3491
    %v6476 = vpack.c.b16 %v3496, %v3492
    %v6477 = vpack.c.b16 %v3501, %v3497
    %v6478 = vpack.c.b16 %v3502, %v3498
    %v6479 = vpack.c.b16 %v3503, %v3499
    %v6480 = vpack.c.b16 %v3504, %v3500
    %v6481 = vpack.c.b16 %v3509, %v3505
    %v6482 = vpack.c.b16 %v3510, %v3506
    %v6483 = vpack.c.b16 %v3511, %v3507
    %v6484 = vpack.c.b16 %v3512, %v3508
    %v6485 = vpack.c.b16 %v3517, %v3513
    %v6486 = vpack.c.b16 %v3518, %v3514
    %v6487 = vpack.c.b16 %v3519, %v3515
    %v6488 = vpack.c.b16 %v3520, %v3516
    %v6489 = vpack.c.b16 %v3525, %v3521
    %v6490 = vpack.c.b16 %v3526, %v3522
    %v6491 = vpack.c.b16 %v3527, %v3523
    %v6492 = vpack.c.b16 %v3528, %v3524
    %v6493 = vpack.c.b16 %v3533, %v3529
    %v6494 = vpack.c.b16 %v3534, %v3530
    %v6495 = vpack.c.b16 %v3535, %v3531
    %v6496 = vpack.c.b16 %v3536, %v3532
    %v6497 = vpack.c.b16 %v3541, %v3537
    %v6498 = vpack.c.b16 %v3542, %v3538
    %v6499 = vpack.c.b16 %v3543, %v3539
    %v6500 = vpack.c.b16 %v3544, %v3540
    %v6501 = vpack.c.b16 %v3549, %v3545
    %v6502 = vpack.c.b16 %v3550, %v3546
    %v6503 = vpack.c.b16 %v3551, %v3547
    %v6504 = vpack.c.b16 %v3552, %v3548
    %v6505 = vpack.c.b16 %v3557, %v3553
    %v6506 = vpack.c.b16 %v3558, %v3554
    %v6507 = vpack.c.b16 %v3559, %v3555
    %v6508 = vpack.c.b16 %v3560, %v3556
    %v6509 = vpack.c.b16 %v3565, %v3561
    %v6510 = vpack.c.b16 %v3566, %v3562
    %v6511 = vpack.c.b16 %v3567, %v3563
    %v6512 = vpack.c.b16 %v3568, %v3564
    %v6513 = vpack.c.b16 %v3573, %v3569
    %v6514 = vpack.c.b16 %v3574, %v3570
    %v6515 = vpack.c.b16 %v3575, %v3571
    %v6516 = vpack.c.b16 %v3576, %v3572
    %v6517 = vpack.c.b16 %v3581, %v3577
    %v6518 = vpack.c.b16 %v3582, %v3578
    %v6519 = vpack.c.b16 %v3583, %v3579
    %v6520 = vpack.c.b16 %v3584, %v3580
    %v6521 = vpack.c.b16 %v3589, %v3585
    %v6522 = vpack.c.b16 %v3590, %v3586
    %v6523 = vpack.c.b16 %v3591, %v3587
    %v6524 = vpack.c.b16 %v3592, %v3588
    %v6525 = vpack.c.b16 %v3597, %v3593
    %v6526 = vpack.c.b16 %v3598, %v3594
    %v6527 = vpack.c.b16 %v3599, %v3595
    %v6528 = vpack.c.b16 %v3600, %v3596
    %v6529 = vpack.c.b16 %v3605, %v3601
    %v6530 = vpack.c.b16 %v3606, %v3602
    %v6531 = vpack.c.b16 %v3607, %v3603
    %v6532 = vpack.c.b16 %v3608, %v3604
    %v6533 = vpack.c.b16 %v3613, %v3609
    %v6534 = vpack.c.b16 %v3614, %v3610
    %v6535 = vpack.c.b16 %v3615, %v3611
    %v6536 = vpack.c.b16 %v3616, %v3612
    %v6537 = vpack.c.b16 %v3621, %v3617
    %v6538 = vpack.c.b16 %v3622, %v3618
    %v6539 = vpack.c.b16 %v3623, %v3619
    %v6540 = vpack.c.b16 %v3624, %v3620
    %v6541 = vpack.c.b16 %v3629, %v3625
    %v6542 = vpack.c.b16 %v3630, %v3626
    %v6543 = vpack.c.b16 %v3631, %v3627
    %v6544 = vpack.c.b16 %v3632, %v3628
    %v6545 = vpack.c.b16 %v3637, %v3633
    %v6546 = vpack.c.b16 %v3638, %v3634
    %v6547 = vpack.c.b16 %v3639, %v3635
    %v6548 = vpack.c.b16 %v3640, %v3636
    %v6549 = vpack.c.b16 %v3645, %v3641
    %v6550 = vpack.c.b16 %v3646, %v3642
    %v6551 = vpack.c.b16 %v3647, %v3643
    %v6552 = vpack.c.b16 %v3648, %v3644
    %v6553 = vpack.c.b16 %v3653, %v3649
    %v6554 = vpack.c.b16 %v3654, %v3650
    %v6555 = vpack.c.b16 %v3655, %v3651
    %v6556 = vpack.c.b16 %v3656, %v3652
    %v6557 = vpack.c.b16 %v3661, %v3657
    %v6558 = vpack.c.b16 %v3662, %v3658
    %v6559 = vpack.c.b16 %v3663, %v3659
    %v6560 = vpack.c.b16 %v3664, %v3660
    %v6561 = vpack.c.b16 %v3669, %v3665
    %v6562 = vpack.c.b16 %v3670, %v3666
    %v6563 = vpack.c.b16 %v3671, %v3667
    %v6564 = vpack.c.b16 %v3672, %v3668
    %v6565 = vpack.c.b16 %v3677, %v3673
    %v6566 = vpack.c.b16 %v3678, %v3674
    %v6567 = vpack.c.b16 %v3679, %v3675
    %v6568 = vpack.c.b16 %v3680, %v3676
    %v6569 = vpack.c.b16 %v3685, %v3681
    %v6570 = vpack.c.b16 %v3686, %v3682
    %v6571 = vpack.c.b16 %v3687, %v3683
    %v6572 = vpack.c.b16 %v3688, %v3684
    %v6573 = vpack.c.b16 %v3693, %v3689
    %v6574 = vpack.c.b16 %v3694, %v3690
    %v6575 = vpack.c.b16 %v3695, %v3691
    %v6576 = vpack.c.b16 %v3696, %v3692
    %v6577 = vpack.c.b16 %v3701, %v3697
    %v6578 = vpack.c.b16 %v3702, %v3698
    %v6579 = vpack.c.b16 %v3703, %v3699
    %v6580 = vpack.c.b16 %v3704, %v3700
    %v6581 = vpack.c.b16 %v3709, %v3705
    %v6582 = vpack.c.b16 %v3710, %v3706
    %v6583 = vpack.c.b16 %v3711, %v3707
    %v6584 = vpack.c.b16 %v3712, %v3708
    %v6585 = vpack.c.b16 %v3717, %v3713
    %v6586 = vpack.c.b16 %v3718, %v3714
    %v6587 = vpack.c.b16 %v3719, %v3715
    %v6588 = vpack.c.b16 %v3720, %v3716
    %v6589 = vpack.c.b16 %v3725, %v3721
    %v6590 = vpack.c.b16 %v3726, %v3722
    %v6591 = vpack.c.b16 %v3727, %v3723
    %v6592 = vpack.c.b16 %v3728, %v3724
    %v6593 = vpack.c.b16 %v3733, %v3729
    %v6594 = vpack.c.b16 %v3734, %v3730
    %v6595 = vpack.c.b16 %v3735, %v3731
    %v6596 = vpack.c.b16 %v3736, %v3732
    %v6597 = vpack.c.b16 %v3741, %v3737
    %v6598 = vpack.c.b16 %v3742, %v3738
    %v6599 = vpack.c.b16 %v3743, %v3739
    %v6600 = vpack.c.b16 %v3744, %v3740
    %v6601 = vpack.c.b16 %v3749, %v3745
    %v6602 = vpack.c.b16 %v3750, %v3746
    %v6603 = vpack.c.b16 %v3751, %v3747
    %v6604 = vpack.c.b16 %v3752, %v3748
    %v6605 = vpack.c.b16 %v3757, %v3753
    %v6606 = vpack.c.b16 %v3758, %v3754
    %v6607 = vpack.c.b16 %v3759, %v3755
    %v6608 = vpack.c.b16 %v3760, %v3756
    %v6609 = vpack.c.b16 %v3765, %v3761
    %v6610 = vpack.c.b16 %v3766, %v3762
    %v6611 = vpack.c.b16 %v3767, %v3763
    %v6612 = vpack.c.b16 %v3768, %v3764
    %v6613 = vpack.c.b16 %v3773, %v3769
    %v6614 = vpack.c.b16 %v3774, %v3770
    %v6615 = vpack.c.b16 %v3775, %v3771
    %v6616 = vpack.c.b16 %v3776, %v3772
    %v6617 = vpack.c.b16 %v3781, %v3777
    %v6618 = vpack.c.b16 %v3782, %v3778
    %v6619 = vpack.c.b16 %v3783, %v3779
    %v6620 = vpack.c.b16 %v3784, %v3780
    %v6621 = vpack.c.b16 %v3789, %v3785
    %v6622 = vpack.c.b16 %v3790, %v3786
    %v6623 = vpack.c.b16 %v3791, %v3787
    %v6624 = vpack.c.b16 %v3792, %v3788
    %v6625 = vpack.c.b16 %v3797, %v3793
    %v6626 = vpack.c.b16 %v3798, %v3794
    %v6627 = vpack.c.b16 %v3799, %v3795
    %v6628 = vpack.c.b16 %v3800, %v3796
    %v6629 = vpack.c.b16 %v3805, %v3801
    %v6630 = vpack.c.b16 %v3806, %v3802
    %v6631 = vpack.c.b16 %v3807, %v3803
    %v6632 = vpack.c.b16 %v3808, %v3804
    %v6633 = vpack.c.b16 %v3813, %v3809
    %v6634 = vpack.c.b16 %v3814, %v3810
    %v6635 = vpack.c.b16 %v3815, %v3811
    %v6636 = vpack.c.b16 %v3816, %v3812
    %v6637 = vpack.c.b16 %v3821, %v3817
    %v6638 = vpack.c.b16 %v3822, %v3818
    %v6639 = vpack.c.b16 %v3823, %v3819
    %v6640 = vpack.c.b16 %v3824, %v3820
    %v6641 = vpack.c.b16 %v3829, %v3825
    %v6642 = vpack.c.b16 %v3830, %v3826
    %v6643 = vpack.c.b16 %v3831, %v3827
    %v6644 = vpack.c.b16 %v3832, %v3828
    %v6645 = vpack.c.b16 %v3837, %v3833
    %v6646 = vpack.c.b16 %v3838, %v3834
    %v6647 = vpack.c.b16 %v3839, %v3835
    %v6648 = vpack.c.b16 %v3840, %v3836
    %v6649 = vpack.c.b16 %v3845, %v3841
    %v6650 = vpack.c.b16 %v3846, %v3842
    %v6651 = vpack.c.b16 %v3847, %v3843
    %v6652 = vpack.c.b16 %v3848, %v3844
    %v6653 = vpack.c.b16 %v3853, %v3849
    %v6654 = vpack.c.b16 %v3854, %v3850
    %v6655 = vpack.c.b16 %v3855, %v3851
    %v6656 = vpack.c.b16 %v3856, %v3852
    %v6657 = vpack.c.b16 %v3861, %v3857
    %v6658 = vpack.c.b16 %v3862, %v3858
    %v6659 = vpack.c.b16 %v3863, %v3859
    %v6660 = vpack.c.b16 %v3864, %v3860
    %v6661 = vpack.c.b16 %v3869, %v3865
    %v6662 = vpack.c.b16 %v3870, %v3866
    %v6663 = vpack.c.b16 %v3871, %v3867
    %v6664 = vpack.c.b16 %v3872, %v3868
    %v6665 = vpack.c.b16 %v3877, %v3873
    %v6666 = vpack.c.b16 %v3878, %v3874
    %v6667 = vpack.c.b16 %v3879, %v3875
    %v6668 = vpack.c.b16 %v3880, %v3876
    %v6669 = vpack.c.b16 %v3885, %v3881
    %v6670 = vpack.c.b16 %v3886, %v3882
    %v6671 = vpack.c.b16 %v3887, %v3883
    %v6672 = vpack.c.b16 %v3888, %v3884
    %v6673 = vpack.c.b16 %v3893, %v3889
    %v6674 = vpack.c.b16 %v3894, %v3890
    %v6675 = vpack.c.b16 %v3895, %v3891
    %v6676 = vpack.c.b16 %v3896, %v3892
    %v6677 = vpack.c.b16 %v3901, %v3897
    %v6678 = vpack.c.b16 %v3902, %v3898
    %v6679 = vpack.c.b16 %v3903, %v3899
    %v6680 = vpack.c.b16 %v3904, %v3900
    %v6681 = vpack.c.b16 %v3909, %v3905
    %v6682 = vpack.c.b16 %v3910, %v3906
    %v6683 = vpack.c.b16 %v3911, %v3907
    %v6684 = vpack.c.b16 %v3912, %v3908
    %v6685 = vpack.c.b16 %v3917, %v3913
    %v6686 = vpack.c.b16 %v3918, %v3914
    %v6687 = vpack.c.b16 %v3919, %v3915
    %v6688 = vpack.c.b16 %v3920, %v3916
    %v6689 = vpack.c.b16 %v3925, %v3921
    %v6690 = vpack.c.b16 %v3926, %v3922
    %v6691 = vpack.c.b16 %v3927, %v3923
    %v6692 = vpack.c.b16 %v3928, %v3924
    %v6693 = vpack.c.b16 %v3933, %v3929
    %v6694 = vpack.c.b16 %v3934, %v3930
    %v6695 = vpack.c.b16 %v3935, %v3931
    %v6696 = vpack.c.b16 %v3936, %v3932
    %v6697 = vpack.c.b16 %v3941, %v3937
    %v6698 = vpack.c.b16 %v3942, %v3938
    %v6699 = vpack.c.b16 %v3943, %v3939
    %v6700 = vpack.c.b16 %v3944, %v3940
    %v6701 = vpack.c.b16 %v3949, %v3945
    %v6702 = vpack.c.b16 %v3950, %v3946
    %v6703 = vpack.c.b16 %v3951, %v3947
    %v6704 = vpack.c.b16 %v3952, %v3948
    %v6705 = vpack.c.b16 %v3957, %v3953
    %v6706 = vpack.c.b16 %v3958, %v3954
    %v6707 = vpack.c.b16 %v3959, %v3955
    %v6708 = vpack.c.b16 %v3960, %v3956
    %v6709 = vpack.c.b16 %v3965, %v3961
    %v6710 = vpack.c.b16 %v3966, %v3962
    %v6711 = vpack.c.b16 %v3967, %v3963
    %v6712 = vpack.c.b16 %v3968, %v3964
    %v6713 = vpack.c.b16 %v3973, %v3969
    %v6714 = vpack.c.b16 %v3974, %v3970
    %v6715 = vpack.c.b16 %v3975, %v3971
    %v6716 = vpack.c.b16 %v3976, %v3972
    %v6717 = vpack.c.b16 %v3981, %v3977
    %v6718 = vpack.c.b16 %v3982, %v3978
    %v6719 = vpack.c.b16 %v3983, %v3979
    %v6720 = vpack.c.b16 %v3984, %v3980
    %v6721 = vpack.c.b16 %v3989, %v3985
    %v6722 = vpack.c.b16 %v3990, %v3986
    %v6723 = vpack.c.b16 %v3991, %v3987
    %v6724 = vpack.c.b16 %v3992, %v3988
    %v6725 = vpack.c.b16 %v3997, %v3993
    %v6726 = vpack.c.b16 %v3998, %v3994
    %v6727 = vpack.c.b16 %v3999, %v3995
    %v6728 = vpack.c.b16 %v4000, %v3996
    %v6729 = vpack.c.b16 %v4005, %v4001
    %v6730 = vpack.c.b16 %v4006, %v4002
    %v6731 = vpack.c.b16 %v4007, %v4003
    %v6732 = vpack.c.b16 %v4008, %v4004
    %v6733 = vpack.c.b16 %v4013, %v4009
    %v6734 = vpack.c.b16 %v4014, %v4010
    %v6735 = vpack.c.b16 %v4015, %v4011
    %v6736 = vpack.c.b16 %v4016, %v4012
    %v6737 = vpack.c.b16 %v4021, %v4017
    %v6738 = vpack.c.b16 %v4022, %v4018
    %v6739 = vpack.c.b16 %v4023, %v4019
    %v6740 = vpack.c.b16 %v4024, %v4020
    %v6741 = vpack.c.b16 %v4029, %v4025
    %v6742 = vpack.c.b16 %v4030, %v4026
    %v6743 = vpack.c.b16 %v4031, %v4027
    %v6744 = vpack.c.b16 %v4032, %v4028
    %v6745 = vpack.c.b16 %v4037, %v4033
    %v6746 = vpack.c.b16 %v4038, %v4034
    %v6747 = vpack.c.b16 %v4039, %v4035
    %v6748 = vpack.c.b16 %v4040, %v4036
    %v6749 = vpack.c.b16 %v4045, %v4041
    %v6750 = vpack.c.b16 %v4046, %v4042
    %v6751 = vpack.c.b16 %v4047, %v4043
    %v6752 = vpack.c.b16 %v4048, %v4044
    %v6753 = vpack.c.b16 %v4053, %v4049
    %v6754 = vpack.c.b16 %v4054, %v4050
    %v6755 = vpack.c.b16 %v4055, %v4051
    %v6756 = vpack.c.b16 %v4056, %v4052
    %v6757 = vpack.c.b16 %v4061, %v4057
    %v6758 = vpack.c.b16 %v4062, %v4058
    %v6759 = vpack.c.b16 %v4063, %v4059
    %v6760 = vpack.c.b16 %v4064, %v4060
    %v6761 = vpack.c.b16 %v4069, %v4065
    %v6762 = vpack.c.b16 %v4070, %v4066
    %v6763 = vpack.c.b16 %v4071, %v4067
    %v6764 = vpack.c.b16 %v4072, %v4068
    %v6765 = vpack.c.b16 %v4077, %v4073
    %v6766 = vpack.c.b16 %v4078, %v4074
    %v6767 = vpack.c.b16 %v4079, %v4075
    %v6768 = vpack.c.b16 %v4080, %v4076
    %v6769 = vpack.c.b16 %v4085, %v4081
    %v6770 = vpack.c.b16 %v4086, %v4082
    %v6771 = vpack.c.b16 %v4087, %v4083
    %v6772 = vpack.c.b16 %v4088, %v4084
    %v6773 = vpack.c.b16 %v4093, %v4089
    %v6774 = vpack.c.b16 %v4094, %v4090
    %v6775 = vpack.c.b16 %v4095, %v4091
    %v6776 = vpack.c.b16 %v4096, %v4092
    %v6777 = vpack.c.b16 %v4101, %v4097
    %v6778 = vpack.c.b16 %v4102, %v4098
    %v6779 = vpack.c.b16 %v4103, %v4099
    %v6780 = vpack.c.b16 %v4104, %v4100
    %v6781 = vpack.c.b16 %v4109, %v4105
    %v6782 = vpack.c.b16 %v4110, %v4106
    %v6783 = vpack.c.b16 %v4111, %v4107
    %v6784 = vpack.c.b16 %v4112, %v4108
    %v6785 = vpack.c.b16 %v4117, %v4113
    %v6786 = vpack.c.b16 %v4118, %v4114
    %v6787 = vpack.c.b16 %v4119, %v4115
    %v6788 = vpack.c.b16 %v4120, %v4116
    %v6789 = vpack.c.b16 %v4125, %v4121
    %v6790 = vpack.c.b16 %v4126, %v4122
    %v6791 = vpack.c.b16 %v4127, %v4123
    %v6792 = vpack.c.b16 %v4128, %v4124
    %v6793 = vpack.c.b16 %v4133, %v4129
    %v6794 = vpack.c.b16 %v4134, %v4130
    %v6795 = vpack.c.b16 %v4135, %v4131
    %v6796 = vpack.c.b16 %v4136, %v4132
    %v6797 = vpack.c.b16 %v4141, %v4137
    %v6798 = vpack.c.b16 %v4142, %v4138
    %v6799 = vpack.c.b16 %v4143, %v4139
    %v6800 = vpack.c.b16 %v4144, %v4140
    %v6801 = vpack.c.b16 %v4149, %v4145
    %v6802 = vpack.c.b16 %v4150, %v4146
    %v6803 = vpack.c.b16 %v4151, %v4147
    %v6804 = vpack.c.b16 %v4152, %v4148
    %v6805 = vpack.c.b16 %v4157, %v4153
    %v6806 = vpack.c.b16 %v4158, %v4154
    %v6807 = vpack.c.b16 %v4159, %v4155
    %v6808 = vpack.c.b16 %v4160, %v4156
    %v6809 = vpack.c.b16 %v4165, %v4161
    %v6810 = vpack.c.b16 %v4166, %v4162
    %v6811 = vpack.c.b16 %v4167, %v4163
    %v6812 = vpack.c.b16 %v4168, %v4164
    %v6813 = vpack.c.b16 %v4173, %v4169
    %v6814 = vpack.c.b16 %v4174, %v4170
    %v6815 = vpack.c.b16 %v4175, %v4171
    %v6816 = vpack.c.b16 %v4176, %v4172
    %v6817 = vpack.c.b16 %v4181, %v4177
    %v6818 = vpack.c.b16 %v4182, %v4178
    %v6819 = vpack.c.b16 %v4183, %v4179
    %v6820 = vpack.c.b16 %v4184, %v4180
    %v6821 = vpack.c.b16 %v4189, %v4185
    %v6822 = vpack.c.b16 %v4190, %v4186
    %v6823 = vpack.c.b16 %v4191, %v4187
    %v6824 = vpack.c.b16 %v4192, %v4188
    %v6825 = vpack.c.b16 %v4197, %v4193
    %v6826 = vpack.c.b16 %v4198, %v4194
    %v6827 = vpack.c.b16 %v4199, %v4195
    %v6828 = vpack.c.b16 %v4200, %v4196
    %v6829 = vpack.c.b16 %v4205, %v4201
    %v6830 = vpack.c.b16 %v4206, %v4202
    %v6831 = vpack.c.b16 %v4207, %v4203
    %v6832 = vpack.c.b16 %v4208, %v4204
    %v6833 = vpack.c.b16 %v4213, %v4209
    %v6834 = vpack.c.b16 %v4214, %v4210
    %v6835 = vpack.c.b16 %v4215, %v4211
    %v6836 = vpack.c.b16 %v4216, %v4212
    %v6837 = vpack.c.b16 %v4221, %v4217
    %v6838 = vpack.c.b16 %v4222, %v4218
    %v6839 = vpack.c.b16 %v4223, %v4219
    %v6840 = vpack.c.b16 %v4224, %v4220
    %v6841 = vpack.c.b16 %v4229, %v4225
    %v6842 = vpack.c.b16 %v4230, %v4226
    %v6843 = vpack.c.b16 %v4231, %v4227
    %v6844 = vpack.c.b16 %v4232, %v4228
    %v6845 = vpack.c.b16 %v4237, %v4233
    %v6846 = vpack.c.b16 %v4238, %v4234
    %v6847 = vpack.c.b16 %v4239, %v4235
    %v6848 = vpack.c.b16 %v4240, %v4236
    %v6849 = vpack.c.b16 %v4245, %v4241
    %v6850 = vpack.c.b16 %v4246, %v4242
    %v6851 = vpack.c.b16 %v4247, %v4243
    %v6852 = vpack.c.b16 %v4248, %v4244
    %v6853 = vpack.c.b16 %v4253, %v4249
    %v6854 = vpack.c.b16 %v4254, %v4250
    %v6855 = vpack.c.b16 %v4255, %v4251
    %v6856 = vpack.c.b16 %v4256, %v4252
    %v6857 = vpack.c.b16 %v4261, %v4257
    %v6858 = vpack.c.b16 %v4262, %v4258
    %v6859 = vpack.c.b16 %v4263, %v4259
    %v6860 = vpack.c.b16 %v4264, %v4260
    %v6861 = vpack.c.b16 %v4269, %v4265
    %v6862 = vpack.c.b16 %v4270, %v4266
    %v6863 = vpack.c.b16 %v4271, %v4267
    %v6864 = vpack.c.b16 %v4272, %v4268
    %v6865 = vpack.c.b16 %v4277, %v4273
    %v6866 = vpack.c.b16 %v4278, %v4274
    %v6867 = vpack.c.b16 %v4279, %v4275
    %v6868 = vpack.c.b16 %v4280, %v4276
    %v6869 = vpack.c.b16 %v4285, %v4281
    %v6870 = vpack.c.b16 %v4286, %v4282
    %v6871 = vpack.c.b16 %v4287, %v4283
    %v6872 = vpack.c.b16 %v4288, %v4284
    %v6873 = vpack.c.b16 %v4293, %v4289
    %v6874 = vpack.c.b16 %v4294, %v4290
    %v6875 = vpack.c.b16 %v4295, %v4291
    %v6876 = vpack.c.b16 %v4296, %v4292
    %v6877 = vpack.c.b16 %v4301, %v4297
    %v6878 = vpack.c.b16 %v4302, %v4298
    %v6879 = vpack.c.b16 %v4303, %v4299
    %v6880 = vpack.c.b16 %v4304, %v4300
    %v6881 = vpack.c.b16 %v4309, %v4305
    %v6882 = vpack.c.b16 %v4310, %v4306
    %v6883 = vpack.c.b16 %v4311, %v4307
    %v6884 = vpack.c.b16 %v4312, %v4308
    %v6885 = vpack.c.b16 %v4317, %v4313
    %v6886 = vpack.c.b16 %v4318, %v4314
    %v6887 = vpack.c.b16 %v4319, %v4315
    %v6888 = vpack.c.b16 %v4320, %v4316
    %v6889 = vpack.c.b16 %v4325, %v4321
    %v6890 = vpack.c.b16 %v4326, %v4322
    %v6891 = vpack.c.b16 %v4327, %v4323
    %v6892 = vpack.c.b16 %v4328, %v4324
    %v6893 = vpack.c.b16 %v4333, %v4329
    %v6894 = vpack.c.b16 %v4334, %v4330
    %v6895 = vpack.c.b16 %v4335, %v4331
    %v6896 = vpack.c.b16 %v4336, %v4332
    %v6897 = vpack.c.b16 %v4341, %v4337
    %v6898 = vpack.c.b16 %v4342, %v4338
    %v6899 = vpack.c.b16 %v4343, %v4339
    %v6900 = vpack.c.b16 %v4344, %v4340
    %v6901 = vpack.c.b16 %v4349, %v4345
    %v6902 = vpack.c.b16 %v4350, %v4346
    %v6903 = vpack.c.b16 %v4351, %v4347
    %v6904 = vpack.c.b16 %v4352, %v4348
    %v6905 = vpack.c.b16 %v4357, %v4353
    %v6906 = vpack.c.b16 %v4358, %v4354
    %v6907 = vpack.c.b16 %v4359, %v4355
    %v6908 = vpack.c.b16 %v4360, %v4356
    %v6909 = vpack.c.b16 %v4365, %v4361
    %v6910 = vpack.c.b16 %v4366, %v4362
    %v6911 = vpack.c.b16 %v4367, %v4363
    %v6912 = vpack.c.b16 %v4368, %v4364
    %v6913 = vpack.c.b16 %v4373, %v4369
    %v6914 = vpack.c.b16 %v4374, %v4370
    %v6915 = vpack.c.b16 %v4375, %v4371
    %v6916 = vpack.c.b16 %v4376, %v4372
    %v6917 = vpack.c.b16 %v4381, %v4377
    %v6918 = vpack.c.b16 %v4382, %v4378
    %v6919 = vpack.c.b16 %v4383, %v4379
    %v6920 = vpack.c.b16 %v4384, %v4380
    %v6921 = vpack.c.b16 %v4389, %v4385
    %v6922 = vpack.c.b16 %v4390, %v4386
    %v6923 = vpack.c.b16 %v4391, %v4387
    %v6924 = vpack.c.b16 %v4392, %v4388
    %v6925 = vpack.c.b16 %v4397, %v4393
    %v6926 = vpack.c.b16 %v4398, %v4394
    %v6927 = vpack.c.b16 %v4399, %v4395
    %v6928 = vpack.c.b16 %v4400, %v4396
    %v6929 = vpack.c.b16 %v4405, %v4401
    %v6930 = vpack.c.b16 %v4406, %v4402
    %v6931 = vpack.c.b16 %v4407, %v4403
    %v6932 = vpack.c.b16 %v4408, %v4404
    %v6933 = vpack.c.b16 %v4413, %v4409
    %v6934 = vpack.c.b16 %v4414, %v4410
    %v6935 = vpack.c.b16 %v4415, %v4411
    %v6936 = vpack.c.b16 %v4416, %v4412
    %v6937 = vpack.c.b16 %v4421, %v4417
    %v6938 = vpack.c.b16 %v4422, %v4418
    %v6939 = vpack.c.b16 %v4423, %v4419
    %v6940 = vpack.c.b16 %v4424, %v4420
    %v6941 = vpack.c.b16 %v4429, %v4425
    %v6942 = vpack.c.b16 %v4430, %v4426
    %v6943 = vpack.c.b16 %v4431, %v4427
    %v6944 = vpack.c.b16 %v4432, %v4428
    %v6945 = vpack.c.b16 %v4437, %v4433
    %v6946 = vpack.c.b16 %v4438, %v4434
    %v6947 = vpack.c.b16 %v4439, %v4435
    %v6948 = vpack.c.b16 %v4440, %v4436
    %v6949 = vpack.c.b16 %v4445, %v4441
    %v6950 = vpack.c.b16 %v4446, %v4442
    %v6951 = vpack.c.b16 %v4447, %v4443
    %v6952 = vpack.c.b16 %v4448, %v4444
    %v6953 = vpack.c.b16 %v4453, %v4449
    %v6954 = vpack.c.b16 %v4454, %v4450
    %v6955 = vpack.c.b16 %v4455, %v4451
    %v6956 = vpack.c.b16 %v4456, %v4452
    %v6957 = vpack.c.b16 %v4461, %v4457
    %v6958 = vpack.c.b16 %v4462, %v4458
    %v6959 = vpack.c.b16 %v4463, %v4459
    %v6960 = vpack.c.b16 %v4464, %v4460
    %v6961 = vpack.c.b16 %v4469, %v4465
    %v6962 = vpack.c.b16 %v4470, %v4466
    %v6963 = vpack.c.b16 %v4471, %v4467
    %v6964 = vpack.c.b16 %v4472, %v4468
    %v6965 = vpack.c.b16 %v4477, %v4473
    %v6966 = vpack.c.b16 %v4478, %v4474
    %v6967 = vpack.c.b16 %v4479, %v4475
    %v6968 = vpack.c.b16 %v4480, %v4476
    %v6969 = vpack.c.b16 %v4485, %v4481
    %v6970 = vpack.c.b16 %v4486, %v4482
    %v6971 = vpack.c.b16 %v4487, %v4483
    %v6972 = vpack.c.b16 %v4488, %v4484
    %v6973 = vpack.c.b16 %v4493, %v4489
    %v6974 = vpack.c.b16 %v4494, %v4490
    %v6975 = vpack.c.b16 %v4495, %v4491
    %v6976 = vpack.c.b16 %v4496, %v4492
    %v6977 = vpack.c.b16 %v4501, %v4497
    %v6978 = vpack.c.b16 %v4502, %v4498
    %v6979 = vpack.c.b16 %v4503, %v4499
    %v6980 = vpack.c.b16 %v4504, %v4500
    %v6981 = vpack.c.b16 %v4509, %v4505
    %v6982 = vpack.c.b16 %v4510, %v4506
    %v6983 = vpack.c.b16 %v4511, %v4507
    %v6984 = vpack.c.b16 %v4512, %v4508
    %v6985 = vpack.c.b16 %v4517, %v4513
    %v6986 = vpack.c.b16 %v4518, %v4514
    %v6987 = vpack.c.b16 %v4519, %v4515
    %v6988 = vpack.c.b16 %v4520, %v4516
    %v6989 = vpack.c.b16 %v4525, %v4521
    %v6990 = vpack.c.b16 %v4526, %v4522
    %v6991 = vpack.c.b16 %v4527, %v4523
    %v6992 = vpack.c.b16 %v4528, %v4524
    %v6993 = vpack.c.b16 %v4533, %v4529
    %v6994 = vpack.c.b16 %v4534, %v4530
    %v6995 = vpack.c.b16 %v4535, %v4531
    %v6996 = vpack.c.b16 %v4536, %v4532
    %v6997 = vpack.c.b16 %v4541, %v4537
    %v6998 = vpack.c.b16 %v4542, %v4538
    %v6999 = vpack.c.b16 %v4543, %v4539
    %v7000 = vpack.c.b16 %v4544, %v4540
    %v7001 = vpack.c.b16 %v4549, %v4545
    %v7002 = vpack.c.b16 %v4550, %v4546
    %v7003 = vpack.c.b16 %v4551, %v4547
    %v7004 = vpack.c.b16 %v4552, %v4548
    %v7005 = vpack.c.b16 %v4557, %v4553
    %v7006 = vpack.c.b16 %v4558, %v4554
    %v7007 = vpack.c.b16 %v4559, %v4555
    %v7008 = vpack.c.b16 %v4560, %v4556
    %v7009 = vpack.c.b16 %v4565, %v4561
    %v7010 = vpack.c.b16 %v4566, %v4562
    %v7011 = vpack.c.b16 %v4567, %v4563
    %v7012 = vpack.c.b16 %v4568, %v4564
    %v7013 = vpack.c.b16 %v4573, %v4569
    %v7014 = vpack.c.b16 %v4574, %v4570
    %v7015 = vpack.c.b16 %v4575, %v4571
    %v7016 = vpack.c.b16 %v4576, %v4572
    %v7017 = vpack.c.b16 %v4581, %v4577
    %v7018 = vpack.c.b16 %v4582, %v4578
    %v7019 = vpack.c.b16 %v4583, %v4579
    %v7020 = vpack.c.b16 %v4584, %v4580
    %v7021 = vpack.c.b16 %v4589, %v4585
    %v7022 = vpack.c.b16 %v4590, %v4586
    %v7023 = vpack.c.b16 %v4591, %v4587
    %v7024 = vpack.c.b16 %v4592, %v4588
    %v7025 = vpack.c.b16 %v4597, %v4593
    %v7026 = vpack.c.b16 %v4598, %v4594
    %v7027 = vpack.c.b16 %v4599, %v4595
    %v7028 = vpack.c.b16 %v4600, %v4596
    %v7029 = vpack.c.b16 %v4605, %v4601
    %v7030 = vpack.c.b16 %v4606, %v4602
    %v7031 = vpack.c.b16 %v4607, %v4603
    %v7032 = vpack.c.b16 %v4608, %v4604
    %v7033 = vpack.c.b16 %v4613, %v4609
    %v7034 = vpack.c.b16 %v4614, %v4610
    %v7035 = vpack.c.b16 %v4615, %v4611
    %v7036 = vpack.c.b16 %v4616, %v4612
    %v7037 = vpack.c.b16 %v4621, %v4617
    %v7038 = vpack.c.b16 %v4622, %v4618
    %v7039 = vpack.c.b16 %v4623, %v4619
    %v7040 = vpack.c.b16 %v4624, %v4620
    %v7041 = vpack.c.b16 %v4629, %v4625
    %v7042 = vpack.c.b16 %v4630, %v4626
    %v7043 = vpack.c.b16 %v4631, %v4627
    %v7044 = vpack.c.b16 %v4632, %v4628
    %v7045 = vpack.c.b16 %v4637, %v4633
    %v7046 = vpack.c.b16 %v4638, %v4634
    %v7047 = vpack.c.b16 %v4639, %v4635
    %v7048 = vpack.c.b16 %v4640, %v4636
    %v7049 = vpack.c.b16 %v4645, %v4641
    %v7050 = vpack.c.b16 %v4646, %v4642
    %v7051 = vpack.c.b16 %v4647, %v4643
    %v7052 = vpack.c.b16 %v4648, %v4644
    %v7053 = vpack.c.b16 %v4653, %v4649
    %v7054 = vpack.c.b16 %v4654, %v4650
    %v7055 = vpack.c.b16 %v4655, %v4651
    %v7056 = vpack.c.b16 %v4656, %v4652
    %v7057 = vpack.c.b16 %v4661, %v4657
    %v7058 = vpack.c.b16 %v4662, %v4658
    %v7059 = vpack.c.b16 %v4663, %v4659
    %v7060 = vpack.c.b16 %v4664, %v4660
    %v7061 = vpack.c.b16 %v4669, %v4665
    %v7062 = vpack.c.b16 %v4670, %v4666
    %v7063 = vpack.c.b16 %v4671, %v4667
    %v7064 = vpack.c.b16 %v4672, %v4668
    %v7065 = vpack.c.b16 %v4677, %v4673
    %v7066 = vpack.c.b16 %v4678, %v4674
    %v7067 = vpack.c.b16 %v4679, %v4675
    %v7068 = vpack.c.b16 %v4680, %v4676
    %v7069 = vpack.c.b16 %v4685, %v4681
    %v7070 = vpack.c.b16 %v4686, %v4682
    %v7071 = vpack.c.b16 %v4687, %v4683
    %v7072 = vpack.c.b16 %v4688, %v4684
    %v7073 = vpack.c.b16 %v4693, %v4689
    %v7074 = vpack.c.b16 %v4694, %v4690
    %v7075 = vpack.c.b16 %v4695, %v4691
    %v7076 = vpack.c.b16 %v4696, %v4692
    %v7077 = vpack.c.b16 %v4701, %v4697
    %v7078 = vpack.c.b16 %v4702, %v4698
    %v7079 = vpack.c.b16 %v4703, %v4699
    %v7080 = vpack.c.b16 %v4704, %v4700
    %v7081 = vpack.c.b16 %v4709, %v4705
    %v7082 = vpack.c.b16 %v4710, %v4706
    %v7083 = vpack.c.b16 %v4711, %v4707
    %v7084 = vpack.c.b16 %v4712, %v4708
    %v7085 = vpack.c.b16 %v4717, %v4713
    %v7086 = vpack.c.b16 %v4718, %v4714
    %v7087 = vpack.c.b16 %v4719, %v4715
    %v7088 = vpack.c.b16 %v4720, %v4716
    %v7089 = vpack.c.b16 %v4725, %v4721
    %v7090 = vpack.c.b16 %v4726, %v4722
    %v7091 = vpack.c.b16 %v4727, %v4723
    %v7092 = vpack.c.b16 %v4728, %v4724
    %v7093 = vpack.c.b16 %v4733, %v4729
    %v7094 = vpack.c.b16 %v4734, %v4730
    %v7095 = vpack.c.b16 %v4735, %v4731
    %v7096 = vpack.c.b16 %v4736, %v4732
    %v7097 = vpack.c.b16 %v4741, %v4737
    %v7098 = vpack.c.b16 %v4742, %v4738
    %v7099 = vpack.c.b16 %v4743, %v4739
    %v7100 = vpack.c.b16 %v4744, %v4740
    %v7101 = vpack.c.b16 %v4749, %v4745
    %v7102 = vpack.c.b16 %v4750, %v4746
    %v7103 = vpack.c.b16 %v4751, %v4747
    %v7104 = vpack.c.b16 %v4752, %v4748
    %v7105 = vpack.c.b16 %v4757, %v4753
    %v7106 = vpack.c.b16 %v4758, %v4754
    %v7107 = vpack.c.b16 %v4759, %v4755
    %v7108 = vpack.c.b16 %v4760, %v4756
    %v7109 = vpack.c.b16 %v4765, %v4761
    %v7110 = vpack.c.b16 %v4766, %v4762
    %v7111 = vpack.c.b16 %v4767, %v4763
    %v7112 = vpack.c.b16 %v4768, %v4764
    %v7113 = vpack.c.b16 %v4773, %v4769
    %v7114 = vpack.c.b16 %v4774, %v4770
    %v7115 = vpack.c.b16 %v4775, %v4771
    %v7116 = vpack.c.b16 %v4776, %v4772
    %v7117 = vpack.c.b16 %v4781, %v4777
    %v7118 = vpack.c.b16 %v4782, %v4778
    %v7119 = vpack.c.b16 %v4783, %v4779
    %v7120 = vpack.c.b16 %v4784, %v4780
    %v7121 = vpack.c.b16 %v4789, %v4785
    %v7122 = vpack.c.b16 %v4790, %v4786
    %v7123 = vpack.c.b16 %v4791, %v4787
    %v7124 = vpack.c.b16 %v4792, %v4788
    %v7125 = vpack.c.b16 %v4797, %v4793
    %v7126 = vpack.c.b16 %v4798, %v4794
    %v7127 = vpack.c.b16 %v4799, %v4795
    %v7128 = vpack.c.b16 %v4800, %v4796
    %v7129 = vpack.c.b16 %v4805, %v4801
    %v7130 = vpack.c.b16 %v4806, %v4802
    %v7131 = vpack.c.b16 %v4807, %v4803
    %v7132 = vpack.c.b16 %v4808, %v4804
    %v7133 = vpack.c.b16 %v4813, %v4809
    %v7134 = vpack.c.b16 %v4814, %v4810
    %v7135 = vpack.c.b16 %v4815, %v4811
    %v7136 = vpack.c.b16 %v4816, %v4812
    %v7137 = vpack.c.b16 %v4821, %v4817
    %v7138 = vpack.c.b16 %v4822, %v4818
    %v7139 = vpack.c.b16 %v4823, %v4819
    %v7140 = vpack.c.b16 %v4824, %v4820
    %v7141 = vpack.c.b16 %v4829, %v4825
    %v7142 = vpack.c.b16 %v4830, %v4826
    %v7143 = vpack.c.b16 %v4831, %v4827
    %v7144 = vpack.c.b16 %v4832, %v4828
    %v7145 = vpack.c.b16 %v4837, %v4833
    %v7146 = vpack.c.b16 %v4838, %v4834
    %v7147 = vpack.c.b16 %v4839, %v4835
    %v7148 = vpack.c.b16 %v4840, %v4836
    %v7149 = vpack.c.b16 %v4845, %v4841
    %v7150 = vpack.c.b16 %v4846, %v4842
    %v7151 = vpack.c.b16 %v4847, %v4843
    %v7152 = vpack.c.b16 %v4848, %v4844
    %v7153 = vpack.c.b16 %v4853, %v4849
    %v7154 = vpack.c.b16 %v4854, %v4850
    %v7155 = vpack.c.b16 %v4855, %v4851
    %v7156 = vpack.c.b16 %v4856, %v4852
    %v7157 = vpack.c.b16 %v4861, %v4857
    %v7158 = vpack.c.b16 %v4862, %v4858
    %v7159 = vpack.c.b16 %v4863, %v4859
    %v7160 = vpack.c.b16 %v4864, %v4860
    %v7161 = vpack.c.b16 %v4869, %v4865
    %v7162 = vpack.c.b16 %v4870, %v4866
    %v7163 = vpack.c.b16 %v4871, %v4867
    %v7164 = vpack.c.b16 %v4872, %v4868
    %v7165 = vpack.c.b16 %v4877, %v4873
    %v7166 = vpack.c.b16 %v4878, %v4874
    %v7167 = vpack.c.b16 %v4879, %v4875
    %v7168 = vpack.c.b16 %v4880, %v4876
    %v7169 = vpack.c.b16 %v4885, %v4881
    %v7170 = vpack.c.b16 %v4886, %v4882
    %v7171 = vpack.c.b16 %v4887, %v4883
    %v7172 = vpack.c.b16 %v4888, %v4884
    %v7173 = vpack.c.b16 %v4893, %v4889
    %v7174 = vpack.c.b16 %v4894, %v4890
    %v7175 = vpack.c.b16 %v4895, %v4891
    %v7176 = vpack.c.b16 %v4896, %v4892
    %v7177 = vpack.c.b16 %v4901, %v4897
    %v7178 = vpack.c.b16 %v4902, %v4898
    %v7179 = vpack.c.b16 %v4903, %v4899
    %v7180 = vpack.c.b16 %v4904, %v4900
    %v7181 = vpack.c.b16 %v4909, %v4905
    %v7182 = vpack.c.b16 %v4910, %v4906
    %v7183 = vpack.c.b16 %v4911, %v4907
    %v7184 = vpack.c.b16 %v4912, %v4908
    %v7185 = vpack.c.b16 %v4917, %v4913
    %v7186 = vpack.c.b16 %v4918, %v4914
    %v7187 = vpack.c.b16 %v4919, %v4915
    %v7188 = vpack.c.b16 %v4920, %v4916
    %v7189 = vpack.c.b16 %v4925, %v4921
    %v7190 = vpack.c.b16 %v4926, %v4922
    %v7191 = vpack.c.b16 %v4927, %v4923
    %v7192 = vpack.c.b16 %v4928, %v4924
    %v7193 = vpack.c.b16 %v4933, %v4929
    %v7194 = vpack.c.b16 %v4934, %v4930
    %v7195 = vpack.c.b16 %v4935, %v4931
    %v7196 = vpack.c.b16 %v4936, %v4932
    %v7197 = vpack.c.b16 %v4941, %v4937
    %v7198 = vpack.c.b16 %v4942, %v4938
    %v7199 = vpack.c.b16 %v4943, %v4939
    %v7200 = vpack.c.b16 %v4944, %v4940
    %v7201 = vpack.c.b16 %v4949, %v4945
    %v7202 = vpack.c.b16 %v4950, %v4946
    %v7203 = vpack.c.b16 %v4951, %v4947
    %v7204 = vpack.c.b16 %v4952, %v4948
    %v7205 = vpack.c.b16 %v4957, %v4953
    %v7206 = vpack.c.b16 %v4958, %v4954
    %v7207 = vpack.c.b16 %v4959, %v4955
    %v7208 = vpack.c.b16 %v4960, %v4956
    %v7209 = vpack.c.b16 %v4965, %v4961
    %v7210 = vpack.c.b16 %v4966, %v4962
    %v7211 = vpack.c.b16 %v4967, %v4963
    %v7212 = vpack.c.b16 %v4968, %v4964
    %v7213 = vpack.c.b16 %v4973, %v4969
    %v7214 = vpack.c.b16 %v4974, %v4970
    %v7215 = vpack.c.b16 %v4975, %v4971
    %v7216 = vpack.c.b16 %v4976, %v4972
    %v7217 = vpack.c.b16 %v4981, %v4977
    %v7218 = vpack.c.b16 %v4982, %v4978
    %v7219 = vpack.c.b16 %v4983, %v4979
    %v7220 = vpack.c.b16 %v4984, %v4980
    %v7221 = vpack.c.b16 %v4989, %v4985
    %v7222 = vpack.c.b16 %v4990, %v4986
    %v7223 = vpack.c.b16 %v4991, %v4987
    %v7224 = vpack.c.b16 %v4992, %v4988
    %v7225 = vpack.c.b16 %v4997, %v4993
    %v7226 = vpack.c.b16 %v4998, %v4994
    %v7227 = vpack.c.b16 %v4999, %v4995
    %v7228 = vpack.c.b16 %v5000, %v4996
    %v7229 = vpack.c.b16 %v5005, %v5001
    %v7230 = vpack.c.b16 %v5006, %v5002
    %v7231 = vpack.c.b16 %v5007, %v5003
    %v7232 = vpack.c.b16 %v5008, %v5004
    %v7233 = vpack.c.b16 %v5013, %v5009
    %v7234 = vpack.c.b16 %v5014, %v5010
    %v7235 = vpack.c.b16 %v5015, %v5011
    %v7236 = vpack.c.b16 %v5016, %v5012
    %v7237 = vpack.c.b16 %v5021, %v5017
    %v7238 = vpack.c.b16 %v5022, %v5018
    %v7239 = vpack.c.b16 %v5023, %v5019
    %v7240 = vpack.c.b16 %v5024, %v5020
    %v7241 = vpack.c.b16 %v5029, %v5025
    %v7242 = vpack.c.b16 %v5030, %v5026
    %v7243 = vpack.c.b16 %v5031, %v5027
    %v7244 = vpack.c.b16 %v5032, %v5028
    %v7245 = vpack.c.b16 %v5037, %v5033
    %v7246 = vpack.c.b16 %v5038, %v5034
    %v7247 = vpack.c.b16 %v5039, %v5035
    %v7248 = vpack.c.b16 %v5040, %v5036
    %v7249 = vpack.c.b16 %v5045, %v5041
    %v7250 = vpack.c.b16 %v5046, %v5042
    %v7251 = vpack.c.b16 %v5047, %v5043
    %v7252 = vpack.c.b16 %v5048, %v5044
    %v7253 = vpack.c.b16 %v5053, %v5049
    %v7254 = vpack.c.b16 %v5054, %v5050
    %v7255 = vpack.c.b16 %v5055, %v5051
    %v7256 = vpack.c.b16 %v5056, %v5052
    %v7257 = vpack.c.b16 %v5061, %v5057
    %v7258 = vpack.c.b16 %v5062, %v5058
    %v7259 = vpack.c.b16 %v5063, %v5059
    %v7260 = vpack.c.b16 %v5064, %v5060
    %v7261 = vpack.c.b16 %v5069, %v5065
    %v7262 = vpack.c.b16 %v5070, %v5066
    %v7263 = vpack.c.b16 %v5071, %v5067
    %v7264 = vpack.c.b16 %v5072, %v5068
    %v7265 = vpack.c.b16 %v5077, %v5073
    %v7266 = vpack.c.b16 %v5078, %v5074
    %v7267 = vpack.c.b16 %v5079, %v5075
    %v7268 = vpack.c.b16 %v5080, %v5076
    %v7269 = vpack.c.b16 %v5085, %v5081
    %v7270 = vpack.c.b16 %v5086, %v5082
    %v7271 = vpack.c.b16 %v5087, %v5083
    %v7272 = vpack.c.b16 %v5088, %v5084
    %v7273 = vpack.c.b16 %v5093, %v5089
    %v7274 = vpack.c.b16 %v5094, %v5090
    %v7275 = vpack.c.b16 %v5095, %v5091
    %v7276 = vpack.c.b16 %v5096, %v5092
    %v7277 = vpack.c.b16 %v5101, %v5097
    %v7278 = vpack.c.b16 %v5102, %v5098
    %v7279 = vpack.c.b16 %v5103, %v5099
    %v7280 = vpack.c.b16 %v5104, %v5100
    %v7281 = vpack.c.b16 %v5109, %v5105
    %v7282 = vpack.c.b16 %v5110, %v5106
    %v7283 = vpack.c.b16 %v5111, %v5107
    %v7284 = vpack.c.b16 %v5112, %v5108
    %v7285 = vpack.c.b16 %v5117, %v5113
    %v7286 = vpack.c.b16 %v5118, %v5114
    %v7287 = vpack.c.b16 %v5119, %v5115
    %v7288 = vpack.c.b16 %v5120, %v5116
    %v7289 = vpack.c.b16 %v5125, %v5121
    %v7290 = vpack.c.b16 %v5126, %v5122
    %v7291 = vpack.c.b16 %v5127, %v5123
    %v7292 = vpack.c.b16 %v5128, %v5124
    %v7293 = vpack.c.b16 %v5133, %v5129
    %v7294 = vpack.c.b16 %v5134, %v5130
    %v7295 = vpack.c.b16 %v5135, %v5131
    %v7296 = vpack.c.b16 %v5136, %v5132
    %v7297 = vpack.c.b16 %v5141, %v5137
    %v7298 = vpack.c.b16 %v5142, %v5138
    %v7299 = vpack.c.b16 %v5143, %v5139
    %v7300 = vpack.c.b16 %v5144, %v5140
    %v7301 = vpack.c.b16 %v5149, %v5145
    %v7302 = vpack.c.b16 %v5150, %v5146
    %v7303 = vpack.c.b16 %v5151, %v5147
    %v7304 = vpack.c.b16 %v5152, %v5148
    %v7305 = vpack.c.b16 %v5157, %v5153
    %v7306 = vpack.c.b16 %v5158, %v5154
    %v7307 = vpack.c.b16 %v5159, %v5155
    %v7308 = vpack.c.b16 %v5160, %v5156
    %v7309 = vpack.c.b16 %v5165, %v5161
    %v7310 = vpack.c.b16 %v5166, %v5162
    %v7311 = vpack.c.b16 %v5167, %v5163
    %v7312 = vpack.c.b16 %v5168, %v5164
    %v7313 = vpack.c.b16 %v5173, %v5169
    %v7314 = vpack.c.b16 %v5174, %v5170
    %v7315 = vpack.c.b16 %v5175, %v5171
    %v7316 = vpack.c.b16 %v5176, %v5172
    %v7317 = vpack.c.b16 %v5181, %v5177
    %v7318 = vpack.c.b16 %v5182, %v5178
    %v7319 = vpack.c.b16 %v5183, %v5179
    %v7320 = vpack.c.b16 %v5184, %v5180
    %v7321 = vpack.c.b16 %v5189, %v5185
    %v7322 = vpack.c.b16 %v5190, %v5186
    %v7323 = vpack.c.b16 %v5191, %v5187
    %v7324 = vpack.c.b16 %v5192, %v5188
    %v7325 = vpack.c.b16 %v5197, %v5193
    %v7326 = vpack.c.b16 %v5198, %v5194
    %v7327 = vpack.c.b16 %v5199, %v5195
    %v7328 = vpack.c.b16 %v5200, %v5196
    %v7329 = vpack.c.b16 %v5205, %v5201
    %v7330 = vpack.c.b16 %v5206, %v5202
    %v7331 = vpack.c.b16 %v5207, %v5203
    %v7332 = vpack.c.b16 %v5208, %v5204
    %v7333 = vpack.c.b16 %v5213, %v5209
    %v7334 = vpack.c.b16 %v5214, %v5210
    %v7335 = vpack.c.b16 %v5215, %v5211
    %v7336 = vpack.c.b16 %v5216, %v5212
    %v7337 = vpack.c.b16 %v5221, %v5217
    %v7338 = vpack.c.b16 %v5222, %v5218
    %v7339 = vpack.c.b16 %v5223, %v5219
    %v7340 = vpack.c.b16 %v5224, %v5220
    %v7341 = vpack.c.b16 %v5229, %v5225
    %v7342 = vpack.c.b16 %v5230, %v5226
    %v7343 = vpack.c.b16 %v5231, %v5227
    %v7344 = vpack.c.b16 %v5232, %v5228
    %v7345 = vpack.c.b16 %v5237, %v5233
    %v7346 = vpack.c.b16 %v5238, %v5234
    %v7347 = vpack.c.b16 %v5239, %v5235
    %v7348 = vpack.c.b16 %v5240, %v5236
    %v7349 = vpack.c.b16 %v5245, %v5241
    %v7350 = vpack.c.b16 %v5246, %v5242
    %v7351 = vpack.c.b16 %v5247, %v5243
    %v7352 = vpack.c.b16 %v5248, %v5244
    %v7353 = vpack.c.b16 %v5253, %v5249
    %v7354 = vpack.c.b16 %v5254, %v5250
    %v7355 = vpack.c.b16 %v5255, %v5251
    %v7356 = vpack.c.b16 %v5256, %v5252
    %v7357 = vpack.c.b16 %v5261, %v5257
    %v7358 = vpack.c.b16 %v5262, %v5258
    %v7359 = vpack.c.b16 %v5263, %v5259
    %v7360 = vpack.c.b16 %v5264, %v5260
    %v7361 = vpack.c.b16 %v5269, %v5265
    %v7362 = vpack.c.b16 %v5270, %v5266
    %v7363 = vpack.c.b16 %v5271, %v5267
    %v7364 = vpack.c.b16 %v5272, %v5268
    %v7365 = vpack.c.b16 %v5277, %v5273
    %v7366 = vpack.c.b16 %v5278, %v5274
    %v7367 = vpack.c.b16 %v5279, %v5275
    %v7368 = vpack.c.b16 %v5280, %v5276
    %v7369 = vpack.c.b16 %v5285, %v5281
    %v7370 = vpack.c.b16 %v5286, %v5282
    %v7371 = vpack.c.b16 %v5287, %v5283
    %v7372 = vpack.c.b16 %v5288, %v5284
    %v7373 = vpack.c.b16 %v5293, %v5289
    %v7374 = vpack.c.b16 %v5294, %v5290
    %v7375 = vpack.c.b16 %v5295, %v5291
    %v7376 = vpack.c.b16 %v5296, %v5292
    %v7377 = vpack.c.b16 %v5301, %v5297
    %v7378 = vpack.c.b16 %v5302, %v5298
    %v7379 = vpack.c.b16 %v5303, %v5299
    %v7380 = vpack.c.b16 %v5304, %v5300
    %v7381 = vpack.c.b16 %v5309, %v5305
    %v7382 = vpack.c.b16 %v5310, %v5306
    %v7383 = vpack.c.b16 %v5311, %v5307
    %v7384 = vpack.c.b16 %v5312, %v5308
    %v7385 = vpack.c.b16 %v5317, %v5313
    %v7386 = vpack.c.b16 %v5318, %v5314
    %v7387 = vpack.c.b16 %v5319, %v5315
    %v7388 = vpack.c.b16 %v5320, %v5316
    %v7389 = vpack.c.b16 %v5325, %v5321
    %v7390 = vpack.c.b16 %v5326, %v5322
    %v7391 = vpack.c.b16 %v5327, %v5323
    %v7392 = vpack.c.b16 %v5328, %v5324
    %v7393 = vpack.c.b16 %v5333, %v5329
    %v7394 = vpack.c.b16 %v5334, %v5330
    %v7395 = vpack.c.b16 %v5335, %v5331
    %v7396 = vpack.c.b16 %v5336, %v5332
    %v7397 = vpack.c.b16 %v5341, %v5337
    %v7398 = vpack.c.b16 %v5342, %v5338
    %v7399 = vpack.c.b16 %v5343, %v5339
    %v7400 = vpack.c.b16 %v5344, %v5340
    %v7401 = vpack.c.b16 %v5349, %v5345
    %v7402 = vpack.c.b16 %v5350, %v5346
    %v7403 = vpack.c.b16 %v5351, %v5347
    %v7404 = vpack.c.b16 %v5352, %v5348
    %v7405 = vpack.c.b16 %v5357, %v5353
    %v7406 = vpack.c.b16 %v5358, %v5354
    %v7407 = vpack.c.b16 %v5359, %v5355
    %v7408 = vpack.c.b16 %v5360, %v5356
    %v7409 = vpack.c.b16 %v5365, %v5361
    %v7410 = vpack.c.b16 %v5366, %v5362
    %v7411 = vpack.c.b16 %v5367, %v5363
    %v7412 = vpack.c.b16 %v5368, %v5364
    %v7413 = vpack.c.b16 %v5373, %v5369
    %v7414 = vpack.c.b16 %v5374, %v5370
    %v7415 = vpack.c.b16 %v5375, %v5371
    %v7416 = vpack.c.b16 %v5376, %v5372
    %v7417 = vpack.c.b16 %v5381, %v5377
    %v7418 = vpack.c.b16 %v5382, %v5378
    %v7419 = vpack.c.b16 %v5383, %v5379
    %v7420 = vpack.c.b16 %v5384, %v5380
    %v7421 = vpack.c.b16 %v5389, %v5385
    %v7422 = vpack.c.b16 %v5390, %v5386
    %v7423 = vpack.c.b16 %v5391, %v5387
    %v7424 = vpack.c.b16 %v5392, %v5388
    %v7425 = vpack.c.b16 %v5397, %v5393
    %v7426 = vpack.c.b16 %v5398, %v5394
    %v7427 = vpack.c.b16 %v5399, %v5395
    %v7428 = vpack.c.b16 %v5400, %v5396
    %v7429 = vpack.c.b16 %v5405, %v5401
    %v7430 = vpack.c.b16 %v5406, %v5402
    %v7431 = vpack.c.b16 %v5407, %v5403
    %v7432 = vpack.c.b16 %v5408, %v5404
    %v7433 = vpack.c.b16 %v5413, %v5409
    %v7434 = vpack.c.b16 %v5414, %v5410
    %v7435 = vpack.c.b16 %v5415, %v5411
    %v7436 = vpack.c.b16 %v5416, %v5412
    %v7437 = vpack.c.b16 %v5421, %v5417
    %v7438 = vpack.c.b16 %v5422, %v5418
    %v7439 = vpack.c.b16 %v5423, %v5419
    %v7440 = vpack.c.b16 %v5424, %v5420
    %v7441 = vpack.c.b16 %v5429, %v5425
    %v7442 = vpack.c.b16 %v5430, %v5426
    %v7443 = vpack.c.b16 %v5431, %v5427
    %v7444 = vpack.c.b16 %v5432, %v5428
    %v7445 = vpack.c.b16 %v5437, %v5433
    %v7446 = vpack.c.b16 %v5438, %v5434
    %v7447 = vpack.c.b16 %v5439, %v5435
    %v7448 = vpack.c.b16 %v5440, %v5436
    %v7449 = vpack.c.b16 %v5445, %v5441
    %v7450 = vpack.c.b16 %v5446, %v5442
    %v7451 = vpack.c.b16 %v5447, %v5443
    %v7452 = vpack.c.b16 %v5448, %v5444
    %v7453 = vpack.c.b16 %v5453, %v5449
    %v7454 = vpack.c.b16 %v5454, %v5450
    %v7455 = vpack.c.b16 %v5455, %v5451
    %v7456 = vpack.c.b16 %v5456, %v5452
    %v7457 = vpack.c.b16 %v5461, %v5457
    %v7458 = vpack.c.b16 %v5462, %v5458
    %v7459 = vpack.c.b16 %v5463, %v5459
    %v7460 = vpack.c.b16 %v5464, %v5460
    %v7461 = vpack.c.b16 %v5469, %v5465
    %v7462 = vpack.c.b16 %v5470, %v5466
    %v7463 = vpack.c.b16 %v5471, %v5467
    %v7464 = vpack.c.b16 %v5472, %v5468
    %v7465 = vpack.c.b16 %v5477, %v5473
    %v7466 = vpack.c.b16 %v5478, %v5474
    %v7467 = vpack.c.b16 %v5479, %v5475
    %v7468 = vpack.c.b16 %v5480, %v5476
    %v7469 = vpack.c.b16 %v5485, %v5481
    %v7470 = vpack.c.b16 %v5486, %v5482
    %v7471 = vpack.c.b16 %v5487, %v5483
    %v7472 = vpack.c.b16 %v5488, %v5484
    %v7473 = vpack.c.b16 %v5493, %v5489
    %v7474 = vpack.c.b16 %v5494, %v5490
    %v7475 = vpack.c.b16 %v5495, %v5491
    %v7476 = vpack.c.b16 %v5496, %v5492
    %v7477 = vpack.c.b16 %v5501, %v5497
    %v7478 = vpack.c.b16 %v5502, %v5498
    %v7479 = vpack.c.b16 %v5503, %v5499
    %v7480 = vpack.c.b16 %v5504, %v5500
    %v7481 = vpack.c.b16 %v5509, %v5505
    %v7482 = vpack.c.b16 %v5510, %v5506
    %v7483 = vpack.c.b16 %v5511, %v5507
    %v7484 = vpack.c.b16 %v5512, %v5508
    %v7485 = vpack.c.b16 %v5517, %v5513
    %v7486 = vpack.c.b16 %v5518, %v5514
    %v7487 = vpack.c.b16 %v5519, %v5515
    %v7488 = vpack.c.b16 %v5520, %v5516
    %v7489 = vpack.c.b16 %v5525, %v5521
    %v7490 = vpack.c.b16 %v5526, %v5522
    %v7491 = vpack.c.b16 %v5527, %v5523
    %v7492 = vpack.c.b16 %v5528, %v5524
    %v7493 = vpack.c.b16 %v5533, %v5529
    %v7494 = vpack.c.b16 %v5534, %v5530
    %v7495 = vpack.c.b16 %v5535, %v5531
    %v7496 = vpack.c.b16 %v5536, %v5532
    %v7497 = vpack.c.b16 %v5541, %v5537
    %v7498 = vpack.c.b16 %v5542, %v5538
    %v7499 = vpack.c.b16 %v5543, %v5539
    %v7500 = vpack.c.b16 %v5544, %v5540
    %v7501 = vpack.c.b16 %v5549, %v5545
    %v7502 = vpack.c.b16 %v5550, %v5546
    %v7503 = vpack.c.b16 %v5551, %v5547
    %v7504 = vpack.c.b16 %v5552, %v5548
    %v7505 = vpack.c.b16 %v5557, %v5553
    %v7506 = vpack.c.b16 %v5558, %v5554
    %v7507 = vpack.c.b16 %v5559, %v5555
    %v7508 = vpack.c.b16 %v5560, %v5556
    %v7509 = vpack.c.b16 %v5565, %v5561
    %v7510 = vpack.c.b16 %v5566, %v5562
    %v7511 = vpack.c.b16 %v5567, %v5563
    %v7512 = vpack.c.b16 %v5568, %v5564
    %v7513 = vpack.c.b16 %v5573, %v5569
    %v7514 = vpack.c.b16 %v5574, %v5570
    %v7515 = vpack.c.b16 %v5575, %v5571
    %v7516 = vpack.c.b16 %v5576, %v5572
    %v7517 = vpack.c.b16 %v5581, %v5577
    %v7518 = vpack.c.b16 %v5582, %v5578
    %v7519 = vpack.c.b16 %v5583, %v5579
    %v7520 = vpack.c.b16 %v5584, %v5580
    %v7521 = vpack.c.b16 %v5589, %v5585
    %v7522 = vpack.c.b16 %v5590, %v5586
    %v7523 = vpack.c.b16 %v5591, %v5587
    %v7524 = vpack.c.b16 %v5592, %v5588
    %v7525 = vpack.c.b16 %v5597, %v5593
    %v7526 = vpack.c.b16 %v5598, %v5594
    %v7527 = vpack.c.b16 %v5599, %v5595
    %v7528 = vpack.c.b16 %v5600, %v5596
    %v7529 = vpack.c.b16 %v5605, %v5601
    %v7530 = vpack.c.b16 %v5606, %v5602
    %v7531 = vpack.c.b16 %v5607, %v5603
    %v7532 = vpack.c.b16 %v5608, %v5604
    %v7533 = vpack.c.b16 %v5613, %v5609
    %v7534 = vpack.c.b16 %v5614, %v5610
    %v7535 = vpack.c.b16 %v5615, %v5611
    %v7536 = vpack.c.b16 %v5616, %v5612
    %v7537 = vpack.c.b16 %v5621, %v5617
    %v7538 = vpack.c.b16 %v5622, %v5618
    %v7539 = vpack.c.b16 %v5623, %v5619
    %v7540 = vpack.c.b16 %v5624, %v5620
    %v7541 = vpack.c.b16 %v5629, %v5625
    %v7542 = vpack.c.b16 %v5630, %v5626
    %v7543 = vpack.c.b16 %v5631, %v5627
    %v7544 = vpack.c.b16 %v5632, %v5628
    %v7545 = vpack.c.b16 %v5637, %v5633
    %v7546 = vpack.c.b16 %v5638, %v5634
    %v7547 = vpack.c.b16 %v5639, %v5635
    %v7548 = vpack.c.b16 %v5640, %v5636
    %v7549 = vpack.c.b16 %v5645, %v5641
    %v7550 = vpack.c.b16 %v5646, %v5642
    %v7551 = vpack.c.b16 %v5647, %v5643
    %v7552 = vpack.c.b16 %v5648, %v5644
    %v7553 = vpack.c.b16 %v5653, %v5649
    %v7554 = vpack.c.b16 %v5654, %v5650
    %v7555 = vpack.c.b16 %v5655, %v5651
    %v7556 = vpack.c.b16 %v5656, %v5652
    %v7557 = vpack.c.b16 %v5661, %v5657
    %v7558 = vpack.c.b16 %v5662, %v5658
    %v7559 = vpack.c.b16 %v5663, %v5659
    %v7560 = vpack.c.b16 %v5664, %v5660
    %v7561 = vpack.c.b16 %v5669, %v5665
    %v7562 = vpack.c.b16 %v5670, %v5666
    %v7563 = vpack.c.b16 %v5671, %v5667
    %v7564 = vpack.c.b16 %v5672, %v5668
    %v7565 = vpack.c.b16 %v5677, %v5673
    %v7566 = vpack.c.b16 %v5678, %v5674
    %v7567 = vpack.c.b16 %v5679, %v5675
    %v7568 = vpack.c.b16 %v5680, %v5676
    %v7569 = vpack.c.b16 %v5685, %v5681
    %v7570 = vpack.c.b16 %v5686, %v5682
    %v7571 = vpack.c.b16 %v5687, %v5683
    %v7572 = vpack.c.b16 %v5688, %v5684
    %v7573 = vpack.c.b16 %v5693, %v5689
    %v7574 = vpack.c.b16 %v5694, %v5690
    %v7575 = vpack.c.b16 %v5695, %v5691
    %v7576 = vpack.c.b16 %v5696, %v5692
    %v7577 = vpack.c.b16 %v5701, %v5697
    %v7578 = vpack.c.b16 %v5702, %v5698
    %v7579 = vpack.c.b16 %v5703, %v5699
    %v7580 = vpack.c.b16 %v5704, %v5700
    %v7581 = vpack.c.b16 %v5709, %v5705
    %v7582 = vpack.c.b16 %v5710, %v5706
    %v7583 = vpack.c.b16 %v5711, %v5707
    %v7584 = vpack.c.b16 %v5712, %v5708
    %v7585 = vpack.c.b16 %v5717, %v5713
    %v7586 = vpack.c.b16 %v5718, %v5714
    %v7587 = vpack.c.b16 %v5719, %v5715
    %v7588 = vpack.c.b16 %v5720, %v5716
    %v7589 = vpack.c.b16 %v5725, %v5721
    %v7590 = vpack.c.b16 %v5726, %v5722
    %v7591 = vpack.c.b16 %v5727, %v5723
    %v7592 = vpack.c.b16 %v5728, %v5724
    %v7593 = vpack.c.b16 %v5733, %v5729
    %v7594 = vpack.c.b16 %v5734, %v5730
    %v7595 = vpack.c.b16 %v5735, %v5731
    %v7596 = vpack.c.b16 %v5736, %v5732
    %v7597 = vpack.c.b16 %v5741, %v5737
    %v7598 = vpack.c.b16 %v5742, %v5738
    %v7599 = vpack.c.b16 %v5743, %v5739
    %v7600 = vpack.c.b16 %v5744, %v5740
    %v7601 = vpack.c.b16 %v5749, %v5745
    %v7602 = vpack.c.b16 %v5750, %v5746
    %v7603 = vpack.c.b16 %v5751, %v5747
    %v7604 = vpack.c.b16 %v5752, %v5748
    %v7605 = vpack.c.b16 %v5757, %v5753
    %v7606 = vpack.c.b16 %v5758, %v5754
    %v7607 = vpack.c.b16 %v5759, %v5755
    %v7608 = vpack.c.b16 %v5760, %v5756
    %v7609 = vpack.c.b16 %v5765, %v5761
    %v7610 = vpack.c.b16 %v5766, %v5762
    %v7611 = vpack.c.b16 %v5767, %v5763
    %v7612 = vpack.c.b16 %v5768, %v5764
    %v7613 = vpack.c.b16 %v5773, %v5769
    %v7614 = vpack.c.b16 %v5774, %v5770
    %v7615 = vpack.c.b16 %v5775, %v5771
    %v7616 = vpack.c.b16 %v5776, %v5772
    %v7617 = vpack.c.b16 %v5781, %v5777
    %v7618 = vpack.c.b16 %v5782, %v5778
    %v7619 = vpack.c.b16 %v5783, %v5779
    %v7620 = vpack.c.b16 %v5784, %v5780
    %v7621 = vpack.c.b16 %v5789, %v5785
    %v7622 = vpack.c.b16 %v5790, %v5786
    %v7623 = vpack.c.b16 %v5791, %v5787
    %v7624 = vpack.c.b16 %v5792, %v5788
    %v7625 = vpack.c.b16 %v5797, %v5793
    %v7626 = vpack.c.b16 %v5798, %v5794
    %v7627 = vpack.c.b16 %v5799, %v5795
    %v7628 = vpack.c.b16 %v5800, %v5796
    %v7629 = vpack.c.b16 %v5805, %v5801
    %v7630 = vpack.c.b16 %v5806, %v5802
    %v7631 = vpack.c.b16 %v5807, %v5803
    %v7632 = vpack.c.b16 %v5808, %v5804
    %v7633 = vpack.c.b16 %v5813, %v5809
    %v7634 = vpack.c.b16 %v5814, %v5810
    %v7635 = vpack.c.b16 %v5815, %v5811
    %v7636 = vpack.c.b16 %v5816, %v5812
    %v7637 = vpack.c.b16 %v5821, %v5817
    %v7638 = vpack.c.b16 %v5822, %v5818
    %v7639 = vpack.c.b16 %v5823, %v5819
    %v7640 = vpack.c.b16 %v5824, %v5820
    %v7641 = vpack.c.b16 %v5829, %v5825
    %v7642 = vpack.c.b16 %v5830, %v5826
    %v7643 = vpack.c.b16 %v5831, %v5827
    %v7644 = vpack.c.b16 %v5832, %v5828
    %v7645 = vpack.c.b16 %v5837, %v5833
    %v7646 = vpack.c.b16 %v5838, %v5834
    %v7647 = vpack.c.b16 %v5839, %v5835
    %v7648 = vpack.c.b16 %v5840, %v5836
    %v7649 = vpack.c.b16 %v5845, %v5841
    %v7650 = vpack.c.b16 %v5846, %v5842
    %v7651 = vpack.c.b16 %v5847, %v5843
    %v7652 = vpack.c.b16 %v5848, %v5844
    %v7653 = vpack.c.b16 %v5853, %v5849
    %v7654 = vpack.c.b16 %v5854, %v5850
    %v7655 = vpack.c.b16 %v5855, %v5851
    %v7656 = vpack.c.b16 %v5856, %v5852
    %v7657 = vpack.c.b16 %v5861, %v5857
    %v7658 = vpack.c.b16 %v5862, %v5858
    %v7659 = vpack.c.b16 %v5863, %v5859
    %v7660 = vpack.c.b16 %v5864, %v5860
    %v7661 = vpack.c.b16 %v5869, %v5865
    %v7662 = vpack.c.b16 %v5870, %v5866
    %v7663 = vpack.c.b16 %v5871, %v5867
    %v7664 = vpack.c.b16 %v5872, %v5868
    %v7665 = vpack.c.b16 %v5877, %v5873
    %v7666 = vpack.c.b16 %v5878, %v5874
    %v7667 = vpack.c.b16 %v5879, %v5875
    %v7668 = vpack.c.b16 %v5880, %v5876
    %v7669 = vpack.c.b16 %v5885, %v5881
    %v7670 = vpack.c.b16 %v5886, %v5882
    %v7671 = vpack.c.b16 %v5887, %v5883
    %v7672 = vpack.c.b16 %v5888, %v5884
    %v7673 = vpack.c.b16 %v5893, %v5889
    %v7674 = vpack.c.b16 %v5894, %v5890
    %v7675 = vpack.c.b16 %v5895, %v5891
    %v7676 = vpack.c.b16 %v5896, %v5892
    %v7677 = vpack.c.b16 %v5901, %v5897
    %v7678 = vpack.c.b16 %v5902, %v5898
    %v7679 = vpack.c.b16 %v5903, %v5899
    %v7680 = vpack.c.b16 %v5904, %v5900
    %v7681 = vpack.c.b16 %v5909, %v5905
    %v7682 = vpack.c.b16 %v5910, %v5906
    %v7683 = vpack.c.b16 %v5911, %v5907
    %v7684 = vpack.c.b16 %v5912, %v5908
    %v7685 = vpack.c.b16 %v5917, %v5913
    %v7686 = vpack.c.b16 %v5918, %v5914
    %v7687 = vpack.c.b16 %v5919, %v5915
    %v7688 = vpack.c.b16 %v5920, %v5916
    %v7689 = vpack.c.b16 %v5925, %v5921
    %v7690 = vpack.c.b16 %v5926, %v5922
    %v7691 = vpack.c.b16 %v5927, %v5923
    %v7692 = vpack.c.b16 %v5928, %v5924
    %v7693 = vpack.c.b16 %v5933, %v5929
    %v7694 = vpack.c.b16 %v5934, %v5930
    %v7695 = vpack.c.b16 %v5935, %v5931
    %v7696 = vpack.c.b16 %v5936, %v5932
    %v7697 = vpack.c.b16 %v5941, %v5937
    %v7698 = vpack.c.b16 %v5942, %v5938
    %v7699 = vpack.c.b16 %v5943, %v5939
    %v7700 = vpack.c.b16 %v5944, %v5940
    %v7701 = vpack.c.b16 %v5949, %v5945
    %v7702 = vpack.c.b16 %v5950, %v5946
    %v7703 = vpack.c.b16 %v5951, %v5947
    %v7704 = vpack.c.b16 %v5952, %v5948
    %v7705 = vpack.c.b16 %v5957, %v5953
    %v7706 = vpack.c.b16 %v5958, %v5954
    %v7707 = vpack.c.b16 %v5959, %v5955
    %v7708 = vpack.c.b16 %v5960, %v5956
    %v7709 = vpack.c.b16 %v5965, %v5961
    %v7710 = vpack.c.b16 %v5966, %v5962
    %v7711 = vpack.c.b16 %v5967, %v5963
    %v7712 = vpack.c.b16 %v5968, %v5964
    %v7713 = vpack.c.b16 %v5973, %v5969
    %v7714 = vpack.c.b16 %v5974, %v5970
    %v7715 = vpack.c.b16 %v5975, %v5971
    %v7716 = vpack.c.b16 %v5976, %v5972
    %v7717 = vpack.c.b16 %v5981, %v5977
    %v7718 = vpack.c.b16 %v5982, %v5978
    %v7719 = vpack.c.b16 %v5983, %v5979
    %v7720 = vpack.c.b16 %v5984, %v5980
    %v7721 = vpack.c.b16 %v5989, %v5985
    %v7722 = vpack.c.b16 %v5990, %v5986
    %v7723 = vpack.c.b16 %v5991, %v5987
    %v7724 = vpack.c.b16 %v5992, %v5988
    %v7725 = vpack.c.b16 %v5997, %v5993
    %v7726 = vpack.c.b16 %v5998, %v5994
    %v7727 = vpack.c.b16 %v5999, %v5995
    %v7728 = vpack.c.b16 %v6000, %v5996
    %v7729 = vpack.c.b16 %v6005, %v6001
    %v7730 = vpack.c.b16 %v6006, %v6002
    %v7731 = vpack.c.b16 %v6007, %v6003
    %v7732 = vpack.c.b16 %v6008, %v6004
    %v7733 = vpack.c.b16 %v6013, %v6009
    %v7734 = vpack.c.b16 %v6014, %v6010
    %v7735 = vpack.c.b16 %v6015, %v6011
    %v7736 = vpack.c.b16 %v6016, %v6012
    %v7737 = vpack.c.b16 %v6021, %v6017
    %v7738 = vpack.c.b16 %v6022, %v6018
    %v7739 = vpack.c.b16 %v6023, %v6019
    %v7740 = vpack.c.b16 %v6024, %v6020
    %v7741 = vpack.c.b16 %v6029, %v6025
    %v7742 = vpack.c.b16 %v6030, %v6026
    %v7743 = vpack.c.b16 %v6031, %v6027
    %v7744 = vpack.c.b16 %v6032, %v6028
    %v7745 = vpack.c.b16 %v6037, %v6033
    %v7746 = vpack.c.b16 %v6038, %v6034
    %v7747 = vpack.c.b16 %v6039, %v6035
    %v7748 = vpack.c.b16 %v6040, %v6036
    %v7749 = vpack.c.b16 %v6045, %v6041
    %v7750 = vpack.c.b16 %v6046, %v6042
    %v7751 = vpack.c.b16 %v6047, %v6043
    %v7752 = vpack.c.b16 %v6048, %v6044
    %v7753 = vpack.c.b16 %v6053, %v6049
    %v7754 = vpack.c.b16 %v6054, %v6050
    %v7755 = vpack.c.b16 %v6055, %v6051
    %v7756 = vpack.c.b16 %v6056, %v6052
    %v7757 = vpack.c.b16 %v6061, %v6057
    %v7758 = vpack.c.b16 %v6062, %v6058
    %v7759 = vpack.c.b16 %v6063, %v6059
    %v7760 = vpack.c.b16 %v6064, %v6060
    %v7761 = vpack.c.b16 %v6069, %v6065
    %v7762 = vpack.c.b16 %v6070, %v6066
    %v7763 = vpack.c.b16 %v6071, %v6067
    %v7764 = vpack.c.b16 %v6072, %v6068
    %v7765 = vpack.c.b16 %v6077, %v6073
    %v7766 = vpack.c.b16 %v6078, %v6074
    %v7767 = vpack.c.b16 %v6079, %v6075
    %v7768 = vpack.c.b16 %v6080, %v6076
    %v7769 = vpack.c.b16 %v6085, %v6081
    %v7770 = vpack.c.b16 %v6086, %v6082
    %v7771 = vpack.c.b16 %v6087, %v6083
    %v7772 = vpack.c.b16 %v6088, %v6084
    %v7773 = vpack.c.b16 %v6093, %v6089
    %v7774 = vpack.c.b16 %v6094, %v6090
    %v7775 = vpack.c.b16 %v6095, %v6091
    %v7776 = vpack.c.b16 %v6096, %v6092
    %v7777 = vpack.c.b16 %v6101, %v6097
    %v7778 = vpack.c.b16 %v6102, %v6098
    %v7779 = vpack.c.b16 %v6103, %v6099
    %v7780 = vpack.c.b16 %v6104, %v6100
    %v7781 = vpack.c.b16 %v6109, %v6105
    %v7782 = vpack.c.b16 %v6110, %v6106
    %v7783 = vpack.c.b16 %v6111, %v6107
    %v7784 = vpack.c.b16 %v6112, %v6108
    %v7785 = vpack.c.b16 %v6117, %v6113
    %v7786 = vpack.c.b16 %v6118, %v6114
    %v7787 = vpack.c.b16 %v6119, %v6115
    %v7788 = vpack.c.b16 %v6120, %v6116
    %v7789 = vpack.c.b16 %v6125, %v6121
    %v7790 = vpack.c.b16 %v6126, %v6122
    %v7791 = vpack.c.b16 %v6127, %v6123
    %v7792 = vpack.c.b16 %v6128, %v6124
    %v7793 = vpack.c.b16 %v6133, %v6129
    %v7794 = vpack.c.b16 %v6134, %v6130
    %v7795 = vpack.c.b16 %v6135, %v6131
    %v7796 = vpack.c.b16 %v6136, %v6132
    %v7797 = vpack.c.b16 %v6141, %v6137
    %v7798 = vpack.c.b16 %v6142, %v6138
    %v7799 = vpack.c.b16 %v6143, %v6139
    %v7800 = vpack.c.b16 %v6144, %v6140
    %v7801 = vpack.c.b16 %v6149, %v6145
    %v7802 = vpack.c.b16 %v6150, %v6146
    %v7803 = vpack.c.b16 %v6151, %v6147
    %v7804 = vpack.c.b16 %v6152, %v6148
    %v7805 = vpack.c.b16 %v6157, %v6153
    %v7806 = vpack.c.b16 %v6158, %v6154
    %v7807 = vpack.c.b16 %v6159, %v6155
    %v7808 = vpack.c.b16 %v6160, %v6156
    %v7809 = vpack.c.b16 %v6165, %v6161
    %v7810 = vpack.c.b16 %v6166, %v6162
    %v7811 = vpack.c.b16 %v6167, %v6163
    %v7812 = vpack.c.b16 %v6168, %v6164
    %v7813 = vpack.c.b16 %v6173, %v6169
    %v7814 = vpack.c.b16 %v6174, %v6170
    %v7815 = vpack.c.b16 %v6175, %v6171
    %v7816 = vpack.c.b16 %v6176, %v6172
    %v7817 = vpack.c.b16 %v6181, %v6177
    %v7818 = vpack.c.b16 %v6182, %v6178
    %v7819 = vpack.c.b16 %v6183, %v6179
    %v7820 = vpack.c.b16 %v6184, %v6180
    %v7821 = vpack.c.b16 %v6189, %v6185
    %v7822 = vpack.c.b16 %v6190, %v6186
    %v7823 = vpack.c.b16 %v6191, %v6187
    %v7824 = vpack.c.b16 %v6192, %v6188
    %v7825 = vpack.c.b16 %v6197, %v6193
    %v7826 = vpack.c.b16 %v6198, %v6194
    %v7827 = vpack.c.b16 %v6199, %v6195
    %v7828 = vpack.c.b16 %v6200, %v6196
    %v7829 = vpack.c.b16 %v6205, %v6201
    %v7830 = vpack.c.b16 %v6206, %v6202
    %v7831 = vpack.c.b16 %v6207, %v6203
    %v7832 = vpack.c.b16 %v6208, %v6204
    %v7833 = vpack.c.b16 %v6213, %v6209
    %v7834 = vpack.c.b16 %v6214, %v6210
    %v7835 = vpack.c.b16 %v6215, %v6211
    %v7836 = vpack.c.b16 %v6216, %v6212
    %v7837 = vpack.c.b16 %v6221, %v6217
    %v7838 = vpack.c.b16 %v6222, %v6218
    %v7839 = vpack.c.b16 %v6223, %v6219
    %v7840 = vpack.c.b16 %v6224, %v6220
    %v7841 = vpack.c.b16 %v6229, %v6225
    %v7842 = vpack.c.b16 %v6230, %v6226
    %v7843 = vpack.c.b16 %v6231, %v6227
    %v7844 = vpack.c.b16 %v6232, %v6228
    %v7845 = vpack.c.b16 %v6237, %v6233
    %v7846 = vpack.c.b16 %v6238, %v6234
    %v7847 = vpack.c.b16 %v6239, %v6235
    %v7848 = vpack.c.b16 %v6240, %v6236
    %v7849 = vpack.c.b16 %v6245, %v6241
    %v7850 = vpack.c.b16 %v6246, %v6242
    %v7851 = vpack.c.b16 %v6247, %v6243
    %v7852 = vpack.c.b16 %v6248, %v6244
    %v7853 = vpack.c.b16 %v6253, %v6249
    %v7854 = vpack.c.b16 %v6254, %v6250
    %v7855 = vpack.c.b16 %v6255, %v6251
    %v7856 = vpack.c.b16 %v6256, %v6252
    %v7857 = vpack.c.b16 %v6261, %v6257
    %v7858 = vpack.c.b16 %v6262, %v6258
    %v7859 = vpack.c.b16 %v6263, %v6259
    %v7860 = vpack.c.b16 %v6264, %v6260
    %v7861 = vpack.c.b16 %v6269, %v6265
    %v7862 = vpack.c.b16 %v6270, %v6266
    %v7863 = vpack.c.b16 %v6271, %v6267
    %v7864 = vpack.c.b16 %v6272, %v6268
    %v7865 = vpack.c.b16 %v6277, %v6273
    %v7866 = vpack.c.b16 %v6278, %v6274
    %v7867 = vpack.c.b16 %v6279, %v6275
    %v7868 = vpack.c.b16 %v6280, %v6276
    %v7869 = vpack.c.b16 %v6285, %v6281
    %v7870 = vpack.c.b16 %v6286, %v6282
    %v7871 = vpack.c.b16 %v6287, %v6283
    %v7872 = vpack.c.b16 %v6288, %v6284
    %v7873 = vpack.c.b16 %v6293, %v6289
    %v7874 = vpack.c.b16 %v6294, %v6290
    %v7875 = vpack.c.b16 %v6295, %v6291
    %v7876 = vpack.c.b16 %v6296, %v6292
    %v7877 = vpack.c.b16 %v6301, %v6297
    %v7878 = vpack.c.b16 %v6302, %v6298
    %v7879 = vpack.c.b16 %v6303, %v6299
    %v7880 = vpack.c.b16 %v6304, %v6300
    %v7881 = vpack.c.b16 %v6309, %v6305
    %v7882 = vpack.c.b16 %v6310, %v6306
    %v7883 = vpack.c.b16 %v6311, %v6307
    %v7884 = vpack.c.b16 %v6312, %v6308
    %v7885 = vpack.c.b16 %v6317, %v6313
    %v7886 = vpack.c.b16 %v6318, %v6314
    %v7887 = vpack.c.b16 %v6319, %v6315
    %v7888 = vpack.c.b16 %v6320, %v6316
    %v7889 = vpack.c.b16 %v6325, %v6321
    %v7890 = vpack.c.b16 %v6326, %v6322
    %v7891 = vpack.c.b16 %v6327, %v6323
    %v7892 = vpack.c.b16 %v6328, %v6324
    %v7893 = vpack.c.b16 %v6333, %v6329
    %v7894 = vpack.c.b16 %v6334, %v6330
    %v7895 = vpack.c.b16 %v6335, %v6331
    %v7896 = vpack.c.b16 %v6336, %v6332
    %v7897 = vpack.c.b16 %v6341, %v6337
    %v7898 = vpack.c.b16 %v6342, %v6338
    %v7899 = vpack.c.b16 %v6343, %v6339
    %v7900 = vpack.c.b16 %v6344, %v6340
    %v7901 = vpack.c.b16 %v6349, %v6345
    %v7902 = vpack.c.b16 %v6350, %v6346
    %v7903 = vpack.c.b16 %v6351, %v6347
    %v7904 = vpack.c.b16 %v6352, %v6348
    %v7905 = vpack.c.b16 %v6357, %v6353
    %v7906 = vpack.c.b16 %v6358, %v6354
    %v7907 = vpack.c.b16 %v6359, %v6355
    %v7908 = vpack.c.b16 %v6360, %v6356
    %v7909 = vpack.c.b16 %v6365, %v6361
    %v7910 = vpack.c.b16 %v6366, %v6362
    %v7911 = vpack.c.b16 %v6367, %v6363
    %v7912 = vpack.c.b16 %v6368, %v6364
    %v7913 = vpack.c.b16 %v6373, %v6369
    %v7914 = vpack.c.b16 %v6374, %v6370
    %v7915 = vpack.c.b16 %v6375, %v6371
    %v7916 = vpack.c.b16 %v6376, %v6372
    %v7917 = vpack.c.b16 %v6381, %v6377
    %v7918 = vpack.c.b16 %v6382, %v6378
    %v7919 = vpack.c.b16 %v6383, %v6379
    %v7920 = vpack.c.b16 %v6384, %v6380
    %v7921 = vpack.c.b16 %v6389, %v6385
    %v7922 = vpack.c.b16 %v6390, %v6386
    %v7923 = vpack.c.b16 %v6391, %v6387
    %v7924 = vpack.c.b16 %v6392, %v6388
    %v7925 = vpack.c.b16 %v6397, %v6393
    %v7926 = vpack.c.b16 %v6398, %v6394
    %v7927 = vpack.c.b16 %v6399, %v6395
    %v7928 = vpack.c.b16 %v6400, %v6396
    %v7929 = vpack.c.b16 %v6405, %v6401
    %v7930 = vpack.c.b16 %v6406, %v6402
    %v7931 = vpack.c.b16 %v6407, %v6403
    %v7932 = vpack.c.b16 %v6408, %v6404
    %v7933 = vpack.c.b16 %v6413, %v6409
    %v7934 = vpack.c.b16 %v6414, %v6410
    %v7935 = vpack.c.b16 %v6415, %v6411
    %v7936 = vpack.c.b16 %v6416, %v6412
    %v7937 = vpack.c.b16 %v6421, %v6417
    %v7938 = vpack.c.b16 %v6422, %v6418
    %v7939 = vpack.c.b16 %v6423, %v6419
    %v7940 = vpack.c.b16 %v6424, %v6420
    %v7941 = vpack.c.b16 %v6429, %v6425
    %v7942 = vpack.c.b16 %v6430, %v6426
    %v7943 = vpack.c.b16 %v6431, %v6427
    %v7944 = vpack.c.b16 %v6432, %v6428
    %v7945 = vpack.c.b16 %v6437, %v6433
    %v7946 = vpack.c.b16 %v6438, %v6434
    %v7947 = vpack.c.b16 %v6439, %v6435
    %v7948 = vpack.c.b16 %v6440, %v6436
    %v7949 = vpack.c.b16 %v6445, %v6441
    %v7950 = vpack.c.b16 %v6446, %v6442
    %v7951 = vpack.c.b16 %v6447, %v6443
    %v7952 = vpack.c.b16 %v6448, %v6444
    %9457 = vmatprep.subr.bf16.mxu0 %v6450
    %9458 = vmatpush1.bf16.msra.mxu0 %v6449
    %9459 = vmatprep.subr.bf16.mxu0 %v6454
    %9460 = vmatpush1.bf16.msra.mxu0 %v6453
    %9461 = vmatprep.subr.bf16.mxu0 %v6458
    %9462 = vmatpush1.bf16.msra.mxu0 %v6457
    %9463 = vmatprep.subr.bf16.mxu0 %v6462
    %9464 = vmatpush1.bf16.msra.mxu0 %v6461
    %9465 = vmatprep.subr.bf16.mxu0 %v6466
    %9466 = vmatpush1.bf16.msra.mxu0 %v6465
    %9467 = vmatprep.subr.bf16.mxu0 %v6470
    %9468 = vmatpush1.bf16.msra.mxu0 %v6469
    %9469 = vmatprep.subr.bf16.mxu0 %v6474
    %9470 = vmatpush1.bf16.msra.mxu0 %v6473
    %9471 = vmatprep.subr.bf16.mxu0 %v6478
    %9472 = vmatpush1.bf16.msra.mxu0 %v6477
    %9473 = vmatprep.subr.bf16.mxu0 %v6482
    %9474 = vmatpush1.bf16.msra.mxu0 %v6481
    %9475 = vmatprep.subr.bf16.mxu0 %v6486
    %9476 = vmatpush1.bf16.msra.mxu0 %v6485
    %9477 = vmatprep.subr.bf16.mxu0 %v6490
    %9478 = vmatpush1.bf16.msra.mxu0 %v6489
    %9479 = vmatprep.subr.bf16.mxu0 %v6494
    %9480 = vmatpush1.bf16.msra.mxu0 %v6493
    %9481 = vmatprep.subr.bf16.mxu0 %v6498
    %9482 = vmatpush1.bf16.msra.mxu0 %v6497
    %9483 = vmatprep.subr.bf16.mxu0 %v6502
    %9484 = vmatpush1.bf16.msra.mxu0 %v6501
    %9485 = vmatprep.subr.bf16.mxu0 %v6506
    %9486 = vmatpush1.bf16.msra.mxu0 %v6505
    %9487 = vmatprep.subr.bf16.mxu0 %v6510
    %9488 = vmatpush1.bf16.msra.mxu0 %v6509
    %9489 = vmatprep.mubr.bf16.mxu0 %v1634
    %9490 = vmatmul.mubr.bf16.gmra.mrb[0].mxu0 %v1620
    %v9491 = vpop.f32.mrb[0].mxu0
    %v9492 = vadd.f32 %v1574, %v9491
    %v9493 = vpop.f32.mrb[0].mxu0
    %v9494 = vadd.f32 %v1578, %v9493
    %v9495 = vpop.f32.mrb[0].mxu0
    %v9496 = vpop.f32.mrb[0].mxu0
    %9497 = vdwg.mxu0
    %9498 = vmatprep.subr.bf16.mxu0 %v6514
    %9499 = vmatpush1.bf16.msra.mxu0 %v6513
    %9500 = vmatprep.subr.bf16.mxu0 %v6518
    %9501 = vmatpush1.bf16.msra.mxu0 %v6517
    %9502 = vmatprep.subr.bf16.mxu0 %v6522
    %9503 = vmatpush1.bf16.msra.mxu0 %v6521
    %9504 = vmatprep.subr.bf16.mxu0 %v6526
    %9505 = vmatpush1.bf16.msra.mxu0 %v6525
    %9506 = vmatprep.subr.bf16.mxu0 %v6530
    %9507 = vmatpush1.bf16.msra.mxu0 %v6529
    %9508 = vmatprep.subr.bf16.mxu0 %v6534
    %9509 = vmatpush1.bf16.msra.mxu0 %v6533
    %9510 = vmatprep.subr.bf16.mxu0 %v6538
    %9511 = vmatpush1.bf16.msra.mxu0 %v6537
    %9512 = vmatprep.subr.bf16.mxu0 %v6542
    %9513 = vmatpush1.bf16.msra.mxu0 %v6541
    %9514 = vmatprep.subr.bf16.mxu0 %v6546
    %9515 = vmatpush1.bf16.msra.mxu0 %v6545
    %9516 = vmatprep.subr.bf16.mxu0 %v6550
    %9517 = vmatpush1.bf16.msra.mxu0 %v6549
    %9518 = vmatprep.subr.bf16.mxu0 %v6554
    %9519 = vmatpush1.bf16.msra.mxu0 %v6553
    %9520 = vmatprep.subr.bf16.mxu0 %v6558
    %9521 = vmatpush1.bf16.msra.mxu0 %v6557
    %9522 = vmatprep.subr.bf16.mxu0 %v6562
    %9523 = vmatpush1.bf16.msra.mxu0 %v6561
    %9524 = vmatprep.subr.bf16.mxu0 %v6566
    %9525 = vmatpush1.bf16.msra.mxu0 %v6565
    %9526 = vmatprep.subr.bf16.mxu0 %v6570
    %9527 = vmatpush1.bf16.msra.mxu0 %v6569
    %9528 = vmatprep.subr.bf16.mxu0 %v6574
    %9529 = vmatpush1.bf16.msra.mxu0 %v6573
    %9530 = vmatprep.mubr.bf16.mxu0 %v1644
    %9531 = vmatmul.mubr.bf16.gmra.mrb[0].mxu0 %v1642
    %v9532 = vpop.f32.mrb[0].mxu0
    %v9533 = vadd.f32 %v9492, %v9532
    %v9534 = vpop.f32.mrb[0].mxu0
    %v9535 = vadd.f32 %v9494, %v9534
    %v9536 = vpop.f32.mrb[0].mxu0
    %v9537 = vpop.f32.mrb[0].mxu0
    %9538 = vdwg.mxu0
    %9539 = vmatprep.subr.bf16.mxu0 %v6578
    %9540 = vmatpush1.bf16.msra.mxu0 %v6577
    %9541 = vmatprep.subr.bf16.mxu0 %v6582
    %9542 = vmatpush1.bf16.msra.mxu0 %v6581
    %9543 = vmatprep.subr.bf16.mxu0 %v6586
    %9544 = vmatpush1.bf16.msra.mxu0 %v6585
    %9545 = vmatprep.subr.bf16.mxu0 %v6590
    %9546 = vmatpush1.bf16.msra.mxu0 %v6589
    %9547 = vmatprep.subr.bf16.mxu0 %v6594
    %9548 = vmatpush1.bf16.msra.mxu0 %v6593
    %9549 = vmatprep.subr.bf16.mxu0 %v6598
    %9550 = vmatpush1.bf16.msra.mxu0 %v6597
    %9551 = vmatprep.subr.bf16.mxu0 %v6602
    %9552 = vmatpush1.bf16.msra.mxu0 %v6601
    %9553 = vmatprep.subr.bf16.mxu0 %v6606
    %9554 = vmatpush1.bf16.msra.mxu0 %v6605
    %9555 = vmatprep.subr.bf16.mxu0 %v6610
    %9556 = vmatpush1.bf16.msra.mxu0 %v6609
    %9557 = vmatprep.subr.bf16.mxu0 %v6614
    %9558 = vmatpush1.bf16.msra.mxu0 %v6613
    %9559 = vmatprep.subr.bf16.mxu0 %v6618
    %9560 = vmatpush1.bf16.msra.mxu0 %v6617
    %9561 = vmatprep.subr.bf16.mxu0 %v6622
    %9562 = vmatpush1.bf16.msra.mxu0 %v6621
    %9563 = vmatprep.subr.bf16.mxu0 %v6626
    %9564 = vmatpush1.bf16.msra.mxu0 %v6625
    %9565 = vmatprep.subr.bf16.mxu0 %v6630
    %9566 = vmatpush1.bf16.msra.mxu0 %v6629
    %9567 = vmatprep.subr.bf16.mxu0 %v6634
    %9568 = vmatpush1.bf16.msra.mxu0 %v6633
    %9569 = vmatprep.subr.bf16.mxu0 %v6638
    %9570 = vmatpush1.bf16.msra.mxu0 %v6637
    %9571 = vmatprep.mubr.bf16.mxu0 %v1641
    %9572 = vmatmul.mubr.bf16.gmra.mrb[0].mxu0 %v1627
    %v9573 = vpop.f32.mrb[0].mxu0
    %v9574 = vadd.f32 %v9533, %v9573
    %v9575 = vpop.f32.mrb[0].mxu0
    %v9576 = vadd.f32 %v9535, %v9575
    %v9577 = vpop.f32.mrb[0].mxu0
    %v9578 = vpop.f32.mrb[0].mxu0
    %9579 = vdwg.mxu0
    %9580 = vmatprep.subr.bf16.mxu0 %v6642
    %9581 = vmatpush1.bf16.msra.mxu0 %v6641
    %9582 = vmatprep.subr.bf16.mxu0 %v6646
    %9583 = vmatpush1.bf16.msra.mxu0 %v6645
    %9584 = vmatprep.subr.bf16.mxu0 %v6650
    %9585 = vmatpush1.bf16.msra.mxu0 %v6649
    %9586 = vmatprep.subr.bf16.mxu0 %v6654
    %9587 = vmatpush1.bf16.msra.mxu0 %v6653
    %9588 = vmatprep.subr.bf16.mxu0 %v6658
    %9589 = vmatpush1.bf16.msra.mxu0 %v6657
    %9590 = vmatprep.subr.bf16.mxu0 %v6662
    %9591 = vmatpush1.bf16.msra.mxu0 %v6661
    %9592 = vmatprep.subr.bf16.mxu0 %v6666
    %9593 = vmatpush1.bf16.msra.mxu0 %v6665
    %9594 = vmatprep.subr.bf16.mxu0 %v6670
    %9595 = vmatpush1.bf16.msra.mxu0 %v6669
    %9596 = vmatprep.subr.bf16.mxu0 %v6674
    %9597 = vmatpush1.bf16.msra.mxu0 %v6673
    %9598 = vmatprep.subr.bf16.mxu0 %v6678
    %9599 = vmatpush1.bf16.msra.mxu0 %v6677
    %9600 = vmatprep.subr.bf16.mxu0 %v6682
    %9601 = vmatpush1.bf16.msra.mxu0 %v6681
    %9602 = vmatprep.subr.bf16.mxu0 %v6686
    %9603 = vmatpush1.bf16.msra.mxu0 %v6685
    %9604 = vmatprep.subr.bf16.mxu0 %v6690
    %9605 = vmatpush1.bf16.msra.mxu0 %v6689
    %9606 = vmatprep.subr.bf16.mxu0 %v6694
    %9607 = vmatpush1.bf16.msra.mxu0 %v6693
    %9608 = vmatprep.subr.bf16.mxu0 %v6698
    %9609 = vmatpush1.bf16.msra.mxu0 %v6697
    %9610 = vmatprep.subr.bf16.mxu0 %v6702
    %9611 = vmatpush1.bf16.msra.mxu0 %v6701
    %9612 = vmatprep.mubr.bf16.mxu0 %v1645
    %9613 = vmatmul.mubr.bf16.gmra.mrb[0].mxu0 %v1643
    %v9614 = vpop.f32.mrb[0].mxu0
    %v9615 = vadd.f32 %v9574, %v9614
    %v9616 = vpop.f32.mrb[0].mxu0
    %v9617 = vadd.f32 %v9576, %v9616
    %v9618 = vpop.f32.mrb[0].mxu0
    %v9619 = vpop.f32.mrb[0].mxu0
    %9620 = vdwg.mxu0
    %9621 = vmatprep.subr.bf16.mxu0 %v6706
    %9622 = vmatpush1.bf16.msra.mxu0 %v6705
    %9623 = vmatprep.subr.bf16.mxu0 %v6710
    %9624 = vmatpush1.bf16.msra.mxu0 %v6709
    %9625 = vmatprep.subr.bf16.mxu0 %v6714
    %9626 = vmatpush1.bf16.msra.mxu0 %v6713
    %9627 = vmatprep.subr.bf16.mxu0 %v6718
    %9628 = vmatpush1.bf16.msra.mxu0 %v6717
    %9629 = vmatprep.subr.bf16.mxu0 %v6722
    %9630 = vmatpush1.bf16.msra.mxu0 %v6721
    %9631 = vmatprep.subr.bf16.mxu0 %v6726
    %9632 = vmatpush1.bf16.msra.mxu0 %v6725
    %9633 = vmatprep.subr.bf16.mxu0 %v6730
    %9634 = vmatpush1.bf16.msra.mxu0 %v6729
    %9635 = vmatprep.subr.bf16.mxu0 %v6734
    %9636 = vmatpush1.bf16.msra.mxu0 %v6733
    %9637 = vmatprep.subr.bf16.mxu0 %v6738
    %9638 = vmatpush1.bf16.msra.mxu0 %v6737
    %9639 = vmatprep.subr.bf16.mxu0 %v6742
    %9640 = vmatpush1.bf16.msra.mxu0 %v6741
    %9641 = vmatprep.subr.bf16.mxu0 %v6746
    %9642 = vmatpush1.bf16.msra.mxu0 %v6745
    %9643 = vmatprep.subr.bf16.mxu0 %v6750
    %9644 = vmatpush1.bf16.msra.mxu0 %v6749
    %9645 = vmatprep.subr.bf16.mxu0 %v6754
    %9646 = vmatpush1.bf16.msra.mxu0 %v6753
    %9647 = vmatprep.subr.bf16.mxu0 %v6758
    %9648 = vmatpush1.bf16.msra.mxu0 %v6757
    %9649 = vmatprep.subr.bf16.mxu0 %v6762
    %9650 = vmatpush1.bf16.msra.mxu0 %v6761
    %9651 = vmatprep.subr.bf16.mxu0 %v6766
    %9652 = vmatpush1.bf16.msra.mxu0 %v6765
    %9653 = vmatprep.mubr.bf16.mxu0 %v1683
    %9654 = vmatmul.mubr.bf16.gmra.mrb[0].mxu0 %v1669
    %v9655 = vpop.f32.mrb[0].mxu0
    %v9656 = vadd.f32 %v9615, %v9655
    %v9657 = vpop.f32.mrb[0].mxu0
    %v9658 = vadd.f32 %v9617, %v9657
    %v9659 = vpop.f32.mrb[0].mxu0
    %v9660 = vpop.f32.mrb[0].mxu0
    %9661 = vdwg.mxu0
    %9662 = vmatprep.subr.bf16.mxu0 %v6770
    %9663 = vmatpush1.bf16.msra.mxu0 %v6769
    %9664 = vmatprep.subr.bf16.mxu0 %v6774
    %9665 = vmatpush1.bf16.msra.mxu0 %v6773
    %9666 = vmatprep.subr.bf16.mxu0 %v6778
    %9667 = vmatpush1.bf16.msra.mxu0 %v6777
    %9668 = vmatprep.subr.bf16.mxu0 %v6782
    %9669 = vmatpush1.bf16.msra.mxu0 %v6781
    %9670 = vmatprep.subr.bf16.mxu0 %v6786
    %9671 = vmatpush1.bf16.msra.mxu0 %v6785
    %9672 = vmatprep.subr.bf16.mxu0 %v6790
    %9673 = vmatpush1.bf16.msra.mxu0 %v6789
    %9674 = vmatprep.subr.bf16.mxu0 %v6794
    %9675 = vmatpush1.bf16.msra.mxu0 %v6793
    %9676 = vmatprep.subr.bf16.mxu0 %v6798
    %9677 = vmatpush1.bf16.msra.mxu0 %v6797
    %9678 = vmatprep.subr.bf16.mxu0 %v6802
    %9679 = vmatpush1.bf16.msra.mxu0 %v6801
    %9680 = vmatprep.subr.bf16.mxu0 %v6806
    %9681 = vmatpush1.bf16.msra.mxu0 %v6805
    %9682 = vmatprep.subr.bf16.mxu0 %v6810
    %9683 = vmatpush1.bf16.msra.mxu0 %v6809
    %9684 = vmatprep.subr.bf16.mxu0 %v6814
    %9685 = vmatpush1.bf16.msra.mxu0 %v6813
    %9686 = vmatprep.subr.bf16.mxu0 %v6818
    %9687 = vmatpush1.bf16.msra.mxu0 %v6817
    %9688 = vmatprep.subr.bf16.mxu0 %v6822
    %9689 = vmatpush1.bf16.msra.mxu0 %v6821
    %9690 = vmatprep.subr.bf16.mxu0 %v6826
    %9691 = vmatpush1.bf16.msra.mxu0 %v6825
    %9692 = vmatprep.subr.bf16.mxu0 %v6830
    %9693 = vmatpush1.bf16.msra.mxu0 %v6829
    %9694 = vmatprep.mubr.bf16.mxu0 %v1693
    %9695 = vmatmul.mubr.bf16.gmra.mrb[0].mxu0 %v1691
    %v9696 = vpop.f32.mrb[0].mxu0
    %v9697 = vadd.f32 %v9656, %v9696
    %v9698 = vpop.f32.mrb[0].mxu0
    %v9699 = vadd.f32 %v9658, %v9698
    %v9700 = vpop.f32.mrb[0].mxu0
    %v9701 = vpop.f32.mrb[0].mxu0
    %9702 = vdwg.mxu0
    %9703 = vmatprep.subr.bf16.mxu0 %v6834
    %9704 = vmatpush1.bf16.msra.mxu0 %v6833
    %9705 = vmatprep.subr.bf16.mxu0 %v6838
    %9706 = vmatpush1.bf16.msra.mxu0 %v6837
    %9707 = vmatprep.subr.bf16.mxu0 %v6842
    %9708 = vmatpush1.bf16.msra.mxu0 %v6841
    %9709 = vmatprep.subr.bf16.mxu0 %v6846
    %9710 = vmatpush1.bf16.msra.mxu0 %v6845
    %9711 = vmatprep.subr.bf16.mxu0 %v6850
    %9712 = vmatpush1.bf16.msra.mxu0 %v6849
    %9713 = vmatprep.subr.bf16.mxu0 %v6854
    %9714 = vmatpush1.bf16.msra.mxu0 %v6853
    %9715 = vmatprep.subr.bf16.mxu0 %v6858
    %9716 = vmatpush1.bf16.msra.mxu0 %v6857
    %9717 = vmatprep.subr.bf16.mxu0 %v6862
    %9718 = vmatpush1.bf16.msra.mxu0 %v6861
    %9719 = vmatprep.subr.bf16.mxu0 %v6866
    %9720 = vmatpush1.bf16.msra.mxu0 %v6865
    %9721 = vmatprep.subr.bf16.mxu0 %v6870
    %9722 = vmatpush1.bf16.msra.mxu0 %v6869
    %9723 = vmatprep.subr.bf16.mxu0 %v6874
    %9724 = vmatpush1.bf16.msra.mxu0 %v6873
    %9725 = vmatprep.subr.bf16.mxu0 %v6878
    %9726 = vmatpush1.bf16.msra.mxu0 %v6877
    %9727 = vmatprep.subr.bf16.mxu0 %v6882
    %9728 = vmatpush1.bf16.msra.mxu0 %v6881
    %9729 = vmatprep.subr.bf16.mxu0 %v6886
    %9730 = vmatpush1.bf16.msra.mxu0 %v6885
    %9731 = vmatprep.subr.bf16.mxu0 %v6890
    %9732 = vmatpush1.bf16.msra.mxu0 %v6889
    %9733 = vmatprep.subr.bf16.mxu0 %v6894
    %9734 = vmatpush1.bf16.msra.mxu0 %v6893
    %9735 = vmatprep.mubr.bf16.mxu0 %v1690
    %9736 = vmatmul.mubr.bf16.gmra.mrb[0].mxu0 %v1676
    %v9737 = vpop.f32.mrb[0].mxu0
    %v9738 = vadd.f32 %v9697, %v9737
    %v9739 = vpop.f32.mrb[0].mxu0
    %v9740 = vadd.f32 %v9699, %v9739
    %v9741 = vpop.f32.mrb[0].mxu0
    %v9742 = vpop.f32.mrb[0].mxu0
    %9743 = vdwg.mxu0
    %9744 = vmatprep.subr.bf16.mxu0 %v6898
    %9745 = vmatpush1.bf16.msra.mxu0 %v6897
    %9746 = vmatprep.subr.bf16.mxu0 %v6902
    %9747 = vmatpush1.bf16.msra.mxu0 %v6901
    %9748 = vmatprep.subr.bf16.mxu0 %v6906
    %9749 = vmatpush1.bf16.msra.mxu0 %v6905
    %9750 = vmatprep.subr.bf16.mxu0 %v6910
    %9751 = vmatpush1.bf16.msra.mxu0 %v6909
    %9752 = vmatprep.subr.bf16.mxu0 %v6914
    %9753 = vmatpush1.bf16.msra.mxu0 %v6913
    %9754 = vmatprep.subr.bf16.mxu0 %v6918
    %9755 = vmatpush1.bf16.msra.mxu0 %v6917
    %9756 = vmatprep.subr.bf16.mxu0 %v6922
    %9757 = vmatpush1.bf16.msra.mxu0 %v6921
    %9758 = vmatprep.subr.bf16.mxu0 %v6926
    %9759 = vmatpush1.bf16.msra.mxu0 %v6925
    %9760 = vmatprep.subr.bf16.mxu0 %v6930
    %9761 = vmatpush1.bf16.msra.mxu0 %v6929
    %9762 = vmatprep.subr.bf16.mxu0 %v6934
    %9763 = vmatpush1.bf16.msra.mxu0 %v6933
    %9764 = vmatprep.subr.bf16.mxu0 %v6938
    %9765 = vmatpush1.bf16.msra.mxu0 %v6937
    %9766 = vmatprep.subr.bf16.mxu0 %v6942
    %9767 = vmatpush1.bf16.msra.mxu0 %v6941
    %9768 = vmatprep.subr.bf16.mxu0 %v6946
    %9769 = vmatpush1.bf16.msra.mxu0 %v6945
    %9770 = vmatprep.subr.bf16.mxu0 %v6950
    %9771 = vmatpush1.bf16.msra.mxu0 %v6949
    %9772 = vmatprep.subr.bf16.mxu0 %v6954
    %9773 = vmatpush1.bf16.msra.mxu0 %v6953
    %9774 = vmatprep.subr.bf16.mxu0 %v6958
    %9775 = vmatpush1.bf16.msra.mxu0 %v6957
    %9776 = vmatprep.mubr.bf16.mxu0 %v1694
    %9777 = vmatmul.mubr.bf16.gmra.mrb[0].mxu0 %v1692
    %v9778 = vpop.f32.mrb[0].mxu0
    %v9779 = vadd.f32 %v9738, %v9778
    %v9780 = vpop.f32.mrb[0].mxu0
    %v9781 = vadd.f32 %v9740, %v9780
    %v9782 = vpop.f32.mrb[0].mxu0
    %v9783 = vpop.f32.mrb[0].mxu0
    %9784 = vdwg.mxu0
    %9785 = vmatprep.subr.bf16.mxu0 %v6962
    %9786 = vmatpush1.bf16.msra.mxu0 %v6961
    %9787 = vmatprep.subr.bf16.mxu0 %v6966
    %9788 = vmatpush1.bf16.msra.mxu0 %v6965
    %9789 = vmatprep.subr.bf16.mxu0 %v6970
    %9790 = vmatpush1.bf16.msra.mxu0 %v6969
    %9791 = vmatprep.subr.bf16.mxu0 %v6974
    %9792 = vmatpush1.bf16.msra.mxu0 %v6973
    %9793 = vmatprep.subr.bf16.mxu0 %v6978
    %9794 = vmatpush1.bf16.msra.mxu0 %v6977
    %9795 = vmatprep.subr.bf16.mxu0 %v6982
    %9796 = vmatpush1.bf16.msra.mxu0 %v6981
    %9797 = vmatprep.subr.bf16.mxu0 %v6986
    %9798 = vmatpush1.bf16.msra.mxu0 %v6985
    %9799 = vmatprep.subr.bf16.mxu0 %v6990
    %9800 = vmatpush1.bf16.msra.mxu0 %v6989
    %9801 = vmatprep.subr.bf16.mxu0 %v6994
    %9802 = vmatpush1.bf16.msra.mxu0 %v6993
    %9803 = vmatprep.subr.bf16.mxu0 %v6998
    %9804 = vmatpush1.bf16.msra.mxu0 %v6997
    %9805 = vmatprep.subr.bf16.mxu0 %v7002
    %9806 = vmatpush1.bf16.msra.mxu0 %v7001
    %9807 = vmatprep.subr.bf16.mxu0 %v7006
    %9808 = vmatpush1.bf16.msra.mxu0 %v7005
    %9809 = vmatprep.subr.bf16.mxu0 %v7010
    %9810 = vmatpush1.bf16.msra.mxu0 %v7009
    %9811 = vmatprep.subr.bf16.mxu0 %v7014
    %9812 = vmatpush1.bf16.msra.mxu0 %v7013
    %9813 = vmatprep.subr.bf16.mxu0 %v7018
    %9814 = vmatpush1.bf16.msra.mxu0 %v7017
    %9815 = vmatprep.subr.bf16.mxu0 %v7022
    %9816 = vmatpush1.bf16.msra.mxu0 %v7021
    %9817 = vmatprep.mubr.bf16.mxu0 %v1732
    %9818 = vmatmul.mubr.bf16.gmra.mrb[0].mxu0 %v1718
    %v9819 = vpop.f32.mrb[0].mxu0
    %v9820 = vadd.f32 %v9779, %v9819
    %v9821 = vpop.f32.mrb[0].mxu0
    %v9822 = vadd.f32 %v9781, %v9821
    %v9823 = vpop.f32.mrb[0].mxu0
    %v9824 = vpop.f32.mrb[0].mxu0
    %9825 = vdwg.mxu0
    %9826 = vmatprep.subr.bf16.mxu0 %v7026
    %9827 = vmatpush1.bf16.msra.mxu0 %v7025
    %9828 = vmatprep.subr.bf16.mxu0 %v7030
    %9829 = vmatpush1.bf16.msra.mxu0 %v7029
    %9830 = vmatprep.subr.bf16.mxu0 %v7034
    %9831 = vmatpush1.bf16.msra.mxu0 %v7033
    %9832 = vmatprep.subr.bf16.mxu0 %v7038
    %9833 = vmatpush1.bf16.msra.mxu0 %v7037
    %9834 = vmatprep.subr.bf16.mxu0 %v7042
    %9835 = vmatpush1.bf16.msra.mxu0 %v7041
    %9836 = vmatprep.subr.bf16.mxu0 %v7046
    %9837 = vmatpush1.bf16.msra.mxu0 %v7045
    %9838 = vmatprep.subr.bf16.mxu0 %v7050
    %9839 = vmatpush1.bf16.msra.mxu0 %v7049
    %9840 = vmatprep.subr.bf16.mxu0 %v7054
    %9841 = vmatpush1.bf16.msra.mxu0 %v7053
    %9842 = vmatprep.subr.bf16.mxu0 %v7058
    %9843 = vmatpush1.bf16.msra.mxu0 %v7057
    %9844 = vmatprep.subr.bf16.mxu0 %v7062
    %9845 = vmatpush1.bf16.msra.mxu0 %v7061
    %9846 = vmatprep.subr.bf16.mxu0 %v7066
    %9847 = vmatpush1.bf16.msra.mxu0 %v7065
    %9848 = vmatprep.subr.bf16.mxu0 %v7070
    %9849 = vmatpush1.bf16.msra.mxu0 %v7069
    %9850 = vmatprep.subr.bf16.mxu0 %v7074
    %9851 = vmatpush1.bf16.msra.mxu0 %v7073
    %9852 = vmatprep.subr.bf16.mxu0 %v7078
    %9853 = vmatpush1.bf16.msra.mxu0 %v7077
    %9854 = vmatprep.subr.bf16.mxu0 %v7082
    %9855 = vmatpush1.bf16.msra.mxu0 %v7081
    %9856 = vmatprep.subr.bf16.mxu0 %v7086
    %9857 = vmatpush1.bf16.msra.mxu0 %v7085
    %9858 = vmatprep.mubr.bf16.mxu0 %v1742
    %9859 = vmatmul.mubr.bf16.gmra.mrb[0].mxu0 %v1740
    %v9860 = vpop.f32.mrb[0].mxu0
    %v9861 = vadd.f32 %v9820, %v9860
    %v9862 = vpop.f32.mrb[0].mxu0
    %v9863 = vadd.f32 %v9822, %v9862
    %v9864 = vpop.f32.mrb[0].mxu0
    %v9865 = vpop.f32.mrb[0].mxu0
    %9866 = vdwg.mxu0
    %9867 = vmatprep.subr.bf16.mxu0 %v7090
    %9868 = vmatpush1.bf16.msra.mxu0 %v7089
    %9869 = vmatprep.subr.bf16.mxu0 %v7094
    %9870 = vmatpush1.bf16.msra.mxu0 %v7093
    %9871 = vmatprep.subr.bf16.mxu0 %v7098
    %9872 = vmatpush1.bf16.msra.mxu0 %v7097
    %9873 = vmatprep.subr.bf16.mxu0 %v7102
    %9874 = vmatpush1.bf16.msra.mxu0 %v7101
    %9875 = vmatprep.subr.bf16.mxu0 %v7106
    %9876 = vmatpush1.bf16.msra.mxu0 %v7105
    %9877 = vmatprep.subr.bf16.mxu0 %v7110
    %9878 = vmatpush1.bf16.msra.mxu0 %v7109
    %9879 = vmatprep.subr.bf16.mxu0 %v7114
    %9880 = vmatpush1.bf16.msra.mxu0 %v7113
    %9881 = vmatprep.subr.bf16.mxu0 %v7118
    %9882 = vmatpush1.bf16.msra.mxu0 %v7117
    %9883 = vmatprep.subr.bf16.mxu0 %v7122
    %9884 = vmatpush1.bf16.msra.mxu0 %v7121
    %9885 = vmatprep.subr.bf16.mxu0 %v7126
    %9886 = vmatpush1.bf16.msra.mxu0 %v7125
    %9887 = vmatprep.subr.bf16.mxu0 %v7130
    %9888 = vmatpush1.bf16.msra.mxu0 %v7129
    %9889 = vmatprep.subr.bf16.mxu0 %v7134
    %9890 = vmatpush1.bf16.msra.mxu0 %v7133
    %9891 = vmatprep.subr.bf16.mxu0 %v7138
    %9892 = vmatpush1.bf16.msra.mxu0 %v7137
    %9893 = vmatprep.subr.bf16.mxu0 %v7142
    %9894 = vmatpush1.bf16.msra.mxu0 %v7141
    %9895 = vmatprep.subr.bf16.mxu0 %v7146
    %9896 = vmatpush1.bf16.msra.mxu0 %v7145
    %9897 = vmatprep.subr.bf16.mxu0 %v7150
    %9898 = vmatpush1.bf16.msra.mxu0 %v7149
    %9899 = vmatprep.mubr.bf16.mxu0 %v1739
    %9900 = vmatmul.mubr.bf16.gmra.mrb[0].mxu0 %v1725
    %v9901 = vpop.f32.mrb[0].mxu0
    %v9902 = vadd.f32 %v9861, %v9901
    %v9903 = vpop.f32.mrb[0].mxu0
    %v9904 = vadd.f32 %v9863, %v9903
    %v9905 = vpop.f32.mrb[0].mxu0
    %v9906 = vpop.f32.mrb[0].mxu0
    %9907 = vdwg.mxu0
    %9908 = vmatprep.subr.bf16.mxu0 %v7154
    %9909 = vmatpush1.bf16.msra.mxu0 %v7153
    %9910 = vmatprep.subr.bf16.mxu0 %v7158
    %9911 = vmatpush1.bf16.msra.mxu0 %v7157
    %9912 = vmatprep.subr.bf16.mxu0 %v7162
    %9913 = vmatpush1.bf16.msra.mxu0 %v7161
    %9914 = vmatprep.subr.bf16.mxu0 %v7166
    %9915 = vmatpush1.bf16.msra.mxu0 %v7165
    %9916 = vmatprep.subr.bf16.mxu0 %v7170
    %9917 = vmatpush1.bf16.msra.mxu0 %v7169
    %9918 = vmatprep.subr.bf16.mxu0 %v7174
    %9919 = vmatpush1.bf16.msra.mxu0 %v7173
    %9920 = vmatprep.subr.bf16.mxu0 %v7178
    %9921 = vmatpush1.bf16.msra.mxu0 %v7177
    %9922 = vmatprep.subr.bf16.mxu0 %v7182
    %9923 = vmatpush1.bf16.msra.mxu0 %v7181
    %9924 = vmatprep.subr.bf16.mxu0 %v7186
    %9925 = vmatpush1.bf16.msra.mxu0 %v7185
    %9926 = vmatprep.subr.bf16.mxu0 %v7190
    %9927 = vmatpush1.bf16.msra.mxu0 %v7189
    %9928 = vmatprep.subr.bf16.mxu0 %v7194
    %9929 = vmatpush1.bf16.msra.mxu0 %v7193
    %9930 = vmatprep.subr.bf16.mxu0 %v7198
    %9931 = vmatpush1.bf16.msra.mxu0 %v7197
    %9932 = vmatprep.subr.bf16.mxu0 %v7202
    %9933 = vmatpush1.bf16.msra.mxu0 %v7201
    %9934 = vmatprep.subr.bf16.mxu0 %v7206
    %9935 = vmatpush1.bf16.msra.mxu0 %v7205
    %9936 = vmatprep.subr.bf16.mxu0 %v7210
    %9937 = vmatpush1.bf16.msra.mxu0 %v7209
    %9938 = vmatprep.subr.bf16.mxu0 %v7214
    %9939 = vmatpush1.bf16.msra.mxu0 %v7213
    %9940 = vmatprep.mubr.bf16.mxu0 %v1743
    %9941 = vmatmul.mubr.bf16.gmra.mrb[0].mxu0 %v1741
    %v9942 = vpop.f32.mrb[0].mxu0
    %v9943 = vadd.f32 %v9902, %v9942
    %v9944 = vpop.f32.mrb[0].mxu0
    %v9945 = vadd.f32 %v9904, %v9944
    %v9946 = vpop.f32.mrb[0].mxu0
    %v9947 = vpop.f32.mrb[0].mxu0
    %9948 = vdwg.mxu0
    %9949 = vmatprep.subr.bf16.mxu0 %v7218
    %9950 = vmatpush1.bf16.msra.mxu0 %v7217
    %9951 = vmatprep.subr.bf16.mxu0 %v7222
    %9952 = vmatpush1.bf16.msra.mxu0 %v7221
    %9953 = vmatprep.subr.bf16.mxu0 %v7226
    %9954 = vmatpush1.bf16.msra.mxu0 %v7225
    %9955 = vmatprep.subr.bf16.mxu0 %v7230
    %9956 = vmatpush1.bf16.msra.mxu0 %v7229
    %9957 = vmatprep.subr.bf16.mxu0 %v7234
    %9958 = vmatpush1.bf16.msra.mxu0 %v7233
    %9959 = vmatprep.subr.bf16.mxu0 %v7238
    %9960 = vmatpush1.bf16.msra.mxu0 %v7237
    %9961 = vmatprep.subr.bf16.mxu0 %v7242
    %9962 = vmatpush1.bf16.msra.mxu0 %v7241
    %9963 = vmatprep.subr.bf16.mxu0 %v7246
    %9964 = vmatpush1.bf16.msra.mxu0 %v7245
    %9965 = vmatprep.subr.bf16.mxu0 %v7250
    %9966 = vmatpush1.bf16.msra.mxu0 %v7249
    %9967 = vmatprep.subr.bf16.mxu0 %v7254
    %9968 = vmatpush1.bf16.msra.mxu0 %v7253
    %9969 = vmatprep.subr.bf16.mxu0 %v7258
    %9970 = vmatpush1.bf16.msra.mxu0 %v7257
    %9971 = vmatprep.subr.bf16.mxu0 %v7262
    %9972 = vmatpush1.bf16.msra.mxu0 %v7261
    %9973 = vmatprep.subr.bf16.mxu0 %v7266
    %9974 = vmatpush1.bf16.msra.mxu0 %v7265
    %9975 = vmatprep.subr.bf16.mxu0 %v7270
    %9976 = vmatpush1.bf16.msra.mxu0 %v7269
    %9977 = vmatprep.subr.bf16.mxu0 %v7274
    %9978 = vmatpush1.bf16.msra.mxu0 %v7273
    %9979 = vmatprep.subr.bf16.mxu0 %v7278
    %9980 = vmatpush1.bf16.msra.mxu0 %v7277
    %9981 = vmatprep.mubr.bf16.mxu0 %v1781
    %9982 = vmatmul.mubr.bf16.gmra.mrb[0].mxu0 %v1767
    %v9983 = vpop.f32.mrb[0].mxu0
    %v9984 = vadd.f32 %v9943, %v9983
    %v9985 = vpop.f32.mrb[0].mxu0
    %v9986 = vadd.f32 %v9945, %v9985
    %v9987 = vpop.f32.mrb[0].mxu0
    %v9988 = vpop.f32.mrb[0].mxu0
    %9989 = vdwg.mxu0
    %9990 = vmatprep.subr.bf16.mxu0 %v7282
    %9991 = vmatpush1.bf16.msra.mxu0 %v7281
    %9992 = vmatprep.subr.bf16.mxu0 %v7286
    %9993 = vmatpush1.bf16.msra.mxu0 %v7285
    %9994 = vmatprep.subr.bf16.mxu0 %v7290
    %9995 = vmatpush1.bf16.msra.mxu0 %v7289
    %9996 = vmatprep.subr.bf16.mxu0 %v7294
    %9997 = vmatpush1.bf16.msra.mxu0 %v7293
    %9998 = vmatprep.subr.bf16.mxu0 %v7298
    %9999 = vmatpush1.bf16.msra.mxu0 %v7297
    %10000 = vmatprep.subr.bf16.mxu0 %v7302
    %10001 = vmatpush1.bf16.msra.mxu0 %v7301
    %10002 = vmatprep.subr.bf16.mxu0 %v7306
    %10003 = vmatpush1.bf16.msra.mxu0 %v7305
    %10004 = vmatprep.subr.bf16.mxu0 %v7310
    %10005 = vmatpush1.bf16.msra.mxu0 %v7309
    %10006 = vmatprep.subr.bf16.mxu0 %v7314
    %10007 = vmatpush1.bf16.msra.mxu0 %v7313
    %10008 = vmatprep.subr.bf16.mxu0 %v7318
    %10009 = vmatpush1.bf16.msra.mxu0 %v7317
    %10010 = vmatprep.subr.bf16.mxu0 %v7322
    %10011 = vmatpush1.bf16.msra.mxu0 %v7321
    %10012 = vmatprep.subr.bf16.mxu0 %v7326
    %10013 = vmatpush1.bf16.msra.mxu0 %v7325
    %10014 = vmatprep.subr.bf16.mxu0 %v7330
    %10015 = vmatpush1.bf16.msra.mxu0 %v7329
    %10016 = vmatprep.subr.bf16.mxu0 %v7334
    %10017 = vmatpush1.bf16.msra.mxu0 %v7333
    %10018 = vmatprep.subr.bf16.mxu0 %v7338
    %10019 = vmatpush1.bf16.msra.mxu0 %v7337
    %10020 = vmatprep.subr.bf16.mxu0 %v7342
    %10021 = vmatpush1.bf16.msra.mxu0 %v7341
    %10022 = vmatprep.mubr.bf16.mxu0 %v1791
    %10023 = vmatmul.mubr.bf16.gmra.mrb[0].mxu0 %v1789
    %v10024 = vpop.f32.mrb[0].mxu0
    %v10025 = vadd.f32 %v9984, %v10024
    %v10026 = vpop.f32.mrb[0].mxu0
    %v10027 = vadd.f32 %v9986, %v10026
    %v10028 = vpop.f32.mrb[0].mxu0
    %v10029 = vpop.f32.mrb[0].mxu0
    %10030 = vdwg.mxu0
    %10031 = vmatprep.subr.bf16.mxu0 %v7346
    %10032 = vmatpush1.bf16.msra.mxu0 %v7345
    %10033 = vmatprep.subr.bf16.mxu0 %v7350
    %10034 = vmatpush1.bf16.msra.mxu0 %v7349
    %10035 = vmatprep.subr.bf16.mxu0 %v7354
    %10036 = vmatpush1.bf16.msra.mxu0 %v7353
    %10037 = vmatprep.subr.bf16.mxu0 %v7358
    %10038 = vmatpush1.bf16.msra.mxu0 %v7357
    %10039 = vmatprep.subr.bf16.mxu0 %v7362
    %10040 = vmatpush1.bf16.msra.mxu0 %v7361
    %10041 = vmatprep.subr.bf16.mxu0 %v7366
    %10042 = vmatpush1.bf16.msra.mxu0 %v7365
    %10043 = vmatprep.subr.bf16.mxu0 %v7370
    %10044 = vmatpush1.bf16.msra.mxu0 %v7369
    %10045 = vmatprep.subr.bf16.mxu0 %v7374
    %10046 = vmatpush1.bf16.msra.mxu0 %v7373
    %10047 = vmatprep.subr.bf16.mxu0 %v7378
    %10048 = vmatpush1.bf16.msra.mxu0 %v7377
    %10049 = vmatprep.subr.bf16.mxu0 %v7382
    %10050 = vmatpush1.bf16.msra.mxu0 %v7381
    %10051 = vmatprep.subr.bf16.mxu0 %v7386
    %10052 = vmatpush1.bf16.msra.mxu0 %v7385
    %10053 = vmatprep.subr.bf16.mxu0 %v7390
    %10054 = vmatpush1.bf16.msra.mxu0 %v7389
    %10055 = vmatprep.subr.bf16.mxu0 %v7394
    %10056 = vmatpush1.bf16.msra.mxu0 %v7393
    %10057 = vmatprep.subr.bf16.mxu0 %v7398
    %10058 = vmatpush1.bf16.msra.mxu0 %v7397
    %10059 = vmatprep.subr.bf16.mxu0 %v7402
    %10060 = vmatpush1.bf16.msra.mxu0 %v7401
    %10061 = vmatprep.subr.bf16.mxu0 %v7406
    %10062 = vmatpush1.bf16.msra.mxu0 %v7405
    %10063 = vmatprep.mubr.bf16.mxu0 %v1788
    %10064 = vmatmul.mubr.bf16.gmra.mrb[0].mxu0 %v1774
    %v10065 = vpop.f32.mrb[0].mxu0
    %v10066 = vadd.f32 %v10025, %v10065
    %v10067 = vpop.f32.mrb[0].mxu0
    %v10068 = vadd.f32 %v10027, %v10067
    %v10069 = vpop.f32.mrb[0].mxu0
    %v10070 = vpop.f32.mrb[0].mxu0
    %10071 = vdwg.mxu0
    %10072 = vmatprep.subr.bf16.mxu0 %v7410
    %10073 = vmatpush1.bf16.msra.mxu0 %v7409
    %10074 = vmatprep.subr.bf16.mxu0 %v7414
    %10075 = vmatpush1.bf16.msra.mxu0 %v7413
    %10076 = vmatprep.subr.bf16.mxu0 %v7418
    %10077 = vmatpush1.bf16.msra.mxu0 %v7417
    %10078 = vmatprep.subr.bf16.mxu0 %v7422
    %10079 = vmatpush1.bf16.msra.mxu0 %v7421
    %10080 = vmatprep.subr.bf16.mxu0 %v7426
    %10081 = vmatpush1.bf16.msra.mxu0 %v7425
    %10082 = vmatprep.subr.bf16.mxu0 %v7430
    %10083 = vmatpush1.bf16.msra.mxu0 %v7429
    %10084 = vmatprep.subr.bf16.mxu0 %v7434
    %10085 = vmatpush1.bf16.msra.mxu0 %v7433
    %10086 = vmatprep.subr.bf16.mxu0 %v7438
    %10087 = vmatpush1.bf16.msra.mxu0 %v7437
    %10088 = vmatprep.subr.bf16.mxu0 %v7442
    %10089 = vmatpush1.bf16.msra.mxu0 %v7441
    %10090 = vmatprep.subr.bf16.mxu0 %v7446
    %10091 = vmatpush1.bf16.msra.mxu0 %v7445
    %10092 = vmatprep.subr.bf16.mxu0 %v7450
    %10093 = vmatpush1.bf16.msra.mxu0 %v7449
    %10094 = vmatprep.subr.bf16.mxu0 %v7454
    %10095 = vmatpush1.bf16.msra.mxu0 %v7453
    %10096 = vmatprep.subr.bf16.mxu0 %v7458
    %10097 = vmatpush1.bf16.msra.mxu0 %v7457
    %10098 = vmatprep.subr.bf16.mxu0 %v7462
    %10099 = vmatpush1.bf16.msra.mxu0 %v7461
    %10100 = vmatprep.subr.bf16.mxu0 %v7466
    %10101 = vmatpush1.bf16.msra.mxu0 %v7465
    %10102 = vmatprep.subr.bf16.mxu0 %v7470
    %10103 = vmatpush1.bf16.msra.mxu0 %v7469
    %10104 = vmatprep.mubr.bf16.mxu0 %v1792
    %10105 = vmatmul.mubr.bf16.gmra.mrb[0].mxu0 %v1790
    %v10106 = vpop.f32.mrb[0].mxu0
    %v10107 = vadd.f32 %v10066, %v10106
    %v10108 = vpop.f32.mrb[0].mxu0
    %v10109 = vadd.f32 %v10068, %v10108
    %v10110 = vpop.f32.mrb[0].mxu0
    %v10111 = vpop.f32.mrb[0].mxu0
    %10112 = vdwg.mxu0
    %10113 = vmatprep.subr.bf16.mxu0 %v7474
    %10114 = vmatpush1.bf16.msra.mxu0 %v7473
    %10115 = vmatprep.subr.bf16.mxu0 %v7478
    %10116 = vmatpush1.bf16.msra.mxu0 %v7477
    %10117 = vmatprep.subr.bf16.mxu0 %v7482
    %10118 = vmatpush1.bf16.msra.mxu0 %v7481
    %10119 = vmatprep.subr.bf16.mxu0 %v7486
    %10120 = vmatpush1.bf16.msra.mxu0 %v7485
    %10121 = vmatprep.subr.bf16.mxu0 %v7490
    %10122 = vmatpush1.bf16.msra.mxu0 %v7489
    %10123 = vmatprep.subr.bf16.mxu0 %v7494
    %10124 = vmatpush1.bf16.msra.mxu0 %v7493
    %10125 = vmatprep.subr.bf16.mxu0 %v7498
    %10126 = vmatpush1.bf16.msra.mxu0 %v7497
    %10127 = vmatprep.subr.bf16.mxu0 %v7502
    %10128 = vmatpush1.bf16.msra.mxu0 %v7501
    %10129 = vmatprep.subr.bf16.mxu0 %v7506
    %10130 = vmatpush1.bf16.msra.mxu0 %v7505
    %10131 = vmatprep.subr.bf16.mxu0 %v7510
    %10132 = vmatpush1.bf16.msra.mxu0 %v7509
    %10133 = vmatprep.subr.bf16.mxu0 %v7514
    %10134 = vmatpush1.bf16.msra.mxu0 %v7513
    %10135 = vmatprep.subr.bf16.mxu0 %v7518
    %10136 = vmatpush1.bf16.msra.mxu0 %v7517
    %10137 = vmatprep.subr.bf16.mxu0 %v7522
    %10138 = vmatpush1.bf16.msra.mxu0 %v7521
    %10139 = vmatprep.subr.bf16.mxu0 %v7526
    %10140 = vmatpush1.bf16.msra.mxu0 %v7525
    %10141 = vmatprep.subr.bf16.mxu0 %v7530
    %10142 = vmatpush1.bf16.msra.mxu0 %v7529
    %10143 = vmatprep.subr.bf16.mxu0 %v7534
    %10144 = vmatpush1.bf16.msra.mxu0 %v7533
    %10145 = vmatprep.mubr.bf16.mxu0 %v1830
    %10146 = vmatmul.mubr.bf16.gmra.mrb[0].mxu0 %v1816
    %v10147 = vpop.f32.mrb[0].mxu0
    %v10148 = vadd.f32 %v10107, %v10147
    %v10149 = vpop.f32.mrb[0].mxu0
    %v10150 = vadd.f32 %v10109, %v10149
    %v10151 = vpop.f32.mrb[0].mxu0
    %v10152 = vpop.f32.mrb[0].mxu0
    %10153 = vdwg.mxu0
    %10154 = vmatprep.subr.bf16.mxu0 %v7538
    %10155 = vmatpush1.bf16.msra.mxu0 %v7537
    %10156 = vmatprep.subr.bf16.mxu0 %v7542
    %10157 = vmatpush1.bf16.msra.mxu0 %v7541
    %10158 = vmatprep.subr.bf16.mxu0 %v7546
    %10159 = vmatpush1.bf16.msra.mxu0 %v7545
    %10160 = vmatprep.subr.bf16.mxu0 %v7550
    %10161 = vmatpush1.bf16.msra.mxu0 %v7549
    %10162 = vmatprep.subr.bf16.mxu0 %v7554
    %10163 = vmatpush1.bf16.msra.mxu0 %v7553
    %10164 = vmatprep.subr.bf16.mxu0 %v7558
    %10165 = vmatpush1.bf16.msra.mxu0 %v7557
    %10166 = vmatprep.subr.bf16.mxu0 %v7562
    %10167 = vmatpush1.bf16.msra.mxu0 %v7561
    %10168 = vmatprep.subr.bf16.mxu0 %v7566
    %10169 = vmatpush1.bf16.msra.mxu0 %v7565
    %10170 = vmatprep.subr.bf16.mxu0 %v7570
    %10171 = vmatpush1.bf16.msra.mxu0 %v7569
    %10172 = vmatprep.subr.bf16.mxu0 %v7574
    %10173 = vmatpush1.bf16.msra.mxu0 %v7573
    %10174 = vmatprep.subr.bf16.mxu0 %v7578
    %10175 = vmatpush1.bf16.msra.mxu0 %v7577
    %10176 = vmatprep.subr.bf16.mxu0 %v7582
    %10177 = vmatpush1.bf16.msra.mxu0 %v7581
    %10178 = vmatprep.subr.bf16.mxu0 %v7586
    %10179 = vmatpush1.bf16.msra.mxu0 %v7585
    %10180 = vmatprep.subr.bf16.mxu0 %v7590
    %10181 = vmatpush1.bf16.msra.mxu0 %v7589
    %10182 = vmatprep.subr.bf16.mxu0 %v7594
    %10183 = vmatpush1.bf16.msra.mxu0 %v7593
    %10184 = vmatprep.subr.bf16.mxu0 %v7598
    %10185 = vmatpush1.bf16.msra.mxu0 %v7597
    %10186 = vmatprep.mubr.bf16.mxu0 %v1840
    %10187 = vmatmul.mubr.bf16.gmra.mrb[0].mxu0 %v1838
    %v10188 = vpop.f32.mrb[0].mxu0
    %v10189 = vadd.f32 %v10148, %v10188
    %v10190 = vpop.f32.mrb[0].mxu0
    %v10191 = vadd.f32 %v10150, %v10190
    %v10192 = vpop.f32.mrb[0].mxu0
    %v10193 = vpop.f32.mrb[0].mxu0
    %10194 = vdwg.mxu0
    %10195 = vmatprep.subr.bf16.mxu0 %v7602
    %10196 = vmatpush1.bf16.msra.mxu0 %v7601
    %10197 = vmatprep.subr.bf16.mxu0 %v7606
    %10198 = vmatpush1.bf16.msra.mxu0 %v7605
    %10199 = vmatprep.subr.bf16.mxu0 %v7610
    %10200 = vmatpush1.bf16.msra.mxu0 %v7609
    %10201 = vmatprep.subr.bf16.mxu0 %v7614
    %10202 = vmatpush1.bf16.msra.mxu0 %v7613
    %10203 = vmatprep.subr.bf16.mxu0 %v7618
    %10204 = vmatpush1.bf16.msra.mxu0 %v7617
    %10205 = vmatprep.subr.bf16.mxu0 %v7622
    %10206 = vmatpush1.bf16.msra.mxu0 %v7621
    %10207 = vmatprep.subr.bf16.mxu0 %v7626
    %10208 = vmatpush1.bf16.msra.mxu0 %v7625
    %10209 = vmatprep.subr.bf16.mxu0 %v7630
    %10210 = vmatpush1.bf16.msra.mxu0 %v7629
    %10211 = vmatprep.subr.bf16.mxu0 %v7634
    %10212 = vmatpush1.bf16.msra.mxu0 %v7633
    %10213 = vmatprep.subr.bf16.mxu0 %v7638
    %10214 = vmatpush1.bf16.msra.mxu0 %v7637
    %10215 = vmatprep.subr.bf16.mxu0 %v7642
    %10216 = vmatpush1.bf16.msra.mxu0 %v7641
    %10217 = vmatprep.subr.bf16.mxu0 %v7646
    %10218 = vmatpush1.bf16.msra.mxu0 %v7645
    %10219 = vmatprep.subr.bf16.mxu0 %v7650
    %10220 = vmatpush1.bf16.msra.mxu0 %v7649
    %10221 = vmatprep.subr.bf16.mxu0 %v7654
    %10222 = vmatpush1.bf16.msra.mxu0 %v7653
    %10223 = vmatprep.subr.bf16.mxu0 %v7658
    %10224 = vmatpush1.bf16.msra.mxu0 %v7657
    %10225 = vmatprep.subr.bf16.mxu0 %v7662
    %10226 = vmatpush1.bf16.msra.mxu0 %v7661
    %10227 = vmatprep.mubr.bf16.mxu0 %v1837
    %10228 = vmatmul.mubr.bf16.gmra.mrb[0].mxu0 %v1823
    %v10229 = vpop.f32.mrb[0].mxu0
    %v10230 = vadd.f32 %v10189, %v10229
    %v10231 = vpop.f32.mrb[0].mxu0
    %v10232 = vadd.f32 %v10191, %v10231
    %v10233 = vpop.f32.mrb[0].mxu0
    %v10234 = vpop.f32.mrb[0].mxu0
    %10235 = vdwg.mxu0
    %10236 = vmatprep.subr.bf16.mxu0 %v7666
    %10237 = vmatpush1.bf16.msra.mxu0 %v7665
    %10238 = vmatprep.subr.bf16.mxu0 %v7670
    %10239 = vmatpush1.bf16.msra.mxu0 %v7669
    %10240 = vmatprep.subr.bf16.mxu0 %v7674
    %10241 = vmatpush1.bf16.msra.mxu0 %v7673
    %10242 = vmatprep.subr.bf16.mxu0 %v7678
    %10243 = vmatpush1.bf16.msra.mxu0 %v7677
    %10244 = vmatprep.subr.bf16.mxu0 %v7682
    %10245 = vmatpush1.bf16.msra.mxu0 %v7681
    %10246 = vmatprep.subr.bf16.mxu0 %v7686
    %10247 = vmatpush1.bf16.msra.mxu0 %v7685
    %10248 = vmatprep.subr.bf16.mxu0 %v7690
    %10249 = vmatpush1.bf16.msra.mxu0 %v7689
    %10250 = vmatprep.subr.bf16.mxu0 %v7694
    %10251 = vmatpush1.bf16.msra.mxu0 %v7693
    %10252 = vmatprep.subr.bf16.mxu0 %v7698
    %10253 = vmatpush1.bf16.msra.mxu0 %v7697
    %10254 = vmatprep.subr.bf16.mxu0 %v7702
    %10255 = vmatpush1.bf16.msra.mxu0 %v7701
    %10256 = vmatprep.subr.bf16.mxu0 %v7706
    %10257 = vmatpush1.bf16.msra.mxu0 %v7705
    %10258 = vmatprep.subr.bf16.mxu0 %v7710
    %10259 = vmatpush1.bf16.msra.mxu0 %v7709
    %10260 = vmatprep.subr.bf16.mxu0 %v7714
    %10261 = vmatpush1.bf16.msra.mxu0 %v7713
    %10262 = vmatprep.subr.bf16.mxu0 %v7718
    %10263 = vmatpush1.bf16.msra.mxu0 %v7717
    %10264 = vmatprep.subr.bf16.mxu0 %v7722
    %10265 = vmatpush1.bf16.msra.mxu0 %v7721
    %10266 = vmatprep.subr.bf16.mxu0 %v7726
    %10267 = vmatpush1.bf16.msra.mxu0 %v7725
    %10268 = vmatprep.mubr.bf16.mxu0 %v1841
    %10269 = vmatmul.mubr.bf16.gmra.mrb[0].mxu0 %v1839
    %v10270 = vpop.f32.mrb[0].mxu0
    %v10271 = vadd.f32 %v10230, %v10270
    %v10272 = vpop.f32.mrb[0].mxu0
    %v10273 = vadd.f32 %v10232, %v10272
    %v10274 = vpop.f32.mrb[0].mxu0
    %v10275 = vpop.f32.mrb[0].mxu0
    %10276 = vdwg.mxu0
    %10277 = vmatprep.subr.bf16.mxu0 %v7730
    %10278 = vmatpush1.bf16.msra.mxu0 %v7729
    %10279 = vmatprep.subr.bf16.mxu0 %v7734
    %10280 = vmatpush1.bf16.msra.mxu0 %v7733
    %10281 = vmatprep.subr.bf16.mxu0 %v7738
    %10282 = vmatpush1.bf16.msra.mxu0 %v7737
    %10283 = vmatprep.subr.bf16.mxu0 %v7742
    %10284 = vmatpush1.bf16.msra.mxu0 %v7741
    %10285 = vmatprep.subr.bf16.mxu0 %v7746
    %10286 = vmatpush1.bf16.msra.mxu0 %v7745
    %10287 = vmatprep.subr.bf16.mxu0 %v7750
    %10288 = vmatpush1.bf16.msra.mxu0 %v7749
    %10289 = vmatprep.subr.bf16.mxu0 %v7754
    %10290 = vmatpush1.bf16.msra.mxu0 %v7753
    %10291 = vmatprep.subr.bf16.mxu0 %v7758
    %10292 = vmatpush1.bf16.msra.mxu0 %v7757
    %10293 = vmatprep.subr.bf16.mxu0 %v7762
    %10294 = vmatpush1.bf16.msra.mxu0 %v7761
    %10295 = vmatprep.subr.bf16.mxu0 %v7766
    %10296 = vmatpush1.bf16.msra.mxu0 %v7765
    %10297 = vmatprep.subr.bf16.mxu0 %v7770
    %10298 = vmatpush1.bf16.msra.mxu0 %v7769
    %10299 = vmatprep.subr.bf16.mxu0 %v7774
    %10300 = vmatpush1.bf16.msra.mxu0 %v7773
    %10301 = vmatprep.subr.bf16.mxu0 %v7778
    %10302 = vmatpush1.bf16.msra.mxu0 %v7777
    %10303 = vmatprep.subr.bf16.mxu0 %v7782
    %10304 = vmatpush1.bf16.msra.mxu0 %v7781
    %10305 = vmatprep.subr.bf16.mxu0 %v7786
    %10306 = vmatpush1.bf16.msra.mxu0 %v7785
    %10307 = vmatprep.subr.bf16.mxu0 %v7790
    %10308 = vmatpush1.bf16.msra.mxu0 %v7789
    %10309 = vmatprep.mubr.bf16.mxu0 %v1879
    %10310 = vmatmul.mubr.bf16.gmra.mrb[0].mxu0 %v1865
    %v10311 = vpop.f32.mrb[0].mxu0
    %v10312 = vadd.f32 %v10271, %v10311
    %v10313 = vpop.f32.mrb[0].mxu0
    %v10314 = vadd.f32 %v10273, %v10313
    %v10315 = vpop.f32.mrb[0].mxu0
    %v10316 = vpop.f32.mrb[0].mxu0
    %10317 = vdwg.mxu0
    %10318 = vmatprep.subr.bf16.mxu0 %v7794
    %10319 = vmatpush1.bf16.msra.mxu0 %v7793
    %10320 = vmatprep.subr.bf16.mxu0 %v7798
    %10321 = vmatpush1.bf16.msra.mxu0 %v7797
    %10322 = vmatprep.subr.bf16.mxu0 %v7802
    %10323 = vmatpush1.bf16.msra.mxu0 %v7801
    %10324 = vmatprep.subr.bf16.mxu0 %v7806
    %10325 = vmatpush1.bf16.msra.mxu0 %v7805
    %10326 = vmatprep.subr.bf16.mxu0 %v7810
    %10327 = vmatpush1.bf16.msra.mxu0 %v7809
    %10328 = vmatprep.subr.bf16.mxu0 %v7814
    %10329 = vmatpush1.bf16.msra.mxu0 %v7813
    %10330 = vmatprep.subr.bf16.mxu0 %v7818
    %10331 = vmatpush1.bf16.msra.mxu0 %v7817
    %10332 = vmatprep.subr.bf16.mxu0 %v7822
    %10333 = vmatpush1.bf16.msra.mxu0 %v7821
    %10334 = vmatprep.subr.bf16.mxu0 %v7826
    %10335 = vmatpush1.bf16.msra.mxu0 %v7825
    %10336 = vmatprep.subr.bf16.mxu0 %v7830
    %10337 = vmatpush1.bf16.msra.mxu0 %v7829
    %10338 = vmatprep.subr.bf16.mxu0 %v7834
    %10339 = vmatpush1.bf16.msra.mxu0 %v7833
    %10340 = vmatprep.subr.bf16.mxu0 %v7838
    %10341 = vmatpush1.bf16.msra.mxu0 %v7837
    %10342 = vmatprep.subr.bf16.mxu0 %v7842
    %10343 = vmatpush1.bf16.msra.mxu0 %v7841
    %10344 = vmatprep.subr.bf16.mxu0 %v7846
    %10345 = vmatpush1.bf16.msra.mxu0 %v7845
    %10346 = vmatprep.subr.bf16.mxu0 %v7850
    %10347 = vmatpush1.bf16.msra.mxu0 %v7849
    %10348 = vmatprep.subr.bf16.mxu0 %v7854
    %10349 = vmatpush1.bf16.msra.mxu0 %v7853
    %10350 = vmatprep.mubr.bf16.mxu0 %v1889
    %10351 = vmatmul.mubr.bf16.gmra.mrb[0].mxu0 %v1887
    %v10352 = vpop.f32.mrb[0].mxu0
    %v10353 = vadd.f32 %v10312, %v10352
    %v10354 = vpop.f32.mrb[0].mxu0
    %v10355 = vadd.f32 %v10314, %v10354
    %v10356 = vpop.f32.mrb[0].mxu0
    %v10357 = vpop.f32.mrb[0].mxu0
    %10358 = vdwg.mxu0
    %10359 = vmatprep.subr.bf16.mxu0 %v7858
    %10360 = vmatpush1.bf16.msra.mxu0 %v7857
    %10361 = vmatprep.subr.bf16.mxu0 %v7862
    %10362 = vmatpush1.bf16.msra.mxu0 %v7861
    %10363 = vmatprep.subr.bf16.mxu0 %v7866
    %10364 = vmatpush1.bf16.msra.mxu0 %v7865
    %10365 = vmatprep.subr.bf16.mxu0 %v7870
    %10366 = vmatpush1.bf16.msra.mxu0 %v7869
    %10367 = vmatprep.subr.bf16.mxu0 %v7874
    %10368 = vmatpush1.bf16.msra.mxu0 %v7873
    %10369 = vmatprep.subr.bf16.mxu0 %v7878
    %10370 = vmatpush1.bf16.msra.mxu0 %v7877
    %10371 = vmatprep.subr.bf16.mxu0 %v7882
    %10372 = vmatpush1.bf16.msra.mxu0 %v7881
    %10373 = vmatprep.subr.bf16.mxu0 %v7886
    %10374 = vmatpush1.bf16.msra.mxu0 %v7885
    %10375 = vmatprep.subr.bf16.mxu0 %v7890
    %10376 = vmatpush1.bf16.msra.mxu0 %v7889
    %10377 = vmatprep.subr.bf16.mxu0 %v7894
    %10378 = vmatpush1.bf16.msra.mxu0 %v7893
    %10379 = vmatprep.subr.bf16.mxu0 %v7898
    %10380 = vmatpush1.bf16.msra.mxu0 %v7897
    %10381 = vmatprep.subr.bf16.mxu0 %v7902
    %10382 = vmatpush1.bf16.msra.mxu0 %v7901
    %10383 = vmatprep.subr.bf16.mxu0 %v7906
    %10384 = vmatpush1.bf16.msra.mxu0 %v7905
    %10385 = vmatprep.subr.bf16.mxu0 %v7910
    %10386 = vmatpush1.bf16.msra.mxu0 %v7909
    %10387 = vmatprep.subr.bf16.mxu0 %v7914
    %10388 = vmatpush1.bf16.msra.mxu0 %v7913
    %10389 = vmatprep.subr.bf16.mxu0 %v7918
    %10390 = vmatpush1.bf16.msra.mxu0 %v7917
    %10391 = vmatprep.mubr.bf16.mxu0 %v1886
    %10392 = vmatmul.mubr.bf16.gmra.mrb[0].mxu0 %v1872
    %v10393 = vpop.f32.mrb[0].mxu0
    %v10394 = vadd.f32 %v10353, %v10393
    %v10395 = vpop.f32.mrb[0].mxu0
    %v10396 = vadd.f32 %v10355, %v10395
    %v10397 = vpop.f32.mrb[0].mxu0
    %v10398 = vpop.f32.mrb[0].mxu0
    %10399 = vdwg.mxu0
    %10400 = vmatprep.subr.bf16.mxu0 %v7922
    %10401 = vmatpush1.bf16.msra.mxu0 %v7921
    %10402 = vmatprep.subr.bf16.mxu0 %v7926
    %10403 = vmatpush1.bf16.msra.mxu0 %v7925
    %10404 = vmatprep.subr.bf16.mxu0 %v7930
    %10405 = vmatpush1.bf16.msra.mxu0 %v7929
    %10406 = vmatprep.subr.bf16.mxu0 %v7934
    %10407 = vmatpush1.bf16.msra.mxu0 %v7933
    %10408 = vmatprep.subr.bf16.mxu0 %v7938
    %10409 = vmatpush1.bf16.msra.mxu0 %v7937
    %10410 = vmatprep.subr.bf16.mxu0 %v7942
    %10411 = vmatpush1.bf16.msra.mxu0 %v7941
    %10412 = vmatprep.subr.bf16.mxu0 %v7946
    %10413 = vmatpush1.bf16.msra.mxu0 %v7945
    %10414 = vmatprep.subr.bf16.mxu0 %v7950
    %10415 = vmatpush1.bf16.msra.mxu0 %v7949
    %10416 = vmatprep.subr.bf16.mxu0 0
    %10417 = vmatpush1.bf16.msra.mxu0 0
    %10418 = vmatprep.subr.bf16.mxu0 0
    %10419 = vmatpush1.bf16.msra.mxu0 0
    %10420 = vmatprep.subr.bf16.mxu0 0
    %10421 = vmatpush1.bf16.msra.mxu0 0
    %10422 = vmatprep.subr.bf16.mxu0 0
    %10423 = vmatpush1.bf16.msra.mxu0 0
    %10424 = vmatprep.subr.bf16.mxu0 0
    %10425 = vmatpush1.bf16.msra.mxu0 0
    %10426 = vmatprep.subr.bf16.mxu0 0
    %10427 = vmatpush1.bf16.msra.mxu0 0
    %10428 = vmatprep.subr.bf16.mxu0 0
    %10429 = vmatpush1.bf16.msra.mxu0 0
    %10430 = vmatprep.subr.bf16.mxu0 0
    %10431 = vmatpush1.bf16.msra.mxu0 0
    %10432 = vmatprep.mubr.bf16.mxu0 0
    %10433 = vmatmul.mubr.bf16.gmra.mrb[0].mxu0 %v1888
    %v10434 = vpop.f32.mrb[0].mxu0
    %v10435 = vadd.f32 %v10394, %v10434
    %v10436 = vpop.f32.mrb[0].mxu0
    %v10437 = vadd.f32 %v10396, %v10436
    %v10438 = vpop.f32.mrb[0].mxu0
    %v10439 = vpop.f32.mrb[0].mxu0
    %10440 = vdwg.mxu0
    %10441 = vmatprep.subr.bf16.mxu0 %v6452
    %10442 = vmatpush1.bf16.msra.mxu0 %v6451
    %10443 = vmatprep.subr.bf16.mxu0 %v6456
    %10444 = vmatpush1.bf16.msra.mxu0 %v6455
    %10445 = vmatprep.subr.bf16.mxu0 %v6460
    %10446 = vmatpush1.bf16.msra.mxu0 %v6459
    %10447 = vmatprep.subr.bf16.mxu0 %v6464
    %10448 = vmatpush1.bf16.msra.mxu0 %v6463
    %10449 = vmatprep.subr.bf16.mxu0 %v6468
    %10450 = vmatpush1.bf16.msra.mxu0 %v6467
    %10451 = vmatprep.subr.bf16.mxu0 %v6472
    %10452 = vmatpush1.bf16.msra.mxu0 %v6471
    %10453 = vmatprep.subr.bf16.mxu0 %v6476
    %10454 = vmatpush1.bf16.msra.mxu0 %v6475
    %10455 = vmatprep.subr.bf16.mxu0 %v6480
    %10456 = vmatpush1.bf16.msra.mxu0 %v6479
    %10457 = vmatprep.subr.bf16.mxu0 %v6484
    %10458 = vmatpush1.bf16.msra.mxu0 %v6483
    %10459 = vmatprep.subr.bf16.mxu0 %v6488
    %10460 = vmatpush1.bf16.msra.mxu0 %v6487
    %10461 = vmatprep.subr.bf16.mxu0 %v6492
    %10462 = vmatpush1.bf16.msra.mxu0 %v6491
    %10463 = vmatprep.subr.bf16.mxu0 %v6496
    %10464 = vmatpush1.bf16.msra.mxu0 %v6495
    %10465 = vmatprep.subr.bf16.mxu0 %v6500
    %10466 = vmatpush1.bf16.msra.mxu0 %v6499
    %10467 = vmatprep.subr.bf16.mxu0 %v6504
    %10468 = vmatpush1.bf16.msra.mxu0 %v6503
    %10469 = vmatprep.subr.bf16.mxu0 %v6508
    %10470 = vmatpush1.bf16.msra.mxu0 %v6507
    %10471 = vmatprep.subr.bf16.mxu0 %v6512
    %10472 = vmatpush1.bf16.msra.mxu0 %v6511
    %10473 = vmatprep.mubr.bf16.mxu0 %v1634
    %10474 = vmatmul.mubr.bf16.gmra.mrb[0].mxu0 %v1620
    %v10475 = vpop.f32.mrb[0].mxu0
    %v10476 = vadd.f32 %v1582, %v10475
    %v10477 = vpop.f32.mrb[0].mxu0
    %v10478 = vadd.f32 %v1586, %v10477
    %v10479 = vpop.f32.mrb[0].mxu0
    %v10480 = vpop.f32.mrb[0].mxu0
    %10481 = vdwg.mxu0
    %10482 = vmatprep.subr.bf16.mxu0 %v6516
    %10483 = vmatpush1.bf16.msra.mxu0 %v6515
    %10484 = vmatprep.subr.bf16.mxu0 %v6520
    %10485 = vmatpush1.bf16.msra.mxu0 %v6519
    %10486 = vmatprep.subr.bf16.mxu0 %v6524
    %10487 = vmatpush1.bf16.msra.mxu0 %v6523
    %10488 = vmatprep.subr.bf16.mxu0 %v6528
    %10489 = vmatpush1.bf16.msra.mxu0 %v6527
    %10490 = vmatprep.subr.bf16.mxu0 %v6532
    %10491 = vmatpush1.bf16.msra.mxu0 %v6531
    %10492 = vmatprep.subr.bf16.mxu0 %v6536
    %10493 = vmatpush1.bf16.msra.mxu0 %v6535
    %10494 = vmatprep.subr.bf16.mxu0 %v6540
    %10495 = vmatpush1.bf16.msra.mxu0 %v6539
    %10496 = vmatprep.subr.bf16.mxu0 %v6544
    %10497 = vmatpush1.bf16.msra.mxu0 %v6543
    %10498 = vmatprep.subr.bf16.mxu0 %v6548
    %10499 = vmatpush1.bf16.msra.mxu0 %v6547
    %10500 = vmatprep.subr.bf16.mxu0 %v6552
    %10501 = vmatpush1.bf16.msra.mxu0 %v6551
    %10502 = vmatprep.subr.bf16.mxu0 %v6556
    %10503 = vmatpush1.bf16.msra.mxu0 %v6555
    %10504 = vmatprep.subr.bf16.mxu0 %v6560
    %10505 = vmatpush1.bf16.msra.mxu0 %v6559
    %10506 = vmatprep.subr.bf16.mxu0 %v6564
    %10507 = vmatpush1.bf16.msra.mxu0 %v6563
    %10508 = vmatprep.subr.bf16.mxu0 %v6568
    %10509 = vmatpush1.bf16.msra.mxu0 %v6567
    %10510 = vmatprep.subr.bf16.mxu0 %v6572
    %10511 = vmatpush1.bf16.msra.mxu0 %v6571
    %10512 = vmatprep.subr.bf16.mxu0 %v6576
    %10513 = vmatpush1.bf16.msra.mxu0 %v6575
    %10514 = vmatprep.mubr.bf16.mxu0 %v1644
    %10515 = vmatmul.mubr.bf16.gmra.mrb[0].mxu0 %v1642
    %v10516 = vpop.f32.mrb[0].mxu0
    %v10517 = vadd.f32 %v10476, %v10516
    %v10518 = vpop.f32.mrb[0].mxu0
    %v10519 = vadd.f32 %v10478, %v10518
    %v10520 = vpop.f32.mrb[0].mxu0
    %v10521 = vpop.f32.mrb[0].mxu0
    %10522 = vdwg.mxu0
    %10523 = vmatprep.subr.bf16.mxu0 %v6580
    %10524 = vmatpush1.bf16.msra.mxu0 %v6579
    %10525 = vmatprep.subr.bf16.mxu0 %v6584
    %10526 = vmatpush1.bf16.msra.mxu0 %v6583
    %10527 = vmatprep.subr.bf16.mxu0 %v6588
    %10528 = vmatpush1.bf16.msra.mxu0 %v6587
    %10529 = vmatprep.subr.bf16.mxu0 %v6592
    %10530 = vmatpush1.bf16.msra.mxu0 %v6591
    %10531 = vmatprep.subr.bf16.mxu0 %v6596
    %10532 = vmatpush1.bf16.msra.mxu0 %v6595
    %10533 = vmatprep.subr.bf16.mxu0 %v6600
    %10534 = vmatpush1.bf16.msra.mxu0 %v6599
    %10535 = vmatprep.subr.bf16.mxu0 %v6604
    %10536 = vmatpush1.bf16.msra.mxu0 %v6603
    %10537 = vmatprep.subr.bf16.mxu0 %v6608
    %10538 = vmatpush1.bf16.msra.mxu0 %v6607
    %10539 = vmatprep.subr.bf16.mxu0 %v6612
    %10540 = vmatpush1.bf16.msra.mxu0 %v6611
    %10541 = vmatprep.subr.bf16.mxu0 %v6616
    %10542 = vmatpush1.bf16.msra.mxu0 %v6615
    %10543 = vmatprep.subr.bf16.mxu0 %v6620
    %10544 = vmatpush1.bf16.msra.mxu0 %v6619
    %10545 = vmatprep.subr.bf16.mxu0 %v6624
    %10546 = vmatpush1.bf16.msra.mxu0 %v6623
    %10547 = vmatprep.subr.bf16.mxu0 %v6628
    %10548 = vmatpush1.bf16.msra.mxu0 %v6627
    %10549 = vmatprep.subr.bf16.mxu0 %v6632
    %10550 = vmatpush1.bf16.msra.mxu0 %v6631
    %10551 = vmatprep.subr.bf16.mxu0 %v6636
    %10552 = vmatpush1.bf16.msra.mxu0 %v6635
    %10553 = vmatprep.subr.bf16.mxu0 %v6640
    %10554 = vmatpush1.bf16.msra.mxu0 %v6639
    %10555 = vmatprep.mubr.bf16.mxu0 %v1641
    %10556 = vmatmul.mubr.bf16.gmra.mrb[0].mxu0 %v1627
    %v10557 = vpop.f32.mrb[0].mxu0
    %v10558 = vadd.f32 %v10517, %v10557
    %v10559 = vpop.f32.mrb[0].mxu0
    %v10560 = vadd.f32 %v10519, %v10559
    %v10561 = vpop.f32.mrb[0].mxu0
    %v10562 = vpop.f32.mrb[0].mxu0
    %10563 = vdwg.mxu0
    %10564 = vmatprep.subr.bf16.mxu0 %v6644
    %10565 = vmatpush1.bf16.msra.mxu0 %v6643
    %10566 = vmatprep.subr.bf16.mxu0 %v6648
    %10567 = vmatpush1.bf16.msra.mxu0 %v6647
    %10568 = vmatprep.subr.bf16.mxu0 %v6652
    %10569 = vmatpush1.bf16.msra.mxu0 %v6651
    %10570 = vmatprep.subr.bf16.mxu0 %v6656
    %10571 = vmatpush1.bf16.msra.mxu0 %v6655
    %10572 = vmatprep.subr.bf16.mxu0 %v6660
    %10573 = vmatpush1.bf16.msra.mxu0 %v6659
    %10574 = vmatprep.subr.bf16.mxu0 %v6664
    %10575 = vmatpush1.bf16.msra.mxu0 %v6663
    %10576 = vmatprep.subr.bf16.mxu0 %v6668
    %10577 = vmatpush1.bf16.msra.mxu0 %v6667
    %10578 = vmatprep.subr.bf16.mxu0 %v6672
    %10579 = vmatpush1.bf16.msra.mxu0 %v6671
    %10580 = vmatprep.subr.bf16.mxu0 %v6676
    %10581 = vmatpush1.bf16.msra.mxu0 %v6675
    %10582 = vmatprep.subr.bf16.mxu0 %v6680
    %10583 = vmatpush1.bf16.msra.mxu0 %v6679
    %10584 = vmatprep.subr.bf16.mxu0 %v6684
    %10585 = vmatpush1.bf16.msra.mxu0 %v6683
    %10586 = vmatprep.subr.bf16.mxu0 %v6688
    %10587 = vmatpush1.bf16.msra.mxu0 %v6687
    %10588 = vmatprep.subr.bf16.mxu0 %v6692
    %10589 = vmatpush1.bf16.msra.mxu0 %v6691
    %10590 = vmatprep.subr.bf16.mxu0 %v6696
    %10591 = vmatpush1.bf16.msra.mxu0 %v6695
    %10592 = vmatprep.subr.bf16.mxu0 %v6700
    %10593 = vmatpush1.bf16.msra.mxu0 %v6699
    %10594 = vmatprep.subr.bf16.mxu0 %v6704
    %10595 = vmatpush1.bf16.msra.mxu0 %v6703
    %10596 = vmatprep.mubr.bf16.mxu0 %v1645
    %10597 = vmatmul.mubr.bf16.gmra.mrb[0].mxu0 %v1643
    %v10598 = vpop.f32.mrb[0].mxu0
    %v10599 = vadd.f32 %v10558, %v10598
    %v10600 = vpop.f32.mrb[0].mxu0
    %v10601 = vadd.f32 %v10560, %v10600
    %v10602 = vpop.f32.mrb[0].mxu0
    %v10603 = vpop.f32.mrb[0].mxu0
    %10604 = vdwg.mxu0
    %10605 = vmatprep.subr.bf16.mxu0 %v6708
    %10606 = vmatpush1.bf16.msra.mxu0 %v6707
    %10607 = vmatprep.subr.bf16.mxu0 %v6712
    %10608 = vmatpush1.bf16.msra.mxu0 %v6711
    %10609 = vmatprep.subr.bf16.mxu0 %v6716
    %10610 = vmatpush1.bf16.msra.mxu0 %v6715
    %10611 = vmatprep.subr.bf16.mxu0 %v6720
    %10612 = vmatpush1.bf16.msra.mxu0 %v6719
    %10613 = vmatprep.subr.bf16.mxu0 %v6724
    %10614 = vmatpush1.bf16.msra.mxu0 %v6723
    %10615 = vmatprep.subr.bf16.mxu0 %v6728
    %10616 = vmatpush1.bf16.msra.mxu0 %v6727
    %10617 = vmatprep.subr.bf16.mxu0 %v6732
    %10618 = vmatpush1.bf16.msra.mxu0 %v6731
    %10619 = vmatprep.subr.bf16.mxu0 %v6736
    %10620 = vmatpush1.bf16.msra.mxu0 %v6735
    %10621 = vmatprep.subr.bf16.mxu0 %v6740
    %10622 = vmatpush1.bf16.msra.mxu0 %v6739
    %10623 = vmatprep.subr.bf16.mxu0 %v6744
    %10624 = vmatpush1.bf16.msra.mxu0 %v6743
    %10625 = vmatprep.subr.bf16.mxu0 %v6748
    %10626 = vmatpush1.bf16.msra.mxu0 %v6747
    %10627 = vmatprep.subr.bf16.mxu0 %v6752
    %10628 = vmatpush1.bf16.msra.mxu0 %v6751
    %10629 = vmatprep.subr.bf16.mxu0 %v6756
    %10630 = vmatpush1.bf16.msra.mxu0 %v6755
    %10631 = vmatprep.subr.bf16.mxu0 %v6760
    %10632 = vmatpush1.bf16.msra.mxu0 %v6759
    %10633 = vmatprep.subr.bf16.mxu0 %v6764
    %10634 = vmatpush1.bf16.msra.mxu0 %v6763
    %10635 = vmatprep.subr.bf16.mxu0 %v6768
    %10636 = vmatpush1.bf16.msra.mxu0 %v6767
    %10637 = vmatprep.mubr.bf16.mxu0 %v1683
    %10638 = vmatmul.mubr.bf16.gmra.mrb[0].mxu0 %v1669
    %v10639 = vpop.f32.mrb[0].mxu0
    %v10640 = vadd.f32 %v10599, %v10639
    %v10641 = vpop.f32.mrb[0].mxu0
    %v10642 = vadd.f32 %v10601, %v10641
    %v10643 = vpop.f32.mrb[0].mxu0
    %v10644 = vpop.f32.mrb[0].mxu0
    %10645 = vdwg.mxu0
    %10646 = vmatprep.subr.bf16.mxu0 %v6772
    %10647 = vmatpush1.bf16.msra.mxu0 %v6771
    %10648 = vmatprep.subr.bf16.mxu0 %v6776
    %10649 = vmatpush1.bf16.msra.mxu0 %v6775
    %10650 = vmatprep.subr.bf16.mxu0 %v6780
    %10651 = vmatpush1.bf16.msra.mxu0 %v6779
    %10652 = vmatprep.subr.bf16.mxu0 %v6784
    %10653 = vmatpush1.bf16.msra.mxu0 %v6783
    %10654 = vmatprep.subr.bf16.mxu0 %v6788
    %10655 = vmatpush1.bf16.msra.mxu0 %v6787
    %10656 = vmatprep.subr.bf16.mxu0 %v6792
    %10657 = vmatpush1.bf16.msra.mxu0 %v6791
    %10658 = vmatprep.subr.bf16.mxu0 %v6796
    %10659 = vmatpush1.bf16.msra.mxu0 %v6795
    %10660 = vmatprep.subr.bf16.mxu0 %v6800
    %10661 = vmatpush1.bf16.msra.mxu0 %v6799
    %10662 = vmatprep.subr.bf16.mxu0 %v6804
    %10663 = vmatpush1.bf16.msra.mxu0 %v6803
    %10664 = vmatprep.subr.bf16.mxu0 %v6808
    %10665 = vmatpush1.bf16.msra.mxu0 %v6807
    %10666 = vmatprep.subr.bf16.mxu0 %v6812
    %10667 = vmatpush1.bf16.msra.mxu0 %v6811
    %10668 = vmatprep.subr.bf16.mxu0 %v6816
    %10669 = vmatpush1.bf16.msra.mxu0 %v6815
    %10670 = vmatprep.subr.bf16.mxu0 %v6820
    %10671 = vmatpush1.bf16.msra.mxu0 %v6819
    %10672 = vmatprep.subr.bf16.mxu0 %v6824
    %10673 = vmatpush1.bf16.msra.mxu0 %v6823
    %10674 = vmatprep.subr.bf16.mxu0 %v6828
    %10675 = vmatpush1.bf16.msra.mxu0 %v6827
    %10676 = vmatprep.subr.bf16.mxu0 %v6832
    %10677 = vmatpush1.bf16.msra.mxu0 %v6831
    %10678 = vmatprep.mubr.bf16.mxu0 %v1693
    %10679 = vmatmul.mubr.bf16.gmra.mrb[0].mxu0 %v1691
    %v10680 = vpop.f32.mrb[0].mxu0
    %v10681 = vadd.f32 %v10640, %v10680
    %v10682 = vpop.f32.mrb[0].mxu0
    %v10683 = vadd.f32 %v10642, %v10682
    %v10684 = vpop.f32.mrb[0].mxu0
    %v10685 = vpop.f32.mrb[0].mxu0
    %10686 = vdwg.mxu0
    %10687 = vmatprep.subr.bf16.mxu0 %v6836
    %10688 = vmatpush1.bf16.msra.mxu0 %v6835
    %10689 = vmatprep.subr.bf16.mxu0 %v6840
    %10690 = vmatpush1.bf16.msra.mxu0 %v6839
    %10691 = vmatprep.subr.bf16.mxu0 %v6844
    %10692 = vmatpush1.bf16.msra.mxu0 %v6843
    %10693 = vmatprep.subr.bf16.mxu0 %v6848
    %10694 = vmatpush1.bf16.msra.mxu0 %v6847
    %10695 = vmatprep.subr.bf16.mxu0 %v6852
    %10696 = vmatpush1.bf16.msra.mxu0 %v6851
    %10697 = vmatprep.subr.bf16.mxu0 %v6856
    %10698 = vmatpush1.bf16.msra.mxu0 %v6855
    %10699 = vmatprep.subr.bf16.mxu0 %v6860
    %10700 = vmatpush1.bf16.msra.mxu0 %v6859
    %10701 = vmatprep.subr.bf16.mxu0 %v6864
    %10702 = vmatpush1.bf16.msra.mxu0 %v6863
    %10703 = vmatprep.subr.bf16.mxu0 %v6868
    %10704 = vmatpush1.bf16.msra.mxu0 %v6867
    %10705 = vmatprep.subr.bf16.mxu0 %v6872
    %10706 = vmatpush1.bf16.msra.mxu0 %v6871
    %10707 = vmatprep.subr.bf16.mxu0 %v6876
    %10708 = vmatpush1.bf16.msra.mxu0 %v6875
    %10709 = vmatprep.subr.bf16.mxu0 %v6880
    %10710 = vmatpush1.bf16.msra.mxu0 %v6879
    %10711 = vmatprep.subr.bf16.mxu0 %v6884
    %10712 = vmatpush1.bf16.msra.mxu0 %v6883
    %10713 = vmatprep.subr.bf16.mxu0 %v6888
    %10714 = vmatpush1.bf16.msra.mxu0 %v6887
    %10715 = vmatprep.subr.bf16.mxu0 %v6892
    %10716 = vmatpush1.bf16.msra.mxu0 %v6891
    %10717 = vmatprep.subr.bf16.mxu0 %v6896
    %10718 = vmatpush1.bf16.msra.mxu0 %v6895
    %10719 = vmatprep.mubr.bf16.mxu0 %v1690
    %10720 = vmatmul.mubr.bf16.gmra.mrb[0].mxu0 %v1676
    %v10721 = vpop.f32.mrb[0].mxu0
    %v10722 = vadd.f32 %v10681, %v10721
    %v10723 = vpop.f32.mrb[0].mxu0
    %v10724 = vadd.f32 %v10683, %v10723
    %v10725 = vpop.f32.mrb[0].mxu0
    %v10726 = vpop.f32.mrb[0].mxu0
    %10727 = vdwg.mxu0
    %10728 = vmatprep.subr.bf16.mxu0 %v6900
    %10729 = vmatpush1.bf16.msra.mxu0 %v6899
    %10730 = vmatprep.subr.bf16.mxu0 %v6904
    %10731 = vmatpush1.bf16.msra.mxu0 %v6903
    %10732 = vmatprep.subr.bf16.mxu0 %v6908
    %10733 = vmatpush1.bf16.msra.mxu0 %v6907
    %10734 = vmatprep.subr.bf16.mxu0 %v6912
    %10735 = vmatpush1.bf16.msra.mxu0 %v6911
    %10736 = vmatprep.subr.bf16.mxu0 %v6916
    %10737 = vmatpush1.bf16.msra.mxu0 %v6915
    %10738 = vmatprep.subr.bf16.mxu0 %v6920
    %10739 = vmatpush1.bf16.msra.mxu0 %v6919
    %10740 = vmatprep.subr.bf16.mxu0 %v6924
    %10741 = vmatpush1.bf16.msra.mxu0 %v6923
    %10742 = vmatprep.subr.bf16.mxu0 %v6928
    %10743 = vmatpush1.bf16.msra.mxu0 %v6927
    %10744 = vmatprep.subr.bf16.mxu0 %v6932
    %10745 = vmatpush1.bf16.msra.mxu0 %v6931
    %10746 = vmatprep.subr.bf16.mxu0 %v6936
    %10747 = vmatpush1.bf16.msra.mxu0 %v6935
    %10748 = vmatprep.subr.bf16.mxu0 %v6940
    %10749 = vmatpush1.bf16.msra.mxu0 %v6939
    %10750 = vmatprep.subr.bf16.mxu0 %v6944
    %10751 = vmatpush1.bf16.msra.mxu0 %v6943
    %10752 = vmatprep.subr.bf16.mxu0 %v6948
    %10753 = vmatpush1.bf16.msra.mxu0 %v6947
    %10754 = vmatprep.subr.bf16.mxu0 %v6952
    %10755 = vmatpush1.bf16.msra.mxu0 %v6951
    %10756 = vmatprep.subr.bf16.mxu0 %v6956
    %10757 = vmatpush1.bf16.msra.mxu0 %v6955
    %10758 = vmatprep.subr.bf16.mxu0 %v6960
    %10759 = vmatpush1.bf16.msra.mxu0 %v6959
    %10760 = vmatprep.mubr.bf16.mxu0 %v1694
    %10761 = vmatmul.mubr.bf16.gmra.mrb[0].mxu0 %v1692
    %v10762 = vpop.f32.mrb[0].mxu0
    %v10763 = vadd.f32 %v10722, %v10762
    %v10764 = vpop.f32.mrb[0].mxu0
    %v10765 = vadd.f32 %v10724, %v10764
    %v10766 = vpop.f32.mrb[0].mxu0
    %v10767 = vpop.f32.mrb[0].mxu0
    %10768 = vdwg.mxu0
    %10769 = vmatprep.subr.bf16.mxu0 %v6964
    %10770 = vmatpush1.bf16.msra.mxu0 %v6963
    %10771 = vmatprep.subr.bf16.mxu0 %v6968
    %10772 = vmatpush1.bf16.msra.mxu0 %v6967
    %10773 = vmatprep.subr.bf16.mxu0 %v6972
    %10774 = vmatpush1.bf16.msra.mxu0 %v6971
    %10775 = vmatprep.subr.bf16.mxu0 %v6976
    %10776 = vmatpush1.bf16.msra.mxu0 %v6975
    %10777 = vmatprep.subr.bf16.mxu0 %v6980
    %10778 = vmatpush1.bf16.msra.mxu0 %v6979
    %10779 = vmatprep.subr.bf16.mxu0 %v6984
    %10780 = vmatpush1.bf16.msra.mxu0 %v6983
    %10781 = vmatprep.subr.bf16.mxu0 %v6988
    %10782 = vmatpush1.bf16.msra.mxu0 %v6987
    %10783 = vmatprep.subr.bf16.mxu0 %v6992
    %10784 = vmatpush1.bf16.msra.mxu0 %v6991
    %10785 = vmatprep.subr.bf16.mxu0 %v6996
    %10786 = vmatpush1.bf16.msra.mxu0 %v6995
    %10787 = vmatprep.subr.bf16.mxu0 %v7000
    %10788 = vmatpush1.bf16.msra.mxu0 %v6999
    %10789 = vmatprep.subr.bf16.mxu0 %v7004
    %10790 = vmatpush1.bf16.msra.mxu0 %v7003
    %10791 = vmatprep.subr.bf16.mxu0 %v7008
    %10792 = vmatpush1.bf16.msra.mxu0 %v7007
    %10793 = vmatprep.subr.bf16.mxu0 %v7012
    %10794 = vmatpush1.bf16.msra.mxu0 %v7011
    %10795 = vmatprep.subr.bf16.mxu0 %v7016
    %10796 = vmatpush1.bf16.msra.mxu0 %v7015
    %10797 = vmatprep.subr.bf16.mxu0 %v7020
    %10798 = vmatpush1.bf16.msra.mxu0 %v7019
    %10799 = vmatprep.subr.bf16.mxu0 %v7024
    %10800 = vmatpush1.bf16.msra.mxu0 %v7023
    %10801 = vmatprep.mubr.bf16.mxu0 %v1732
    %10802 = vmatmul.mubr.bf16.gmra.mrb[0].mxu0 %v1718
    %v10803 = vpop.f32.mrb[0].mxu0
    %v10804 = vadd.f32 %v10763, %v10803
    %v10805 = vpop.f32.mrb[0].mxu0
    %v10806 = vadd.f32 %v10765, %v10805
    %v10807 = vpop.f32.mrb[0].mxu0
    %v10808 = vpop.f32.mrb[0].mxu0
    %10809 = vdwg.mxu0
    %10810 = vmatprep.subr.bf16.mxu0 %v7028
    %10811 = vmatpush1.bf16.msra.mxu0 %v7027
    %10812 = vmatprep.subr.bf16.mxu0 %v7032
    %10813 = vmatpush1.bf16.msra.mxu0 %v7031
    %10814 = vmatprep.subr.bf16.mxu0 %v7036
    %10815 = vmatpush1.bf16.msra.mxu0 %v7035
    %10816 = vmatprep.subr.bf16.mxu0 %v7040
    %10817 = vmatpush1.bf16.msra.mxu0 %v7039
    %10818 = vmatprep.subr.bf16.mxu0 %v7044
    %10819 = vmatpush1.bf16.msra.mxu0 %v7043
    %10820 = vmatprep.subr.bf16.mxu0 %v7048
    %10821 = vmatpush1.bf16.msra.mxu0 %v7047
    %10822 = vmatprep.subr.bf16.mxu0 %v7052
    %10823 = vmatpush1.bf16.msra.mxu0 %v7051
    %10824 = vmatprep.subr.bf16.mxu0 %v7056
    %10825 = vmatpush1.bf16.msra.mxu0 %v7055
    %10826 = vmatprep.subr.bf16.mxu0 %v7060
    %10827 = vmatpush1.bf16.msra.mxu0 %v7059
    %10828 = vmatprep.subr.bf16.mxu0 %v7064
    %10829 = vmatpush1.bf16.msra.mxu0 %v7063
    %10830 = vmatprep.subr.bf16.mxu0 %v7068
    %10831 = vmatpush1.bf16.msra.mxu0 %v7067
    %10832 = vmatprep.subr.bf16.mxu0 %v7072
    %10833 = vmatpush1.bf16.msra.mxu0 %v7071
    %10834 = vmatprep.subr.bf16.mxu0 %v7076
    %10835 = vmatpush1.bf16.msra.mxu0 %v7075
    %10836 = vmatprep.subr.bf16.mxu0 %v7080
    %10837 = vmatpush1.bf16.msra.mxu0 %v7079
    %10838 = vmatprep.subr.bf16.mxu0 %v7084
    %10839 = vmatpush1.bf16.msra.mxu0 %v7083
    %10840 = vmatprep.subr.bf16.mxu0 %v7088
    %10841 = vmatpush1.bf16.msra.mxu0 %v7087
    %10842 = vmatprep.mubr.bf16.mxu0 %v1742
    %10843 = vmatmul.mubr.bf16.gmra.mrb[0].mxu0 %v1740
    %v10844 = vpop.f32.mrb[0].mxu0
    %v10845 = vadd.f32 %v10804, %v10844
    %v10846 = vpop.f32.mrb[0].mxu0
    %v10847 = vadd.f32 %v10806, %v10846
    %v10848 = vpop.f32.mrb[0].mxu0
    %v10849 = vpop.f32.mrb[0].mxu0
    %10850 = vdwg.mxu0
    %10851 = vmatprep.subr.bf16.mxu0 %v7092
    %10852 = vmatpush1.bf16.msra.mxu0 %v7091
    %10853 = vmatprep.subr.bf16.mxu0 %v7096
    %10854 = vmatpush1.bf16.msra.mxu0 %v7095
    %10855 = vmatprep.subr.bf16.mxu0 %v7100
    %10856 = vmatpush1.bf16.msra.mxu0 %v7099
    %10857 = vmatprep.subr.bf16.mxu0 %v7104
    %10858 = vmatpush1.bf16.msra.mxu0 %v7103
    %10859 = vmatprep.subr.bf16.mxu0 %v7108
    %10860 = vmatpush1.bf16.msra.mxu0 %v7107
    %10861 = vmatprep.subr.bf16.mxu0 %v7112
    %10862 = vmatpush1.bf16.msra.mxu0 %v7111
    %10863 = vmatprep.subr.bf16.mxu0 %v7116
    %10864 = vmatpush1.bf16.msra.mxu0 %v7115
    %10865 = vmatprep.subr.bf16.mxu0 %v7120
    %10866 = vmatpush1.bf16.msra.mxu0 %v7119
    %10867 = vmatprep.subr.bf16.mxu0 %v7124
    %10868 = vmatpush1.bf16.msra.mxu0 %v7123
    %10869 = vmatprep.subr.bf16.mxu0 %v7128
    %10870 = vmatpush1.bf16.msra.mxu0 %v7127
    %10871 = vmatprep.subr.bf16.mxu0 %v7132
    %10872 = vmatpush1.bf16.msra.mxu0 %v7131
    %10873 = vmatprep.subr.bf16.mxu0 %v7136
    %10874 = vmatpush1.bf16.msra.mxu0 %v7135
    %10875 = vmatprep.subr.bf16.mxu0 %v7140
    %10876 = vmatpush1.bf16.msra.mxu0 %v7139
    %10877 = vmatprep.subr.bf16.mxu0 %v7144
    %10878 = vmatpush1.bf16.msra.mxu0 %v7143
    %10879 = vmatprep.subr.bf16.mxu0 %v7148
    %10880 = vmatpush1.bf16.msra.mxu0 %v7147
    %10881 = vmatprep.subr.bf16.mxu0 %v7152
    %10882 = vmatpush1.bf16.msra.mxu0 %v7151
    %10883 = vmatprep.mubr.bf16.mxu0 %v1739
    %10884 = vmatmul.mubr.bf16.gmra.mrb[0].mxu0 %v1725
    %v10885 = vpop.f32.mrb[0].mxu0
    %v10886 = vadd.f32 %v10845, %v10885
    %v10887 = vpop.f32.mrb[0].mxu0
    %v10888 = vadd.f32 %v10847, %v10887
    %v10889 = vpop.f32.mrb[0].mxu0
    %v10890 = vpop.f32.mrb[0].mxu0
    %10891 = vdwg.mxu0
    %10892 = vmatprep.subr.bf16.mxu0 %v7156
    %10893 = vmatpush1.bf16.msra.mxu0 %v7155
    %10894 = vmatprep.subr.bf16.mxu0 %v7160
    %10895 = vmatpush1.bf16.msra.mxu0 %v7159
    %10896 = vmatprep.subr.bf16.mxu0 %v7164
    %10897 = vmatpush1.bf16.msra.mxu0 %v7163
    %10898 = vmatprep.subr.bf16.mxu0 %v7168
    %10899 = vmatpush1.bf16.msra.mxu0 %v7167
    %10900 = vmatprep.subr.bf16.mxu0 %v7172
    %10901 = vmatpush1.bf16.msra.mxu0 %v7171
    %10902 = vmatprep.subr.bf16.mxu0 %v7176
    %10903 = vmatpush1.bf16.msra.mxu0 %v7175
    %10904 = vmatprep.subr.bf16.mxu0 %v7180
    %10905 = vmatpush1.bf16.msra.mxu0 %v7179
    %10906 = vmatprep.subr.bf16.mxu0 %v7184
    %10907 = vmatpush1.bf16.msra.mxu0 %v7183
    %10908 = vmatprep.subr.bf16.mxu0 %v7188
    %10909 = vmatpush1.bf16.msra.mxu0 %v7187
    %10910 = vmatprep.subr.bf16.mxu0 %v7192
    %10911 = vmatpush1.bf16.msra.mxu0 %v7191
    %10912 = vmatprep.subr.bf16.mxu0 %v7196
    %10913 = vmatpush1.bf16.msra.mxu0 %v7195
    %10914 = vmatprep.subr.bf16.mxu0 %v7200
    %10915 = vmatpush1.bf16.msra.mxu0 %v7199
    %10916 = vmatprep.subr.bf16.mxu0 %v7204
    %10917 = vmatpush1.bf16.msra.mxu0 %v7203
    %10918 = vmatprep.subr.bf16.mxu0 %v7208
    %10919 = vmatpush1.bf16.msra.mxu0 %v7207
    %10920 = vmatprep.subr.bf16.mxu0 %v7212
    %10921 = vmatpush1.bf16.msra.mxu0 %v7211
    %10922 = vmatprep.subr.bf16.mxu0 %v7216
    %10923 = vmatpush1.bf16.msra.mxu0 %v7215
    %10924 = vmatprep.mubr.bf16.mxu0 %v1743
    %10925 = vmatmul.mubr.bf16.gmra.mrb[0].mxu0 %v1741
    %v10926 = vpop.f32.mrb[0].mxu0
    %v10927 = vadd.f32 %v10886, %v10926
    %v10928 = vpop.f32.mrb[0].mxu0
    %v10929 = vadd.f32 %v10888, %v10928
    %v10930 = vpop.f32.mrb[0].mxu0
    %v10931 = vpop.f32.mrb[0].mxu0
    %10932 = vdwg.mxu0
    %10933 = vmatprep.subr.bf16.mxu0 %v7220
    %10934 = vmatpush1.bf16.msra.mxu0 %v7219
    %10935 = vmatprep.subr.bf16.mxu0 %v7224
    %10936 = vmatpush1.bf16.msra.mxu0 %v7223
    %10937 = vmatprep.subr.bf16.mxu0 %v7228
    %10938 = vmatpush1.bf16.msra.mxu0 %v7227
    %10939 = vmatprep.subr.bf16.mxu0 %v7232
    %10940 = vmatpush1.bf16.msra.mxu0 %v7231
    %10941 = vmatprep.subr.bf16.mxu0 %v7236
    %10942 = vmatpush1.bf16.msra.mxu0 %v7235
    %10943 = vmatprep.subr.bf16.mxu0 %v7240
    %10944 = vmatpush1.bf16.msra.mxu0 %v7239
    %10945 = vmatprep.subr.bf16.mxu0 %v7244
    %10946 = vmatpush1.bf16.msra.mxu0 %v7243
    %10947 = vmatprep.subr.bf16.mxu0 %v7248
    %10948 = vmatpush1.bf16.msra.mxu0 %v7247
    %10949 = vmatprep.subr.bf16.mxu0 %v7252
    %10950 = vmatpush1.bf16.msra.mxu0 %v7251
    %10951 = vmatprep.subr.bf16.mxu0 %v7256
    %10952 = vmatpush1.bf16.msra.mxu0 %v7255
    %10953 = vmatprep.subr.bf16.mxu0 %v7260
    %10954 = vmatpush1.bf16.msra.mxu0 %v7259
    %10955 = vmatprep.subr.bf16.mxu0 %v7264
    %10956 = vmatpush1.bf16.msra.mxu0 %v7263
    %10957 = vmatprep.subr.bf16.mxu0 %v7268
    %10958 = vmatpush1.bf16.msra.mxu0 %v7267
    %10959 = vmatprep.subr.bf16.mxu0 %v7272
    %10960 = vmatpush1.bf16.msra.mxu0 %v7271
    %10961 = vmatprep.subr.bf16.mxu0 %v7276
    %10962 = vmatpush1.bf16.msra.mxu0 %v7275
    %10963 = vmatprep.subr.bf16.mxu0 %v7280
    %10964 = vmatpush1.bf16.msra.mxu0 %v7279
    %10965 = vmatprep.mubr.bf16.mxu0 %v1781
    %10966 = vmatmul.mubr.bf16.gmra.mrb[0].mxu0 %v1767
    %v10967 = vpop.f32.mrb[0].mxu0
    %v10968 = vadd.f32 %v10927, %v10967
    %v10969 = vpop.f32.mrb[0].mxu0
    %v10970 = vadd.f32 %v10929, %v10969
    %v10971 = vpop.f32.mrb[0].mxu0
    %v10972 = vpop.f32.mrb[0].mxu0
    %10973 = vdwg.mxu0
    %10974 = vmatprep.subr.bf16.mxu0 %v7284
    %10975 = vmatpush1.bf16.msra.mxu0 %v7283
    %10976 = vmatprep.subr.bf16.mxu0 %v7288
    %10977 = vmatpush1.bf16.msra.mxu0 %v7287
    %10978 = vmatprep.subr.bf16.mxu0 %v7292
    %10979 = vmatpush1.bf16.msra.mxu0 %v7291
    %10980 = vmatprep.subr.bf16.mxu0 %v7296
    %10981 = vmatpush1.bf16.msra.mxu0 %v7295
    %10982 = vmatprep.subr.bf16.mxu0 %v7300
    %10983 = vmatpush1.bf16.msra.mxu0 %v7299
    %10984 = vmatprep.subr.bf16.mxu0 %v7304
    %10985 = vmatpush1.bf16.msra.mxu0 %v7303
    %10986 = vmatprep.subr.bf16.mxu0 %v7308
    %10987 = vmatpush1.bf16.msra.mxu0 %v7307
    %10988 = vmatprep.subr.bf16.mxu0 %v7312
    %10989 = vmatpush1.bf16.msra.mxu0 %v7311
    %10990 = vmatprep.subr.bf16.mxu0 %v7316
    %10991 = vmatpush1.bf16.msra.mxu0 %v7315
    %10992 = vmatprep.subr.bf16.mxu0 %v7320
    %10993 = vmatpush1.bf16.msra.mxu0 %v7319
    %10994 = vmatprep.subr.bf16.mxu0 %v7324
    %10995 = vmatpush1.bf16.msra.mxu0 %v7323
    %10996 = vmatprep.subr.bf16.mxu0 %v7328
    %10997 = vmatpush1.bf16.msra.mxu0 %v7327
    %10998 = vmatprep.subr.bf16.mxu0 %v7332
    %10999 = vmatpush1.bf16.msra.mxu0 %v7331
    %11000 = vmatprep.subr.bf16.mxu0 %v7336
    %11001 = vmatpush1.bf16.msra.mxu0 %v7335
    %11002 = vmatprep.subr.bf16.mxu0 %v7340
    %11003 = vmatpush1.bf16.msra.mxu0 %v7339
    %11004 = vmatprep.subr.bf16.mxu0 %v7344
    %11005 = vmatpush1.bf16.msra.mxu0 %v7343
    %11006 = vmatprep.mubr.bf16.mxu0 %v1791
    %11007 = vmatmul.mubr.bf16.gmra.mrb[0].mxu0 %v1789
    %v11008 = vpop.f32.mrb[0].mxu0
    %v11009 = vadd.f32 %v10968, %v11008
    %v11010 = vpop.f32.mrb[0].mxu0
    %v11011 = vadd.f32 %v10970, %v11010
    %v11012 = vpop.f32.mrb[0].mxu0
    %v11013 = vpop.f32.mrb[0].mxu0
    %11014 = vdwg.mxu0
    %11015 = vmatprep.subr.bf16.mxu0 %v7348
    %11016 = vmatpush1.bf16.msra.mxu0 %v7347
    %11017 = vmatprep.subr.bf16.mxu0 %v7352
    %11018 = vmatpush1.bf16.msra.mxu0 %v7351
    %11019 = vmatprep.subr.bf16.mxu0 %v7356
    %11020 = vmatpush1.bf16.msra.mxu0 %v7355
    %11021 = vmatprep.subr.bf16.mxu0 %v7360
    %11022 = vmatpush1.bf16.msra.mxu0 %v7359
    %11023 = vmatprep.subr.bf16.mxu0 %v7364
    %11024 = vmatpush1.bf16.msra.mxu0 %v7363
    %11025 = vmatprep.subr.bf16.mxu0 %v7368
    %11026 = vmatpush1.bf16.msra.mxu0 %v7367
    %11027 = vmatprep.subr.bf16.mxu0 %v7372
    %11028 = vmatpush1.bf16.msra.mxu0 %v7371
    %11029 = vmatprep.subr.bf16.mxu0 %v7376
    %11030 = vmatpush1.bf16.msra.mxu0 %v7375
    %11031 = vmatprep.subr.bf16.mxu0 %v7380
    %11032 = vmatpush1.bf16.msra.mxu0 %v7379
    %11033 = vmatprep.subr.bf16.mxu0 %v7384
    %11034 = vmatpush1.bf16.msra.mxu0 %v7383
    %11035 = vmatprep.subr.bf16.mxu0 %v7388
    %11036 = vmatpush1.bf16.msra.mxu0 %v7387
    %11037 = vmatprep.subr.bf16.mxu0 %v7392
    %11038 = vmatpush1.bf16.msra.mxu0 %v7391
    %11039 = vmatprep.subr.bf16.mxu0 %v7396
    %11040 = vmatpush1.bf16.msra.mxu0 %v7395
    %11041 = vmatprep.subr.bf16.mxu0 %v7400
    %11042 = vmatpush1.bf16.msra.mxu0 %v7399
    %11043 = vmatprep.subr.bf16.mxu0 %v7404
    %11044 = vmatpush1.bf16.msra.mxu0 %v7403
    %11045 = vmatprep.subr.bf16.mxu0 %v7408
    %11046 = vmatpush1.bf16.msra.mxu0 %v7407
    %11047 = vmatprep.mubr.bf16.mxu0 %v1788
    %11048 = vmatmul.mubr.bf16.gmra.mrb[0].mxu0 %v1774
    %v11049 = vpop.f32.mrb[0].mxu0
    %v11050 = vadd.f32 %v11009, %v11049
    %v11051 = vpop.f32.mrb[0].mxu0
    %v11052 = vadd.f32 %v11011, %v11051
    %v11053 = vpop.f32.mrb[0].mxu0
    %v11054 = vpop.f32.mrb[0].mxu0
    %11055 = vdwg.mxu0
    %11056 = vmatprep.subr.bf16.mxu0 %v7412
    %11057 = vmatpush1.bf16.msra.mxu0 %v7411
    %11058 = vmatprep.subr.bf16.mxu0 %v7416
    %11059 = vmatpush1.bf16.msra.mxu0 %v7415
    %11060 = vmatprep.subr.bf16.mxu0 %v7420
    %11061 = vmatpush1.bf16.msra.mxu0 %v7419
    %11062 = vmatprep.subr.bf16.mxu0 %v7424
    %11063 = vmatpush1.bf16.msra.mxu0 %v7423
    %11064 = vmatprep.subr.bf16.mxu0 %v7428
    %11065 = vmatpush1.bf16.msra.mxu0 %v7427
    %11066 = vmatprep.subr.bf16.mxu0 %v7432
    %11067 = vmatpush1.bf16.msra.mxu0 %v7431
    %11068 = vmatprep.subr.bf16.mxu0 %v7436
    %11069 = vmatpush1.bf16.msra.mxu0 %v7435
    %11070 = vmatprep.subr.bf16.mxu0 %v7440
    %11071 = vmatpush1.bf16.msra.mxu0 %v7439
    %11072 = vmatprep.subr.bf16.mxu0 %v7444
    %11073 = vmatpush1.bf16.msra.mxu0 %v7443
    %11074 = vmatprep.subr.bf16.mxu0 %v7448
    %11075 = vmatpush1.bf16.msra.mxu0 %v7447
    %11076 = vmatprep.subr.bf16.mxu0 %v7452
    %11077 = vmatpush1.bf16.msra.mxu0 %v7451
    %11078 = vmatprep.subr.bf16.mxu0 %v7456
    %11079 = vmatpush1.bf16.msra.mxu0 %v7455
    %11080 = vmatprep.subr.bf16.mxu0 %v7460
    %11081 = vmatpush1.bf16.msra.mxu0 %v7459
    %11082 = vmatprep.subr.bf16.mxu0 %v7464
    %11083 = vmatpush1.bf16.msra.mxu0 %v7463
    %11084 = vmatprep.subr.bf16.mxu0 %v7468
    %11085 = vmatpush1.bf16.msra.mxu0 %v7467
    %11086 = vmatprep.subr.bf16.mxu0 %v7472
    %11087 = vmatpush1.bf16.msra.mxu0 %v7471
    %11088 = vmatprep.mubr.bf16.mxu0 %v1792
    %11089 = vmatmul.mubr.bf16.gmra.mrb[0].mxu0 %v1790
    %v11090 = vpop.f32.mrb[0].mxu0
    %v11091 = vadd.f32 %v11050, %v11090
    %v11092 = vpop.f32.mrb[0].mxu0
    %v11093 = vadd.f32 %v11052, %v11092
    %v11094 = vpop.f32.mrb[0].mxu0
    %v11095 = vpop.f32.mrb[0].mxu0
    %11096 = vdwg.mxu0
    %11097 = vmatprep.subr.bf16.mxu0 %v7476
    %11098 = vmatpush1.bf16.msra.mxu0 %v7475
    %11099 = vmatprep.subr.bf16.mxu0 %v7480
    %11100 = vmatpush1.bf16.msra.mxu0 %v7479
    %11101 = vmatprep.subr.bf16.mxu0 %v7484
    %11102 = vmatpush1.bf16.msra.mxu0 %v7483
    %11103 = vmatprep.subr.bf16.mxu0 %v7488
    %11104 = vmatpush1.bf16.msra.mxu0 %v7487
    %11105 = vmatprep.subr.bf16.mxu0 %v7492
    %11106 = vmatpush1.bf16.msra.mxu0 %v7491
    %11107 = vmatprep.subr.bf16.mxu0 %v7496
    %11108 = vmatpush1.bf16.msra.mxu0 %v7495
    %11109 = vmatprep.subr.bf16.mxu0 %v7500
    %11110 = vmatpush1.bf16.msra.mxu0 %v7499
    %11111 = vmatprep.subr.bf16.mxu0 %v7504
    %11112 = vmatpush1.bf16.msra.mxu0 %v7503
    %11113 = vmatprep.subr.bf16.mxu0 %v7508
    %11114 = vmatpush1.bf16.msra.mxu0 %v7507
    %11115 = vmatprep.subr.bf16.mxu0 %v7512
    %11116 = vmatpush1.bf16.msra.mxu0 %v7511
    %11117 = vmatprep.subr.bf16.mxu0 %v7516
    %11118 = vmatpush1.bf16.msra.mxu0 %v7515
    %11119 = vmatprep.subr.bf16.mxu0 %v7520
    %11120 = vmatpush1.bf16.msra.mxu0 %v7519
    %11121 = vmatprep.subr.bf16.mxu0 %v7524
    %11122 = vmatpush1.bf16.msra.mxu0 %v7523
    %11123 = vmatprep.subr.bf16.mxu0 %v7528
    %11124 = vmatpush1.bf16.msra.mxu0 %v7527
    %11125 = vmatprep.subr.bf16.mxu0 %v7532
    %11126 = vmatpush1.bf16.msra.mxu0 %v7531
    %11127 = vmatprep.subr.bf16.mxu0 %v7536
    %11128 = vmatpush1.bf16.msra.mxu0 %v7535
    %11129 = vmatprep.mubr.bf16.mxu0 %v1830
    %11130 = vmatmul.mubr.bf16.gmra.mrb[0].mxu0 %v1816
    %v11131 = vpop.f32.mrb[0].mxu0
    %v11132 = vadd.f32 %v11091, %v11131
    %v11133 = vpop.f32.mrb[0].mxu0
    %v11134 = vadd.f32 %v11093, %v11133
    %v11135 = vpop.f32.mrb[0].mxu0
    %v11136 = vpop.f32.mrb[0].mxu0
    %11137 = vdwg.mxu0
    %11138 = vmatprep.subr.bf16.mxu0 %v7540
    %11139 = vmatpush1.bf16.msra.mxu0 %v7539
    %11140 = vmatprep.subr.bf16.mxu0 %v7544
    %11141 = vmatpush1.bf16.msra.mxu0 %v7543
    %11142 = vmatprep.subr.bf16.mxu0 %v7548
    %11143 = vmatpush1.bf16.msra.mxu0 %v7547
    %11144 = vmatprep.subr.bf16.mxu0 %v7552
    %11145 = vmatpush1.bf16.msra.mxu0 %v7551
    %11146 = vmatprep.subr.bf16.mxu0 %v7556
    %11147 = vmatpush1.bf16.msra.mxu0 %v7555
    %11148 = vmatprep.subr.bf16.mxu0 %v7560
    %11149 = vmatpush1.bf16.msra.mxu0 %v7559
    %11150 = vmatprep.subr.bf16.mxu0 %v7564
    %11151 = vmatpush1.bf16.msra.mxu0 %v7563
    %11152 = vmatprep.subr.bf16.mxu0 %v7568
    %11153 = vmatpush1.bf16.msra.mxu0 %v7567
    %11154 = vmatprep.subr.bf16.mxu0 %v7572
    %11155 = vmatpush1.bf16.msra.mxu0 %v7571
    %11156 = vmatprep.subr.bf16.mxu0 %v7576
    %11157 = vmatpush1.bf16.msra.mxu0 %v7575
    %11158 = vmatprep.subr.bf16.mxu0 %v7580
    %11159 = vmatpush1.bf16.msra.mxu0 %v7579
    %11160 = vmatprep.subr.bf16.mxu0 %v7584
    %11161 = vmatpush1.bf16.msra.mxu0 %v7583
    %11162 = vmatprep.subr.bf16.mxu0 %v7588
    %11163 = vmatpush1.bf16.msra.mxu0 %v7587
    %11164 = vmatprep.subr.bf16.mxu0 %v7592
    %11165 = vmatpush1.bf16.msra.mxu0 %v7591
    %11166 = vmatprep.subr.bf16.mxu0 %v7596
    %11167 = vmatpush1.bf16.msra.mxu0 %v7595
    %11168 = vmatprep.subr.bf16.mxu0 %v7600
    %11169 = vmatpush1.bf16.msra.mxu0 %v7599
    %11170 = vmatprep.mubr.bf16.mxu0 %v1840
    %11171 = vmatmul.mubr.bf16.gmra.mrb[0].mxu0 %v1838
    %v11172 = vpop.f32.mrb[0].mxu0
    %v11173 = vadd.f32 %v11132, %v11172
    %v11174 = vpop.f32.mrb[0].mxu0
    %v11175 = vadd.f32 %v11134, %v11174
    %v11176 = vpop.f32.mrb[0].mxu0
    %v11177 = vpop.f32.mrb[0].mxu0
    %11178 = vdwg.mxu0
    %11179 = vmatprep.subr.bf16.mxu0 %v7604
    %11180 = vmatpush1.bf16.msra.mxu0 %v7603
    %11181 = vmatprep.subr.bf16.mxu0 %v7608
    %11182 = vmatpush1.bf16.msra.mxu0 %v7607
    %11183 = vmatprep.subr.bf16.mxu0 %v7612
    %11184 = vmatpush1.bf16.msra.mxu0 %v7611
    %11185 = vmatprep.subr.bf16.mxu0 %v7616
    %11186 = vmatpush1.bf16.msra.mxu0 %v7615
    %11187 = vmatprep.subr.bf16.mxu0 %v7620
    %11188 = vmatpush1.bf16.msra.mxu0 %v7619
    %11189 = vmatprep.subr.bf16.mxu0 %v7624
    %11190 = vmatpush1.bf16.msra.mxu0 %v7623
    %11191 = vmatprep.subr.bf16.mxu0 %v7628
    %11192 = vmatpush1.bf16.msra.mxu0 %v7627
    %11193 = vmatprep.subr.bf16.mxu0 %v7632
    %11194 = vmatpush1.bf16.msra.mxu0 %v7631
    %11195 = vmatprep.subr.bf16.mxu0 %v7636
    %11196 = vmatpush1.bf16.msra.mxu0 %v7635
    %11197 = vmatprep.subr.bf16.mxu0 %v7640
    %11198 = vmatpush1.bf16.msra.mxu0 %v7639
    %11199 = vmatprep.subr.bf16.mxu0 %v7644
    %11200 = vmatpush1.bf16.msra.mxu0 %v7643
    %11201 = vmatprep.subr.bf16.mxu0 %v7648
    %11202 = vmatpush1.bf16.msra.mxu0 %v7647
    %11203 = vmatprep.subr.bf16.mxu0 %v7652
    %11204 = vmatpush1.bf16.msra.mxu0 %v7651
    %11205 = vmatprep.subr.bf16.mxu0 %v7656
    %11206 = vmatpush1.bf16.msra.mxu0 %v7655
    %11207 = vmatprep.subr.bf16.mxu0 %v7660
    %11208 = vmatpush1.bf16.msra.mxu0 %v7659
    %11209 = vmatprep.subr.bf16.mxu0 %v7664
    %11210 = vmatpush1.bf16.msra.mxu0 %v7663
    %11211 = vmatprep.mubr.bf16.mxu0 %v1837
    %11212 = vmatmul.mubr.bf16.gmra.mrb[0].mxu0 %v1823
    %v11213 = vpop.f32.mrb[0].mxu0
    %v11214 = vadd.f32 %v11173, %v11213
    %v11215 = vpop.f32.mrb[0].mxu0
    %v11216 = vadd.f32 %v11175, %v11215
    %v11217 = vpop.f32.mrb[0].mxu0
    %v11218 = vpop.f32.mrb[0].mxu0
    %11219 = vdwg.mxu0
    %11220 = vmatprep.subr.bf16.mxu0 %v7668
    %11221 = vmatpush1.bf16.msra.mxu0 %v7667
    %11222 = vmatprep.subr.bf16.mxu0 %v7672
    %11223 = vmatpush1.bf16.msra.mxu0 %v7671
    %11224 = vmatprep.subr.bf16.mxu0 %v7676
    %11225 = vmatpush1.bf16.msra.mxu0 %v7675
    %11226 = vmatprep.subr.bf16.mxu0 %v7680
    %11227 = vmatpush1.bf16.msra.mxu0 %v7679
    %11228 = vmatprep.subr.bf16.mxu0 %v7684
    %11229 = vmatpush1.bf16.msra.mxu0 %v7683
    %11230 = vmatprep.subr.bf16.mxu0 %v7688
    %11231 = vmatpush1.bf16.msra.mxu0 %v7687
    %11232 = vmatprep.subr.bf16.mxu0 %v7692
    %11233 = vmatpush1.bf16.msra.mxu0 %v7691
    %11234 = vmatprep.subr.bf16.mxu0 %v7696
    %11235 = vmatpush1.bf16.msra.mxu0 %v7695
    %11236 = vmatprep.subr.bf16.mxu0 %v7700
    %11237 = vmatpush1.bf16.msra.mxu0 %v7699
    %11238 = vmatprep.subr.bf16.mxu0 %v7704
    %11239 = vmatpush1.bf16.msra.mxu0 %v7703
    %11240 = vmatprep.subr.bf16.mxu0 %v7708
    %11241 = vmatpush1.bf16.msra.mxu0 %v7707
    %11242 = vmatprep.subr.bf16.mxu0 %v7712
    %11243 = vmatpush1.bf16.msra.mxu0 %v7711
    %11244 = vmatprep.subr.bf16.mxu0 %v7716
    %11245 = vmatpush1.bf16.msra.mxu0 %v7715
    %11246 = vmatprep.subr.bf16.mxu0 %v7720
    %11247 = vmatpush1.bf16.msra.mxu0 %v7719
    %11248 = vmatprep.subr.bf16.mxu0 %v7724
    %11249 = vmatpush1.bf16.msra.mxu0 %v7723
    %11250 = vmatprep.subr.bf16.mxu0 %v7728
    %11251 = vmatpush1.bf16.msra.mxu0 %v7727
    %11252 = vmatprep.mubr.bf16.mxu0 %v1841
    %11253 = vmatmul.mubr.bf16.gmra.mrb[0].mxu0 %v1839
    %v11254 = vpop.f32.mrb[0].mxu0
    %v11255 = vadd.f32 %v11214, %v11254
    %v11256 = vpop.f32.mrb[0].mxu0
    %v11257 = vadd.f32 %v11216, %v11256
    %v11258 = vpop.f32.mrb[0].mxu0
    %v11259 = vpop.f32.mrb[0].mxu0
    %11260 = vdwg.mxu0
    %11261 = vmatprep.subr.bf16.mxu0 %v7732
    %11262 = vmatpush1.bf16.msra.mxu0 %v7731
    %11263 = vmatprep.subr.bf16.mxu0 %v7736
    %11264 = vmatpush1.bf16.msra.mxu0 %v7735
    %11265 = vmatprep.subr.bf16.mxu0 %v7740
    %11266 = vmatpush1.bf16.msra.mxu0 %v7739
    %11267 = vmatprep.subr.bf16.mxu0 %v7744
    %11268 = vmatpush1.bf16.msra.mxu0 %v7743
    %11269 = vmatprep.subr.bf16.mxu0 %v7748
    %11270 = vmatpush1.bf16.msra.mxu0 %v7747
    %11271 = vmatprep.subr.bf16.mxu0 %v7752
    %11272 = vmatpush1.bf16.msra.mxu0 %v7751
    %11273 = vmatprep.subr.bf16.mxu0 %v7756
    %11274 = vmatpush1.bf16.msra.mxu0 %v7755
    %11275 = vmatprep.subr.bf16.mxu0 %v7760
    %11276 = vmatpush1.bf16.msra.mxu0 %v7759
    %11277 = vmatprep.subr.bf16.mxu0 %v7764
    %11278 = vmatpush1.bf16.msra.mxu0 %v7763
    %11279 = vmatprep.subr.bf16.mxu0 %v7768
    %11280 = vmatpush1.bf16.msra.mxu0 %v7767
    %11281 = vmatprep.subr.bf16.mxu0 %v7772
    %11282 = vmatpush1.bf16.msra.mxu0 %v7771
    %11283 = vmatprep.subr.bf16.mxu0 %v7776
    %11284 = vmatpush1.bf16.msra.mxu0 %v7775
    %11285 = vmatprep.subr.bf16.mxu0 %v7780
    %11286 = vmatpush1.bf16.msra.mxu0 %v7779
    %11287 = vmatprep.subr.bf16.mxu0 %v7784
    %11288 = vmatpush1.bf16.msra.mxu0 %v7783
    %11289 = vmatprep.subr.bf16.mxu0 %v7788
    %11290 = vmatpush1.bf16.msra.mxu0 %v7787
    %11291 = vmatprep.subr.bf16.mxu0 %v7792
    %11292 = vmatpush1.bf16.msra.mxu0 %v7791
    %11293 = vmatprep.mubr.bf16.mxu0 %v1879
    %11294 = vmatmul.mubr.bf16.gmra.mrb[0].mxu0 %v1865
    %v11295 = vpop.f32.mrb[0].mxu0
    %v11296 = vadd.f32 %v11255, %v11295
    %v11297 = vpop.f32.mrb[0].mxu0
    %v11298 = vadd.f32 %v11257, %v11297
    %v11299 = vpop.f32.mrb[0].mxu0
    %v11300 = vpop.f32.mrb[0].mxu0
    %11301 = vdwg.mxu0
    %11302 = vmatprep.subr.bf16.mxu0 %v7796
    %11303 = vmatpush1.bf16.msra.mxu0 %v7795
    %11304 = vmatprep.subr.bf16.mxu0 %v7800
    %11305 = vmatpush1.bf16.msra.mxu0 %v7799
    %11306 = vmatprep.subr.bf16.mxu0 %v7804
    %11307 = vmatpush1.bf16.msra.mxu0 %v7803
    %11308 = vmatprep.subr.bf16.mxu0 %v7808
    %11309 = vmatpush1.bf16.msra.mxu0 %v7807
    %11310 = vmatprep.subr.bf16.mxu0 %v7812
    %11311 = vmatpush1.bf16.msra.mxu0 %v7811
    %11312 = vmatprep.subr.bf16.mxu0 %v7816
    %11313 = vmatpush1.bf16.msra.mxu0 %v7815
    %11314 = vmatprep.subr.bf16.mxu0 %v7820
    %11315 = vmatpush1.bf16.msra.mxu0 %v7819
    %11316 = vmatprep.subr.bf16.mxu0 %v7824
    %11317 = vmatpush1.bf16.msra.mxu0 %v7823
    %11318 = vmatprep.subr.bf16.mxu0 %v7828
    %11319 = vmatpush1.bf16.msra.mxu0 %v7827
    %11320 = vmatprep.subr.bf16.mxu0 %v7832
    %11321 = vmatpush1.bf16.msra.mxu0 %v7831
    %11322 = vmatprep.subr.bf16.mxu0 %v7836
    %11323 = vmatpush1.bf16.msra.mxu0 %v7835
    %11324 = vmatprep.subr.bf16.mxu0 %v7840
    %11325 = vmatpush1.bf16.msra.mxu0 %v7839
    %11326 = vmatprep.subr.bf16.mxu0 %v7844
    %11327 = vmatpush1.bf16.msra.mxu0 %v7843
    %11328 = vmatprep.subr.bf16.mxu0 %v7848
    %11329 = vmatpush1.bf16.msra.mxu0 %v7847
    %11330 = vmatprep.subr.bf16.mxu0 %v7852
    %11331 = vmatpush1.bf16.msra.mxu0 %v7851
    %11332 = vmatprep.subr.bf16.mxu0 %v7856
    %11333 = vmatpush1.bf16.msra.mxu0 %v7855
    %11334 = vmatprep.mubr.bf16.mxu0 %v1889
    %11335 = vmatmul.mubr.bf16.gmra.mrb[0].mxu0 %v1887
    %v11336 = vpop.f32.mrb[0].mxu0
    %v11337 = vadd.f32 %v11296, %v11336
    %v11338 = vpop.f32.mrb[0].mxu0
    %v11339 = vadd.f32 %v11298, %v11338
    %v11340 = vpop.f32.mrb[0].mxu0
    %v11341 = vpop.f32.mrb[0].mxu0
    %11342 = vdwg.mxu0
    %11343 = vmatprep.subr.bf16.mxu0 %v7860
    %11344 = vmatpush1.bf16.msra.mxu0 %v7859
    %11345 = vmatprep.subr.bf16.mxu0 %v7864
    %11346 = vmatpush1.bf16.msra.mxu0 %v7863
    %11347 = vmatprep.subr.bf16.mxu0 %v7868
    %11348 = vmatpush1.bf16.msra.mxu0 %v7867
    %11349 = vmatprep.subr.bf16.mxu0 %v7872
    %11350 = vmatpush1.bf16.msra.mxu0 %v7871
    %11351 = vmatprep.subr.bf16.mxu0 %v7876
    %11352 = vmatpush1.bf16.msra.mxu0 %v7875
    %11353 = vmatprep.subr.bf16.mxu0 %v7880
    %11354 = vmatpush1.bf16.msra.mxu0 %v7879
    %11355 = vmatprep.subr.bf16.mxu0 %v7884
    %11356 = vmatpush1.bf16.msra.mxu0 %v7883
    %11357 = vmatprep.subr.bf16.mxu0 %v7888
    %11358 = vmatpush1.bf16.msra.mxu0 %v7887
    %11359 = vmatprep.subr.bf16.mxu0 %v7892
    %11360 = vmatpush1.bf16.msra.mxu0 %v7891
    %11361 = vmatprep.subr.bf16.mxu0 %v7896
    %11362 = vmatpush1.bf16.msra.mxu0 %v7895
    %11363 = vmatprep.subr.bf16.mxu0 %v7900
    %11364 = vmatpush1.bf16.msra.mxu0 %v7899
    %11365 = vmatprep.subr.bf16.mxu0 %v7904
    %11366 = vmatpush1.bf16.msra.mxu0 %v7903
    %11367 = vmatprep.subr.bf16.mxu0 %v7908
    %11368 = vmatpush1.bf16.msra.mxu0 %v7907
    %11369 = vmatprep.subr.bf16.mxu0 %v7912
    %11370 = vmatpush1.bf16.msra.mxu0 %v7911
    %11371 = vmatprep.subr.bf16.mxu0 %v7916
    %11372 = vmatpush1.bf16.msra.mxu0 %v7915
    %11373 = vmatprep.subr.bf16.mxu0 %v7920
    %11374 = vmatpush1.bf16.msra.mxu0 %v7919
    %11375 = vmatprep.mubr.bf16.mxu0 %v1886
    %11376 = vmatmul.mubr.bf16.gmra.mrb[0].mxu0 %v1872
    %v11377 = vpop.f32.mrb[0].mxu0
    %v11378 = vadd.f32 %v11337, %v11377
    %v11379 = vpop.f32.mrb[0].mxu0
    %v11380 = vadd.f32 %v11339, %v11379
    %v11381 = vpop.f32.mrb[0].mxu0
    %v11382 = vpop.f32.mrb[0].mxu0
    %11383 = vdwg.mxu0
    %11384 = vmatprep.subr.bf16.mxu0 %v7924
    %11385 = vmatpush1.bf16.msra.mxu0 %v7923
    %11386 = vmatprep.subr.bf16.mxu0 %v7928
    %11387 = vmatpush1.bf16.msra.mxu0 %v7927
    %11388 = vmatprep.subr.bf16.mxu0 %v7932
    %11389 = vmatpush1.bf16.msra.mxu0 %v7931
    %11390 = vmatprep.subr.bf16.mxu0 %v7936
    %11391 = vmatpush1.bf16.msra.mxu0 %v7935
    %11392 = vmatprep.subr.bf16.mxu0 %v7940
    %11393 = vmatpush1.bf16.msra.mxu0 %v7939
    %11394 = vmatprep.subr.bf16.mxu0 %v7944
    %11395 = vmatpush1.bf16.msra.mxu0 %v7943
    %11396 = vmatprep.subr.bf16.mxu0 %v7948
    %11397 = vmatpush1.bf16.msra.mxu0 %v7947
    %11398 = vmatprep.subr.bf16.mxu0 %v7952
    %11399 = vmatpush1.bf16.msra.mxu0 %v7951
    %11400 = vmatprep.subr.bf16.mxu0 0
    %11401 = vmatpush1.bf16.msra.mxu0 0
    %11402 = vmatprep.subr.bf16.mxu0 0
    %11403 = vmatpush1.bf16.msra.mxu0 0
    %11404 = vmatprep.subr.bf16.mxu0 0
    %11405 = vmatpush1.bf16.msra.mxu0 0
    %11406 = vmatprep.subr.bf16.mxu0 0
    %11407 = vmatpush1.bf16.msra.mxu0 0
    %11408 = vmatprep.subr.bf16.mxu0 0
    %11409 = vmatpush1.bf16.msra.mxu0 0
    %11410 = vmatprep.subr.bf16.mxu0 0
    %11411 = vmatpush1.bf16.msra.mxu0 0
    %11412 = vmatprep.subr.bf16.mxu0 0
    %11413 = vmatpush1.bf16.msra.mxu0 0
    %11414 = vmatprep.subr.bf16.mxu0 0
    %11415 = vmatpush1.bf16.msra.mxu0 0
    %11416 = vmatprep.mubr.bf16.mxu0 0
    %11417 = vmatmul.mubr.bf16.gmra.mrb[0].mxu0 %v1888
    %v11418 = vpop.f32.mrb[0].mxu0
    %v11419 = vadd.f32 %v11378, %v11418
    %v11420 = vpop.f32.mrb[0].mxu0
    %v11421 = vadd.f32 %v11380, %v11420
    %v11422 = vpop.f32.mrb[0].mxu0
    %v11423 = vpop.f32.mrb[0].mxu0
    %11424 = vdwg.mxu0
    %v11425 = vld [vmem:[%s3] sm:$0xff]
    %v11426 = vld [vmem:[%s3 + $0x8] sm:$0xff]
    %v11427 = vld [vmem:[%s3 + $0x10] sm:$0xff]
    %v11428 = vld [vmem:[%s3 + $0x18] sm:$0xff]
    %v11429 = vld [vmem:[%s3 + $0x20] sm:$0xff]
    %v11430 = vld [vmem:[%s3 + $0x28] sm:$0xff]
    %v11431 = vld [vmem:[%s3 + $0x30] sm:$0xff]
    %v11432 = vld [vmem:[%s3 + $0x38] sm:$0xff]
    %v11433 = vld [vmem:[%s3 + $0x40] sm:$0xff]
    %v11434 = vld [vmem:[%s3 + $0x48] sm:$0xff]
    %v11435 = vld [vmem:[%s3 + $0x50] sm:$0xff]
    %v11436 = vld [vmem:[%s3 + $0x58] sm:$0xff]
    %v11437 = vld [vmem:[%s3 + $0x60] sm:$0xff]
    %v11438 = vld [vmem:[%s3 + $0x68] sm:$0xff]
    %v11439 = vld [vmem:[%s3 + $0x70] sm:$0xff]
    %v11440 = vld [vmem:[%s3 + $0x78] sm:$0xff]
    %v11441 = vld [vmem:[%s3 + $0x80] sm:$0xff]
    %v11442 = vld [vmem:[%s3 + $0x88] sm:$0xff]
    %v11443 = vld [vmem:[%s3 + $0x90] sm:$0xff]
    %v11444 = vld [vmem:[%s3 + $0x98] sm:$0xff]
    %v11445 = vld [vmem:[%s3 + $0xa0] sm:$0xff]
    %v11446 = vld [vmem:[%s3 + $0xa8] sm:$0xff]
    %v11447 = vld [vmem:[%s3 + $0xb0] sm:$0xff]
    %v11448 = vld [vmem:[%s3 + $0xb8] sm:$0xff]
    %v11449 = vld [vmem:[%s3 + $0xc0] sm:$0xff]
    %v11450 = vld [vmem:[%s3 + $0xc8] sm:$0xff]
    %v11451 = vld [vmem:[%s3 + $0xd0] sm:$0xff]
    %v11452 = vld [vmem:[%s3 + $0xd8] sm:$0xff]
    %v11453 = vld [vmem:[%s3 + $0xe0] sm:$0xff]
    %v11454 = vld [vmem:[%s3 + $0xe8] sm:$0xff]
    %v11455 = vld [vmem:[%s3 + $0xf0] sm:$0xff]
    %v11456 = vld [vmem:[%s3 + $0xf8] sm:$0xff]
    %v11457 = vld [vmem:[%s3 + $0x100] sm:$0xff]
    %v11458 = vld [vmem:[%s3 + $0x108] sm:$0xff]
    %v11459 = vld [vmem:[%s3 + $0x110] sm:$0xff]
    %v11460 = vld [vmem:[%s3 + $0x118] sm:$0xff]
    %v11461 = vld [vmem:[%s3 + $0x120] sm:$0xff]
    %v11462 = vld [vmem:[%s3 + $0x128] sm:$0xff]
    %v11463 = vld [vmem:[%s3 + $0x130] sm:$0xff]
    %v11464 = vld [vmem:[%s3 + $0x138] sm:$0xff]
    %v11465 = vld [vmem:[%s3 + $0x140] sm:$0xff]
    %v11466 = vld [vmem:[%s3 + $0x148] sm:$0xff]
    %v11467 = vld [vmem:[%s3 + $0x150] sm:$0xff]
    %v11468 = vld [vmem:[%s3 + $0x158] sm:$0xff]
    %v11469 = vld [vmem:[%s3 + $0x160] sm:$0xff]
    %v11470 = vld [vmem:[%s3 + $0x168] sm:$0xff]
    %v11471 = vld [vmem:[%s3 + $0x170] sm:$0xff]
    %v11472 = vld [vmem:[%s3 + $0x178] sm:$0xff]
    %v11473 = vld [vmem:[%s3 + $0x180] sm:$0xff]
    %v11474 = vld [vmem:[%s3 + $0x188] sm:$0xff]
    %v11475 = vld [vmem:[%s3 + $0x190] sm:$0xff]
    %v11476 = vld [vmem:[%s3 + $0x198] sm:$0xff]
    %v11477 = vld [vmem:[%s3 + $0x1a0] sm:$0xff]
    %v11478 = vld [vmem:[%s3 + $0x1a8] sm:$0xff]
    %v11479 = vld [vmem:[%s3 + $0x1b0] sm:$0xff]
    %v11480 = vld [vmem:[%s3 + $0x1b8] sm:$0xff]
    %v11481 = vld [vmem:[%s3 + $0x1c0] sm:$0xff]
    %v11482 = vld [vmem:[%s3 + $0x1c8] sm:$0xff]
    %v11483 = vld [vmem:[%s3 + $0x1d0] sm:$0xff]
    %v11484 = vld [vmem:[%s3 + $0x1d8] sm:$0xff]
    %v11485 = vld [vmem:[%s3 + $0x1e0] sm:$0xff]
    %v11486 = vld [vmem:[%s3 + $0x1e8] sm:$0xff]
    %v11487 = vld [vmem:[%s3 + $0x1f0] sm:$0xff]
    %v11488 = vld [vmem:[%s3 + $0x1f8] sm:$0xff]
    %v11489 = vld [vmem:[#allocation7] sm:$0x1]
    %v11491 = vlaneseq
    %v11492 = vshrl.u32 %v11491, 7
    %v11493 = vsub.s32 0, %v11492
    %v11494 = vrot.slane %v11489, %v11493
    %11496 = vmatprep.subr.mxu0 0.0
    %11497 = vmatpush1.msra.mxu0 %v11425
    %11498 = vmatprep.subr.mxu0 0.0
    %11499 = vmatpush1.msra.mxu0 %v11426
    %11500 = vmatprep.subr.mxu0 0.0
    %11501 = vmatpush1.msra.mxu0 %v11427
    %11502 = vmatprep.subr.mxu0 0.0
    %11503 = vmatpush1.msra.mxu0 %v11428
    %11504 = vmatprep.subr.mxu0 0.0
    %11505 = vmatpush1.msra.mxu0 %v11429
    %11506 = vmatprep.subr.mxu0 0.0
    %11507 = vmatpush1.msra.mxu0 %v11430
    %11508 = vmatprep.subr.mxu0 0.0
    %11509 = vmatpush1.msra.mxu0 %v11431
    %11510 = vmatprep.subr.mxu0 0.0
    %11511 = vmatpush1.msra.mxu0 %v11432
    %11512 = vmatprep.subr.mxu0 0.0
    %11513 = vmatpush1.msra.mxu0 %v11433
    %11514 = vmatprep.subr.mxu0 0.0
    %11515 = vmatpush1.msra.mxu0 %v11434
    %11516 = vmatprep.subr.mxu0 0.0
    %11517 = vmatpush1.msra.mxu0 %v11435
    %11518 = vmatprep.subr.mxu0 0.0
    %11519 = vmatpush1.msra.mxu0 %v11436
    %11520 = vmatprep.subr.mxu0 0.0
    %11521 = vmatpush1.msra.mxu0 %v11437
    %11522 = vmatprep.subr.mxu0 0.0
    %11523 = vmatpush1.msra.mxu0 %v11438
    %11524 = vmatprep.subr.mxu0 0.0
    %11525 = vmatpush1.msra.mxu0 %v11439
    %11526 = vmatprep.subr.mxu0 0.0
    %11527 = vmatpush1.msra.mxu0 %v11440
    %11528 = vmatprep.subr.mxu0 0.0
    %11529 = vmatpush1.msra.mxu0 %v11441
    %11530 = vmatprep.subr.mxu0 0.0
    %11531 = vmatpush1.msra.mxu0 %v11442
    %11532 = vmatprep.subr.mxu0 0.0
    %11533 = vmatpush1.msra.mxu0 %v11443
    %11534 = vmatprep.subr.mxu0 0.0
    %11535 = vmatpush1.msra.mxu0 %v11444
    %11536 = vmatprep.subr.mxu0 0.0
    %11537 = vmatpush1.msra.mxu0 %v11445
    %11538 = vmatprep.subr.mxu0 0.0
    %11539 = vmatpush1.msra.mxu0 %v11446
    %11540 = vmatprep.subr.mxu0 0.0
    %11541 = vmatpush1.msra.mxu0 %v11447
    %11542 = vmatprep.subr.mxu0 0.0
    %11543 = vmatpush1.msra.mxu0 %v11448
    %11544 = vmatprep.subr.mxu0 0.0
    %11545 = vmatpush1.msra.mxu0 %v11449
    %11546 = vmatprep.subr.mxu0 0.0
    %11547 = vmatpush1.msra.mxu0 %v11450
    %11548 = vmatprep.subr.mxu0 0.0
    %11549 = vmatpush1.msra.mxu0 %v11451
    %11550 = vmatprep.subr.mxu0 0.0
    %11551 = vmatpush1.msra.mxu0 %v11452
    %11552 = vmatprep.subr.mxu0 0.0
    %11553 = vmatpush1.msra.mxu0 %v11453
    %11554 = vmatprep.subr.mxu0 0.0
    %11555 = vmatpush1.msra.mxu0 %v11454
    %11556 = vmatprep.subr.mxu0 0.0
    %11557 = vmatpush1.msra.mxu0 %v11455
    %11558 = vmatprep.subr.mxu0 0.0
    %11559 = vmatpush1.msra.mxu0 %v11456
    %11560 = vmatprep.mubr.f32.mxu0 %v10437
    %11561 = vmatmul.mubr.f32.gmra.mrb[0].mxu0 %v10435
    %v11562 = vpop.f32.mrb[0].mxu0
    %v11563 = vadd.f32 %v11494, %v11562
    %v11564 = vpop.f32.mrb[0].mxu0
    %11565 = vdwg.mxu0
    %11566 = vmatprep.subr.mxu0 0.0
    %11567 = vmatpush1.msra.mxu0 %v11457
    %11568 = vmatprep.subr.mxu0 0.0
    %11569 = vmatpush1.msra.mxu0 %v11458
    %11570 = vmatprep.subr.mxu0 0.0
    %11571 = vmatpush1.msra.mxu0 %v11459
    %11572 = vmatprep.subr.mxu0 0.0
    %11573 = vmatpush1.msra.mxu0 %v11460
    %11574 = vmatprep.subr.mxu0 0.0
    %11575 = vmatpush1.msra.mxu0 %v11461
    %11576 = vmatprep.subr.mxu0 0.0
    %11577 = vmatpush1.msra.mxu0 %v11462
    %11578 = vmatprep.subr.mxu0 0.0
    %11579 = vmatpush1.msra.mxu0 %v11463
    %11580 = vmatprep.subr.mxu0 0.0
    %11581 = vmatpush1.msra.mxu0 %v11464
    %11582 = vmatprep.subr.mxu0 0.0
    %11583 = vmatpush1.msra.mxu0 %v11465
    %11584 = vmatprep.subr.mxu0 0.0
    %11585 = vmatpush1.msra.mxu0 %v11466
    %11586 = vmatprep.subr.mxu0 0.0
    %11587 = vmatpush1.msra.mxu0 %v11467
    %11588 = vmatprep.subr.mxu0 0.0
    %11589 = vmatpush1.msra.mxu0 %v11468
    %11590 = vmatprep.subr.mxu0 0.0
    %11591 = vmatpush1.msra.mxu0 %v11469
    %11592 = vmatprep.subr.mxu0 0.0
    %11593 = vmatpush1.msra.mxu0 %v11470
    %11594 = vmatprep.subr.mxu0 0.0
    %11595 = vmatpush1.msra.mxu0 %v11471
    %11596 = vmatprep.subr.mxu0 0.0
    %11597 = vmatpush1.msra.mxu0 %v11472
    %11598 = vmatprep.subr.mxu0 0.0
    %11599 = vmatpush1.msra.mxu0 %v11473
    %11600 = vmatprep.subr.mxu0 0.0
    %11601 = vmatpush1.msra.mxu0 %v11474
    %11602 = vmatprep.subr.mxu0 0.0
    %11603 = vmatpush1.msra.mxu0 %v11475
    %11604 = vmatprep.subr.mxu0 0.0
    %11605 = vmatpush1.msra.mxu0 %v11476
    %11606 = vmatprep.subr.mxu0 0.0
    %11607 = vmatpush1.msra.mxu0 %v11477
    %11608 = vmatprep.subr.mxu0 0.0
    %11609 = vmatpush1.msra.mxu0 %v11478
    %11610 = vmatprep.subr.mxu0 0.0
    %11611 = vmatpush1.msra.mxu0 %v11479
    %11612 = vmatprep.subr.mxu0 0.0
    %11613 = vmatpush1.msra.mxu0 %v11480
    %11614 = vmatprep.subr.mxu0 0.0
    %11615 = vmatpush1.msra.mxu0 %v11481
    %11616 = vmatprep.subr.mxu0 0.0
    %11617 = vmatpush1.msra.mxu0 %v11482
    %11618 = vmatprep.subr.mxu0 0.0
    %11619 = vmatpush1.msra.mxu0 %v11483
    %11620 = vmatprep.subr.mxu0 0.0
    %11621 = vmatpush1.msra.mxu0 %v11484
    %11622 = vmatprep.subr.mxu0 0.0
    %11623 = vmatpush1.msra.mxu0 %v11485
    %11624 = vmatprep.subr.mxu0 0.0
    %11625 = vmatpush1.msra.mxu0 %v11486
    %11626 = vmatprep.subr.mxu0 0.0
    %11627 = vmatpush1.msra.mxu0 %v11487
    %11628 = vmatprep.subr.mxu0 0.0
    %11629 = vmatpush1.msra.mxu0 %v11488
    %11630 = vmatprep.mubr.f32.mxu0 %v11421
    %11631 = vmatmul.mubr.f32.gmra.mrb[0].mxu0 %v11419
    %v11632 = vpop.f32.mrb[0].mxu0
    %v11633 = vadd.f32 %v11563, %v11632
    %v11634 = vpop.f32.mrb[0].mxu0
    %11635 = vdwg.mxu0
    %vm11636 = vcmask 58368
    %11637 = vst.msk [vmem:[#allocation8] sm:$0x3] %vm11636, %v11633
    // Predicated region
    $region34: #{cnn_model_forward.1} parent=1 // pred_check
      _
    $region35: #{cnn_model_forward.1} parent=1 // pred_check_branch
      %11639 = sbr.rel (0) target = $region37
    $region36: #{cnn_model_forward.1} parent=1 // pred_region
      %s11641 = ssub.s32 32, 32
      %11642 = vsyncadd [#allocation4], %s11641
      %s11644 = sshll.u32 [#allocation8], 4
      %s11645 = int_to_ptr.vmem [resolvable:$true] %s11644
      %11647 = dma.vmem_to_hbm [thread:$0]  %s11645, 32, %s5, [#allocation4]
    $region37: #{cnn_model_forward.1} parent=1 // pred_fallthru
      _
    // Predicated region
    $region38: #{cnn_model_forward.1} parent=1 // pred_check
      _
    $region39: #{cnn_model_forward.1} parent=1 // pred_check_branch
      %11649 = sbr.rel (0) target = $region41
    $region40: #{cnn_model_forward.1} parent=1 // pred_region
      %11650 = dma.done [#allocation4], 32
    $region41: #{cnn_model_forward.1} parent=1 // pred_fallthru
      _
    %11651 = vsyncpa [#allocation3], 1
    %11652 = vsyncpa [#allocation6], 1
    %11653 = vsyncpa [#allocation4], 1

</llo_original>
